<compile_context>
chip_gen: v7x
topology: tpu7x:2x2x1
jax: 0.10.0
libtpu: 0.0.40
codegen_flags: <defaults>
</compile_context>

<pallas_src>
import numpy as np
import jax
import jax.numpy as jnp
from jax import lax
from jax.experimental import pallas as pl
from jax.experimental.pallas import tpu as pltpu


# ------------------------- parameter packing (host) -------------------------

def _pack_conv(w_oihw, b, ih, iw, stride):
    """Pack one conv layer into banded-matmul operands.

    Returns (R, V, b_row, oh, ow) with
      R:     (KH, OH, IH)           0/1 row selection per kernel-row tap
      V:     (KH, IW*Cin, OW*Cout)  banded weights per tap
      b_row: (1, OW*Cout)           bias broadcast over output columns
    such that   out(OH, OW*Cout) = sum_i R[i] @ A @ V[i] + b_row
    for a per-sample activation A laid out as (IH, IW*Cin), channels fastest.
    """
    w_oihw = np.asarray(w_oihw, np.float32)
    b = np.asarray(b, np.float32)
    cout, cin, kh, kw = w_oihw.shape
    oh = (ih - kh) // stride + 1
    ow = (iw - kw) // stride + 1
    w = np.transpose(w_oihw, (2, 3, 1, 0))            # (kh, kw, cin, cout)

    r = np.zeros((kh, oh, ih), np.float32)
    for i in range(kh):
        for o in range(oh):
            r[i, o, stride * o + i] = 1.0

    v = np.zeros((kh, iw * cin, ow * cout), np.float32)
    for i in range(kh):
        for o in range(ow):
            for j in range(kw):
                col = stride * o + j
                v[i, col * cin:(col + 1) * cin, o * cout:(o + 1) * cout] = w[i, j]

    b_row = np.tile(b, ow).reshape(1, ow * cout)
    return r, v, b_row, oh, ow


def pack_params(params, spatial_hw, latent_dim):
    """One-time repack of PyTorch-layout parameters into kernel operands."""
    h, w = spatial_hw
    r1, v1, b1, oh1, ow1 = _pack_conv(params["conv1_w"], params["conv1_b"], h, w, 4)
    r2, v2, b2, oh2, ow2 = _pack_conv(params["conv2_w"], params["conv2_b"], oh1, ow1, 2)
    r3, v3, b3, oh3, ow3 = _pack_conv(params["conv3_w"], params["conv3_b"], oh2, ow2, 1)
    c3 = int(params["conv3_w"].shape[0])
    # Linear head == an (OH3 x OW3) "conv" with a 1x1 output.  Reshaping its
    # weight (latent, C*H*W in NCHW-flatten order) to OIHW reuses _pack_conv
    # and bakes the flatten order in, removing the per-call transpose.
    wl = np.asarray(params["linear_w"], np.float32).reshape(latent_dim, c3, oh3, ow3)
    rh, vh, bh, _, _ = _pack_conv(wl, params["linear_b"], oh3, ow3, 1)
    packed = dict(
        r1=r1, v1=v1, b1=b1,
        r2=r2, v2=v2, b2=b2,
        r3=r3, v3=v3, b3=b3,
        rh=rh, vh=vh, bh=bh,
        g=np.asarray(params["ln_g"], np.float32).reshape(1, latent_dim),
        beta=np.asarray(params["ln_b"], np.float32).reshape(1, latent_dim),
    )
    return {k: jnp.asarray(v) for k, v in packed.items()}


# ------------------------------ Pallas kernel --------------------------------

def _encoder_kernel(x_ref, r1_ref, v1_ref, b1_ref, r2_ref, v2_ref, b2_ref,
                    r3_ref, v3_ref, b3_ref, rh_ref, vh_ref, bh_ref,
                    g_ref, beta_ref, o_ref):
    """Whole encoder for one sample; all activations stay on-chip."""

    def band_layer(a, r_ref, v_ref, b_ref, relu):
        acc = None
        for t in range(r_ref.shape[0]):            # static, unrolled tap loop
            rows = jnp.dot(r_ref[t], a, preferred_element_type=jnp.float32)
            part = jnp.dot(rows, v_ref[t], preferred_element_type=jnp.float32)
            acc = part if acc is None else acc + part
        acc = acc + b_ref[...]
        return jnp.maximum(acc, 0.0) if relu else acc

    x = x_ref[0]                                          # (H, W*Cin)
    a1 = band_layer(x,  r1_ref, v1_ref, b1_ref, relu=True)   # (OH1, OW1*32)
    a2 = band_layer(a1, r2_ref, v2_ref, b2_ref, relu=True)   # (OH2, OW2*64)
    a3 = band_layer(a2, r3_ref, v3_ref, b3_ref, relu=True)   # (OH3, OW3*32)
    y  = band_layer(a3, rh_ref, vh_ref, bh_ref, relu=False)  # (1, latent)

    mean = jnp.mean(y, axis=-1, keepdims=True)
    var = jnp.mean(jnp.square(y - mean), axis=-1, keepdims=True)
    y = (y - mean) * lax.rsqrt(var + 1e-5)
    o_ref[0] = (y * g_ref[...] + beta_ref[...]).astype(o_ref.dtype)


_PACK_ORDER = ("r1", "v1", "b1", "r2", "v2", "b2", "r3", "v3", "b3",
               "rh", "vh", "bh", "g", "beta")


def cnn_encoder_forward(obs, packed):
    """obs: (N, C, H, W) float32 (PyTorch NCHW); packed: from pack_params."""
    n, c, h, w = obs.shape
    latent = packed["vh"].shape[-1]
    # Single small layout op left in XLA: NCHW -> per-sample (H, W*C) matrices.
    x = jnp.transpose(obs, (0, 2, 3, 1)).reshape(n, h, w * c)

    consts = [packed[k] for k in _PACK_ORDER]

    def _const_spec(a):
        nd = a.ndim
        return pl.BlockSpec(a.shape, lambda b, _nd=nd: (0,) * _nd)

    in_specs = [pl.BlockSpec((1, h, w * c), lambda b: (b, 0, 0))]
    in_specs += [_const_spec(a) for a in consts]

    out = pl.pallas_call(
        _encoder_kernel,
        out_shape=jax.ShapeDtypeStruct((n, 1, latent), jnp.float32),
        grid=(n,),
        in_specs=in_specs,
        out_specs=pl.BlockSpec((1, 1, latent), lambda b: (b, 0, 0)),
        compiler_params=pltpu.CompilerParams(
            dimension_semantics=("parallel",),     # batch across TCs on v7x
        ),
    )(x, *consts)
    return out.reshape(n, latent)


# ----------------------------- reference model -------------------------------

def reference_forward(obs, params):
    h = obs
    for w, b, stride in [
        (params["conv1_w"], params["conv1_b"], 4),
        (params["conv2_w"], params["conv2_b"], 2),
        (params["conv3_w"], params["conv3_b"], 1),
    ]:
        h = lax.conv_general_dilated(
            h, w, (stride, stride), "VALID",
            dimension_numbers=("NCHW", "OIHW", "NCHW"))
        h = jnp.maximum(h + b[None, :, None, None], 0.0)
    h = h.reshape(h.shape[0], -1)
    y = h @ params["linear_w"].T + params["linear_b"]
    mean = y.mean(-1, keepdims=True)
    var = ((y - mean) ** 2).mean(-1, keepdims=True)
    return (y - mean) / jnp.sqrt(var + 1e-5) * params["ln_g"] + params["ln_b"]


# --------------------------------- main ---------------------------------------

if __name__ == "__main__":
    # obs_shape = (4, 44, 44), latent_dim = 32, batch = 2
    C_IN, H, W = 4, 44, 44
    LATENT = 32
    BATCH = 2

    # Derived spatial sizes (same arithmetic as the PyTorch __init__ probe).
    oh1, ow1 = (H - 8) // 4 + 1, (W - 8) // 4 + 1       # 10, 10
    oh2, ow2 = (oh1 - 4) // 2 + 1, (ow1 - 4) // 2 + 1   # 4, 4
    oh3, ow3 = (oh2 - 3) // 1 + 1, (ow2 - 3) // 1 + 1   # 2, 2
    n_flatten = 32 * oh3 * ow3                          # 128

    key = jax.random.PRNGKey(0)
    keys = jax.random.split(key, 9)
    params = {
        "conv1_w": 0.05 * jax.random.normal(keys[0], (32, C_IN, 8, 8), jnp.float32),
        "conv1_b": 0.05 * jax.random.normal(keys[1], (32,), jnp.float32),
        "conv2_w": 0.05 * jax.random.normal(keys[2], (64, 32, 4, 4), jnp.float32),
        "conv2_b": 0.05 * jax.random.normal(keys[3], (64,), jnp.float32),
        "conv3_w": 0.05 * jax.random.normal(keys[4], (32, 64, 3, 3), jnp.float32),
        "conv3_b": 0.05 * jax.random.normal(keys[5], (32,), jnp.float32),
        "linear_w": 0.05 * jax.random.normal(keys[6], (LATENT, n_flatten), jnp.float32),
        "linear_b": 0.05 * jax.random.normal(keys[7], (LATENT,), jnp.float32),
        "ln_g": jnp.ones((LATENT,), jnp.float32),    # nn.LayerNorm default init
        "ln_b": jnp.zeros((LATENT,), jnp.float32),
    }
    obs = jax.random.normal(keys[8], (BATCH, C_IN, H, W), jnp.float32)

    packed = pack_params(params, (H, W), LATENT)     # one-time host-side repack
    fwd = jax.jit(cnn_encoder_forward)
    out = jax.block_until_ready(fwd(obs, packed))
    assert out.shape == (BATCH, LATENT), out.shape

    ref = reference_forward(obs, params)
    assert jnp.allclose(out, ref, atol=1e-4, rtol=1e-4), (
        float(jnp.max(jnp.abs(out - ref))))

    print("KERNEL_OK")
</pallas_src>

<mosaic_0001>
module attributes {stable_mosaic.version = 11 : i64} {
  func.func @_encoder_kernel(%arg0: i32, %arg1: memref<1x44x176xf32, #tpu.memory_space<vmem>>, %arg2: memref<8x10x44xf32, #tpu.memory_space<vmem>>, %arg3: memref<8x176x320xf32, #tpu.memory_space<vmem>>, %arg4: memref<1x320xf32, #tpu.memory_space<vmem>>, %arg5: memref<4x4x10xf32, #tpu.memory_space<vmem>>, %arg6: memref<4x320x256xf32, #tpu.memory_space<vmem>>, %arg7: memref<1x256xf32, #tpu.memory_space<vmem>>, %arg8: memref<3x2x4xf32, #tpu.memory_space<vmem>>, %arg9: memref<3x256x64xf32, #tpu.memory_space<vmem>>, %arg10: memref<1x64xf32, #tpu.memory_space<vmem>>, %arg11: memref<2x1x2xf32, #tpu.memory_space<vmem>>, %arg12: memref<2x64x32xf32, #tpu.memory_space<vmem>>, %arg13: memref<1x32xf32, #tpu.memory_space<vmem>>, %arg14: memref<1x32xf32, #tpu.memory_space<vmem>>, %arg15: memref<1x32xf32, #tpu.memory_space<vmem>>, %arg16: memref<1x1x32xf32, #tpu.memory_space<vmem>>) attributes {dimension_semantics = [#tpu.dimension_semantics<parallel>], iteration_bounds = array<i64: 2>, scalar_prefetch = 0 : i64, scratch_operands = 0 : i64, tpu.core_type = #tpu.core_type<tc>, window_params = [{transform_indices = @transform_0, window_bounds = array<i64: 1, 44, 176>}, {pipeline_mode = #tpu.pipeline_mode<synchronous>, transform_indices = @transform_1, window_bounds = array<i64: 8, 10, 44>}, {pipeline_mode = #tpu.pipeline_mode<synchronous>, transform_indices = @transform_2, window_bounds = array<i64: 8, 176, 320>}, {pipeline_mode = #tpu.pipeline_mode<synchronous>, transform_indices = @transform_3, window_bounds = array<i64: 1, 320>}, {pipeline_mode = #tpu.pipeline_mode<synchronous>, transform_indices = @transform_4, window_bounds = array<i64: 4, 4, 10>}, {pipeline_mode = #tpu.pipeline_mode<synchronous>, transform_indices = @transform_5, window_bounds = array<i64: 4, 320, 256>}, {pipeline_mode = #tpu.pipeline_mode<synchronous>, transform_indices = @transform_6, window_bounds = array<i64: 1, 256>}, {pipeline_mode = #tpu.pipeline_mode<synchronous>, transform_indices = @transform_7, window_bounds = array<i64: 3, 2, 4>}, {pipeline_mode = #tpu.pipeline_mode<synchronous>, transform_indices = @transform_8, window_bounds = array<i64: 3, 256, 64>}, {pipeline_mode = #tpu.pipeline_mode<synchronous>, transform_indices = @transform_9, window_bounds = array<i64: 1, 64>}, {pipeline_mode = #tpu.pipeline_mode<synchronous>, transform_indices = @transform_10, window_bounds = array<i64: 2, 1, 2>}, {pipeline_mode = #tpu.pipeline_mode<synchronous>, transform_indices = @transform_11, window_bounds = array<i64: 2, 64, 32>}, {pipeline_mode = #tpu.pipeline_mode<synchronous>, transform_indices = @transform_12, window_bounds = array<i64: 1, 32>}, {pipeline_mode = #tpu.pipeline_mode<synchronous>, transform_indices = @transform_13, window_bounds = array<i64: 1, 32>}, {pipeline_mode = #tpu.pipeline_mode<synchronous>, transform_indices = @transform_14, window_bounds = array<i64: 1, 32>}, {transform_indices = @transform_15, window_bounds = array<i64: 1, 1, 32>}]} {
    %c0 = arith.constant 0 : index
    %c0_0 = arith.constant 0 : index
    %c0_1 = arith.constant 0 : index
    %0 = vector.load %arg1[%c0, %c0_0, %c0_1] : memref<1x44x176xf32, #tpu.memory_space<vmem>>, vector<1x44x176xf32>
    %1 = vector.shape_cast %0 : vector<1x44x176xf32> to vector<44x176xf32>
    %c0_2 = arith.constant 0 : index
    %c0_3 = arith.constant 0 : index
    %c0_4 = arith.constant 0 : index
    %2 = vector.load %arg2[%c0_2, %c0_3, %c0_4] : memref<8x10x44xf32, #tpu.memory_space<vmem>>, vector<1x10x44xf32>
    %3 = vector.shape_cast %2 : vector<1x10x44xf32> to vector<10x44xf32>
    %cst = arith.constant dense<0.000000e+00> : vector<10x176xf32>
    %4 = tpu.matmul %3, %1, %cst {dimension_numbers = #tpu.dot_dimension_numbers<[1], [0], [0], [1], [0, 0, 1, 1], [], []>} : vector<10x44xf32>, vector<44x176xf32>, vector<10x176xf32> -> vector<10x176xf32>
    %c0_5 = arith.constant 0 : index
    %c0_6 = arith.constant 0 : index
    %c0_7 = arith.constant 0 : index
    %5 = vector.load %arg3[%c0_5, %c0_6, %c0_7] : memref<8x176x320xf32, #tpu.memory_space<vmem>>, vector<1x176x320xf32>
    %6 = vector.shape_cast %5 : vector<1x176x320xf32> to vector<176x320xf32>
    %cst_8 = arith.constant dense<0.000000e+00> : vector<10x320xf32>
    %7 = tpu.matmul %4, %6, %cst_8 {dimension_numbers = #tpu.dot_dimension_numbers<[1], [0], [0], [1], [0, 0, 1, 1], [], []>} : vector<10x176xf32>, vector<176x320xf32>, vector<10x320xf32> -> vector<10x320xf32>
    %c1 = arith.constant 1 : index
    %c0_9 = arith.constant 0 : index
    %c0_10 = arith.constant 0 : index
    %8 = vector.load %arg2[%c1, %c0_9, %c0_10] : memref<8x10x44xf32, #tpu.memory_space<vmem>>, vector<1x10x44xf32>
    %9 = vector.shape_cast %8 : vector<1x10x44xf32> to vector<10x44xf32>
    %cst_11 = arith.constant dense<0.000000e+00> : vector<10x176xf32>
    %10 = tpu.matmul %9, %1, %cst_11 {dimension_numbers = #tpu.dot_dimension_numbers<[1], [0], [0], [1], [0, 0, 1, 1], [], []>} : vector<10x44xf32>, vector<44x176xf32>, vector<10x176xf32> -> vector<10x176xf32>
    %c1_12 = arith.constant 1 : index
    %c0_13 = arith.constant 0 : index
    %c0_14 = arith.constant 0 : index
    %11 = vector.load %arg3[%c1_12, %c0_13, %c0_14] : memref<8x176x320xf32, #tpu.memory_space<vmem>>, vector<1x176x320xf32>
    %12 = vector.shape_cast %11 : vector<1x176x320xf32> to vector<176x320xf32>
    %cst_15 = arith.constant dense<0.000000e+00> : vector<10x320xf32>
    %13 = tpu.matmul %10, %12, %cst_15 {dimension_numbers = #tpu.dot_dimension_numbers<[1], [0], [0], [1], [0, 0, 1, 1], [], []>} : vector<10x176xf32>, vector<176x320xf32>, vector<10x320xf32> -> vector<10x320xf32>
    %14 = arith.addf %7, %13 : vector<10x320xf32>
    %c2 = arith.constant 2 : index
    %c0_16 = arith.constant 0 : index
    %c0_17 = arith.constant 0 : index
    %15 = vector.load %arg2[%c2, %c0_16, %c0_17] : memref<8x10x44xf32, #tpu.memory_space<vmem>>, vector<1x10x44xf32>
    %16 = vector.shape_cast %15 : vector<1x10x44xf32> to vector<10x44xf32>
    %cst_18 = arith.constant dense<0.000000e+00> : vector<10x176xf32>
    %17 = tpu.matmul %16, %1, %cst_18 {dimension_numbers = #tpu.dot_dimension_numbers<[1], [0], [0], [1], [0, 0, 1, 1], [], []>} : vector<10x44xf32>, vector<44x176xf32>, vector<10x176xf32> -> vector<10x176xf32>
    %c2_19 = arith.constant 2 : index
    %c0_20 = arith.constant 0 : index
    %c0_21 = arith.constant 0 : index
    %18 = vector.load %arg3[%c2_19, %c0_20, %c0_21] : memref<8x176x320xf32, #tpu.memory_space<vmem>>, vector<1x176x320xf32>
    %19 = vector.shape_cast %18 : vector<1x176x320xf32> to vector<176x320xf32>
    %cst_22 = arith.constant dense<0.000000e+00> : vector<10x320xf32>
    %20 = tpu.matmul %17, %19, %cst_22 {dimension_numbers = #tpu.dot_dimension_numbers<[1], [0], [0], [1], [0, 0, 1, 1], [], []>} : vector<10x176xf32>, vector<176x320xf32>, vector<10x320xf32> -> vector<10x320xf32>
    %21 = arith.addf %14, %20 : vector<10x320xf32>
    %c3 = arith.constant 3 : index
    %c0_23 = arith.constant 0 : index
    %c0_24 = arith.constant 0 : index
    %22 = vector.load %arg2[%c3, %c0_23, %c0_24] : memref<8x10x44xf32, #tpu.memory_space<vmem>>, vector<1x10x44xf32>
    %23 = vector.shape_cast %22 : vector<1x10x44xf32> to vector<10x44xf32>
    %cst_25 = arith.constant dense<0.000000e+00> : vector<10x176xf32>
    %24 = tpu.matmul %23, %1, %cst_25 {dimension_numbers = #tpu.dot_dimension_numbers<[1], [0], [0], [1], [0, 0, 1, 1], [], []>} : vector<10x44xf32>, vector<44x176xf32>, vector<10x176xf32> -> vector<10x176xf32>
    %c3_26 = arith.constant 3 : index
    %c0_27 = arith.constant 0 : index
    %c0_28 = arith.constant 0 : index
    %25 = vector.load %arg3[%c3_26, %c0_27, %c0_28] : memref<8x176x320xf32, #tpu.memory_space<vmem>>, vector<1x176x320xf32>
    %26 = vector.shape_cast %25 : vector<1x176x320xf32> to vector<176x320xf32>
    %cst_29 = arith.constant dense<0.000000e+00> : vector<10x320xf32>
    %27 = tpu.matmul %24, %26, %cst_29 {dimension_numbers = #tpu.dot_dimension_numbers<[1], [0], [0], [1], [0, 0, 1, 1], [], []>} : vector<10x176xf32>, vector<176x320xf32>, vector<10x320xf32> -> vector<10x320xf32>
    %28 = arith.addf %21, %27 : vector<10x320xf32>
    %c4 = arith.constant 4 : index
    %c0_30 = arith.constant 0 : index
    %c0_31 = arith.constant 0 : index
    %29 = vector.load %arg2[%c4, %c0_30, %c0_31] : memref<8x10x44xf32, #tpu.memory_space<vmem>>, vector<1x10x44xf32>
    %30 = vector.shape_cast %29 : vector<1x10x44xf32> to vector<10x44xf32>
    %cst_32 = arith.constant dense<0.000000e+00> : vector<10x176xf32>
    %31 = tpu.matmul %30, %1, %cst_32 {dimension_numbers = #tpu.dot_dimension_numbers<[1], [0], [0], [1], [0, 0, 1, 1], [], []>} : vector<10x44xf32>, vector<44x176xf32>, vector<10x176xf32> -> vector<10x176xf32>
    %c4_33 = arith.constant 4 : index
    %c0_34 = arith.constant 0 : index
    %c0_35 = arith.constant 0 : index
    %32 = vector.load %arg3[%c4_33, %c0_34, %c0_35] : memref<8x176x320xf32, #tpu.memory_space<vmem>>, vector<1x176x320xf32>
    %33 = vector.shape_cast %32 : vector<1x176x320xf32> to vector<176x320xf32>
    %cst_36 = arith.constant dense<0.000000e+00> : vector<10x320xf32>
    %34 = tpu.matmul %31, %33, %cst_36 {dimension_numbers = #tpu.dot_dimension_numbers<[1], [0], [0], [1], [0, 0, 1, 1], [], []>} : vector<10x176xf32>, vector<176x320xf32>, vector<10x320xf32> -> vector<10x320xf32>
    %35 = arith.addf %28, %34 : vector<10x320xf32>
    %c5 = arith.constant 5 : index
    %c0_37 = arith.constant 0 : index
    %c0_38 = arith.constant 0 : index
    %36 = vector.load %arg2[%c5, %c0_37, %c0_38] : memref<8x10x44xf32, #tpu.memory_space<vmem>>, vector<1x10x44xf32>
    %37 = vector.shape_cast %36 : vector<1x10x44xf32> to vector<10x44xf32>
    %cst_39 = arith.constant dense<0.000000e+00> : vector<10x176xf32>
    %38 = tpu.matmul %37, %1, %cst_39 {dimension_numbers = #tpu.dot_dimension_numbers<[1], [0], [0], [1], [0, 0, 1, 1], [], []>} : vector<10x44xf32>, vector<44x176xf32>, vector<10x176xf32> -> vector<10x176xf32>
    %c5_40 = arith.constant 5 : index
    %c0_41 = arith.constant 0 : index
    %c0_42 = arith.constant 0 : index
    %39 = vector.load %arg3[%c5_40, %c0_41, %c0_42] : memref<8x176x320xf32, #tpu.memory_space<vmem>>, vector<1x176x320xf32>
    %40 = vector.shape_cast %39 : vector<1x176x320xf32> to vector<176x320xf32>
    %cst_43 = arith.constant dense<0.000000e+00> : vector<10x320xf32>
    %41 = tpu.matmul %38, %40, %cst_43 {dimension_numbers = #tpu.dot_dimension_numbers<[1], [0], [0], [1], [0, 0, 1, 1], [], []>} : vector<10x176xf32>, vector<176x320xf32>, vector<10x320xf32> -> vector<10x320xf32>
    %42 = arith.addf %35, %41 : vector<10x320xf32>
    %c6 = arith.constant 6 : index
    %c0_44 = arith.constant 0 : index
    %c0_45 = arith.constant 0 : index
    %43 = vector.load %arg2[%c6, %c0_44, %c0_45] : memref<8x10x44xf32, #tpu.memory_space<vmem>>, vector<1x10x44xf32>
    %44 = vector.shape_cast %43 : vector<1x10x44xf32> to vector<10x44xf32>
    %cst_46 = arith.constant dense<0.000000e+00> : vector<10x176xf32>
    %45 = tpu.matmul %44, %1, %cst_46 {dimension_numbers = #tpu.dot_dimension_numbers<[1], [0], [0], [1], [0, 0, 1, 1], [], []>} : vector<10x44xf32>, vector<44x176xf32>, vector<10x176xf32> -> vector<10x176xf32>
    %c6_47 = arith.constant 6 : index
    %c0_48 = arith.constant 0 : index
    %c0_49 = arith.constant 0 : index
    %46 = vector.load %arg3[%c6_47, %c0_48, %c0_49] : memref<8x176x320xf32, #tpu.memory_space<vmem>>, vector<1x176x320xf32>
    %47 = vector.shape_cast %46 : vector<1x176x320xf32> to vector<176x320xf32>
    %cst_50 = arith.constant dense<0.000000e+00> : vector<10x320xf32>
    %48 = tpu.matmul %45, %47, %cst_50 {dimension_numbers = #tpu.dot_dimension_numbers<[1], [0], [0], [1], [0, 0, 1, 1], [], []>} : vector<10x176xf32>, vector<176x320xf32>, vector<10x320xf32> -> vector<10x320xf32>
    %49 = arith.addf %42, %48 : vector<10x320xf32>
    %c7 = arith.constant 7 : index
    %c0_51 = arith.constant 0 : index
    %c0_52 = arith.constant 0 : index
    %50 = vector.load %arg2[%c7, %c0_51, %c0_52] : memref<8x10x44xf32, #tpu.memory_space<vmem>>, vector<1x10x44xf32>
    %51 = vector.shape_cast %50 : vector<1x10x44xf32> to vector<10x44xf32>
    %cst_53 = arith.constant dense<0.000000e+00> : vector<10x176xf32>
    %52 = tpu.matmul %51, %1, %cst_53 {dimension_numbers = #tpu.dot_dimension_numbers<[1], [0], [0], [1], [0, 0, 1, 1], [], []>} : vector<10x44xf32>, vector<44x176xf32>, vector<10x176xf32> -> vector<10x176xf32>
    %c7_54 = arith.constant 7 : index
    %c0_55 = arith.constant 0 : index
    %c0_56 = arith.constant 0 : index
    %53 = vector.load %arg3[%c7_54, %c0_55, %c0_56] : memref<8x176x320xf32, #tpu.memory_space<vmem>>, vector<1x176x320xf32>
    %54 = vector.shape_cast %53 : vector<1x176x320xf32> to vector<176x320xf32>
    %cst_57 = arith.constant dense<0.000000e+00> : vector<10x320xf32>
    %55 = tpu.matmul %52, %54, %cst_57 {dimension_numbers = #tpu.dot_dimension_numbers<[1], [0], [0], [1], [0, 0, 1, 1], [], []>} : vector<10x176xf32>, vector<176x320xf32>, vector<10x320xf32> -> vector<10x320xf32>
    %56 = arith.addf %49, %55 : vector<10x320xf32>
    %c0_58 = arith.constant 0 : index
    %c0_59 = arith.constant 0 : index
    %57 = vector.load %arg4[%c0_58, %c0_59] : memref<1x320xf32, #tpu.memory_space<vmem>>, vector<1x320xf32>
    %58 = vector.broadcast %57 : vector<1x320xf32> to vector<10x320xf32>
    %59 = arith.addf %56, %58 : vector<10x320xf32>
    %cst_60 = arith.constant 0.000000e+00 : f32
    %60 = vector.broadcast %cst_60 : f32 to vector<10x320xf32>
    %61 = arith.maximumf %59, %60 : vector<10x320xf32>
    %c0_61 = arith.constant 0 : index
    %c0_62 = arith.constant 0 : index
    %c0_63 = arith.constant 0 : index
    %62 = vector.load %arg5[%c0_61, %c0_62, %c0_63] : memref<4x4x10xf32, #tpu.memory_space<vmem>>, vector<1x4x10xf32>
    %63 = vector.shape_cast %62 : vector<1x4x10xf32> to vector<4x10xf32>
    %cst_64 = arith.constant dense<0.000000e+00> : vector<4x320xf32>
    %64 = tpu.matmul %63, %61, %cst_64 {dimension_numbers = #tpu.dot_dimension_numbers<[1], [0], [0], [1], [0, 0, 1, 1], [], []>} : vector<4x10xf32>, vector<10x320xf32>, vector<4x320xf32> -> vector<4x320xf32>
    %c0_65 = arith.constant 0 : index
    %c0_66 = arith.constant 0 : index
    %c0_67 = arith.constant 0 : index
    %65 = vector.load %arg6[%c0_65, %c0_66, %c0_67] : memref<4x320x256xf32, #tpu.memory_space<vmem>>, vector<1x320x256xf32>
    %66 = vector.shape_cast %65 : vector<1x320x256xf32> to vector<320x256xf32>
    %cst_68 = arith.constant dense<0.000000e+00> : vector<4x256xf32>
    %67 = tpu.matmul %64, %66, %cst_68 {dimension_numbers = #tpu.dot_dimension_numbers<[1], [0], [0], [1], [0, 0, 1, 1], [], []>} : vector<4x320xf32>, vector<320x256xf32>, vector<4x256xf32> -> vector<4x256xf32>
    %c1_69 = arith.constant 1 : index
    %c0_70 = arith.constant 0 : index
    %c0_71 = arith.constant 0 : index
    %68 = vector.load %arg5[%c1_69, %c0_70, %c0_71] : memref<4x4x10xf32, #tpu.memory_space<vmem>>, vector<1x4x10xf32>
    %69 = vector.shape_cast %68 : vector<1x4x10xf32> to vector<4x10xf32>
    %cst_72 = arith.constant dense<0.000000e+00> : vector<4x320xf32>
    %70 = tpu.matmul %69, %61, %cst_72 {dimension_numbers = #tpu.dot_dimension_numbers<[1], [0], [0], [1], [0, 0, 1, 1], [], []>} : vector<4x10xf32>, vector<10x320xf32>, vector<4x320xf32> -> vector<4x320xf32>
    %c1_73 = arith.constant 1 : index
    %c0_74 = arith.constant 0 : index
    %c0_75 = arith.constant 0 : index
    %71 = vector.load %arg6[%c1_73, %c0_74, %c0_75] : memref<4x320x256xf32, #tpu.memory_space<vmem>>, vector<1x320x256xf32>
    %72 = vector.shape_cast %71 : vector<1x320x256xf32> to vector<320x256xf32>
    %cst_76 = arith.constant dense<0.000000e+00> : vector<4x256xf32>
    %73 = tpu.matmul %70, %72, %cst_76 {dimension_numbers = #tpu.dot_dimension_numbers<[1], [0], [0], [1], [0, 0, 1, 1], [], []>} : vector<4x320xf32>, vector<320x256xf32>, vector<4x256xf32> -> vector<4x256xf32>
    %74 = arith.addf %67, %73 : vector<4x256xf32>
    %c2_77 = arith.constant 2 : index
    %c0_78 = arith.constant 0 : index
    %c0_79 = arith.constant 0 : index
    %75 = vector.load %arg5[%c2_77, %c0_78, %c0_79] : memref<4x4x10xf32, #tpu.memory_space<vmem>>, vector<1x4x10xf32>
    %76 = vector.shape_cast %75 : vector<1x4x10xf32> to vector<4x10xf32>
    %cst_80 = arith.constant dense<0.000000e+00> : vector<4x320xf32>
    %77 = tpu.matmul %76, %61, %cst_80 {dimension_numbers = #tpu.dot_dimension_numbers<[1], [0], [0], [1], [0, 0, 1, 1], [], []>} : vector<4x10xf32>, vector<10x320xf32>, vector<4x320xf32> -> vector<4x320xf32>
    %c2_81 = arith.constant 2 : index
    %c0_82 = arith.constant 0 : index
    %c0_83 = arith.constant 0 : index
    %78 = vector.load %arg6[%c2_81, %c0_82, %c0_83] : memref<4x320x256xf32, #tpu.memory_space<vmem>>, vector<1x320x256xf32>
    %79 = vector.shape_cast %78 : vector<1x320x256xf32> to vector<320x256xf32>
    %cst_84 = arith.constant dense<0.000000e+00> : vector<4x256xf32>
    %80 = tpu.matmul %77, %79, %cst_84 {dimension_numbers = #tpu.dot_dimension_numbers<[1], [0], [0], [1], [0, 0, 1, 1], [], []>} : vector<4x320xf32>, vector<320x256xf32>, vector<4x256xf32> -> vector<4x256xf32>
    %81 = arith.addf %74, %80 : vector<4x256xf32>
    %c3_85 = arith.constant 3 : index
    %c0_86 = arith.constant 0 : index
    %c0_87 = arith.constant 0 : index
    %82 = vector.load %arg5[%c3_85, %c0_86, %c0_87] : memref<4x4x10xf32, #tpu.memory_space<vmem>>, vector<1x4x10xf32>
    %83 = vector.shape_cast %82 : vector<1x4x10xf32> to vector<4x10xf32>
    %cst_88 = arith.constant dense<0.000000e+00> : vector<4x320xf32>
    %84 = tpu.matmul %83, %61, %cst_88 {dimension_numbers = #tpu.dot_dimension_numbers<[1], [0], [0], [1], [0, 0, 1, 1], [], []>} : vector<4x10xf32>, vector<10x320xf32>, vector<4x320xf32> -> vector<4x320xf32>
    %c3_89 = arith.constant 3 : index
    %c0_90 = arith.constant 0 : index
    %c0_91 = arith.constant 0 : index
    %85 = vector.load %arg6[%c3_89, %c0_90, %c0_91] : memref<4x320x256xf32, #tpu.memory_space<vmem>>, vector<1x320x256xf32>
    %86 = vector.shape_cast %85 : vector<1x320x256xf32> to vector<320x256xf32>
    %cst_92 = arith.constant dense<0.000000e+00> : vector<4x256xf32>
    %87 = tpu.matmul %84, %86, %cst_92 {dimension_numbers = #tpu.dot_dimension_numbers<[1], [0], [0], [1], [0, 0, 1, 1], [], []>} : vector<4x320xf32>, vector<320x256xf32>, vector<4x256xf32> -> vector<4x256xf32>
    %88 = arith.addf %81, %87 : vector<4x256xf32>
    %c0_93 = arith.constant 0 : index
    %c0_94 = arith.constant 0 : index
    %89 = vector.load %arg7[%c0_93, %c0_94] : memref<1x256xf32, #tpu.memory_space<vmem>>, vector<1x256xf32>
    %90 = vector.broadcast %89 : vector<1x256xf32> to vector<4x256xf32>
    %91 = arith.addf %88, %90 : vector<4x256xf32>
    %cst_95 = arith.constant 0.000000e+00 : f32
    %92 = vector.broadcast %cst_95 : f32 to vector<4x256xf32>
    %93 = arith.maximumf %91, %92 : vector<4x256xf32>
    %c0_96 = arith.constant 0 : index
    %c0_97 = arith.constant 0 : index
    %c0_98 = arith.constant 0 : index
    %94 = vector.load %arg8[%c0_96, %c0_97, %c0_98] : memref<3x2x4xf32, #tpu.memory_space<vmem>>, vector<1x2x4xf32>
    %95 = vector.shape_cast %94 : vector<1x2x4xf32> to vector<2x4xf32>
    %cst_99 = arith.constant dense<0.000000e+00> : vector<2x256xf32>
    %96 = tpu.matmul %95, %93, %cst_99 {dimension_numbers = #tpu.dot_dimension_numbers<[1], [0], [0], [1], [0, 0, 1, 1], [], []>} : vector<2x4xf32>, vector<4x256xf32>, vector<2x256xf32> -> vector<2x256xf32>
    %c0_100 = arith.constant 0 : index
    %c0_101 = arith.constant 0 : index
    %c0_102 = arith.constant 0 : index
    %97 = vector.load %arg9[%c0_100, %c0_101, %c0_102] : memref<3x256x64xf32, #tpu.memory_space<vmem>>, vector<1x256x64xf32>
    %98 = vector.shape_cast %97 : vector<1x256x64xf32> to vector<256x64xf32>
    %cst_103 = arith.constant dense<0.000000e+00> : vector<2x64xf32>
    %99 = tpu.matmul %96, %98, %cst_103 {dimension_numbers = #tpu.dot_dimension_numbers<[1], [0], [0], [1], [0, 0, 1, 1], [], []>} : vector<2x256xf32>, vector<256x64xf32>, vector<2x64xf32> -> vector<2x64xf32>
    %c1_104 = arith.constant 1 : index
    %c0_105 = arith.constant 0 : index
    %c0_106 = arith.constant 0 : index
    %100 = vector.load %arg8[%c1_104, %c0_105, %c0_106] : memref<3x2x4xf32, #tpu.memory_space<vmem>>, vector<1x2x4xf32>
    %101 = vector.shape_cast %100 : vector<1x2x4xf32> to vector<2x4xf32>
    %cst_107 = arith.constant dense<0.000000e+00> : vector<2x256xf32>
    %102 = tpu.matmul %101, %93, %cst_107 {dimension_numbers = #tpu.dot_dimension_numbers<[1], [0], [0], [1], [0, 0, 1, 1], [], []>} : vector<2x4xf32>, vector<4x256xf32>, vector<2x256xf32> -> vector<2x256xf32>
    %c1_108 = arith.constant 1 : index
    %c0_109 = arith.constant 0 : index
    %c0_110 = arith.constant 0 : index
    %103 = vector.load %arg9[%c1_108, %c0_109, %c0_110] : memref<3x256x64xf32, #tpu.memory_space<vmem>>, vector<1x256x64xf32>
    %104 = vector.shape_cast %103 : vector<1x256x64xf32> to vector<256x64xf32>
    %cst_111 = arith.constant dense<0.000000e+00> : vector<2x64xf32>
    %105 = tpu.matmul %102, %104, %cst_111 {dimension_numbers = #tpu.dot_dimension_numbers<[1], [0], [0], [1], [0, 0, 1, 1], [], []>} : vector<2x256xf32>, vector<256x64xf32>, vector<2x64xf32> -> vector<2x64xf32>
    %106 = arith.addf %99, %105 : vector<2x64xf32>
    %c2_112 = arith.constant 2 : index
    %c0_113 = arith.constant 0 : index
    %c0_114 = arith.constant 0 : index
    %107 = vector.load %arg8[%c2_112, %c0_113, %c0_114] : memref<3x2x4xf32, #tpu.memory_space<vmem>>, vector<1x2x4xf32>
    %108 = vector.shape_cast %107 : vector<1x2x4xf32> to vector<2x4xf32>
    %cst_115 = arith.constant dense<0.000000e+00> : vector<2x256xf32>
    %109 = tpu.matmul %108, %93, %cst_115 {dimension_numbers = #tpu.dot_dimension_numbers<[1], [0], [0], [1], [0, 0, 1, 1], [], []>} : vector<2x4xf32>, vector<4x256xf32>, vector<2x256xf32> -> vector<2x256xf32>
    %c2_116 = arith.constant 2 : index
    %c0_117 = arith.constant 0 : index
    %c0_118 = arith.constant 0 : index
    %110 = vector.load %arg9[%c2_116, %c0_117, %c0_118] : memref<3x256x64xf32, #tpu.memory_space<vmem>>, vector<1x256x64xf32>
    %111 = vector.shape_cast %110 : vector<1x256x64xf32> to vector<256x64xf32>
    %cst_119 = arith.constant dense<0.000000e+00> : vector<2x64xf32>
    %112 = tpu.matmul %109, %111, %cst_119 {dimension_numbers = #tpu.dot_dimension_numbers<[1], [0], [0], [1], [0, 0, 1, 1], [], []>} : vector<2x256xf32>, vector<256x64xf32>, vector<2x64xf32> -> vector<2x64xf32>
    %113 = arith.addf %106, %112 : vector<2x64xf32>
    %c0_120 = arith.constant 0 : index
    %c0_121 = arith.constant 0 : index
    %114 = vector.load %arg10[%c0_120, %c0_121] : memref<1x64xf32, #tpu.memory_space<vmem>>, vector<1x64xf32>
    %115 = vector.broadcast %114 : vector<1x64xf32> to vector<2x64xf32>
    %116 = arith.addf %113, %115 : vector<2x64xf32>
    %cst_122 = arith.constant 0.000000e+00 : f32
    %117 = vector.broadcast %cst_122 : f32 to vector<2x64xf32>
    %118 = arith.maximumf %116, %117 : vector<2x64xf32>
    %c0_123 = arith.constant 0 : index
    %c0_124 = arith.constant 0 : index
    %c0_125 = arith.constant 0 : index
    %119 = vector.load %arg11[%c0_123, %c0_124, %c0_125] : memref<2x1x2xf32, #tpu.memory_space<vmem>>, vector<1x1x2xf32>
    %120 = vector.shape_cast %119 : vector<1x1x2xf32> to vector<1x2xf32>
    %cst_126 = arith.constant dense<0.000000e+00> : vector<1x64xf32>
    %121 = tpu.matmul %120, %118, %cst_126 {dimension_numbers = #tpu.dot_dimension_numbers<[1], [0], [0], [1], [0, 0, 1, 1], [], []>} : vector<1x2xf32>, vector<2x64xf32>, vector<1x64xf32> -> vector<1x64xf32>
    %c0_127 = arith.constant 0 : index
    %c0_128 = arith.constant 0 : index
    %c0_129 = arith.constant 0 : index
    %122 = vector.load %arg12[%c0_127, %c0_128, %c0_129] : memref<2x64x32xf32, #tpu.memory_space<vmem>>, vector<1x64x32xf32>
    %123 = vector.shape_cast %122 : vector<1x64x32xf32> to vector<64x32xf32>
    %cst_130 = arith.constant dense<0.000000e+00> : vector<1x32xf32>
    %124 = tpu.matmul %121, %123, %cst_130 {dimension_numbers = #tpu.dot_dimension_numbers<[1], [0], [0], [1], [0, 0, 1, 1], [], []>} : vector<1x64xf32>, vector<64x32xf32>, vector<1x32xf32> -> vector<1x32xf32>
    %c1_131 = arith.constant 1 : index
    %c0_132 = arith.constant 0 : index
    %c0_133 = arith.constant 0 : index
    %125 = vector.load %arg11[%c1_131, %c0_132, %c0_133] : memref<2x1x2xf32, #tpu.memory_space<vmem>>, vector<1x1x2xf32>
    %126 = vector.shape_cast %125 : vector<1x1x2xf32> to vector<1x2xf32>
    %cst_134 = arith.constant dense<0.000000e+00> : vector<1x64xf32>
    %127 = tpu.matmul %126, %118, %cst_134 {dimension_numbers = #tpu.dot_dimension_numbers<[1], [0], [0], [1], [0, 0, 1, 1], [], []>} : vector<1x2xf32>, vector<2x64xf32>, vector<1x64xf32> -> vector<1x64xf32>
    %c1_135 = arith.constant 1 : index
    %c0_136 = arith.constant 0 : index
    %c0_137 = arith.constant 0 : index
    %128 = vector.load %arg12[%c1_135, %c0_136, %c0_137] : memref<2x64x32xf32, #tpu.memory_space<vmem>>, vector<1x64x32xf32>
    %129 = vector.shape_cast %128 : vector<1x64x32xf32> to vector<64x32xf32>
    %cst_138 = arith.constant dense<0.000000e+00> : vector<1x32xf32>
    %130 = tpu.matmul %127, %129, %cst_138 {dimension_numbers = #tpu.dot_dimension_numbers<[1], [0], [0], [1], [0, 0, 1, 1], [], []>} : vector<1x64xf32>, vector<64x32xf32>, vector<1x32xf32> -> vector<1x32xf32>
    %131 = arith.addf %124, %130 : vector<1x32xf32>
    %c0_139 = arith.constant 0 : index
    %c0_140 = arith.constant 0 : index
    %132 = vector.load %arg13[%c0_139, %c0_140] : memref<1x32xf32, #tpu.memory_space<vmem>>, vector<1x32xf32>
    %133 = arith.addf %131, %132 : vector<1x32xf32>
    %cst_141 = arith.constant dense<0.000000e+00> : vector<1xf32>
    %134 = vector.multi_reduction <add>, %133, %cst_141 [1] : vector<1x32xf32> to vector<1xf32>
    %135 = vector.shape_cast %134 : vector<1xf32> to vector<1x1xf32>
    %cst_142 = arith.constant 3.200000e+01 : f32
    %136 = vector.broadcast %cst_142 : f32 to vector<1x1xf32>
    %137 = arith.divf %135, %136 : vector<1x1xf32>
    %138 = vector.broadcast %137 : vector<1x1xf32> to vector<1x32xf32>
    %139 = arith.subf %133, %138 : vector<1x32xf32>
    %140 = arith.mulf %139, %139 : vector<1x32xf32>
    %cst_143 = arith.constant dense<0.000000e+00> : vector<1xf32>
    %141 = vector.multi_reduction <add>, %140, %cst_143 [1] : vector<1x32xf32> to vector<1xf32>
    %142 = vector.shape_cast %141 : vector<1xf32> to vector<1x1xf32>
    %cst_144 = arith.constant 3.200000e+01 : f32
    %143 = vector.broadcast %cst_144 : f32 to vector<1x1xf32>
    %144 = arith.divf %142, %143 : vector<1x1xf32>
    %145 = vector.broadcast %137 : vector<1x1xf32> to vector<1x32xf32>
    %146 = arith.subf %133, %145 : vector<1x32xf32>
    %cst_145 = arith.constant 9.99999974E-6 : f32
    %147 = vector.broadcast %cst_145 : f32 to vector<1x1xf32>
    %148 = arith.addf %144, %147 : vector<1x1xf32>
    %149 = math.rsqrt %148 : vector<1x1xf32>
    %150 = vector.broadcast %149 : vector<1x1xf32> to vector<1x32xf32>
    %151 = arith.mulf %146, %150 : vector<1x32xf32>
    %c0_146 = arith.constant 0 : index
    %c0_147 = arith.constant 0 : index
    %152 = vector.load %arg14[%c0_146, %c0_147] : memref<1x32xf32, #tpu.memory_space<vmem>>, vector<1x32xf32>
    %153 = arith.mulf %151, %152 : vector<1x32xf32>
    %c0_148 = arith.constant 0 : index
    %c0_149 = arith.constant 0 : index
    %154 = vector.load %arg15[%c0_148, %c0_149] : memref<1x32xf32, #tpu.memory_space<vmem>>, vector<1x32xf32>
    %155 = arith.addf %153, %154 : vector<1x32xf32>
    %c0_150 = arith.constant 0 : index
    %c0_151 = arith.constant 0 : index
    %c0_152 = arith.constant 0 : index
    %156 = vector.load %arg16[%c0_150, %c0_151, %c0_152] : memref<1x1x32xf32, #tpu.memory_space<vmem>>, vector<1x1x32xf32>
    %157 = vector.shape_cast %156 : vector<1x1x32xf32> to vector<1x32xf32>
    %158 = vector.shape_cast %155 : vector<1x32xf32> to vector<1x1x32xf32>
    tpu.vector_store %arg16[%c0_150, %c0_151, %c0_152], %158 {strides = array<i32>} : memref<1x1x32xf32, #tpu.memory_space<vmem>>, vector<1x1x32xf32>,
    return
  }
  func.func @transform_0(%arg0: i32) -> (i32, i32, i32) {
    %c0_i32 = arith.constant 0 : i32
    %c0_i32_0 = arith.constant 0 : i32
    %c0_i32_1 = arith.constant 0 : i32
    return %arg0, %c0_i32, %c0_i32_0 : i32, i32, i32
  }
  func.func @transform_1(%arg0: i32) -> (i32, i32, i32) {
    %c0_i32 = arith.constant 0 : i32
    %c0_i32_0 = arith.constant 0 : i32
    %c0_i32_1 = arith.constant 0 : i32
    %c0_i32_2 = arith.constant 0 : i32
    return %c0_i32, %c0_i32_0, %c0_i32_1 : i32, i32, i32
  }
  func.func @transform_2(%arg0: i32) -> (i32, i32, i32) {
    %c0_i32 = arith.constant 0 : i32
    %c0_i32_0 = arith.constant 0 : i32
    %c0_i32_1 = arith.constant 0 : i32
    %c0_i32_2 = arith.constant 0 : i32
    return %c0_i32, %c0_i32_0, %c0_i32_1 : i32, i32, i32
  }
  func.func @transform_3(%arg0: i32) -> (i32, i32) {
    %c0_i32 = arith.constant 0 : i32
    %c0_i32_0 = arith.constant 0 : i32
    %c0_i32_1 = arith.constant 0 : i32
    return %c0_i32, %c0_i32_0 : i32, i32
  }
  func.func @transform_4(%arg0: i32) -> (i32, i32, i32) {
    %c0_i32 = arith.constant 0 : i32
    %c0_i32_0 = arith.constant 0 : i32
    %c0_i32_1 = arith.constant 0 : i32
    %c0_i32_2 = arith.constant 0 : i32
    return %c0_i32, %c0_i32_0, %c0_i32_1 : i32, i32, i32
  }
  func.func @transform_5(%arg0: i32) -> (i32, i32, i32) {
    %c0_i32 = arith.constant 0 : i32
    %c0_i32_0 = arith.constant 0 : i32
    %c0_i32_1 = arith.constant 0 : i32
    %c0_i32_2 = arith.constant 0 : i32
    return %c0_i32, %c0_i32_0, %c0_i32_1 : i32, i32, i32
  }
  func.func @transform_6(%arg0: i32) -> (i32, i32) {
    %c0_i32 = arith.constant 0 : i32
    %c0_i32_0 = arith.constant 0 : i32
    %c0_i32_1 = arith.constant 0 : i32
    return %c0_i32, %c0_i32_0 : i32, i32
  }
  func.func @transform_7(%arg0: i32) -> (i32, i32, i32) {
    %c0_i32 = arith.constant 0 : i32
    %c0_i32_0 = arith.constant 0 : i32
    %c0_i32_1 = arith.constant 0 : i32
    %c0_i32_2 = arith.constant 0 : i32
    return %c0_i32, %c0_i32_0, %c0_i32_1 : i32, i32, i32
  }
  func.func @transform_8(%arg0: i32) -> (i32, i32, i32) {
    %c0_i32 = arith.constant 0 : i32
    %c0_i32_0 = arith.constant 0 : i32
    %c0_i32_1 = arith.constant 0 : i32
    %c0_i32_2 = arith.constant 0 : i32
    return %c0_i32, %c0_i32_0, %c0_i32_1 : i32, i32, i32
  }
  func.func @transform_9(%arg0: i32) -> (i32, i32) {
    %c0_i32 = arith.constant 0 : i32
    %c0_i32_0 = arith.constant 0 : i32
    %c0_i32_1 = arith.constant 0 : i32
    return %c0_i32, %c0_i32_0 : i32, i32
  }
  func.func @transform_10(%arg0: i32) -> (i32, i32, i32) {
    %c0_i32 = arith.constant 0 : i32
    %c0_i32_0 = arith.constant 0 : i32
    %c0_i32_1 = arith.constant 0 : i32
    %c0_i32_2 = arith.constant 0 : i32
    return %c0_i32, %c0_i32_0, %c0_i32_1 : i32, i32, i32
  }
  func.func @transform_11(%arg0: i32) -> (i32, i32, i32) {
    %c0_i32 = arith.constant 0 : i32
    %c0_i32_0 = arith.constant 0 : i32
    %c0_i32_1 = arith.constant 0 : i32
    %c0_i32_2 = arith.constant 0 : i32
    return %c0_i32, %c0_i32_0, %c0_i32_1 : i32, i32, i32
  }
  func.func @transform_12(%arg0: i32) -> (i32, i32) {
    %c0_i32 = arith.constant 0 : i32
    %c0_i32_0 = arith.constant 0 : i32
    %c0_i32_1 = arith.constant 0 : i32
    return %c0_i32, %c0_i32_0 : i32, i32
  }
  func.func @transform_13(%arg0: i32) -> (i32, i32) {
    %c0_i32 = arith.constant 0 : i32
    %c0_i32_0 = arith.constant 0 : i32
    %c0_i32_1 = arith.constant 0 : i32
    return %c0_i32, %c0_i32_0 : i32, i32
  }
  func.func @transform_14(%arg0: i32) -> (i32, i32) {
    %c0_i32 = arith.constant 0 : i32
    %c0_i32_0 = arith.constant 0 : i32
    %c0_i32_1 = arith.constant 0 : i32
    return %c0_i32, %c0_i32_0 : i32, i32
  }
  func.func @transform_15(%arg0: i32) -> (i32, i32, i32) {
    %c0_i32 = arith.constant 0 : i32
    %c0_i32_0 = arith.constant 0 : i32
    %c0_i32_1 = arith.constant 0 : i32
    return %arg0, %c0_i32, %c0_i32_0 : i32, i32, i32
  }
}

</mosaic_0001>

<llo_original>
// kernel: cnn_encoder_forward.1
$region0: #{cnn_encoder_forward.1}
  #allocation0 [shape = 'u32[]', space=smem, size = 0x4, offset = 0x4, fixed_abs, tag = 'smem constant byte address 0x4 - core index']
  #allocation1 [shape = 'u32[144,128]{1,0:T(1,128)}', space=vmem, size = 0x12000, scoped, tag = 'internal scratch']
  %s0 = inlined_call_operand.vmem [shape: f32[2,44,176], index: 0, kind: input, shape index: {}]
  %s1 = inlined_call_operand.vmem [shape: f32[8,10,44], index: 1, kind: input, shape index: {}]
  %s2 = inlined_call_operand.hbm [shape: f32[8,176,320], index: 2, kind: input, shape index: {}]
  %s3 = inlined_call_operand.hbm [shape: f32[1,320], index: 3, kind: input, shape index: {}]
  %s4 = inlined_call_operand.hbm [shape: f32[4,4,10], index: 4, kind: input, shape index: {}]
  %s5 = inlined_call_operand.vmem [shape: f32[4,320,256], index: 5, kind: input, shape index: {}]
  %s6 = inlined_call_operand.hbm [shape: f32[1,256], index: 6, kind: input, shape index: {}]
  %s7 = inlined_call_operand.hbm [shape: f32[3,2,4], index: 7, kind: input, shape index: {}]
  %s8 = inlined_call_operand.vmem [shape: f32[3,256,64], index: 8, kind: input, shape index: {}]
  %s9 = inlined_call_operand.hbm [shape: f32[1,64], index: 9, kind: input, shape index: {}]
  %s10 = inlined_call_operand.hbm [shape: f32[2,1,2], index: 10, kind: input, shape index: {}]
  %s11 = inlined_call_operand.vmem [shape: f32[2,64,32], index: 11, kind: input, shape index: {}]
  %s12 = inlined_call_operand.hbm [shape: f32[1,32], index: 12, kind: input, shape index: {}]
  %s13 = inlined_call_operand.hbm [shape: f32[1,32], index: 13, kind: input, shape index: {}]
  %s14 = inlined_call_operand.hbm [shape: f32[1,32], index: 14, kind: input, shape index: {}]
  %s15 = inlined_call_operand.hbm [shape: f32[2,1,32], index: 15, kind: output, shape index: {}]
  %s16 = sld [smem:[#allocation0]]
  $region133: #{cnn_encoder_forward.1} parent=0
    _
  %s18 = ssub.s32 1, %s16
  %s19 = scalar_select 0, %s18, %s16
  $region1: #{cnn_encoder_forward.1} parent=0
    #allocation2 [shape = 'u8[2162688]{0}', space=vmem, size = 0x210000, scoped, tag = 'input window, operand 2, single buffered']
    #allocation3 [shape = 's32[2]{0}', space=sflag, size = 0x8, scoped, tag = 'scoped memory for cnn_encoder_forward.1']
    #allocation4 [shape = 's32[2]{0}', space=sflag, size = 0x8, scoped, tag = 'scoped memory for cnn_encoder_forward.1']
    #allocation5 [shape = 'u8[1536]{0}', space=vmem, size = 0x800, scoped, tag = 'input window, operand 3, single buffered']
    #allocation6 [shape = 's32[1]{0}', space=sflag, size = 0x4, scoped, tag = 'scoped memory for cnn_encoder_forward.1']
    #allocation7 [shape = 'u8[8192]{0}', space=vmem, size = 0x2000, scoped, tag = 'input window, operand 4, single buffered']
    #allocation8 [shape = 'u8[1024]{0}', space=vmem, size = 0x400, scoped, tag = 'input window, operand 6, single buffered']
    #allocation9 [shape = 's32[1]{0}', space=sflag, size = 0x4, scoped, tag = 'scoped memory for cnn_encoder_forward.1']
    #allocation10 [shape = 'u8[3072]{0}', space=vmem, size = 0xc00, scoped, tag = 'input window, operand 7, single buffered']
    #allocation11 [shape = 'u8[512]{0}', space=vmem, size = 0x400, scoped, tag = 'input window, operand 9, single buffered']
    #allocation12 [shape = 's32[1]{0}', space=sflag, size = 0x4, scoped, tag = 'scoped memory for cnn_encoder_forward.1']
    #allocation13 [shape = 'u8[1024]{0}', space=vmem, size = 0x400, scoped, tag = 'input window, operand 10, single buffered']
    #allocation14 [shape = 'u8[512]{0}', space=vmem, size = 0x400, scoped, tag = 'input window, operand 12, single buffered']
    #allocation15 [shape = 's32[1]{0}', space=sflag, size = 0x4, scoped, tag = 'scoped memory for cnn_encoder_forward.1']
    #allocation16 [shape = 'u8[512]{0}', space=vmem, size = 0x400, scoped, tag = 'input window, operand 13, single buffered']
    #allocation17 [shape = 'u8[512]{0}', space=vmem, size = 0x400, scoped, tag = 'input window, operand 14, single buffered']
    #allocation18 [shape = 's32[1]{0}', space=sflag, size = 0x4, scoped, tag = 'scoped memory for cnn_encoder_forward.1']
    #allocation19 [shape = 'u8[1024]{0}', space=vmem, size = 0x400, scoped, tag = 'output window, operand 0']
    %20 = vsyncpa [#allocation3], 0
    %21 = vsyncpa [#allocation6], 0
    %22 = vsyncpa [#allocation9], 0
    %23 = vsyncpa [#allocation12], 0
    %24 = vsyncpa [#allocation15], 0
    %25 = vsyncpa [#allocation18], 0
    %26 = vsyncpa [#allocation4], 0
    %s27 = scalar_lea.sflag [#allocation4], 1
    %28 = vsyncpa %s27, 0
    loop: start=0, step=1, limit=4
    $region2: #{cnn_encoder_forward.1} parent=1 // loop_pre_header
      _
    $region3: #{cnn_encoder_forward.1} parent=1 // loop_header
      %s30 = sphi 0, %s34
      %p31 = scmp.ge.s32.totalorder %s30, 4
      %s40 = sphi 0, %s42
      %s43 = sphi 0, %s40
      %s44 = sphi 0, %s43
      %s60 = sphi 0, %s44
      %s64 = sphi 0, %s64
      %s66 = sphi 0, %s64
      %s67 = sphi 0, %s66
      %s81 = sphi 0, %s67
      %s85 = sphi 0, %s85
      %s87 = sphi 0, %s85
      %s88 = sphi 0, %s87
      %s102 = sphi 0, %s88
      %s106 = sphi 0, %s106
      %s108 = sphi 0, %s106
      %s109 = sphi 0, %s108
      %s123 = sphi 0, %s109
      %s127 = sphi 0, %s127
      %s129 = sphi 0, %s127
      %s130 = sphi 0, %s129
      %s144 = sphi 0, %s130
      %s148 = sphi 0, %s148
      %s150 = sphi 0, %s148
      %s151 = sphi 0, %s150
      %s165 = sphi 0, %s151
      %s169 = sphi 0, %s169
      %s171 = sphi 0, %s169
      %s172 = sphi 0, %s171
      %s186 = sphi 0, %s172
      %s190 = sphi 0, %s190
      %s192 = sphi 0, %s190
      %s193 = sphi 0, %s192
      %s207 = sphi 0, %s193
      %s211 = sphi 0, %s211
      %s213 = sphi 0, %s211
      %s214 = sphi 0, %s213
      %s228 = sphi 0, %s214
      %s232 = sphi 0, %s232
      %s234 = sphi 0, %s232
      %s235 = sphi 0, %s234
      %s249 = sphi 0, %s235
      %s253 = sphi 0, %s253
      %s255 = sphi 0, %s253
      %s256 = sphi 0, %s255
      %s270 = sphi 0, %s256
      %s274 = sphi 0, %s274
      %s276 = sphi 0, %s274
      %s277 = sphi 0, %s276
      %s291 = sphi 0, %s277
      %s295 = sphi 0, %s295
      %s297 = sphi 0, %s295
      %s298 = sphi 0, %s297
      %s312 = sphi 0, %s298
      %s316 = sphi 0, %s316
      %s318 = sphi 0, %s316
      %s319 = sphi 0, %s318
      %s333 = sphi 0, %s319
      %s337 = sphi 0, %s337
      %s339 = sphi 0, %s337
      %s340 = sphi 0, %s339
      %s354 = sphi 0, %s340
      %s360 = sphi 0, %s362
      %s363 = sphi 0, %s360
      %s364 = sphi 0, %s363
      %s380 = sphi 0, %s364
    $region4: #{cnn_encoder_forward.1} parent=1 // loop_header_branch
      %33 = sbr.rel (%p31) target = $region8
    $region5: #{cnn_encoder_forward.1} parent=1 // loop_body
      %s35 = ssub.s32 %s30, 1
      %s36 = ssub.s32 %s30, 2
      %s37 = sadd.s32 %s30, 1
      %s38 = ssub.s32 %s30, %s37
      %p39 = scmp.eq.s32.totalorder %s38, 0
      %s41 = sadd.s32 %s40, 1
      %s42 = scalar_select %p39, %s40, %s41
      %p45 = pneg %p39
      %p46 = scmp.eq.s32.totalorder %s30, 1
      %p47 = por %p45, %p46
      %p48 = scmp.ne.s32.totalorder %s40, %s43
      %p49 = scmp.eq.s32.totalorder %s30, 0
      %p50 = por %p48, %p49
      %p51 = scmp.ne.s32.totalorder %s40, %s43
      %p52 = scmp.eq.s32.totalorder %s35, 1
      %p53 = por %p51, %p52
      %p54 = scmp.ne.s32.totalorder %s43, %s44
      %p55 = scmp.eq.s32.totalorder %s35, 0
      %p56 = por %p54, %p55
      %p57 = scmp.ne.s32.totalorder %s43, %s44
      %p58 = scmp.eq.s32.totalorder %s36, 1
      %p59 = por %p57, %p58
      %p61 = scmp.ne.s32.totalorder %s44, %s60
      %p62 = scmp.eq.s32.totalorder %s36, 0
      %p63 = por %p61, %p62
      %s65 = sadd.s32 %s64, 1
      %p68 = scmp.eq.s32.totalorder %s30, 1
      %p69 = scmp.ne.s32.totalorder %s64, %s66
      %p70 = scmp.eq.s32.totalorder %s30, 0
      %p71 = por %p69, %p70
      %p72 = scmp.ne.s32.totalorder %s64, %s66
      %p73 = scmp.eq.s32.totalorder %s35, 1
      %p74 = por %p72, %p73
      %p75 = scmp.ne.s32.totalorder %s66, %s67
      %p76 = scmp.eq.s32.totalorder %s35, 0
      %p77 = por %p75, %p76
      %p78 = scmp.ne.s32.totalorder %s66, %s67
      %p79 = scmp.eq.s32.totalorder %s36, 1
      %p80 = por %p78, %p79
      %p82 = scmp.ne.s32.totalorder %s67, %s81
      %p83 = scmp.eq.s32.totalorder %s36, 0
      %p84 = por %p82, %p83
      %s86 = sadd.s32 %s85, 1
      %p89 = scmp.eq.s32.totalorder %s30, 1
      %p90 = scmp.ne.s32.totalorder %s85, %s87
      %p91 = scmp.eq.s32.totalorder %s30, 0
      %p92 = por %p90, %p91
      %p93 = scmp.ne.s32.totalorder %s85, %s87
      %p94 = scmp.eq.s32.totalorder %s35, 1
      %p95 = por %p93, %p94
      %p96 = scmp.ne.s32.totalorder %s87, %s88
      %p97 = scmp.eq.s32.totalorder %s35, 0
      %p98 = por %p96, %p97
      %p99 = scmp.ne.s32.totalorder %s87, %s88
      %p100 = scmp.eq.s32.totalorder %s36, 1
      %p101 = por %p99, %p100
      %p103 = scmp.ne.s32.totalorder %s88, %s102
      %p104 = scmp.eq.s32.totalorder %s36, 0
      %p105 = por %p103, %p104
      %s107 = sadd.s32 %s106, 1
      %p110 = scmp.eq.s32.totalorder %s30, 1
      %p111 = scmp.ne.s32.totalorder %s106, %s108
      %p112 = scmp.eq.s32.totalorder %s30, 0
      %p113 = por %p111, %p112
      %p114 = scmp.ne.s32.totalorder %s106, %s108
      %p115 = scmp.eq.s32.totalorder %s35, 1
      %p116 = por %p114, %p115
      %p117 = scmp.ne.s32.totalorder %s108, %s109
      %p118 = scmp.eq.s32.totalorder %s35, 0
      %p119 = por %p117, %p118
      %p120 = scmp.ne.s32.totalorder %s108, %s109
      %p121 = scmp.eq.s32.totalorder %s36, 1
      %p122 = por %p120, %p121
      %p124 = scmp.ne.s32.totalorder %s109, %s123
      %p125 = scmp.eq.s32.totalorder %s36, 0
      %p126 = por %p124, %p125
      %s128 = sadd.s32 %s127, 1
      %p131 = scmp.eq.s32.totalorder %s30, 1
      %p132 = scmp.ne.s32.totalorder %s127, %s129
      %p133 = scmp.eq.s32.totalorder %s30, 0
      %p134 = por %p132, %p133
      %p135 = scmp.ne.s32.totalorder %s127, %s129
      %p136 = scmp.eq.s32.totalorder %s35, 1
      %p137 = por %p135, %p136
      %p138 = scmp.ne.s32.totalorder %s129, %s130
      %p139 = scmp.eq.s32.totalorder %s35, 0
      %p140 = por %p138, %p139
      %p141 = scmp.ne.s32.totalorder %s129, %s130
      %p142 = scmp.eq.s32.totalorder %s36, 1
      %p143 = por %p141, %p142
      %p145 = scmp.ne.s32.totalorder %s130, %s144
      %p146 = scmp.eq.s32.totalorder %s36, 0
      %p147 = por %p145, %p146
      %s149 = sadd.s32 %s148, 1
      %p152 = scmp.eq.s32.totalorder %s30, 1
      %p153 = scmp.ne.s32.totalorder %s148, %s150
      %p154 = scmp.eq.s32.totalorder %s30, 0
      %p155 = por %p153, %p154
      %p156 = scmp.ne.s32.totalorder %s148, %s150
      %p157 = scmp.eq.s32.totalorder %s35, 1
      %p158 = por %p156, %p157
      %p159 = scmp.ne.s32.totalorder %s150, %s151
      %p160 = scmp.eq.s32.totalorder %s35, 0
      %p161 = por %p159, %p160
      %p162 = scmp.ne.s32.totalorder %s150, %s151
      %p163 = scmp.eq.s32.totalorder %s36, 1
      %p164 = por %p162, %p163
      %p166 = scmp.ne.s32.totalorder %s151, %s165
      %p167 = scmp.eq.s32.totalorder %s36, 0
      %p168 = por %p166, %p167
      %s170 = sadd.s32 %s169, 1
      %p173 = scmp.eq.s32.totalorder %s30, 1
      %p174 = scmp.ne.s32.totalorder %s169, %s171
      %p175 = scmp.eq.s32.totalorder %s30, 0
      %p176 = por %p174, %p175
      %p177 = scmp.ne.s32.totalorder %s169, %s171
      %p178 = scmp.eq.s32.totalorder %s35, 1
      %p179 = por %p177, %p178
      %p180 = scmp.ne.s32.totalorder %s171, %s172
      %p181 = scmp.eq.s32.totalorder %s35, 0
      %p182 = por %p180, %p181
      %p183 = scmp.ne.s32.totalorder %s171, %s172
      %p184 = scmp.eq.s32.totalorder %s36, 1
      %p185 = por %p183, %p184
      %p187 = scmp.ne.s32.totalorder %s172, %s186
      %p188 = scmp.eq.s32.totalorder %s36, 0
      %p189 = por %p187, %p188
      %s191 = sadd.s32 %s190, 1
      %p194 = scmp.eq.s32.totalorder %s30, 1
      %p195 = scmp.ne.s32.totalorder %s190, %s192
      %p196 = scmp.eq.s32.totalorder %s30, 0
      %p197 = por %p195, %p196
      %p198 = scmp.ne.s32.totalorder %s190, %s192
      %p199 = scmp.eq.s32.totalorder %s35, 1
      %p200 = por %p198, %p199
      %p201 = scmp.ne.s32.totalorder %s192, %s193
      %p202 = scmp.eq.s32.totalorder %s35, 0
      %p203 = por %p201, %p202
      %p204 = scmp.ne.s32.totalorder %s192, %s193
      %p205 = scmp.eq.s32.totalorder %s36, 1
      %p206 = por %p204, %p205
      %p208 = scmp.ne.s32.totalorder %s193, %s207
      %p209 = scmp.eq.s32.totalorder %s36, 0
      %p210 = por %p208, %p209
      %s212 = sadd.s32 %s211, 1
      %p215 = scmp.eq.s32.totalorder %s30, 1
      %p216 = scmp.ne.s32.totalorder %s211, %s213
      %p217 = scmp.eq.s32.totalorder %s30, 0
      %p218 = por %p216, %p217
      %p219 = scmp.ne.s32.totalorder %s211, %s213
      %p220 = scmp.eq.s32.totalorder %s35, 1
      %p221 = por %p219, %p220
      %p222 = scmp.ne.s32.totalorder %s213, %s214
      %p223 = scmp.eq.s32.totalorder %s35, 0
      %p224 = por %p222, %p223
      %p225 = scmp.ne.s32.totalorder %s213, %s214
      %p226 = scmp.eq.s32.totalorder %s36, 1
      %p227 = por %p225, %p226
      %p229 = scmp.ne.s32.totalorder %s214, %s228
      %p230 = scmp.eq.s32.totalorder %s36, 0
      %p231 = por %p229, %p230
      %s233 = sadd.s32 %s232, 1
      %p236 = scmp.eq.s32.totalorder %s30, 1
      %p237 = scmp.ne.s32.totalorder %s232, %s234
      %p238 = scmp.eq.s32.totalorder %s30, 0
      %p239 = por %p237, %p238
      %p240 = scmp.ne.s32.totalorder %s232, %s234
      %p241 = scmp.eq.s32.totalorder %s35, 1
      %p242 = por %p240, %p241
      %p243 = scmp.ne.s32.totalorder %s234, %s235
      %p244 = scmp.eq.s32.totalorder %s35, 0
      %p245 = por %p243, %p244
      %p246 = scmp.ne.s32.totalorder %s234, %s235
      %p247 = scmp.eq.s32.totalorder %s36, 1
      %p248 = por %p246, %p247
      %p250 = scmp.ne.s32.totalorder %s235, %s249
      %p251 = scmp.eq.s32.totalorder %s36, 0
      %p252 = por %p250, %p251
      %s254 = sadd.s32 %s253, 1
      %p257 = scmp.eq.s32.totalorder %s30, 1
      %p258 = scmp.ne.s32.totalorder %s253, %s255
      %p259 = scmp.eq.s32.totalorder %s30, 0
      %p260 = por %p258, %p259
      %p261 = scmp.ne.s32.totalorder %s253, %s255
      %p262 = scmp.eq.s32.totalorder %s35, 1
      %p263 = por %p261, %p262
      %p264 = scmp.ne.s32.totalorder %s255, %s256
      %p265 = scmp.eq.s32.totalorder %s35, 0
      %p266 = por %p264, %p265
      %p267 = scmp.ne.s32.totalorder %s255, %s256
      %p268 = scmp.eq.s32.totalorder %s36, 1
      %p269 = por %p267, %p268
      %p271 = scmp.ne.s32.totalorder %s256, %s270
      %p272 = scmp.eq.s32.totalorder %s36, 0
      %p273 = por %p271, %p272
      %s275 = sadd.s32 %s274, 1
      %p278 = scmp.eq.s32.totalorder %s30, 1
      %p279 = scmp.ne.s32.totalorder %s274, %s276
      %p280 = scmp.eq.s32.totalorder %s30, 0
      %p281 = por %p279, %p280
      %p282 = scmp.ne.s32.totalorder %s274, %s276
      %p283 = scmp.eq.s32.totalorder %s35, 1
      %p284 = por %p282, %p283
      %p285 = scmp.ne.s32.totalorder %s276, %s277
      %p286 = scmp.eq.s32.totalorder %s35, 0
      %p287 = por %p285, %p286
      %p288 = scmp.ne.s32.totalorder %s276, %s277
      %p289 = scmp.eq.s32.totalorder %s36, 1
      %p290 = por %p288, %p289
      %p292 = scmp.ne.s32.totalorder %s277, %s291
      %p293 = scmp.eq.s32.totalorder %s36, 0
      %p294 = por %p292, %p293
      %s296 = sadd.s32 %s295, 1
      %p299 = scmp.eq.s32.totalorder %s30, 1
      %p300 = scmp.ne.s32.totalorder %s295, %s297
      %p301 = scmp.eq.s32.totalorder %s30, 0
      %p302 = por %p300, %p301
      %p303 = scmp.ne.s32.totalorder %s295, %s297
      %p304 = scmp.eq.s32.totalorder %s35, 1
      %p305 = por %p303, %p304
      %p306 = scmp.ne.s32.totalorder %s297, %s298
      %p307 = scmp.eq.s32.totalorder %s35, 0
      %p308 = por %p306, %p307
      %p309 = scmp.ne.s32.totalorder %s297, %s298
      %p310 = scmp.eq.s32.totalorder %s36, 1
      %p311 = por %p309, %p310
      %p313 = scmp.ne.s32.totalorder %s298, %s312
      %p314 = scmp.eq.s32.totalorder %s36, 0
      %p315 = por %p313, %p314
      %s317 = sadd.s32 %s316, 1
      %p320 = scmp.eq.s32.totalorder %s30, 1
      %p321 = scmp.ne.s32.totalorder %s316, %s318
      %p322 = scmp.eq.s32.totalorder %s30, 0
      %p323 = por %p321, %p322
      %p324 = scmp.ne.s32.totalorder %s316, %s318
      %p325 = scmp.eq.s32.totalorder %s35, 1
      %p326 = por %p324, %p325
      %p327 = scmp.ne.s32.totalorder %s318, %s319
      %p328 = scmp.eq.s32.totalorder %s35, 0
      %p329 = por %p327, %p328
      %p330 = scmp.ne.s32.totalorder %s318, %s319
      %p331 = scmp.eq.s32.totalorder %s36, 1
      %p332 = por %p330, %p331
      %p334 = scmp.ne.s32.totalorder %s319, %s333
      %p335 = scmp.eq.s32.totalorder %s36, 0
      %p336 = por %p334, %p335
      %s338 = sadd.s32 %s337, 1
      %p341 = scmp.eq.s32.totalorder %s30, 1
      %p342 = scmp.ne.s32.totalorder %s337, %s339
      %p343 = scmp.eq.s32.totalorder %s30, 0
      %p344 = por %p342, %p343
      %p345 = scmp.ne.s32.totalorder %s337, %s339
      %p346 = scmp.eq.s32.totalorder %s35, 1
      %p347 = por %p345, %p346
      %p348 = scmp.ne.s32.totalorder %s339, %s340
      %p349 = scmp.eq.s32.totalorder %s35, 0
      %p350 = por %p348, %p349
      %p351 = scmp.ne.s32.totalorder %s339, %s340
      %p352 = scmp.eq.s32.totalorder %s36, 1
      %p353 = por %p351, %p352
      %p355 = scmp.ne.s32.totalorder %s340, %s354
      %p356 = scmp.eq.s32.totalorder %s36, 0
      %p357 = por %p355, %p356
      %s358 = ssub.s32 %s30, %s37
      %p359 = scmp.eq.s32.totalorder %s358, 0
      %s361 = sadd.s32 %s360, 1
      %s362 = scalar_select %p359, %s360, %s361
      %p365 = pneg %p359
      %p366 = scmp.eq.s32.totalorder %s30, 1
      %p367 = por %p365, %p366
      %p368 = scmp.ne.s32.totalorder %s360, %s363
      %p369 = scmp.eq.s32.totalorder %s30, 0
      %p370 = por %p368, %p369
      %p371 = scmp.ne.s32.totalorder %s360, %s363
      %p372 = scmp.eq.s32.totalorder %s35, 1
      %p373 = por %p371, %p372
      %p374 = scmp.ne.s32.totalorder %s363, %s364
      %p375 = scmp.eq.s32.totalorder %s35, 0
      %p376 = por %p374, %p375
      %p377 = scmp.ne.s32.totalorder %s363, %s364
      %p378 = scmp.eq.s32.totalorder %s36, 1
      %p379 = por %p377, %p378
      %p381 = scmp.ne.s32.totalorder %s364, %s380
      %p382 = scmp.eq.s32.totalorder %s36, 0
      %p383 = por %p381, %p382
      %p384 = scmp.le.s32.totalorder 1, %s30
      %p385 = scmp.lt.s32.totalorder %s30, 3
      %p386 = pnand %p384, %p385
      %p387 = pneg %p386
      // Predicated region
      $region9: #{cnn_encoder_forward.1} parent=5 // pred_check
        _
      $region10: #{cnn_encoder_forward.1} parent=5 // pred_check_branch
        %389 = sbr.rel (%p386) target = $region12
      $region11: #{cnn_encoder_forward.1} parent=5 // pred_region
        %s390 = ssub.s32 %s30, 1
        // Predicated region
        $region13: #{cnn_encoder_forward.1} parent=11 // pred_check
          %p391 = pneg %p77
        $region14: #{cnn_encoder_forward.1} parent=11 // pred_check_branch
          %393 = sbr.rel (%p391) target = $region16
        $region15: #{cnn_encoder_forward.1} parent=11 // pred_region
          _
        $region16: #{cnn_encoder_forward.1} parent=11 // pred_fallthru
          _
        // Predicated region
        $region17: #{cnn_encoder_forward.1} parent=11 // pred_check
          %p394 = pneg %p98
        $region18: #{cnn_encoder_forward.1} parent=11 // pred_check_branch
          %396 = sbr.rel (%p394) target = $region20
        $region19: #{cnn_encoder_forward.1} parent=11 // pred_region
          %s398 = ssub.s32 67584, 67584
          %399 = vsyncadd [#allocation3], %s398
          %s400 = sshll.u32 [#allocation2], 4
          %s401 = int_to_ptr.vmem [resolvable:$true] %s400
          %406 = dma.hbm_to_vmem [thread:$0]  %s2, 67584, %s401, [#allocation3], 384, 384, 24
        $region20: #{cnn_encoder_forward.1} parent=11 // pred_fallthru
          _
        // Predicated region
        $region21: #{cnn_encoder_forward.1} parent=11 // pred_check
          %p407 = pneg %p119
        $region22: #{cnn_encoder_forward.1} parent=11 // pred_check_branch
          %409 = sbr.rel (%p407) target = $region24
        $region23: #{cnn_encoder_forward.1} parent=11 // pred_region
          %s411 = ssub.s32 48, 48
          %412 = vsyncadd [#allocation6], %s411
          %s414 = sshll.u32 [#allocation5], 4
          %s415 = int_to_ptr.vmem [resolvable:$true] %s414
          %417 = dma.hbm_to_vmem [thread:$0]  %s3, 48, %s415, [#allocation6]
        $region24: #{cnn_encoder_forward.1} parent=11 // pred_fallthru
          _
        // Predicated region
        $region25: #{cnn_encoder_forward.1} parent=11 // pred_check
          %p418 = pneg %p140
        $region26: #{cnn_encoder_forward.1} parent=11 // pred_check_branch
          %420 = sbr.rel (%p418) target = $region28
        $region27: #{cnn_encoder_forward.1} parent=11 // pred_region
          %s422 = ssub.s32 256, 256
          %423 = vsyncadd [#allocation6], %s422
          %s424 = sshll.u32 [#allocation7], 4
          %s425 = int_to_ptr.vmem [resolvable:$true] %s424
          %430 = dma.hbm_to_vmem [thread:$0]  %s4, 256, %s425, [#allocation6], 64, 64, 4
        $region28: #{cnn_encoder_forward.1} parent=11 // pred_fallthru
          _
        // Predicated region
        $region29: #{cnn_encoder_forward.1} parent=11 // pred_check
          %p431 = pneg %p161
        $region30: #{cnn_encoder_forward.1} parent=11 // pred_check_branch
          %433 = sbr.rel (%p431) target = $region32
        $region31: #{cnn_encoder_forward.1} parent=11 // pred_region
          _
        $region32: #{cnn_encoder_forward.1} parent=11 // pred_fallthru
          _
        // Predicated region
        $region33: #{cnn_encoder_forward.1} parent=11 // pred_check
          %p434 = pneg %p182
        $region34: #{cnn_encoder_forward.1} parent=11 // pred_check_branch
          %436 = sbr.rel (%p434) target = $region36
        $region35: #{cnn_encoder_forward.1} parent=11 // pred_region
          %s438 = ssub.s32 32, 32
          %439 = vsyncadd [#allocation9], %s438
          %s441 = sshll.u32 [#allocation8], 4
          %s442 = int_to_ptr.vmem [resolvable:$true] %s441
          %444 = dma.hbm_to_vmem [thread:$0]  %s6, 32, %s442, [#allocation9]
        $region36: #{cnn_encoder_forward.1} parent=11 // pred_fallthru
          _
        // Predicated region
        $region37: #{cnn_encoder_forward.1} parent=11 // pred_check
          %p445 = pneg %p203
        $region38: #{cnn_encoder_forward.1} parent=11 // pred_check_branch
          %447 = sbr.rel (%p445) target = $region40
        $region39: #{cnn_encoder_forward.1} parent=11 // pred_region
          %s449 = ssub.s32 96, 96
          %450 = vsyncadd [#allocation9], %s449
          %s451 = sshll.u32 [#allocation10], 4
          %s452 = int_to_ptr.vmem [resolvable:$true] %s451
          %457 = dma.hbm_to_vmem [thread:$0]  %s7, 96, %s452, [#allocation9], 32, 32, 2
        $region40: #{cnn_encoder_forward.1} parent=11 // pred_fallthru
          _
        // Predicated region
        $region41: #{cnn_encoder_forward.1} parent=11 // pred_check
          %p458 = pneg %p224
        $region42: #{cnn_encoder_forward.1} parent=11 // pred_check_branch
          %460 = sbr.rel (%p458) target = $region44
        $region43: #{cnn_encoder_forward.1} parent=11 // pred_region
          _
        $region44: #{cnn_encoder_forward.1} parent=11 // pred_fallthru
          _
        // Predicated region
        $region45: #{cnn_encoder_forward.1} parent=11 // pred_check
          %p461 = pneg %p245
        $region46: #{cnn_encoder_forward.1} parent=11 // pred_check_branch
          %463 = sbr.rel (%p461) target = $region48
        $region47: #{cnn_encoder_forward.1} parent=11 // pred_region
          %s465 = ssub.s32 16, 16
          %466 = vsyncadd [#allocation12], %s465
          %s468 = sshll.u32 [#allocation11], 4
          %s469 = int_to_ptr.vmem [resolvable:$true] %s468
          %471 = dma.hbm_to_vmem [thread:$0]  %s9, 16, %s469, [#allocation12]
        $region48: #{cnn_encoder_forward.1} parent=11 // pred_fallthru
          _
        // Predicated region
        $region49: #{cnn_encoder_forward.1} parent=11 // pred_check
          %p472 = pneg %p266
        $region50: #{cnn_encoder_forward.1} parent=11 // pred_check_branch
          %474 = sbr.rel (%p472) target = $region52
        $region51: #{cnn_encoder_forward.1} parent=11 // pred_region
          %s476 = ssub.s32 32, 32
          %477 = vsyncadd [#allocation12], %s476
          %s478 = sshll.u32 [#allocation13], 4
          %s479 = int_to_ptr.vmem [resolvable:$true] %s478
          %484 = dma.hbm_to_vmem [thread:$0]  %s10, 32, %s479, [#allocation12], 16, 16, 1
        $region52: #{cnn_encoder_forward.1} parent=11 // pred_fallthru
          _
        // Predicated region
        $region53: #{cnn_encoder_forward.1} parent=11 // pred_check
          %p485 = pneg %p287
        $region54: #{cnn_encoder_forward.1} parent=11 // pred_check_branch
          %487 = sbr.rel (%p485) target = $region56
        $region55: #{cnn_encoder_forward.1} parent=11 // pred_region
          _
        $region56: #{cnn_encoder_forward.1} parent=11 // pred_fallthru
          _
        // Predicated region
        $region57: #{cnn_encoder_forward.1} parent=11 // pred_check
          %p488 = pneg %p308
        $region58: #{cnn_encoder_forward.1} parent=11 // pred_check_branch
          %490 = sbr.rel (%p488) target = $region60
        $region59: #{cnn_encoder_forward.1} parent=11 // pred_region
          %s492 = ssub.s32 16, 16
          %493 = vsyncadd [#allocation15], %s492
          %s495 = sshll.u32 [#allocation14], 4
          %s496 = int_to_ptr.vmem [resolvable:$true] %s495
          %498 = dma.hbm_to_vmem [thread:$0]  %s12, 16, %s496, [#allocation15]
        $region60: #{cnn_encoder_forward.1} parent=11 // pred_fallthru
          _
        // Predicated region
        $region61: #{cnn_encoder_forward.1} parent=11 // pred_check
          %p499 = pneg %p329
        $region62: #{cnn_encoder_forward.1} parent=11 // pred_check_branch
          %501 = sbr.rel (%p499) target = $region64
        $region63: #{cnn_encoder_forward.1} parent=11 // pred_region
          %s503 = ssub.s32 16, 16
          %504 = vsyncadd [#allocation15], %s503
          %s506 = sshll.u32 [#allocation16], 4
          %s507 = int_to_ptr.vmem [resolvable:$true] %s506
          %509 = dma.hbm_to_vmem [thread:$0]  %s13, 16, %s507, [#allocation15]
        $region64: #{cnn_encoder_forward.1} parent=11 // pred_fallthru
          _
        // Predicated region
        $region65: #{cnn_encoder_forward.1} parent=11 // pred_check
          %p510 = pneg %p350
        $region66: #{cnn_encoder_forward.1} parent=11 // pred_check_branch
          %512 = sbr.rel (%p510) target = $region68
        $region67: #{cnn_encoder_forward.1} parent=11 // pred_region
          %s514 = ssub.s32 16, 16
          %515 = vsyncadd [#allocation18], %s514
          %s517 = sshll.u32 [#allocation17], 4
          %s518 = int_to_ptr.vmem [resolvable:$true] %s517
          %520 = dma.hbm_to_vmem [thread:$0]  %s14, 16, %s518, [#allocation18]
        $region68: #{cnn_encoder_forward.1} parent=11 // pred_fallthru
          _
      $region12: #{cnn_encoder_forward.1} parent=5 // pred_fallthru
        _
      %p521 = scmp.lt.s32.totalorder %s30, 2
      // Predicated region
      $region69: #{cnn_encoder_forward.1} parent=5 // pred_check
        %p522 = pneg %p521
      $region70: #{cnn_encoder_forward.1} parent=5 // pred_check_branch
        %524 = sbr.rel (%p522) target = $region72
      $region71: #{cnn_encoder_forward.1} parent=5 // pred_region
        // Predicated region
        $region73: #{cnn_encoder_forward.1} parent=71 // pred_check
          %p525 = pneg %p50
        $region74: #{cnn_encoder_forward.1} parent=71 // pred_check_branch
          %527 = sbr.rel (%p525) target = $region76
        $region75: #{cnn_encoder_forward.1} parent=71 // pred_region
          %p528 = scmp.lt.s32.totalorder %s30, 1
          %s529 = scalar_select %p528, %s30, 1
          %s530 = smul.addr %s529, 12
          %s531 = smul.addr %s530, 8
          %s532 = scalar_lea.vmem %s0, %s531
        $region76: #{cnn_encoder_forward.1} parent=71 // pred_fallthru
          _
      $region72: #{cnn_encoder_forward.1} parent=5 // pred_fallthru
        _
      %p533 = scmp.le.s32.totalorder 1, %s30
      %p534 = scmp.lt.s32.totalorder %s30, 3
      %p535 = pnand %p533, %p534
      %p536 = pneg %p535
      // Predicated region
      $region77: #{cnn_encoder_forward.1} parent=5 // pred_check
        _
      $region78: #{cnn_encoder_forward.1} parent=5 // pred_check_branch
        %538 = sbr.rel (%p535) target = $region80
      $region79: #{cnn_encoder_forward.1} parent=5 // pred_region
        %s539 = ssub.s32 %s30, 1
        // Predicated region
        $region81: #{cnn_encoder_forward.1} parent=79 // pred_check
          %p540 = pneg %p98
        $region82: #{cnn_encoder_forward.1} parent=79 // pred_check_branch
          %542 = sbr.rel (%p540) target = $region84
        $region83: #{cnn_encoder_forward.1} parent=79 // pred_region
          %543 = dma.done [#allocation3], 67584
        $region84: #{cnn_encoder_forward.1} parent=79 // pred_fallthru
          _
        // Predicated region
        $region85: #{cnn_encoder_forward.1} parent=79 // pred_check
          %p544 = pneg %p119
        $region86: #{cnn_encoder_forward.1} parent=79 // pred_check_branch
          %546 = sbr.rel (%p544) target = $region88
        $region87: #{cnn_encoder_forward.1} parent=79 // pred_region
          %547 = dma.done [#allocation6], 48
        $region88: #{cnn_encoder_forward.1} parent=79 // pred_fallthru
          _
        // Predicated region
        $region89: #{cnn_encoder_forward.1} parent=79 // pred_check
          %p548 = pneg %p140
        $region90: #{cnn_encoder_forward.1} parent=79 // pred_check_branch
          %550 = sbr.rel (%p548) target = $region92
        $region91: #{cnn_encoder_forward.1} parent=79 // pred_region
          %551 = dma.done [#allocation6], 256
        $region92: #{cnn_encoder_forward.1} parent=79 // pred_fallthru
          _
        // Predicated region
        $region93: #{cnn_encoder_forward.1} parent=79 // pred_check
          %p552 = pneg %p182
        $region94: #{cnn_encoder_forward.1} parent=79 // pred_check_branch
          %554 = sbr.rel (%p552) target = $region96
        $region95: #{cnn_encoder_forward.1} parent=79 // pred_region
          %555 = dma.done [#allocation9], 32
        $region96: #{cnn_encoder_forward.1} parent=79 // pred_fallthru
          _
        // Predicated region
        $region97: #{cnn_encoder_forward.1} parent=79 // pred_check
          %p556 = pneg %p203
        $region98: #{cnn_encoder_forward.1} parent=79 // pred_check_branch
          %558 = sbr.rel (%p556) target = $region100
        $region99: #{cnn_encoder_forward.1} parent=79 // pred_region
          %559 = dma.done [#allocation9], 96
        $region100: #{cnn_encoder_forward.1} parent=79 // pred_fallthru
          _
        // Predicated region
        $region101: #{cnn_encoder_forward.1} parent=79 // pred_check
          %p560 = pneg %p245
        $region102: #{cnn_encoder_forward.1} parent=79 // pred_check_branch
          %562 = sbr.rel (%p560) target = $region104
        $region103: #{cnn_encoder_forward.1} parent=79 // pred_region
          %563 = dma.done [#allocation12], 16
        $region104: #{cnn_encoder_forward.1} parent=79 // pred_fallthru
          _
        // Predicated region
        $region105: #{cnn_encoder_forward.1} parent=79 // pred_check
          %p564 = pneg %p266
        $region106: #{cnn_encoder_forward.1} parent=79 // pred_check_branch
          %566 = sbr.rel (%p564) target = $region108
        $region107: #{cnn_encoder_forward.1} parent=79 // pred_region
          %567 = dma.done [#allocation12], 32
        $region108: #{cnn_encoder_forward.1} parent=79 // pred_fallthru
          _
        // Predicated region
        $region109: #{cnn_encoder_forward.1} parent=79 // pred_check
          %p568 = pneg %p308
        $region110: #{cnn_encoder_forward.1} parent=79 // pred_check_branch
          %570 = sbr.rel (%p568) target = $region112
        $region111: #{cnn_encoder_forward.1} parent=79 // pred_region
          %571 = dma.done [#allocation15], 16
        $region112: #{cnn_encoder_forward.1} parent=79 // pred_fallthru
          _
        // Predicated region
        $region113: #{cnn_encoder_forward.1} parent=79 // pred_check
          %p572 = pneg %p329
        $region114: #{cnn_encoder_forward.1} parent=79 // pred_check_branch
          %574 = sbr.rel (%p572) target = $region116
        $region115: #{cnn_encoder_forward.1} parent=79 // pred_region
          %575 = dma.done [#allocation15], 16
        $region116: #{cnn_encoder_forward.1} parent=79 // pred_fallthru
          _
        // Predicated region
        $region117: #{cnn_encoder_forward.1} parent=79 // pred_check
          %p576 = pneg %p350
        $region118: #{cnn_encoder_forward.1} parent=79 // pred_check_branch
          %578 = sbr.rel (%p576) target = $region120
        $region119: #{cnn_encoder_forward.1} parent=79 // pred_region
          %579 = dma.done [#allocation18], 16
        $region120: #{cnn_encoder_forward.1} parent=79 // pred_fallthru
          _
        %p580 = scmp.lt.s32.totalorder %s35, 1
        %s581 = scalar_select %p580, %s35, 1
        %s582 = smul.addr %s581, 12
        %s583 = smul.addr %s582, 8
        %s584 = scalar_lea.vmem %s0, %s583
        %p585 = pneg %p56
        %p586 = pneg %p53
        %p587 = pneg %p77
        %p588 = pneg %p74
        %p589 = pneg %p98
        %p590 = pneg %p95
        %p591 = pneg %p119
        %p592 = pneg %p116
        %p593 = pneg %p140
        %p594 = pneg %p137
        %p595 = pneg %p161
        %p596 = pneg %p158
        %p597 = pneg %p182
        %p598 = pneg %p179
        %p599 = pneg %p203
        %p600 = pneg %p200
        %p601 = pneg %p224
        %p602 = pneg %p221
        %p603 = pneg %p245
        %p604 = pneg %p242
        %p605 = pneg %p266
        %p606 = pneg %p263
        %p607 = pneg %p287
        %p608 = pneg %p284
        %p609 = pneg %p308
        %p610 = pneg %p305
        %p611 = pneg %p329
        %p612 = pneg %p326
        %p613 = pneg %p350
        %p614 = pneg %p347
        %p615 = pneg %p376
        %p616 = pneg %p373
        %s617 = sand.u32 %s363, 1
        %s618 = scalar_lea.sflag [#allocation4], %s617
        %s619 = sand.u32 %s363, 1
        %s620 = scalar_lea.vmem [#allocation19], %s619
        %p621 = scmp.lt.s32.totalorder %s35, 1
        %s622 = scalar_select %p621, %s35, 1
        %s623 = smul.addr %s622, 12
        %s624 = smul.addr %s623, 8
        %s625 = scalar_lea.vmem %s0, %s624
        %v626 = vld [vmem:[%s625] sm:$0xff]
        %v627 = vld [vmem:[%s625 + $0x8] sm:$0xff]
        %v628 = vld [vmem:[%s625 + $0x10] sm:$0xff]
        %v629 = vld [vmem:[%s625 + $0x18] sm:$0xff]
        %v630 = vld [vmem:[%s625 + $0x20] sm:$0xff]
        %v631 = vld [vmem:[%s625 + $0x28] sm:$0xff]
        %v632 = vld [vmem:[%s625 + $0x30] sm:$0xff]
        %v633 = vld [vmem:[%s625 + $0x38] sm:$0xff]
        %v634 = vld [vmem:[%s625 + $0x40] sm:$0xff]
        %v635 = vld [vmem:[%s625 + $0x48] sm:$0xff]
        %v636 = vld [vmem:[%s625 + $0x50] sm:$0xf]
        %v637 = vld [vmem:[%s625 + $0x58] sm:$0xf]
        %v638 = vld [vmem:[%s1] sm:$0xff]
        %v639 = vld [vmem:[%s1 + $0x8] sm:$0x3]
        %vm640 = vcmask 359424
        %v642 = vsel %vm640, %v638, 0
        %v645 = vsel %vm640, %v639, 0
        %vm647 = vcmask 1043456
        %v649 = vsel %vm647, %v636, 0
        %v652 = vsel %vm647, %v637, 0
        %654 = vmatprep.subr.mxu0 %v627
        %655 = vmatpush1.msra.mxu0 %v626
        %656 = vmatprep.subr.mxu0 %v629
        %657 = vmatpush1.msra.mxu0 %v628
        %658 = vmatprep.subr.mxu0 %v631
        %659 = vmatpush1.msra.mxu0 %v630
        %660 = vmatprep.subr.mxu0 %v633
        %661 = vmatpush1.msra.mxu0 %v632
        %662 = vmatprep.subr.mxu0 %v635
        %663 = vmatpush1.msra.mxu0 %v634
        %664 = vmatprep.subr.mxu0 %v652
        %665 = vmatpush1.msra.mxu0 %v649
        %666 = vmatprep.subr.mxu0 0.0
        %667 = vmatpush1.msra.mxu0 0.0
        %668 = vmatprep.subr.mxu0 0.0
        %669 = vmatpush1.msra.mxu0 0.0
        %670 = vmatprep.subr.mxu0 0.0
        %671 = vmatpush1.msra.mxu0 0.0
        %672 = vmatprep.subr.mxu0 0.0
        %673 = vmatpush1.msra.mxu0 0.0
        %674 = vmatprep.subr.mxu0 0.0
        %675 = vmatpush1.msra.mxu0 0.0
        %676 = vmatprep.subr.mxu0 0.0
        %677 = vmatpush1.msra.mxu0 0.0
        %678 = vmatprep.subr.mxu0 0.0
        %679 = vmatpush1.msra.mxu0 0.0
        %680 = vmatprep.subr.mxu0 0.0
        %681 = vmatpush1.msra.mxu0 0.0
        %682 = vmatprep.subr.mxu0 0.0
        %683 = vmatpush1.msra.mxu0 0.0
        %684 = vmatprep.subr.mxu0 0.0
        %685 = vmatpush1.msra.mxu0 0.0
        %686 = vmatprep.subr.mxu0 0.0
        %687 = vmatpush1.msra.mxu0 0.0
        %688 = vmatprep.subr.mxu0 0.0
        %689 = vmatpush1.msra.mxu0 0.0
        %690 = vmatprep.subr.mxu0 0.0
        %691 = vmatpush1.msra.mxu0 0.0
        %692 = vmatprep.subr.mxu0 0.0
        %693 = vmatpush1.msra.mxu0 0.0
        %694 = vmatprep.subr.mxu0 0.0
        %695 = vmatpush1.msra.mxu0 0.0
        %696 = vmatprep.subr.mxu0 0.0
        %697 = vmatpush1.msra.mxu0 0.0
        %698 = vmatprep.subr.mxu0 0.0
        %699 = vmatpush1.msra.mxu0 0.0
        %700 = vmatprep.subr.mxu0 0.0
        %701 = vmatpush1.msra.mxu0 0.0
        %702 = vmatprep.subr.mxu0 0.0
        %703 = vmatpush1.msra.mxu0 0.0
        %704 = vmatprep.subr.mxu0 0.0
        %705 = vmatpush1.msra.mxu0 0.0
        %706 = vmatprep.subr.mxu0 0.0
        %707 = vmatpush1.msra.mxu0 0.0
        %708 = vmatprep.subr.mxu0 0.0
        %709 = vmatpush1.msra.mxu0 0.0
        %710 = vmatprep.subr.mxu0 0.0
        %711 = vmatpush1.msra.mxu0 0.0
        %712 = vmatprep.subr.mxu0 0.0
        %713 = vmatpush1.msra.mxu0 0.0
        %714 = vmatprep.subr.mxu0 0.0
        %715 = vmatpush1.msra.mxu0 0.0
        %716 = vmatprep.subr.mxu0 0.0
        %717 = vmatpush1.msra.mxu0 0.0
        %718 = vmatprep.mubr.f32.mxu0 0.0
        %719 = vmatmul.mubr.f32.gmra.mrb[0].mxu0 %v642
        %v720 = vpop.f32.mrb[0].mxu0
        %v721 = vadd.f32 0.0, %v720
        %v722 = vpop.f32.mrb[0].mxu0
        %v723 = vadd.f32 0.0, %v722
        %724 = vmatprep.mubr.f32.mxu0 0.0
        %725 = vmatmul.mubr.f32.gmra.mrb[0].mxu0 %v645
        %v726 = vpop.f32.mrb[0].mxu0
        %v727 = vadd.f32 0.0, %v726
        %v728 = vpop.f32.mrb[0].mxu0
        %v729 = vadd.f32 0.0, %v728
        %730 = vdwg.mxu0
        %v731 = vld [vmem:[#allocation2] sm:$0xff]
        %v732 = vld [vmem:[#allocation2 + $0x8] sm:$0xff]
        %v733 = vld [vmem:[#allocation2 + $0x10] sm:$0xff]
        %v734 = vld [vmem:[#allocation2 + $0x18] sm:$0xff]
        %v735 = vld [vmem:[#allocation2 + $0x20] sm:$0xff]
        %v736 = vld [vmem:[#allocation2 + $0x28] sm:$0xff]
        %v737 = vld [vmem:[#allocation2 + $0x30] sm:$0xff]
        %v738 = vld [vmem:[#allocation2 + $0x38] sm:$0xff]
        %v739 = vld [vmem:[#allocation2 + $0x40] sm:$0xff]
        %v740 = vld [vmem:[#allocation2 + $0x48] sm:$0xff]
        %v741 = vld [vmem:[#allocation2 + $0x50] sm:$0xff]
        %v742 = vld [vmem:[#allocation2 + $0x58] sm:$0xff]
        %v743 = vld [vmem:[#allocation2 + $0x60] sm:$0xff]
        %v744 = vld [vmem:[#allocation2 + $0x68] sm:$0xff]
        %v745 = vld [vmem:[#allocation2 + $0x70] sm:$0xff]
        %v746 = vld [vmem:[#allocation2 + $0x78] sm:$0xff]
        %v747 = vld [vmem:[#allocation2 + $0x80] sm:$0xff]
        %v748 = vld [vmem:[#allocation2 + $0x88] sm:$0xff]
        %v749 = vld [vmem:[#allocation2 + $0x90] sm:$0xff]
        %v750 = vld [vmem:[#allocation2 + $0x98] sm:$0xff]
        %v751 = vld [vmem:[#allocation2 + $0xa0] sm:$0xff]
        %v752 = vld [vmem:[#allocation2 + $0xa8] sm:$0xff]
        %v753 = vld [vmem:[#allocation2 + $0xb0] sm:$0xff]
        %v754 = vld [vmem:[#allocation2 + $0xb8] sm:$0xff]
        %v755 = vld [vmem:[#allocation2 + $0xc0] sm:$0xff]
        %v756 = vld [vmem:[#allocation2 + $0xc8] sm:$0xff]
        %v757 = vld [vmem:[#allocation2 + $0xd0] sm:$0xff]
        %v758 = vld [vmem:[#allocation2 + $0xd8] sm:$0xff]
        %v759 = vld [vmem:[#allocation2 + $0xe0] sm:$0xff]
        %v760 = vld [vmem:[#allocation2 + $0xe8] sm:$0xff]
        %v761 = vld [vmem:[#allocation2 + $0xf0] sm:$0xff]
        %v762 = vld [vmem:[#allocation2 + $0xf8] sm:$0xff]
        %v763 = vld [vmem:[#allocation2 + $0x100] sm:$0xff]
        %v764 = vld [vmem:[#allocation2 + $0x108] sm:$0xff]
        %v765 = vld [vmem:[#allocation2 + $0x110] sm:$0xff]
        %v766 = vld [vmem:[#allocation2 + $0x118] sm:$0xff]
        %v767 = vld [vmem:[#allocation2 + $0x120] sm:$0xff]
        %v768 = vld [vmem:[#allocation2 + $0x128] sm:$0xff]
        %v769 = vld [vmem:[#allocation2 + $0x130] sm:$0xff]
        %v770 = vld [vmem:[#allocation2 + $0x138] sm:$0xff]
        %v771 = vld [vmem:[#allocation2 + $0x140] sm:$0xff]
        %v772 = vld [vmem:[#allocation2 + $0x148] sm:$0xff]
        %v773 = vld [vmem:[#allocation2 + $0x150] sm:$0xff]
        %v774 = vld [vmem:[#allocation2 + $0x158] sm:$0xff]
        %v775 = vld [vmem:[#allocation2 + $0x160] sm:$0xff]
        %v776 = vld [vmem:[#allocation2 + $0x168] sm:$0xff]
        %v777 = vld [vmem:[#allocation2 + $0x170] sm:$0xff]
        %v778 = vld [vmem:[#allocation2 + $0x178] sm:$0xff]
        %v779 = vld [vmem:[#allocation2 + $0x180] sm:$0xff]
        %v780 = vld [vmem:[#allocation2 + $0x188] sm:$0xff]
        %v781 = vld [vmem:[#allocation2 + $0x190] sm:$0xff]
        %v782 = vld [vmem:[#allocation2 + $0x198] sm:$0xff]
        %v783 = vld [vmem:[#allocation2 + $0x1a0] sm:$0xff]
        %v784 = vld [vmem:[#allocation2 + $0x1a8] sm:$0xff]
        %v785 = vld [vmem:[#allocation2 + $0x1b0] sm:$0xff]
        %v786 = vld [vmem:[#allocation2 + $0x1b8] sm:$0xff]
        %v787 = vld [vmem:[#allocation2 + $0x1c0] sm:$0xff]
        %v788 = vld [vmem:[#allocation2 + $0x1c8] sm:$0xff]
        %v789 = vld [vmem:[#allocation2 + $0x1d0] sm:$0xff]
        %v790 = vld [vmem:[#allocation2 + $0x1d8] sm:$0xff]
        %v791 = vld [vmem:[#allocation2 + $0x1e0] sm:$0xff]
        %v792 = vld [vmem:[#allocation2 + $0x1e8] sm:$0xff]
        %v793 = vld [vmem:[#allocation2 + $0x1f0] sm:$0xff]
        %v794 = vld [vmem:[#allocation2 + $0x1f8] sm:$0xff]
        %v795 = vld [vmem:[#allocation2 + $0x200] sm:$0xff]
        %v796 = vld [vmem:[#allocation2 + $0x208] sm:$0xff]
        %s797 = scalar_lea.vmem %s1, 16
        %v798 = vld [vmem:[%s797] sm:$0xff]
        %v799 = vld [vmem:[%s797 + $0x8] sm:$0x3]
        %v801 = vsel %vm640, %v798, 0
        %v804 = vsel %vm640, %v799, 0
        %806 = vmatprep.subr.mxu0 %v627
        %807 = vmatpush1.msra.mxu0 %v626
        %808 = vmatprep.subr.mxu0 %v629
        %809 = vmatpush1.msra.mxu0 %v628
        %810 = vmatprep.subr.mxu0 %v631
        %811 = vmatpush1.msra.mxu0 %v630
        %812 = vmatprep.subr.mxu0 %v633
        %813 = vmatpush1.msra.mxu0 %v632
        %814 = vmatprep.subr.mxu0 %v635
        %815 = vmatpush1.msra.mxu0 %v634
        %816 = vmatprep.subr.mxu0 %v652
        %817 = vmatpush1.msra.mxu0 %v649
        %818 = vmatprep.subr.mxu0 0.0
        %819 = vmatpush1.msra.mxu0 0.0
        %820 = vmatprep.subr.mxu0 0.0
        %821 = vmatpush1.msra.mxu0 0.0
        %822 = vmatprep.subr.mxu0 0.0
        %823 = vmatpush1.msra.mxu0 0.0
        %824 = vmatprep.subr.mxu0 0.0
        %825 = vmatpush1.msra.mxu0 0.0
        %826 = vmatprep.subr.mxu0 0.0
        %827 = vmatpush1.msra.mxu0 0.0
        %828 = vmatprep.subr.mxu0 0.0
        %829 = vmatpush1.msra.mxu0 0.0
        %830 = vmatprep.subr.mxu0 0.0
        %831 = vmatpush1.msra.mxu0 0.0
        %832 = vmatprep.subr.mxu0 0.0
        %833 = vmatpush1.msra.mxu0 0.0
        %834 = vmatprep.subr.mxu0 0.0
        %835 = vmatpush1.msra.mxu0 0.0
        %836 = vmatprep.subr.mxu0 0.0
        %837 = vmatpush1.msra.mxu0 0.0
        %838 = vmatprep.subr.mxu0 0.0
        %839 = vmatpush1.msra.mxu0 0.0
        %840 = vmatprep.subr.mxu0 0.0
        %841 = vmatpush1.msra.mxu0 0.0
        %842 = vmatprep.subr.mxu0 0.0
        %843 = vmatpush1.msra.mxu0 0.0
        %844 = vmatprep.subr.mxu0 0.0
        %845 = vmatpush1.msra.mxu0 0.0
        %846 = vmatprep.subr.mxu0 0.0
        %847 = vmatpush1.msra.mxu0 0.0
        %848 = vmatprep.subr.mxu0 0.0
        %849 = vmatpush1.msra.mxu0 0.0
        %850 = vmatprep.subr.mxu0 0.0
        %851 = vmatpush1.msra.mxu0 0.0
        %852 = vmatprep.subr.mxu0 0.0
        %853 = vmatpush1.msra.mxu0 0.0
        %854 = vmatprep.subr.mxu0 0.0
        %855 = vmatpush1.msra.mxu0 0.0
        %856 = vmatprep.subr.mxu0 0.0
        %857 = vmatpush1.msra.mxu0 0.0
        %858 = vmatprep.subr.mxu0 0.0
        %859 = vmatpush1.msra.mxu0 0.0
        %860 = vmatprep.subr.mxu0 0.0
        %861 = vmatpush1.msra.mxu0 0.0
        %862 = vmatprep.subr.mxu0 0.0
        %863 = vmatpush1.msra.mxu0 0.0
        %864 = vmatprep.subr.mxu0 0.0
        %865 = vmatpush1.msra.mxu0 0.0
        %866 = vmatprep.subr.mxu0 0.0
        %867 = vmatpush1.msra.mxu0 0.0
        %868 = vmatprep.subr.mxu0 0.0
        %869 = vmatpush1.msra.mxu0 0.0
        %870 = vmatprep.mubr.f32.mxu0 0.0
        %871 = vmatmul.mubr.f32.gmra.mrb[0].mxu0 %v801
        %v872 = vpop.f32.mrb[0].mxu0
        %v873 = vadd.f32 0.0, %v872
        %v874 = vpop.f32.mrb[0].mxu0
        %v875 = vadd.f32 0.0, %v874
        %876 = vmatprep.mubr.f32.mxu0 0.0
        %877 = vmatmul.mubr.f32.gmra.mrb[0].mxu0 %v804
        %v878 = vpop.f32.mrb[0].mxu0
        %v879 = vadd.f32 0.0, %v878
        %v880 = vpop.f32.mrb[0].mxu0
        %v881 = vadd.f32 0.0, %v880
        %882 = vdwg.mxu0
        %s883 = scalar_lea.vmem [#allocation2], 528
        %v884 = vld [vmem:[%s883] sm:$0xff]
        %v885 = vld [vmem:[%s883 + $0x8] sm:$0xff]
        %v886 = vld [vmem:[%s883 + $0x10] sm:$0xff]
        %v887 = vld [vmem:[%s883 + $0x18] sm:$0xff]
        %v888 = vld [vmem:[%s883 + $0x20] sm:$0xff]
        %v889 = vld [vmem:[%s883 + $0x28] sm:$0xff]
        %v890 = vld [vmem:[%s883 + $0x30] sm:$0xff]
        %v891 = vld [vmem:[%s883 + $0x38] sm:$0xff]
        %v892 = vld [vmem:[%s883 + $0x40] sm:$0xff]
        %v893 = vld [vmem:[%s883 + $0x48] sm:$0xff]
        %v894 = vld [vmem:[%s883 + $0x50] sm:$0xff]
        %v895 = vld [vmem:[%s883 + $0x58] sm:$0xff]
        %v896 = vld [vmem:[%s883 + $0x60] sm:$0xff]
        %v897 = vld [vmem:[%s883 + $0x68] sm:$0xff]
        %v898 = vld [vmem:[%s883 + $0x70] sm:$0xff]
        %v899 = vld [vmem:[%s883 + $0x78] sm:$0xff]
        %v900 = vld [vmem:[%s883 + $0x80] sm:$0xff]
        %v901 = vld [vmem:[%s883 + $0x88] sm:$0xff]
        %v902 = vld [vmem:[%s883 + $0x90] sm:$0xff]
        %v903 = vld [vmem:[%s883 + $0x98] sm:$0xff]
        %v904 = vld [vmem:[%s883 + $0xa0] sm:$0xff]
        %v905 = vld [vmem:[%s883 + $0xa8] sm:$0xff]
        %v906 = vld [vmem:[%s883 + $0xb0] sm:$0xff]
        %v907 = vld [vmem:[%s883 + $0xb8] sm:$0xff]
        %v908 = vld [vmem:[%s883 + $0xc0] sm:$0xff]
        %v909 = vld [vmem:[%s883 + $0xc8] sm:$0xff]
        %v910 = vld [vmem:[%s883 + $0xd0] sm:$0xff]
        %v911 = vld [vmem:[%s883 + $0xd8] sm:$0xff]
        %v912 = vld [vmem:[%s883 + $0xe0] sm:$0xff]
        %v913 = vld [vmem:[%s883 + $0xe8] sm:$0xff]
        %v914 = vld [vmem:[%s883 + $0xf0] sm:$0xff]
        %v915 = vld [vmem:[%s883 + $0xf8] sm:$0xff]
        %v916 = vld [vmem:[%s883 + $0x100] sm:$0xff]
        %v917 = vld [vmem:[%s883 + $0x108] sm:$0xff]
        %v918 = vld [vmem:[%s883 + $0x110] sm:$0xff]
        %v919 = vld [vmem:[%s883 + $0x118] sm:$0xff]
        %v920 = vld [vmem:[%s883 + $0x120] sm:$0xff]
        %v921 = vld [vmem:[%s883 + $0x128] sm:$0xff]
        %v922 = vld [vmem:[%s883 + $0x130] sm:$0xff]
        %v923 = vld [vmem:[%s883 + $0x138] sm:$0xff]
        %v924 = vld [vmem:[%s883 + $0x140] sm:$0xff]
        %v925 = vld [vmem:[%s883 + $0x148] sm:$0xff]
        %v926 = vld [vmem:[%s883 + $0x150] sm:$0xff]
        %v927 = vld [vmem:[%s883 + $0x158] sm:$0xff]
        %v928 = vld [vmem:[%s883 + $0x160] sm:$0xff]
        %v929 = vld [vmem:[%s883 + $0x168] sm:$0xff]
        %v930 = vld [vmem:[%s883 + $0x170] sm:$0xff]
        %v931 = vld [vmem:[%s883 + $0x178] sm:$0xff]
        %v932 = vld [vmem:[%s883 + $0x180] sm:$0xff]
        %v933 = vld [vmem:[%s883 + $0x188] sm:$0xff]
        %v934 = vld [vmem:[%s883 + $0x190] sm:$0xff]
        %v935 = vld [vmem:[%s883 + $0x198] sm:$0xff]
        %v936 = vld [vmem:[%s883 + $0x1a0] sm:$0xff]
        %v937 = vld [vmem:[%s883 + $0x1a8] sm:$0xff]
        %v938 = vld [vmem:[%s883 + $0x1b0] sm:$0xff]
        %v939 = vld [vmem:[%s883 + $0x1b8] sm:$0xff]
        %v940 = vld [vmem:[%s883 + $0x1c0] sm:$0xff]
        %v941 = vld [vmem:[%s883 + $0x1c8] sm:$0xff]
        %v942 = vld [vmem:[%s883 + $0x1d0] sm:$0xff]
        %v943 = vld [vmem:[%s883 + $0x1d8] sm:$0xff]
        %v944 = vld [vmem:[%s883 + $0x1e0] sm:$0xff]
        %v945 = vld [vmem:[%s883 + $0x1e8] sm:$0xff]
        %v946 = vld [vmem:[%s883 + $0x1f0] sm:$0xff]
        %v947 = vld [vmem:[%s883 + $0x1f8] sm:$0xff]
        %v948 = vld [vmem:[%s883 + $0x200] sm:$0xff]
        %v949 = vld [vmem:[%s883 + $0x208] sm:$0xff]
        %vm950 = vcmask 392192
        %v952 = vsel %vm950, %v875, 0
        %v955 = vsel %vm950, %v881, 0
        %957 = vmatprep.subr.mxu0 %v885
        %958 = vmatpush1.msra.mxu0 %v884
        %959 = vmatprep.subr.mxu0 %v888
        %960 = vmatpush1.msra.mxu0 %v887
        %961 = vmatprep.subr.mxu0 %v891
        %962 = vmatpush1.msra.mxu0 %v890
        %963 = vmatprep.subr.mxu0 %v894
        %964 = vmatpush1.msra.mxu0 %v893
        %965 = vmatprep.subr.mxu0 %v897
        %966 = vmatpush1.msra.mxu0 %v896
        %967 = vmatprep.subr.mxu0 %v900
        %968 = vmatpush1.msra.mxu0 %v899
        %969 = vmatprep.subr.mxu0 %v903
        %970 = vmatpush1.msra.mxu0 %v902
        %971 = vmatprep.subr.mxu0 %v906
        %972 = vmatpush1.msra.mxu0 %v905
        %973 = vmatprep.subr.mxu0 %v909
        %974 = vmatpush1.msra.mxu0 %v908
        %975 = vmatprep.subr.mxu0 %v912
        %976 = vmatpush1.msra.mxu0 %v911
        %977 = vmatprep.subr.mxu0 %v915
        %978 = vmatpush1.msra.mxu0 %v914
        %979 = vmatprep.subr.mxu0 %v918
        %980 = vmatpush1.msra.mxu0 %v917
        %981 = vmatprep.subr.mxu0 %v921
        %982 = vmatpush1.msra.mxu0 %v920
        %983 = vmatprep.subr.mxu0 %v924
        %984 = vmatpush1.msra.mxu0 %v923
        %985 = vmatprep.subr.mxu0 %v927
        %986 = vmatpush1.msra.mxu0 %v926
        %987 = vmatprep.subr.mxu0 %v930
        %988 = vmatpush1.msra.mxu0 %v929
        %989 = vmatprep.subr.mxu0 %v933
        %990 = vmatpush1.msra.mxu0 %v932
        %991 = vmatprep.subr.mxu0 %v936
        %992 = vmatpush1.msra.mxu0 %v935
        %993 = vmatprep.subr.mxu0 %v939
        %994 = vmatpush1.msra.mxu0 %v938
        %995 = vmatprep.subr.mxu0 %v942
        %996 = vmatpush1.msra.mxu0 %v941
        %997 = vmatprep.subr.mxu0 %v945
        %998 = vmatpush1.msra.mxu0 %v944
        %999 = vmatprep.subr.mxu0 %v948
        %1000 = vmatpush1.msra.mxu0 %v947
        %1001 = vmatprep.subr.mxu0 0.0
        %1002 = vmatpush1.msra.mxu0 0.0
        %1003 = vmatprep.subr.mxu0 0.0
        %1004 = vmatpush1.msra.mxu0 0.0
        %1005 = vmatprep.subr.mxu0 0.0
        %1006 = vmatpush1.msra.mxu0 0.0
        %1007 = vmatprep.subr.mxu0 0.0
        %1008 = vmatpush1.msra.mxu0 0.0
        %1009 = vmatprep.subr.mxu0 0.0
        %1010 = vmatpush1.msra.mxu0 0.0
        %1011 = vmatprep.subr.mxu0 0.0
        %1012 = vmatpush1.msra.mxu0 0.0
        %1013 = vmatprep.subr.mxu0 0.0
        %1014 = vmatpush1.msra.mxu0 0.0
        %1015 = vmatprep.subr.mxu0 0.0
        %1016 = vmatpush1.msra.mxu0 0.0
        %1017 = vmatprep.subr.mxu0 0.0
        %1018 = vmatpush1.msra.mxu0 0.0
        %1019 = vmatprep.subr.mxu0 0.0
        %1020 = vmatpush1.msra.mxu0 0.0
        %1021 = vmatprep.mubr.f32.mxu0 %v952
        %1022 = vmatmul.mubr.f32.gmra.mrb[0].mxu0 %v873
        %v1023 = vpop.f32.mrb[0].mxu0
        %v1024 = vadd.f32 0.0, %v1023
        %v1025 = vpop.f32.mrb[0].mxu0
        %v1026 = vadd.f32 0.0, %v1025
        %1027 = vmatprep.mubr.f32.mxu0 %v955
        %1028 = vmatmul.mubr.f32.gmra.mrb[0].mxu0 %v879
        %v1029 = vpop.f32.mrb[0].mxu0
        %v1030 = vadd.f32 0.0, %v1029
        %v1031 = vpop.f32.mrb[0].mxu0
        %v1032 = vadd.f32 0.0, %v1031
        %1033 = vdwg.mxu0
        %1034 = vmatprep.subr.mxu0 0.0
        %1035 = vmatpush1.msra.mxu0 %v886
        %1036 = vmatprep.subr.mxu0 0.0
        %1037 = vmatpush1.msra.mxu0 %v889
        %1038 = vmatprep.subr.mxu0 0.0
        %1039 = vmatpush1.msra.mxu0 %v892
        %1040 = vmatprep.subr.mxu0 0.0
        %1041 = vmatpush1.msra.mxu0 %v895
        %1042 = vmatprep.subr.mxu0 0.0
        %1043 = vmatpush1.msra.mxu0 %v898
        %1044 = vmatprep.subr.mxu0 0.0
        %1045 = vmatpush1.msra.mxu0 %v901
        %1046 = vmatprep.subr.mxu0 0.0
        %1047 = vmatpush1.msra.mxu0 %v904
        %1048 = vmatprep.subr.mxu0 0.0
        %1049 = vmatpush1.msra.mxu0 %v907
        %1050 = vmatprep.subr.mxu0 0.0
        %1051 = vmatpush1.msra.mxu0 %v910
        %1052 = vmatprep.subr.mxu0 0.0
        %1053 = vmatpush1.msra.mxu0 %v913
        %1054 = vmatprep.subr.mxu0 0.0
        %1055 = vmatpush1.msra.mxu0 %v916
        %1056 = vmatprep.subr.mxu0 0.0
        %1057 = vmatpush1.msra.mxu0 %v919
        %1058 = vmatprep.subr.mxu0 0.0
        %1059 = vmatpush1.msra.mxu0 %v922
        %1060 = vmatprep.subr.mxu0 0.0
        %1061 = vmatpush1.msra.mxu0 %v925
        %1062 = vmatprep.subr.mxu0 0.0
        %1063 = vmatpush1.msra.mxu0 %v928
        %1064 = vmatprep.subr.mxu0 0.0
        %1065 = vmatpush1.msra.mxu0 %v931
        %1066 = vmatprep.subr.mxu0 0.0
        %1067 = vmatpush1.msra.mxu0 %v934
        %1068 = vmatprep.subr.mxu0 0.0
        %1069 = vmatpush1.msra.mxu0 %v937
        %1070 = vmatprep.subr.mxu0 0.0
        %1071 = vmatpush1.msra.mxu0 %v940
        %1072 = vmatprep.subr.mxu0 0.0
        %1073 = vmatpush1.msra.mxu0 %v943
        %1074 = vmatprep.subr.mxu0 0.0
        %1075 = vmatpush1.msra.mxu0 %v946
        %1076 = vmatprep.subr.mxu0 0.0
        %1077 = vmatpush1.msra.mxu0 %v949
        %1078 = vmatprep.subr.mxu0 0.0
        %1079 = vmatpush1.msra.mxu0 0.0
        %1080 = vmatprep.subr.mxu0 0.0
        %1081 = vmatpush1.msra.mxu0 0.0
        %1082 = vmatprep.subr.mxu0 0.0
        %1083 = vmatpush1.msra.mxu0 0.0
        %1084 = vmatprep.subr.mxu0 0.0
        %1085 = vmatpush1.msra.mxu0 0.0
        %1086 = vmatprep.subr.mxu0 0.0
        %1087 = vmatpush1.msra.mxu0 0.0
        %1088 = vmatprep.subr.mxu0 0.0
        %1089 = vmatpush1.msra.mxu0 0.0
        %1090 = vmatprep.subr.mxu0 0.0
        %1091 = vmatpush1.msra.mxu0 0.0
        %1092 = vmatprep.subr.mxu0 0.0
        %1093 = vmatpush1.msra.mxu0 0.0
        %1094 = vmatprep.subr.mxu0 0.0
        %1095 = vmatpush1.msra.mxu0 0.0
        %1096 = vmatprep.subr.mxu0 0.0
        %1097 = vmatpush1.msra.mxu0 0.0
        %1098 = vmatprep.mubr.f32.mxu0 %v952
        %1099 = vmatmul.mubr.f32.gmra.mrb[0].mxu0 %v873
        %v1100 = vpop.f32.mrb[0].mxu0
        %v1101 = vadd.f32 0.0, %v1100
        %v1102 = vpop.f32.mrb[0].mxu0
        %1103 = vmatprep.mubr.f32.mxu0 %v955
        %1104 = vmatmul.mubr.f32.gmra.mrb[0].mxu0 %v879
        %v1105 = vpop.f32.mrb[0].mxu0
        %v1106 = vadd.f32 0.0, %v1105
        %v1107 = vpop.f32.mrb[0].mxu0
        %1108 = vdwg.mxu0
        %v1110 = vsel %vm950, %v723, 0
        %v1113 = vsel %vm950, %v729, 0
        %1115 = vmatprep.subr.mxu0 %v732
        %1116 = vmatpush1.msra.mxu0 %v731
        %1117 = vmatprep.subr.mxu0 %v735
        %1118 = vmatpush1.msra.mxu0 %v734
        %1119 = vmatprep.subr.mxu0 %v738
        %1120 = vmatpush1.msra.mxu0 %v737
        %1121 = vmatprep.subr.mxu0 %v741
        %1122 = vmatpush1.msra.mxu0 %v740
        %1123 = vmatprep.subr.mxu0 %v744
        %1124 = vmatpush1.msra.mxu0 %v743
        %1125 = vmatprep.subr.mxu0 %v747
        %1126 = vmatpush1.msra.mxu0 %v746
        %1127 = vmatprep.subr.mxu0 %v750
        %1128 = vmatpush1.msra.mxu0 %v749
        %1129 = vmatprep.subr.mxu0 %v753
        %1130 = vmatpush1.msra.mxu0 %v752
        %1131 = vmatprep.subr.mxu0 %v756
        %1132 = vmatpush1.msra.mxu0 %v755
        %1133 = vmatprep.subr.mxu0 %v759
        %1134 = vmatpush1.msra.mxu0 %v758
        %1135 = vmatprep.subr.mxu0 %v762
        %1136 = vmatpush1.msra.mxu0 %v761
        %1137 = vmatprep.subr.mxu0 %v765
        %1138 = vmatpush1.msra.mxu0 %v764
        %1139 = vmatprep.subr.mxu0 %v768
        %1140 = vmatpush1.msra.mxu0 %v767
        %1141 = vmatprep.subr.mxu0 %v771
        %1142 = vmatpush1.msra.mxu0 %v770
        %1143 = vmatprep.subr.mxu0 %v774
        %1144 = vmatpush1.msra.mxu0 %v773
        %1145 = vmatprep.subr.mxu0 %v777
        %1146 = vmatpush1.msra.mxu0 %v776
        %1147 = vmatprep.subr.mxu0 %v780
        %1148 = vmatpush1.msra.mxu0 %v779
        %1149 = vmatprep.subr.mxu0 %v783
        %1150 = vmatpush1.msra.mxu0 %v782
        %1151 = vmatprep.subr.mxu0 %v786
        %1152 = vmatpush1.msra.mxu0 %v785
        %1153 = vmatprep.subr.mxu0 %v789
        %1154 = vmatpush1.msra.mxu0 %v788
        %1155 = vmatprep.subr.mxu0 %v792
        %1156 = vmatpush1.msra.mxu0 %v791
        %1157 = vmatprep.subr.mxu0 %v795
        %1158 = vmatpush1.msra.mxu0 %v794
        %1159 = vmatprep.subr.mxu0 0.0
        %1160 = vmatpush1.msra.mxu0 0.0
        %1161 = vmatprep.subr.mxu0 0.0
        %1162 = vmatpush1.msra.mxu0 0.0
        %1163 = vmatprep.subr.mxu0 0.0
        %1164 = vmatpush1.msra.mxu0 0.0
        %1165 = vmatprep.subr.mxu0 0.0
        %1166 = vmatpush1.msra.mxu0 0.0
        %1167 = vmatprep.subr.mxu0 0.0
        %1168 = vmatpush1.msra.mxu0 0.0
        %1169 = vmatprep.subr.mxu0 0.0
        %1170 = vmatpush1.msra.mxu0 0.0
        %1171 = vmatprep.subr.mxu0 0.0
        %1172 = vmatpush1.msra.mxu0 0.0
        %1173 = vmatprep.subr.mxu0 0.0
        %1174 = vmatpush1.msra.mxu0 0.0
        %1175 = vmatprep.subr.mxu0 0.0
        %1176 = vmatpush1.msra.mxu0 0.0
        %1177 = vmatprep.subr.mxu0 0.0
        %1178 = vmatpush1.msra.mxu0 0.0
        %1179 = vmatprep.mubr.f32.mxu0 %v1110
        %1180 = vmatmul.mubr.f32.gmra.mrb[0].mxu0 %v721
        %v1181 = vpop.f32.mrb[0].mxu0
        %v1182 = vadd.f32 %v1024, %v1181
        %v1183 = vpop.f32.mrb[0].mxu0
        %v1184 = vadd.f32 %v1026, %v1183
        %1185 = vmatprep.mubr.f32.mxu0 %v1113
        %1186 = vmatmul.mubr.f32.gmra.mrb[0].mxu0 %v727
        %v1187 = vpop.f32.mrb[0].mxu0
        %v1188 = vadd.f32 %v1030, %v1187
        %v1189 = vpop.f32.mrb[0].mxu0
        %v1190 = vadd.f32 %v1032, %v1189
        %1191 = vdwg.mxu0
        %1192 = vmatprep.subr.mxu0 0.0
        %1193 = vmatpush1.msra.mxu0 %v733
        %1194 = vmatprep.subr.mxu0 0.0
        %1195 = vmatpush1.msra.mxu0 %v736
        %1196 = vmatprep.subr.mxu0 0.0
        %1197 = vmatpush1.msra.mxu0 %v739
        %1198 = vmatprep.subr.mxu0 0.0
        %1199 = vmatpush1.msra.mxu0 %v742
        %1200 = vmatprep.subr.mxu0 0.0
        %1201 = vmatpush1.msra.mxu0 %v745
        %1202 = vmatprep.subr.mxu0 0.0
        %1203 = vmatpush1.msra.mxu0 %v748
        %1204 = vmatprep.subr.mxu0 0.0
        %1205 = vmatpush1.msra.mxu0 %v751
        %1206 = vmatprep.subr.mxu0 0.0
        %1207 = vmatpush1.msra.mxu0 %v754
        %1208 = vmatprep.subr.mxu0 0.0
        %1209 = vmatpush1.msra.mxu0 %v757
        %1210 = vmatprep.subr.mxu0 0.0
        %1211 = vmatpush1.msra.mxu0 %v760
        %1212 = vmatprep.subr.mxu0 0.0
        %1213 = vmatpush1.msra.mxu0 %v763
        %1214 = vmatprep.subr.mxu0 0.0
        %1215 = vmatpush1.msra.mxu0 %v766
        %1216 = vmatprep.subr.mxu0 0.0
        %1217 = vmatpush1.msra.mxu0 %v769
        %1218 = vmatprep.subr.mxu0 0.0
        %1219 = vmatpush1.msra.mxu0 %v772
        %1220 = vmatprep.subr.mxu0 0.0
        %1221 = vmatpush1.msra.mxu0 %v775
        %1222 = vmatprep.subr.mxu0 0.0
        %1223 = vmatpush1.msra.mxu0 %v778
        %1224 = vmatprep.subr.mxu0 0.0
        %1225 = vmatpush1.msra.mxu0 %v781
        %1226 = vmatprep.subr.mxu0 0.0
        %1227 = vmatpush1.msra.mxu0 %v784
        %1228 = vmatprep.subr.mxu0 0.0
        %1229 = vmatpush1.msra.mxu0 %v787
        %1230 = vmatprep.subr.mxu0 0.0
        %1231 = vmatpush1.msra.mxu0 %v790
        %1232 = vmatprep.subr.mxu0 0.0
        %1233 = vmatpush1.msra.mxu0 %v793
        %1234 = vmatprep.subr.mxu0 0.0
        %1235 = vmatpush1.msra.mxu0 %v796
        %1236 = vmatprep.subr.mxu0 0.0
        %1237 = vmatpush1.msra.mxu0 0.0
        %1238 = vmatprep.subr.mxu0 0.0
        %1239 = vmatpush1.msra.mxu0 0.0
        %1240 = vmatprep.subr.mxu0 0.0
        %1241 = vmatpush1.msra.mxu0 0.0
        %1242 = vmatprep.subr.mxu0 0.0
        %1243 = vmatpush1.msra.mxu0 0.0
        %1244 = vmatprep.subr.mxu0 0.0
        %1245 = vmatpush1.msra.mxu0 0.0
        %1246 = vmatprep.subr.mxu0 0.0
        %1247 = vmatpush1.msra.mxu0 0.0
        %1248 = vmatprep.subr.mxu0 0.0
        %1249 = vmatpush1.msra.mxu0 0.0
        %1250 = vmatprep.subr.mxu0 0.0
        %1251 = vmatpush1.msra.mxu0 0.0
        %1252 = vmatprep.subr.mxu0 0.0
        %1253 = vmatpush1.msra.mxu0 0.0
        %1254 = vmatprep.subr.mxu0 0.0
        %1255 = vmatpush1.msra.mxu0 0.0
        %1256 = vmatprep.mubr.f32.mxu0 %v1110
        %1257 = vmatmul.mubr.f32.gmra.mrb[0].mxu0 %v721
        %v1258 = vpop.f32.mrb[0].mxu0
        %v1259 = vadd.f32 %v1101, %v1258
        %v1260 = vpop.f32.mrb[0].mxu0
        %1261 = vmatprep.mubr.f32.mxu0 %v1113
        %1262 = vmatmul.mubr.f32.gmra.mrb[0].mxu0 %v727
        %v1263 = vpop.f32.mrb[0].mxu0
        %v1264 = vadd.f32 %v1106, %v1263
        %v1265 = vpop.f32.mrb[0].mxu0
        %1266 = vdwg.mxu0
        %s1267 = scalar_lea.vmem %s1, 32
        %v1268 = vld [vmem:[%s1267] sm:$0xff]
        %v1269 = vld [vmem:[%s1267 + $0x8] sm:$0x3]
        %v1271 = vsel %vm640, %v1268, 0
        %v1274 = vsel %vm640, %v1269, 0
        %1276 = vmatprep.subr.mxu0 %v627
        %1277 = vmatpush1.msra.mxu0 %v626
        %1278 = vmatprep.subr.mxu0 %v629
        %1279 = vmatpush1.msra.mxu0 %v628
        %1280 = vmatprep.subr.mxu0 %v631
        %1281 = vmatpush1.msra.mxu0 %v630
        %1282 = vmatprep.subr.mxu0 %v633
        %1283 = vmatpush1.msra.mxu0 %v632
        %1284 = vmatprep.subr.mxu0 %v635
        %1285 = vmatpush1.msra.mxu0 %v634
        %1286 = vmatprep.subr.mxu0 %v652
        %1287 = vmatpush1.msra.mxu0 %v649
        %1288 = vmatprep.subr.mxu0 0.0
        %1289 = vmatpush1.msra.mxu0 0.0
        %1290 = vmatprep.subr.mxu0 0.0
        %1291 = vmatpush1.msra.mxu0 0.0
        %1292 = vmatprep.subr.mxu0 0.0
        %1293 = vmatpush1.msra.mxu0 0.0
        %1294 = vmatprep.subr.mxu0 0.0
        %1295 = vmatpush1.msra.mxu0 0.0
        %1296 = vmatprep.subr.mxu0 0.0
        %1297 = vmatpush1.msra.mxu0 0.0
        %1298 = vmatprep.subr.mxu0 0.0
        %1299 = vmatpush1.msra.mxu0 0.0
        %1300 = vmatprep.subr.mxu0 0.0
        %1301 = vmatpush1.msra.mxu0 0.0
        %1302 = vmatprep.subr.mxu0 0.0
        %1303 = vmatpush1.msra.mxu0 0.0
        %1304 = vmatprep.subr.mxu0 0.0
        %1305 = vmatpush1.msra.mxu0 0.0
        %1306 = vmatprep.subr.mxu0 0.0
        %1307 = vmatpush1.msra.mxu0 0.0
        %1308 = vmatprep.subr.mxu0 0.0
        %1309 = vmatpush1.msra.mxu0 0.0
        %1310 = vmatprep.subr.mxu0 0.0
        %1311 = vmatpush1.msra.mxu0 0.0
        %1312 = vmatprep.subr.mxu0 0.0
        %1313 = vmatpush1.msra.mxu0 0.0
        %1314 = vmatprep.subr.mxu0 0.0
        %1315 = vmatpush1.msra.mxu0 0.0
        %1316 = vmatprep.subr.mxu0 0.0
        %1317 = vmatpush1.msra.mxu0 0.0
        %1318 = vmatprep.subr.mxu0 0.0
        %1319 = vmatpush1.msra.mxu0 0.0
        %1320 = vmatprep.subr.mxu0 0.0
        %1321 = vmatpush1.msra.mxu0 0.0
        %1322 = vmatprep.subr.mxu0 0.0
        %1323 = vmatpush1.msra.mxu0 0.0
        %1324 = vmatprep.subr.mxu0 0.0
        %1325 = vmatpush1.msra.mxu0 0.0
        %1326 = vmatprep.subr.mxu0 0.0
        %1327 = vmatpush1.msra.mxu0 0.0
        %1328 = vmatprep.subr.mxu0 0.0
        %1329 = vmatpush1.msra.mxu0 0.0
        %1330 = vmatprep.subr.mxu0 0.0
        %1331 = vmatpush1.msra.mxu0 0.0
        %1332 = vmatprep.subr.mxu0 0.0
        %1333 = vmatpush1.msra.mxu0 0.0
        %1334 = vmatprep.subr.mxu0 0.0
        %1335 = vmatpush1.msra.mxu0 0.0
        %1336 = vmatprep.subr.mxu0 0.0
        %1337 = vmatpush1.msra.mxu0 0.0
        %1338 = vmatprep.subr.mxu0 0.0
        %1339 = vmatpush1.msra.mxu0 0.0
        %1340 = vmatprep.mubr.f32.mxu0 0.0
        %1341 = vmatmul.mubr.f32.gmra.mrb[0].mxu0 %v1271
        %v1342 = vpop.f32.mrb[0].mxu0
        %v1343 = vadd.f32 0.0, %v1342
        %v1344 = vpop.f32.mrb[0].mxu0
        %v1345 = vadd.f32 0.0, %v1344
        %1346 = vmatprep.mubr.f32.mxu0 0.0
        %1347 = vmatmul.mubr.f32.gmra.mrb[0].mxu0 %v1274
        %v1348 = vpop.f32.mrb[0].mxu0
        %v1349 = vadd.f32 0.0, %v1348
        %v1350 = vpop.f32.mrb[0].mxu0
        %v1351 = vadd.f32 0.0, %v1350
        %1352 = vdwg.mxu0
        %s1353 = scalar_lea.vmem [#allocation2], 1056
        %v1354 = vld [vmem:[%s1353] sm:$0xff]
        %v1355 = vld [vmem:[%s1353 + $0x8] sm:$0xff]
        %v1356 = vld [vmem:[%s1353 + $0x10] sm:$0xff]
        %v1357 = vld [vmem:[%s1353 + $0x18] sm:$0xff]
        %v1358 = vld [vmem:[%s1353 + $0x20] sm:$0xff]
        %v1359 = vld [vmem:[%s1353 + $0x28] sm:$0xff]
        %v1360 = vld [vmem:[%s1353 + $0x30] sm:$0xff]
        %v1361 = vld [vmem:[%s1353 + $0x38] sm:$0xff]
        %v1362 = vld [vmem:[%s1353 + $0x40] sm:$0xff]
        %v1363 = vld [vmem:[%s1353 + $0x48] sm:$0xff]
        %v1364 = vld [vmem:[%s1353 + $0x50] sm:$0xff]
        %v1365 = vld [vmem:[%s1353 + $0x58] sm:$0xff]
        %v1366 = vld [vmem:[%s1353 + $0x60] sm:$0xff]
        %v1367 = vld [vmem:[%s1353 + $0x68] sm:$0xff]
        %v1368 = vld [vmem:[%s1353 + $0x70] sm:$0xff]
        %v1369 = vld [vmem:[%s1353 + $0x78] sm:$0xff]
        %v1370 = vld [vmem:[%s1353 + $0x80] sm:$0xff]
        %v1371 = vld [vmem:[%s1353 + $0x88] sm:$0xff]
        %v1372 = vld [vmem:[%s1353 + $0x90] sm:$0xff]
        %v1373 = vld [vmem:[%s1353 + $0x98] sm:$0xff]
        %v1374 = vld [vmem:[%s1353 + $0xa0] sm:$0xff]
        %v1375 = vld [vmem:[%s1353 + $0xa8] sm:$0xff]
        %v1376 = vld [vmem:[%s1353 + $0xb0] sm:$0xff]
        %v1377 = vld [vmem:[%s1353 + $0xb8] sm:$0xff]
        %v1378 = vld [vmem:[%s1353 + $0xc0] sm:$0xff]
        %v1379 = vld [vmem:[%s1353 + $0xc8] sm:$0xff]
        %v1380 = vld [vmem:[%s1353 + $0xd0] sm:$0xff]
        %v1381 = vld [vmem:[%s1353 + $0xd8] sm:$0xff]
        %v1382 = vld [vmem:[%s1353 + $0xe0] sm:$0xff]
        %v1383 = vld [vmem:[%s1353 + $0xe8] sm:$0xff]
        %v1384 = vld [vmem:[%s1353 + $0xf0] sm:$0xff]
        %v1385 = vld [vmem:[%s1353 + $0xf8] sm:$0xff]
        %v1386 = vld [vmem:[%s1353 + $0x100] sm:$0xff]
        %v1387 = vld [vmem:[%s1353 + $0x108] sm:$0xff]
        %v1388 = vld [vmem:[%s1353 + $0x110] sm:$0xff]
        %v1389 = vld [vmem:[%s1353 + $0x118] sm:$0xff]
        %v1390 = vld [vmem:[%s1353 + $0x120] sm:$0xff]
        %v1391 = vld [vmem:[%s1353 + $0x128] sm:$0xff]
        %v1392 = vld [vmem:[%s1353 + $0x130] sm:$0xff]
        %v1393 = vld [vmem:[%s1353 + $0x138] sm:$0xff]
        %v1394 = vld [vmem:[%s1353 + $0x140] sm:$0xff]
        %v1395 = vld [vmem:[%s1353 + $0x148] sm:$0xff]
        %v1396 = vld [vmem:[%s1353 + $0x150] sm:$0xff]
        %v1397 = vld [vmem:[%s1353 + $0x158] sm:$0xff]
        %v1398 = vld [vmem:[%s1353 + $0x160] sm:$0xff]
        %v1399 = vld [vmem:[%s1353 + $0x168] sm:$0xff]
        %v1400 = vld [vmem:[%s1353 + $0x170] sm:$0xff]
        %v1401 = vld [vmem:[%s1353 + $0x178] sm:$0xff]
        %v1402 = vld [vmem:[%s1353 + $0x180] sm:$0xff]
        %v1403 = vld [vmem:[%s1353 + $0x188] sm:$0xff]
        %v1404 = vld [vmem:[%s1353 + $0x190] sm:$0xff]
        %v1405 = vld [vmem:[%s1353 + $0x198] sm:$0xff]
        %v1406 = vld [vmem:[%s1353 + $0x1a0] sm:$0xff]
        %v1407 = vld [vmem:[%s1353 + $0x1a8] sm:$0xff]
        %v1408 = vld [vmem:[%s1353 + $0x1b0] sm:$0xff]
        %v1409 = vld [vmem:[%s1353 + $0x1b8] sm:$0xff]
        %v1410 = vld [vmem:[%s1353 + $0x1c0] sm:$0xff]
        %v1411 = vld [vmem:[%s1353 + $0x1c8] sm:$0xff]
        %v1412 = vld [vmem:[%s1353 + $0x1d0] sm:$0xff]
        %v1413 = vld [vmem:[%s1353 + $0x1d8] sm:$0xff]
        %v1414 = vld [vmem:[%s1353 + $0x1e0] sm:$0xff]
        %v1415 = vld [vmem:[%s1353 + $0x1e8] sm:$0xff]
        %v1416 = vld [vmem:[%s1353 + $0x1f0] sm:$0xff]
        %v1417 = vld [vmem:[%s1353 + $0x1f8] sm:$0xff]
        %v1418 = vld [vmem:[%s1353 + $0x200] sm:$0xff]
        %v1419 = vld [vmem:[%s1353 + $0x208] sm:$0xff]
        %v1421 = vsel %vm950, %v1345, 0
        %v1424 = vsel %vm950, %v1351, 0
        %1426 = vmatprep.subr.mxu0 %v1355
        %1427 = vmatpush1.msra.mxu0 %v1354
        %1428 = vmatprep.subr.mxu0 %v1358
        %1429 = vmatpush1.msra.mxu0 %v1357
        %1430 = vmatprep.subr.mxu0 %v1361
        %1431 = vmatpush1.msra.mxu0 %v1360
        %1432 = vmatprep.subr.mxu0 %v1364
        %1433 = vmatpush1.msra.mxu0 %v1363
        %1434 = vmatprep.subr.mxu0 %v1367
        %1435 = vmatpush1.msra.mxu0 %v1366
        %1436 = vmatprep.subr.mxu0 %v1370
        %1437 = vmatpush1.msra.mxu0 %v1369
        %1438 = vmatprep.subr.mxu0 %v1373
        %1439 = vmatpush1.msra.mxu0 %v1372
        %1440 = vmatprep.subr.mxu0 %v1376
        %1441 = vmatpush1.msra.mxu0 %v1375
        %1442 = vmatprep.subr.mxu0 %v1379
        %1443 = vmatpush1.msra.mxu0 %v1378
        %1444 = vmatprep.subr.mxu0 %v1382
        %1445 = vmatpush1.msra.mxu0 %v1381
        %1446 = vmatprep.subr.mxu0 %v1385
        %1447 = vmatpush1.msra.mxu0 %v1384
        %1448 = vmatprep.subr.mxu0 %v1388
        %1449 = vmatpush1.msra.mxu0 %v1387
        %1450 = vmatprep.subr.mxu0 %v1391
        %1451 = vmatpush1.msra.mxu0 %v1390
        %1452 = vmatprep.subr.mxu0 %v1394
        %1453 = vmatpush1.msra.mxu0 %v1393
        %1454 = vmatprep.subr.mxu0 %v1397
        %1455 = vmatpush1.msra.mxu0 %v1396
        %1456 = vmatprep.subr.mxu0 %v1400
        %1457 = vmatpush1.msra.mxu0 %v1399
        %1458 = vmatprep.subr.mxu0 %v1403
        %1459 = vmatpush1.msra.mxu0 %v1402
        %1460 = vmatprep.subr.mxu0 %v1406
        %1461 = vmatpush1.msra.mxu0 %v1405
        %1462 = vmatprep.subr.mxu0 %v1409
        %1463 = vmatpush1.msra.mxu0 %v1408
        %1464 = vmatprep.subr.mxu0 %v1412
        %1465 = vmatpush1.msra.mxu0 %v1411
        %1466 = vmatprep.subr.mxu0 %v1415
        %1467 = vmatpush1.msra.mxu0 %v1414
        %1468 = vmatprep.subr.mxu0 %v1418
        %1469 = vmatpush1.msra.mxu0 %v1417
        %1470 = vmatprep.subr.mxu0 0.0
        %1471 = vmatpush1.msra.mxu0 0.0
        %1472 = vmatprep.subr.mxu0 0.0
        %1473 = vmatpush1.msra.mxu0 0.0
        %1474 = vmatprep.subr.mxu0 0.0
        %1475 = vmatpush1.msra.mxu0 0.0
        %1476 = vmatprep.subr.mxu0 0.0
        %1477 = vmatpush1.msra.mxu0 0.0
        %1478 = vmatprep.subr.mxu0 0.0
        %1479 = vmatpush1.msra.mxu0 0.0
        %1480 = vmatprep.subr.mxu0 0.0
        %1481 = vmatpush1.msra.mxu0 0.0
        %1482 = vmatprep.subr.mxu0 0.0
        %1483 = vmatpush1.msra.mxu0 0.0
        %1484 = vmatprep.subr.mxu0 0.0
        %1485 = vmatpush1.msra.mxu0 0.0
        %1486 = vmatprep.subr.mxu0 0.0
        %1487 = vmatpush1.msra.mxu0 0.0
        %1488 = vmatprep.subr.mxu0 0.0
        %1489 = vmatpush1.msra.mxu0 0.0
        %1490 = vmatprep.mubr.f32.mxu0 %v1421
        %1491 = vmatmul.mubr.f32.gmra.mrb[0].mxu0 %v1343
        %v1492 = vpop.f32.mrb[0].mxu0
        %v1493 = vadd.f32 0.0, %v1492
        %v1494 = vpop.f32.mrb[0].mxu0
        %v1495 = vadd.f32 0.0, %v1494
        %1496 = vmatprep.mubr.f32.mxu0 %v1424
        %1497 = vmatmul.mubr.f32.gmra.mrb[0].mxu0 %v1349
        %v1498 = vpop.f32.mrb[0].mxu0
        %v1499 = vadd.f32 0.0, %v1498
        %v1500 = vpop.f32.mrb[0].mxu0
        %v1501 = vadd.f32 0.0, %v1500
        %1502 = vdwg.mxu0
        %1503 = vmatprep.subr.mxu0 0.0
        %1504 = vmatpush1.msra.mxu0 %v1356
        %1505 = vmatprep.subr.mxu0 0.0
        %1506 = vmatpush1.msra.mxu0 %v1359
        %1507 = vmatprep.subr.mxu0 0.0
        %1508 = vmatpush1.msra.mxu0 %v1362
        %1509 = vmatprep.subr.mxu0 0.0
        %1510 = vmatpush1.msra.mxu0 %v1365
        %1511 = vmatprep.subr.mxu0 0.0
        %1512 = vmatpush1.msra.mxu0 %v1368
        %1513 = vmatprep.subr.mxu0 0.0
        %1514 = vmatpush1.msra.mxu0 %v1371
        %1515 = vmatprep.subr.mxu0 0.0
        %1516 = vmatpush1.msra.mxu0 %v1374
        %1517 = vmatprep.subr.mxu0 0.0
        %1518 = vmatpush1.msra.mxu0 %v1377
        %1519 = vmatprep.subr.mxu0 0.0
        %1520 = vmatpush1.msra.mxu0 %v1380
        %1521 = vmatprep.subr.mxu0 0.0
        %1522 = vmatpush1.msra.mxu0 %v1383
        %1523 = vmatprep.subr.mxu0 0.0
        %1524 = vmatpush1.msra.mxu0 %v1386
        %1525 = vmatprep.subr.mxu0 0.0
        %1526 = vmatpush1.msra.mxu0 %v1389
        %1527 = vmatprep.subr.mxu0 0.0
        %1528 = vmatpush1.msra.mxu0 %v1392
        %1529 = vmatprep.subr.mxu0 0.0
        %1530 = vmatpush1.msra.mxu0 %v1395
        %1531 = vmatprep.subr.mxu0 0.0
        %1532 = vmatpush1.msra.mxu0 %v1398
        %1533 = vmatprep.subr.mxu0 0.0
        %1534 = vmatpush1.msra.mxu0 %v1401
        %1535 = vmatprep.subr.mxu0 0.0
        %1536 = vmatpush1.msra.mxu0 %v1404
        %1537 = vmatprep.subr.mxu0 0.0
        %1538 = vmatpush1.msra.mxu0 %v1407
        %1539 = vmatprep.subr.mxu0 0.0
        %1540 = vmatpush1.msra.mxu0 %v1410
        %1541 = vmatprep.subr.mxu0 0.0
        %1542 = vmatpush1.msra.mxu0 %v1413
        %1543 = vmatprep.subr.mxu0 0.0
        %1544 = vmatpush1.msra.mxu0 %v1416
        %1545 = vmatprep.subr.mxu0 0.0
        %1546 = vmatpush1.msra.mxu0 %v1419
        %1547 = vmatprep.subr.mxu0 0.0
        %1548 = vmatpush1.msra.mxu0 0.0
        %1549 = vmatprep.subr.mxu0 0.0
        %1550 = vmatpush1.msra.mxu0 0.0
        %1551 = vmatprep.subr.mxu0 0.0
        %1552 = vmatpush1.msra.mxu0 0.0
        %1553 = vmatprep.subr.mxu0 0.0
        %1554 = vmatpush1.msra.mxu0 0.0
        %1555 = vmatprep.subr.mxu0 0.0
        %1556 = vmatpush1.msra.mxu0 0.0
        %1557 = vmatprep.subr.mxu0 0.0
        %1558 = vmatpush1.msra.mxu0 0.0
        %1559 = vmatprep.subr.mxu0 0.0
        %1560 = vmatpush1.msra.mxu0 0.0
        %1561 = vmatprep.subr.mxu0 0.0
        %1562 = vmatpush1.msra.mxu0 0.0
        %1563 = vmatprep.subr.mxu0 0.0
        %1564 = vmatpush1.msra.mxu0 0.0
        %1565 = vmatprep.subr.mxu0 0.0
        %1566 = vmatpush1.msra.mxu0 0.0
        %1567 = vmatprep.mubr.f32.mxu0 %v1421
        %1568 = vmatmul.mubr.f32.gmra.mrb[0].mxu0 %v1343
        %v1569 = vpop.f32.mrb[0].mxu0
        %v1570 = vadd.f32 0.0, %v1569
        %v1571 = vpop.f32.mrb[0].mxu0
        %1572 = vmatprep.mubr.f32.mxu0 %v1424
        %1573 = vmatmul.mubr.f32.gmra.mrb[0].mxu0 %v1349
        %v1574 = vpop.f32.mrb[0].mxu0
        %v1575 = vadd.f32 0.0, %v1574
        %v1576 = vpop.f32.mrb[0].mxu0
        %1577 = vdwg.mxu0
        %v1578 = vadd.f32 %v1182, %v1493
        %v1579 = vadd.f32 %v1184, %v1495
        %v1580 = vadd.f32 %v1259, %v1570
        %v1581 = vadd.f32 %v1188, %v1499
        %v1582 = vadd.f32 %v1190, %v1501
        %v1583 = vadd.f32 %v1264, %v1575
        %s1584 = scalar_lea.vmem %s1, 48
        %v1585 = vld [vmem:[%s1584] sm:$0xff]
        %v1586 = vld [vmem:[%s1584 + $0x8] sm:$0x3]
        %v1588 = vsel %vm640, %v1585, 0
        %v1591 = vsel %vm640, %v1586, 0
        %1593 = vmatprep.subr.mxu0 %v627
        %1594 = vmatpush1.msra.mxu0 %v626
        %1595 = vmatprep.subr.mxu0 %v629
        %1596 = vmatpush1.msra.mxu0 %v628
        %1597 = vmatprep.subr.mxu0 %v631
        %1598 = vmatpush1.msra.mxu0 %v630
        %1599 = vmatprep.subr.mxu0 %v633
        %1600 = vmatpush1.msra.mxu0 %v632
        %1601 = vmatprep.subr.mxu0 %v635
        %1602 = vmatpush1.msra.mxu0 %v634
        %1603 = vmatprep.subr.mxu0 %v652
        %1604 = vmatpush1.msra.mxu0 %v649
        %1605 = vmatprep.subr.mxu0 0.0
        %1606 = vmatpush1.msra.mxu0 0.0
        %1607 = vmatprep.subr.mxu0 0.0
        %1608 = vmatpush1.msra.mxu0 0.0
        %1609 = vmatprep.subr.mxu0 0.0
        %1610 = vmatpush1.msra.mxu0 0.0
        %1611 = vmatprep.subr.mxu0 0.0
        %1612 = vmatpush1.msra.mxu0 0.0
        %1613 = vmatprep.subr.mxu0 0.0
        %1614 = vmatpush1.msra.mxu0 0.0
        %1615 = vmatprep.subr.mxu0 0.0
        %1616 = vmatpush1.msra.mxu0 0.0
        %1617 = vmatprep.subr.mxu0 0.0
        %1618 = vmatpush1.msra.mxu0 0.0
        %1619 = vmatprep.subr.mxu0 0.0
        %1620 = vmatpush1.msra.mxu0 0.0
        %1621 = vmatprep.subr.mxu0 0.0
        %1622 = vmatpush1.msra.mxu0 0.0
        %1623 = vmatprep.subr.mxu0 0.0
        %1624 = vmatpush1.msra.mxu0 0.0
        %1625 = vmatprep.subr.mxu0 0.0
        %1626 = vmatpush1.msra.mxu0 0.0
        %1627 = vmatprep.subr.mxu0 0.0
        %1628 = vmatpush1.msra.mxu0 0.0
        %1629 = vmatprep.subr.mxu0 0.0
        %1630 = vmatpush1.msra.mxu0 0.0
        %1631 = vmatprep.subr.mxu0 0.0
        %1632 = vmatpush1.msra.mxu0 0.0
        %1633 = vmatprep.subr.mxu0 0.0
        %1634 = vmatpush1.msra.mxu0 0.0
        %1635 = vmatprep.subr.mxu0 0.0
        %1636 = vmatpush1.msra.mxu0 0.0
        %1637 = vmatprep.subr.mxu0 0.0
        %1638 = vmatpush1.msra.mxu0 0.0
        %1639 = vmatprep.subr.mxu0 0.0
        %1640 = vmatpush1.msra.mxu0 0.0
        %1641 = vmatprep.subr.mxu0 0.0
        %1642 = vmatpush1.msra.mxu0 0.0
        %1643 = vmatprep.subr.mxu0 0.0
        %1644 = vmatpush1.msra.mxu0 0.0
        %1645 = vmatprep.subr.mxu0 0.0
        %1646 = vmatpush1.msra.mxu0 0.0
        %1647 = vmatprep.subr.mxu0 0.0
        %1648 = vmatpush1.msra.mxu0 0.0
        %1649 = vmatprep.subr.mxu0 0.0
        %1650 = vmatpush1.msra.mxu0 0.0
        %1651 = vmatprep.subr.mxu0 0.0
        %1652 = vmatpush1.msra.mxu0 0.0
        %1653 = vmatprep.subr.mxu0 0.0
        %1654 = vmatpush1.msra.mxu0 0.0
        %1655 = vmatprep.subr.mxu0 0.0
        %1656 = vmatpush1.msra.mxu0 0.0
        %1657 = vmatprep.mubr.f32.mxu0 0.0
        %1658 = vmatmul.mubr.f32.gmra.mrb[0].mxu0 %v1588
        %v1659 = vpop.f32.mrb[0].mxu0
        %v1660 = vadd.f32 0.0, %v1659
        %v1661 = vpop.f32.mrb[0].mxu0
        %v1662 = vadd.f32 0.0, %v1661
        %1663 = vmatprep.mubr.f32.mxu0 0.0
        %1664 = vmatmul.mubr.f32.gmra.mrb[0].mxu0 %v1591
        %v1665 = vpop.f32.mrb[0].mxu0
        %v1666 = vadd.f32 0.0, %v1665
        %v1667 = vpop.f32.mrb[0].mxu0
        %v1668 = vadd.f32 0.0, %v1667
        %1669 = vdwg.mxu0
        %s1670 = scalar_lea.vmem [#allocation2], 1584
        %v1671 = vld [vmem:[%s1670] sm:$0xff]
        %v1672 = vld [vmem:[%s1670 + $0x8] sm:$0xff]
        %v1673 = vld [vmem:[%s1670 + $0x10] sm:$0xff]
        %v1674 = vld [vmem:[%s1670 + $0x18] sm:$0xff]
        %v1675 = vld [vmem:[%s1670 + $0x20] sm:$0xff]
        %v1676 = vld [vmem:[%s1670 + $0x28] sm:$0xff]
        %v1677 = vld [vmem:[%s1670 + $0x30] sm:$0xff]
        %v1678 = vld [vmem:[%s1670 + $0x38] sm:$0xff]
        %v1679 = vld [vmem:[%s1670 + $0x40] sm:$0xff]
        %v1680 = vld [vmem:[%s1670 + $0x48] sm:$0xff]
        %v1681 = vld [vmem:[%s1670 + $0x50] sm:$0xff]
        %v1682 = vld [vmem:[%s1670 + $0x58] sm:$0xff]
        %v1683 = vld [vmem:[%s1670 + $0x60] sm:$0xff]
        %v1684 = vld [vmem:[%s1670 + $0x68] sm:$0xff]
        %v1685 = vld [vmem:[%s1670 + $0x70] sm:$0xff]
        %v1686 = vld [vmem:[%s1670 + $0x78] sm:$0xff]
        %v1687 = vld [vmem:[%s1670 + $0x80] sm:$0xff]
        %v1688 = vld [vmem:[%s1670 + $0x88] sm:$0xff]
        %v1689 = vld [vmem:[%s1670 + $0x90] sm:$0xff]
        %v1690 = vld [vmem:[%s1670 + $0x98] sm:$0xff]
        %v1691 = vld [vmem:[%s1670 + $0xa0] sm:$0xff]
        %v1692 = vld [vmem:[%s1670 + $0xa8] sm:$0xff]
        %v1693 = vld [vmem:[%s1670 + $0xb0] sm:$0xff]
        %v1694 = vld [vmem:[%s1670 + $0xb8] sm:$0xff]
        %v1695 = vld [vmem:[%s1670 + $0xc0] sm:$0xff]
        %v1696 = vld [vmem:[%s1670 + $0xc8] sm:$0xff]
        %v1697 = vld [vmem:[%s1670 + $0xd0] sm:$0xff]
        %v1698 = vld [vmem:[%s1670 + $0xd8] sm:$0xff]
        %v1699 = vld [vmem:[%s1670 + $0xe0] sm:$0xff]
        %v1700 = vld [vmem:[%s1670 + $0xe8] sm:$0xff]
        %v1701 = vld [vmem:[%s1670 + $0xf0] sm:$0xff]
        %v1702 = vld [vmem:[%s1670 + $0xf8] sm:$0xff]
        %v1703 = vld [vmem:[%s1670 + $0x100] sm:$0xff]
        %v1704 = vld [vmem:[%s1670 + $0x108] sm:$0xff]
        %v1705 = vld [vmem:[%s1670 + $0x110] sm:$0xff]
        %v1706 = vld [vmem:[%s1670 + $0x118] sm:$0xff]
        %v1707 = vld [vmem:[%s1670 + $0x120] sm:$0xff]
        %v1708 = vld [vmem:[%s1670 + $0x128] sm:$0xff]
        %v1709 = vld [vmem:[%s1670 + $0x130] sm:$0xff]
        %v1710 = vld [vmem:[%s1670 + $0x138] sm:$0xff]
        %v1711 = vld [vmem:[%s1670 + $0x140] sm:$0xff]
        %v1712 = vld [vmem:[%s1670 + $0x148] sm:$0xff]
        %v1713 = vld [vmem:[%s1670 + $0x150] sm:$0xff]
        %v1714 = vld [vmem:[%s1670 + $0x158] sm:$0xff]
        %v1715 = vld [vmem:[%s1670 + $0x160] sm:$0xff]
        %v1716 = vld [vmem:[%s1670 + $0x168] sm:$0xff]
        %v1717 = vld [vmem:[%s1670 + $0x170] sm:$0xff]
        %v1718 = vld [vmem:[%s1670 + $0x178] sm:$0xff]
        %v1719 = vld [vmem:[%s1670 + $0x180] sm:$0xff]
        %v1720 = vld [vmem:[%s1670 + $0x188] sm:$0xff]
        %v1721 = vld [vmem:[%s1670 + $0x190] sm:$0xff]
        %v1722 = vld [vmem:[%s1670 + $0x198] sm:$0xff]
        %v1723 = vld [vmem:[%s1670 + $0x1a0] sm:$0xff]
        %v1724 = vld [vmem:[%s1670 + $0x1a8] sm:$0xff]
        %v1725 = vld [vmem:[%s1670 + $0x1b0] sm:$0xff]
        %v1726 = vld [vmem:[%s1670 + $0x1b8] sm:$0xff]
        %v1727 = vld [vmem:[%s1670 + $0x1c0] sm:$0xff]
        %v1728 = vld [vmem:[%s1670 + $0x1c8] sm:$0xff]
        %v1729 = vld [vmem:[%s1670 + $0x1d0] sm:$0xff]
        %v1730 = vld [vmem:[%s1670 + $0x1d8] sm:$0xff]
        %v1731 = vld [vmem:[%s1670 + $0x1e0] sm:$0xff]
        %v1732 = vld [vmem:[%s1670 + $0x1e8] sm:$0xff]
        %v1733 = vld [vmem:[%s1670 + $0x1f0] sm:$0xff]
        %v1734 = vld [vmem:[%s1670 + $0x1f8] sm:$0xff]
        %v1735 = vld [vmem:[%s1670 + $0x200] sm:$0xff]
        %v1736 = vld [vmem:[%s1670 + $0x208] sm:$0xff]
        %v1738 = vsel %vm950, %v1662, 0
        %v1741 = vsel %vm950, %v1668, 0
        %1743 = vmatprep.subr.mxu0 %v1672
        %1744 = vmatpush1.msra.mxu0 %v1671
        %1745 = vmatprep.subr.mxu0 %v1675
        %1746 = vmatpush1.msra.mxu0 %v1674
        %1747 = vmatprep.subr.mxu0 %v1678
        %1748 = vmatpush1.msra.mxu0 %v1677
        %1749 = vmatprep.subr.mxu0 %v1681
        %1750 = vmatpush1.msra.mxu0 %v1680
        %1751 = vmatprep.subr.mxu0 %v1684
        %1752 = vmatpush1.msra.mxu0 %v1683
        %1753 = vmatprep.subr.mxu0 %v1687
        %1754 = vmatpush1.msra.mxu0 %v1686
        %1755 = vmatprep.subr.mxu0 %v1690
        %1756 = vmatpush1.msra.mxu0 %v1689
        %1757 = vmatprep.subr.mxu0 %v1693
        %1758 = vmatpush1.msra.mxu0 %v1692
        %1759 = vmatprep.subr.mxu0 %v1696
        %1760 = vmatpush1.msra.mxu0 %v1695
        %1761 = vmatprep.subr.mxu0 %v1699
        %1762 = vmatpush1.msra.mxu0 %v1698
        %1763 = vmatprep.subr.mxu0 %v1702
        %1764 = vmatpush1.msra.mxu0 %v1701
        %1765 = vmatprep.subr.mxu0 %v1705
        %1766 = vmatpush1.msra.mxu0 %v1704
        %1767 = vmatprep.subr.mxu0 %v1708
        %1768 = vmatpush1.msra.mxu0 %v1707
        %1769 = vmatprep.subr.mxu0 %v1711
        %1770 = vmatpush1.msra.mxu0 %v1710
        %1771 = vmatprep.subr.mxu0 %v1714
        %1772 = vmatpush1.msra.mxu0 %v1713
        %1773 = vmatprep.subr.mxu0 %v1717
        %1774 = vmatpush1.msra.mxu0 %v1716
        %1775 = vmatprep.subr.mxu0 %v1720
        %1776 = vmatpush1.msra.mxu0 %v1719
        %1777 = vmatprep.subr.mxu0 %v1723
        %1778 = vmatpush1.msra.mxu0 %v1722
        %1779 = vmatprep.subr.mxu0 %v1726
        %1780 = vmatpush1.msra.mxu0 %v1725
        %1781 = vmatprep.subr.mxu0 %v1729
        %1782 = vmatpush1.msra.mxu0 %v1728
        %1783 = vmatprep.subr.mxu0 %v1732
        %1784 = vmatpush1.msra.mxu0 %v1731
        %1785 = vmatprep.subr.mxu0 %v1735
        %1786 = vmatpush1.msra.mxu0 %v1734
        %1787 = vmatprep.subr.mxu0 0.0
        %1788 = vmatpush1.msra.mxu0 0.0
        %1789 = vmatprep.subr.mxu0 0.0
        %1790 = vmatpush1.msra.mxu0 0.0
        %1791 = vmatprep.subr.mxu0 0.0
        %1792 = vmatpush1.msra.mxu0 0.0
        %1793 = vmatprep.subr.mxu0 0.0
        %1794 = vmatpush1.msra.mxu0 0.0
        %1795 = vmatprep.subr.mxu0 0.0
        %1796 = vmatpush1.msra.mxu0 0.0
        %1797 = vmatprep.subr.mxu0 0.0
        %1798 = vmatpush1.msra.mxu0 0.0
        %1799 = vmatprep.subr.mxu0 0.0
        %1800 = vmatpush1.msra.mxu0 0.0
        %1801 = vmatprep.subr.mxu0 0.0
        %1802 = vmatpush1.msra.mxu0 0.0
        %1803 = vmatprep.subr.mxu0 0.0
        %1804 = vmatpush1.msra.mxu0 0.0
        %1805 = vmatprep.subr.mxu0 0.0
        %1806 = vmatpush1.msra.mxu0 0.0
        %1807 = vmatprep.mubr.f32.mxu0 %v1738
        %1808 = vmatmul.mubr.f32.gmra.mrb[0].mxu0 %v1660
        %v1809 = vpop.f32.mrb[0].mxu0
        %v1810 = vadd.f32 0.0, %v1809
        %v1811 = vpop.f32.mrb[0].mxu0
        %v1812 = vadd.f32 0.0, %v1811
        %1813 = vmatprep.mubr.f32.mxu0 %v1741
        %1814 = vmatmul.mubr.f32.gmra.mrb[0].mxu0 %v1666
        %v1815 = vpop.f32.mrb[0].mxu0
        %v1816 = vadd.f32 0.0, %v1815
        %v1817 = vpop.f32.mrb[0].mxu0
        %v1818 = vadd.f32 0.0, %v1817
        %1819 = vdwg.mxu0
        %1820 = vmatprep.subr.mxu0 0.0
        %1821 = vmatpush1.msra.mxu0 %v1673
        %1822 = vmatprep.subr.mxu0 0.0
        %1823 = vmatpush1.msra.mxu0 %v1676
        %1824 = vmatprep.subr.mxu0 0.0
        %1825 = vmatpush1.msra.mxu0 %v1679
        %1826 = vmatprep.subr.mxu0 0.0
        %1827 = vmatpush1.msra.mxu0 %v1682
        %1828 = vmatprep.subr.mxu0 0.0
        %1829 = vmatpush1.msra.mxu0 %v1685
        %1830 = vmatprep.subr.mxu0 0.0
        %1831 = vmatpush1.msra.mxu0 %v1688
        %1832 = vmatprep.subr.mxu0 0.0
        %1833 = vmatpush1.msra.mxu0 %v1691
        %1834 = vmatprep.subr.mxu0 0.0
        %1835 = vmatpush1.msra.mxu0 %v1694
        %1836 = vmatprep.subr.mxu0 0.0
        %1837 = vmatpush1.msra.mxu0 %v1697
        %1838 = vmatprep.subr.mxu0 0.0
        %1839 = vmatpush1.msra.mxu0 %v1700
        %1840 = vmatprep.subr.mxu0 0.0
        %1841 = vmatpush1.msra.mxu0 %v1703
        %1842 = vmatprep.subr.mxu0 0.0
        %1843 = vmatpush1.msra.mxu0 %v1706
        %1844 = vmatprep.subr.mxu0 0.0
        %1845 = vmatpush1.msra.mxu0 %v1709
        %1846 = vmatprep.subr.mxu0 0.0
        %1847 = vmatpush1.msra.mxu0 %v1712
        %1848 = vmatprep.subr.mxu0 0.0
        %1849 = vmatpush1.msra.mxu0 %v1715
        %1850 = vmatprep.subr.mxu0 0.0
        %1851 = vmatpush1.msra.mxu0 %v1718
        %1852 = vmatprep.subr.mxu0 0.0
        %1853 = vmatpush1.msra.mxu0 %v1721
        %1854 = vmatprep.subr.mxu0 0.0
        %1855 = vmatpush1.msra.mxu0 %v1724
        %1856 = vmatprep.subr.mxu0 0.0
        %1857 = vmatpush1.msra.mxu0 %v1727
        %1858 = vmatprep.subr.mxu0 0.0
        %1859 = vmatpush1.msra.mxu0 %v1730
        %1860 = vmatprep.subr.mxu0 0.0
        %1861 = vmatpush1.msra.mxu0 %v1733
        %1862 = vmatprep.subr.mxu0 0.0
        %1863 = vmatpush1.msra.mxu0 %v1736
        %1864 = vmatprep.subr.mxu0 0.0
        %1865 = vmatpush1.msra.mxu0 0.0
        %1866 = vmatprep.subr.mxu0 0.0
        %1867 = vmatpush1.msra.mxu0 0.0
        %1868 = vmatprep.subr.mxu0 0.0
        %1869 = vmatpush1.msra.mxu0 0.0
        %1870 = vmatprep.subr.mxu0 0.0
        %1871 = vmatpush1.msra.mxu0 0.0
        %1872 = vmatprep.subr.mxu0 0.0
        %1873 = vmatpush1.msra.mxu0 0.0
        %1874 = vmatprep.subr.mxu0 0.0
        %1875 = vmatpush1.msra.mxu0 0.0
        %1876 = vmatprep.subr.mxu0 0.0
        %1877 = vmatpush1.msra.mxu0 0.0
        %1878 = vmatprep.subr.mxu0 0.0
        %1879 = vmatpush1.msra.mxu0 0.0
        %1880 = vmatprep.subr.mxu0 0.0
        %1881 = vmatpush1.msra.mxu0 0.0
        %1882 = vmatprep.subr.mxu0 0.0
        %1883 = vmatpush1.msra.mxu0 0.0
        %1884 = vmatprep.mubr.f32.mxu0 %v1738
        %1885 = vmatmul.mubr.f32.gmra.mrb[0].mxu0 %v1660
        %v1886 = vpop.f32.mrb[0].mxu0
        %v1887 = vadd.f32 0.0, %v1886
        %v1888 = vpop.f32.mrb[0].mxu0
        %1889 = vmatprep.mubr.f32.mxu0 %v1741
        %1890 = vmatmul.mubr.f32.gmra.mrb[0].mxu0 %v1666
        %v1891 = vpop.f32.mrb[0].mxu0
        %v1892 = vadd.f32 0.0, %v1891
        %v1893 = vpop.f32.mrb[0].mxu0
        %1894 = vdwg.mxu0
        %v1895 = vadd.f32 %v1578, %v1810
        %v1896 = vadd.f32 %v1579, %v1812
        %v1897 = vadd.f32 %v1580, %v1887
        %v1898 = vadd.f32 %v1581, %v1816
        %v1899 = vadd.f32 %v1582, %v1818
        %v1900 = vadd.f32 %v1583, %v1892
        %s1901 = scalar_lea.vmem %s1, 64
        %v1902 = vld [vmem:[%s1901] sm:$0xff]
        %v1903 = vld [vmem:[%s1901 + $0x8] sm:$0x3]
        %v1905 = vsel %vm640, %v1902, 0
        %v1908 = vsel %vm640, %v1903, 0
        %1910 = vmatprep.subr.mxu0 %v627
        %1911 = vmatpush1.msra.mxu0 %v626
        %1912 = vmatprep.subr.mxu0 %v629
        %1913 = vmatpush1.msra.mxu0 %v628
        %1914 = vmatprep.subr.mxu0 %v631
        %1915 = vmatpush1.msra.mxu0 %v630
        %1916 = vmatprep.subr.mxu0 %v633
        %1917 = vmatpush1.msra.mxu0 %v632
        %1918 = vmatprep.subr.mxu0 %v635
        %1919 = vmatpush1.msra.mxu0 %v634
        %1920 = vmatprep.subr.mxu0 %v652
        %1921 = vmatpush1.msra.mxu0 %v649
        %1922 = vmatprep.subr.mxu0 0.0
        %1923 = vmatpush1.msra.mxu0 0.0
        %1924 = vmatprep.subr.mxu0 0.0
        %1925 = vmatpush1.msra.mxu0 0.0
        %1926 = vmatprep.subr.mxu0 0.0
        %1927 = vmatpush1.msra.mxu0 0.0
        %1928 = vmatprep.subr.mxu0 0.0
        %1929 = vmatpush1.msra.mxu0 0.0
        %1930 = vmatprep.subr.mxu0 0.0
        %1931 = vmatpush1.msra.mxu0 0.0
        %1932 = vmatprep.subr.mxu0 0.0
        %1933 = vmatpush1.msra.mxu0 0.0
        %1934 = vmatprep.subr.mxu0 0.0
        %1935 = vmatpush1.msra.mxu0 0.0
        %1936 = vmatprep.subr.mxu0 0.0
        %1937 = vmatpush1.msra.mxu0 0.0
        %1938 = vmatprep.subr.mxu0 0.0
        %1939 = vmatpush1.msra.mxu0 0.0
        %1940 = vmatprep.subr.mxu0 0.0
        %1941 = vmatpush1.msra.mxu0 0.0
        %1942 = vmatprep.subr.mxu0 0.0
        %1943 = vmatpush1.msra.mxu0 0.0
        %1944 = vmatprep.subr.mxu0 0.0
        %1945 = vmatpush1.msra.mxu0 0.0
        %1946 = vmatprep.subr.mxu0 0.0
        %1947 = vmatpush1.msra.mxu0 0.0
        %1948 = vmatprep.subr.mxu0 0.0
        %1949 = vmatpush1.msra.mxu0 0.0
        %1950 = vmatprep.subr.mxu0 0.0
        %1951 = vmatpush1.msra.mxu0 0.0
        %1952 = vmatprep.subr.mxu0 0.0
        %1953 = vmatpush1.msra.mxu0 0.0
        %1954 = vmatprep.subr.mxu0 0.0
        %1955 = vmatpush1.msra.mxu0 0.0
        %1956 = vmatprep.subr.mxu0 0.0
        %1957 = vmatpush1.msra.mxu0 0.0
        %1958 = vmatprep.subr.mxu0 0.0
        %1959 = vmatpush1.msra.mxu0 0.0
        %1960 = vmatprep.subr.mxu0 0.0
        %1961 = vmatpush1.msra.mxu0 0.0
        %1962 = vmatprep.subr.mxu0 0.0
        %1963 = vmatpush1.msra.mxu0 0.0
        %1964 = vmatprep.subr.mxu0 0.0
        %1965 = vmatpush1.msra.mxu0 0.0
        %1966 = vmatprep.subr.mxu0 0.0
        %1967 = vmatpush1.msra.mxu0 0.0
        %1968 = vmatprep.subr.mxu0 0.0
        %1969 = vmatpush1.msra.mxu0 0.0
        %1970 = vmatprep.subr.mxu0 0.0
        %1971 = vmatpush1.msra.mxu0 0.0
        %1972 = vmatprep.subr.mxu0 0.0
        %1973 = vmatpush1.msra.mxu0 0.0
        %1974 = vmatprep.mubr.f32.mxu0 0.0
        %1975 = vmatmul.mubr.f32.gmra.mrb[0].mxu0 %v1905
        %v1976 = vpop.f32.mrb[0].mxu0
        %v1977 = vadd.f32 0.0, %v1976
        %v1978 = vpop.f32.mrb[0].mxu0
        %v1979 = vadd.f32 0.0, %v1978
        %1980 = vmatprep.mubr.f32.mxu0 0.0
        %1981 = vmatmul.mubr.f32.gmra.mrb[0].mxu0 %v1908
        %v1982 = vpop.f32.mrb[0].mxu0
        %v1983 = vadd.f32 0.0, %v1982
        %v1984 = vpop.f32.mrb[0].mxu0
        %v1985 = vadd.f32 0.0, %v1984
        %1986 = vdwg.mxu0
        %s1987 = scalar_lea.vmem [#allocation2], 2112
        %v1988 = vld [vmem:[%s1987] sm:$0xff]
        %v1989 = vld [vmem:[%s1987 + $0x8] sm:$0xff]
        %v1990 = vld [vmem:[%s1987 + $0x10] sm:$0xff]
        %v1991 = vld [vmem:[%s1987 + $0x18] sm:$0xff]
        %v1992 = vld [vmem:[%s1987 + $0x20] sm:$0xff]
        %v1993 = vld [vmem:[%s1987 + $0x28] sm:$0xff]
        %v1994 = vld [vmem:[%s1987 + $0x30] sm:$0xff]
        %v1995 = vld [vmem:[%s1987 + $0x38] sm:$0xff]
        %v1996 = vld [vmem:[%s1987 + $0x40] sm:$0xff]
        %v1997 = vld [vmem:[%s1987 + $0x48] sm:$0xff]
        %v1998 = vld [vmem:[%s1987 + $0x50] sm:$0xff]
        %v1999 = vld [vmem:[%s1987 + $0x58] sm:$0xff]
        %v2000 = vld [vmem:[%s1987 + $0x60] sm:$0xff]
        %v2001 = vld [vmem:[%s1987 + $0x68] sm:$0xff]
        %v2002 = vld [vmem:[%s1987 + $0x70] sm:$0xff]
        %v2003 = vld [vmem:[%s1987 + $0x78] sm:$0xff]
        %v2004 = vld [vmem:[%s1987 + $0x80] sm:$0xff]
        %v2005 = vld [vmem:[%s1987 + $0x88] sm:$0xff]
        %v2006 = vld [vmem:[%s1987 + $0x90] sm:$0xff]
        %v2007 = vld [vmem:[%s1987 + $0x98] sm:$0xff]
        %v2008 = vld [vmem:[%s1987 + $0xa0] sm:$0xff]
        %v2009 = vld [vmem:[%s1987 + $0xa8] sm:$0xff]
        %v2010 = vld [vmem:[%s1987 + $0xb0] sm:$0xff]
        %v2011 = vld [vmem:[%s1987 + $0xb8] sm:$0xff]
        %v2012 = vld [vmem:[%s1987 + $0xc0] sm:$0xff]
        %v2013 = vld [vmem:[%s1987 + $0xc8] sm:$0xff]
        %v2014 = vld [vmem:[%s1987 + $0xd0] sm:$0xff]
        %v2015 = vld [vmem:[%s1987 + $0xd8] sm:$0xff]
        %v2016 = vld [vmem:[%s1987 + $0xe0] sm:$0xff]
        %v2017 = vld [vmem:[%s1987 + $0xe8] sm:$0xff]
        %v2018 = vld [vmem:[%s1987 + $0xf0] sm:$0xff]
        %v2019 = vld [vmem:[%s1987 + $0xf8] sm:$0xff]
        %v2020 = vld [vmem:[%s1987 + $0x100] sm:$0xff]
        %v2021 = vld [vmem:[%s1987 + $0x108] sm:$0xff]
        %v2022 = vld [vmem:[%s1987 + $0x110] sm:$0xff]
        %v2023 = vld [vmem:[%s1987 + $0x118] sm:$0xff]
        %v2024 = vld [vmem:[%s1987 + $0x120] sm:$0xff]
        %v2025 = vld [vmem:[%s1987 + $0x128] sm:$0xff]
        %v2026 = vld [vmem:[%s1987 + $0x130] sm:$0xff]
        %v2027 = vld [vmem:[%s1987 + $0x138] sm:$0xff]
        %v2028 = vld [vmem:[%s1987 + $0x140] sm:$0xff]
        %v2029 = vld [vmem:[%s1987 + $0x148] sm:$0xff]
        %v2030 = vld [vmem:[%s1987 + $0x150] sm:$0xff]
        %v2031 = vld [vmem:[%s1987 + $0x158] sm:$0xff]
        %v2032 = vld [vmem:[%s1987 + $0x160] sm:$0xff]
        %v2033 = vld [vmem:[%s1987 + $0x168] sm:$0xff]
        %v2034 = vld [vmem:[%s1987 + $0x170] sm:$0xff]
        %v2035 = vld [vmem:[%s1987 + $0x178] sm:$0xff]
        %v2036 = vld [vmem:[%s1987 + $0x180] sm:$0xff]
        %v2037 = vld [vmem:[%s1987 + $0x188] sm:$0xff]
        %v2038 = vld [vmem:[%s1987 + $0x190] sm:$0xff]
        %v2039 = vld [vmem:[%s1987 + $0x198] sm:$0xff]
        %v2040 = vld [vmem:[%s1987 + $0x1a0] sm:$0xff]
        %v2041 = vld [vmem:[%s1987 + $0x1a8] sm:$0xff]
        %v2042 = vld [vmem:[%s1987 + $0x1b0] sm:$0xff]
        %v2043 = vld [vmem:[%s1987 + $0x1b8] sm:$0xff]
        %v2044 = vld [vmem:[%s1987 + $0x1c0] sm:$0xff]
        %v2045 = vld [vmem:[%s1987 + $0x1c8] sm:$0xff]
        %v2046 = vld [vmem:[%s1987 + $0x1d0] sm:$0xff]
        %v2047 = vld [vmem:[%s1987 + $0x1d8] sm:$0xff]
        %v2048 = vld [vmem:[%s1987 + $0x1e0] sm:$0xff]
        %v2049 = vld [vmem:[%s1987 + $0x1e8] sm:$0xff]
        %v2050 = vld [vmem:[%s1987 + $0x1f0] sm:$0xff]
        %v2051 = vld [vmem:[%s1987 + $0x1f8] sm:$0xff]
        %v2052 = vld [vmem:[%s1987 + $0x200] sm:$0xff]
        %v2053 = vld [vmem:[%s1987 + $0x208] sm:$0xff]
        %v2055 = vsel %vm950, %v1979, 0
        %v2058 = vsel %vm950, %v1985, 0
        %2060 = vmatprep.subr.mxu0 %v1989
        %2061 = vmatpush1.msra.mxu0 %v1988
        %2062 = vmatprep.subr.mxu0 %v1992
        %2063 = vmatpush1.msra.mxu0 %v1991
        %2064 = vmatprep.subr.mxu0 %v1995
        %2065 = vmatpush1.msra.mxu0 %v1994
        %2066 = vmatprep.subr.mxu0 %v1998
        %2067 = vmatpush1.msra.mxu0 %v1997
        %2068 = vmatprep.subr.mxu0 %v2001
        %2069 = vmatpush1.msra.mxu0 %v2000
        %2070 = vmatprep.subr.mxu0 %v2004
        %2071 = vmatpush1.msra.mxu0 %v2003
        %2072 = vmatprep.subr.mxu0 %v2007
        %2073 = vmatpush1.msra.mxu0 %v2006
        %2074 = vmatprep.subr.mxu0 %v2010
        %2075 = vmatpush1.msra.mxu0 %v2009
        %2076 = vmatprep.subr.mxu0 %v2013
        %2077 = vmatpush1.msra.mxu0 %v2012
        %2078 = vmatprep.subr.mxu0 %v2016
        %2079 = vmatpush1.msra.mxu0 %v2015
        %2080 = vmatprep.subr.mxu0 %v2019
        %2081 = vmatpush1.msra.mxu0 %v2018
        %2082 = vmatprep.subr.mxu0 %v2022
        %2083 = vmatpush1.msra.mxu0 %v2021
        %2084 = vmatprep.subr.mxu0 %v2025
        %2085 = vmatpush1.msra.mxu0 %v2024
        %2086 = vmatprep.subr.mxu0 %v2028
        %2087 = vmatpush1.msra.mxu0 %v2027
        %2088 = vmatprep.subr.mxu0 %v2031
        %2089 = vmatpush1.msra.mxu0 %v2030
        %2090 = vmatprep.subr.mxu0 %v2034
        %2091 = vmatpush1.msra.mxu0 %v2033
        %2092 = vmatprep.subr.mxu0 %v2037
        %2093 = vmatpush1.msra.mxu0 %v2036
        %2094 = vmatprep.subr.mxu0 %v2040
        %2095 = vmatpush1.msra.mxu0 %v2039
        %2096 = vmatprep.subr.mxu0 %v2043
        %2097 = vmatpush1.msra.mxu0 %v2042
        %2098 = vmatprep.subr.mxu0 %v2046
        %2099 = vmatpush1.msra.mxu0 %v2045
        %2100 = vmatprep.subr.mxu0 %v2049
        %2101 = vmatpush1.msra.mxu0 %v2048
        %2102 = vmatprep.subr.mxu0 %v2052
        %2103 = vmatpush1.msra.mxu0 %v2051
        %2104 = vmatprep.subr.mxu0 0.0
        %2105 = vmatpush1.msra.mxu0 0.0
        %2106 = vmatprep.subr.mxu0 0.0
        %2107 = vmatpush1.msra.mxu0 0.0
        %2108 = vmatprep.subr.mxu0 0.0
        %2109 = vmatpush1.msra.mxu0 0.0
        %2110 = vmatprep.subr.mxu0 0.0
        %2111 = vmatpush1.msra.mxu0 0.0
        %2112 = vmatprep.subr.mxu0 0.0
        %2113 = vmatpush1.msra.mxu0 0.0
        %2114 = vmatprep.subr.mxu0 0.0
        %2115 = vmatpush1.msra.mxu0 0.0
        %2116 = vmatprep.subr.mxu0 0.0
        %2117 = vmatpush1.msra.mxu0 0.0
        %2118 = vmatprep.subr.mxu0 0.0
        %2119 = vmatpush1.msra.mxu0 0.0
        %2120 = vmatprep.subr.mxu0 0.0
        %2121 = vmatpush1.msra.mxu0 0.0
        %2122 = vmatprep.subr.mxu0 0.0
        %2123 = vmatpush1.msra.mxu0 0.0
        %2124 = vmatprep.mubr.f32.mxu0 %v2055
        %2125 = vmatmul.mubr.f32.gmra.mrb[0].mxu0 %v1977
        %v2126 = vpop.f32.mrb[0].mxu0
        %v2127 = vadd.f32 0.0, %v2126
        %v2128 = vpop.f32.mrb[0].mxu0
        %v2129 = vadd.f32 0.0, %v2128
        %2130 = vmatprep.mubr.f32.mxu0 %v2058
        %2131 = vmatmul.mubr.f32.gmra.mrb[0].mxu0 %v1983
        %v2132 = vpop.f32.mrb[0].mxu0
        %v2133 = vadd.f32 0.0, %v2132
        %v2134 = vpop.f32.mrb[0].mxu0
        %v2135 = vadd.f32 0.0, %v2134
        %2136 = vdwg.mxu0
        %2137 = vmatprep.subr.mxu0 0.0
        %2138 = vmatpush1.msra.mxu0 %v1990
        %2139 = vmatprep.subr.mxu0 0.0
        %2140 = vmatpush1.msra.mxu0 %v1993
        %2141 = vmatprep.subr.mxu0 0.0
        %2142 = vmatpush1.msra.mxu0 %v1996
        %2143 = vmatprep.subr.mxu0 0.0
        %2144 = vmatpush1.msra.mxu0 %v1999
        %2145 = vmatprep.subr.mxu0 0.0
        %2146 = vmatpush1.msra.mxu0 %v2002
        %2147 = vmatprep.subr.mxu0 0.0
        %2148 = vmatpush1.msra.mxu0 %v2005
        %2149 = vmatprep.subr.mxu0 0.0
        %2150 = vmatpush1.msra.mxu0 %v2008
        %2151 = vmatprep.subr.mxu0 0.0
        %2152 = vmatpush1.msra.mxu0 %v2011
        %2153 = vmatprep.subr.mxu0 0.0
        %2154 = vmatpush1.msra.mxu0 %v2014
        %2155 = vmatprep.subr.mxu0 0.0
        %2156 = vmatpush1.msra.mxu0 %v2017
        %2157 = vmatprep.subr.mxu0 0.0
        %2158 = vmatpush1.msra.mxu0 %v2020
        %2159 = vmatprep.subr.mxu0 0.0
        %2160 = vmatpush1.msra.mxu0 %v2023
        %2161 = vmatprep.subr.mxu0 0.0
        %2162 = vmatpush1.msra.mxu0 %v2026
        %2163 = vmatprep.subr.mxu0 0.0
        %2164 = vmatpush1.msra.mxu0 %v2029
        %2165 = vmatprep.subr.mxu0 0.0
        %2166 = vmatpush1.msra.mxu0 %v2032
        %2167 = vmatprep.subr.mxu0 0.0
        %2168 = vmatpush1.msra.mxu0 %v2035
        %2169 = vmatprep.subr.mxu0 0.0
        %2170 = vmatpush1.msra.mxu0 %v2038
        %2171 = vmatprep.subr.mxu0 0.0
        %2172 = vmatpush1.msra.mxu0 %v2041
        %2173 = vmatprep.subr.mxu0 0.0
        %2174 = vmatpush1.msra.mxu0 %v2044
        %2175 = vmatprep.subr.mxu0 0.0
        %2176 = vmatpush1.msra.mxu0 %v2047
        %2177 = vmatprep.subr.mxu0 0.0
        %2178 = vmatpush1.msra.mxu0 %v2050
        %2179 = vmatprep.subr.mxu0 0.0
        %2180 = vmatpush1.msra.mxu0 %v2053
        %2181 = vmatprep.subr.mxu0 0.0
        %2182 = vmatpush1.msra.mxu0 0.0
        %2183 = vmatprep.subr.mxu0 0.0
        %2184 = vmatpush1.msra.mxu0 0.0
        %2185 = vmatprep.subr.mxu0 0.0
        %2186 = vmatpush1.msra.mxu0 0.0
        %2187 = vmatprep.subr.mxu0 0.0
        %2188 = vmatpush1.msra.mxu0 0.0
        %2189 = vmatprep.subr.mxu0 0.0
        %2190 = vmatpush1.msra.mxu0 0.0
        %2191 = vmatprep.subr.mxu0 0.0
        %2192 = vmatpush1.msra.mxu0 0.0
        %2193 = vmatprep.subr.mxu0 0.0
        %2194 = vmatpush1.msra.mxu0 0.0
        %2195 = vmatprep.subr.mxu0 0.0
        %2196 = vmatpush1.msra.mxu0 0.0
        %2197 = vmatprep.subr.mxu0 0.0
        %2198 = vmatpush1.msra.mxu0 0.0
        %2199 = vmatprep.subr.mxu0 0.0
        %2200 = vmatpush1.msra.mxu0 0.0
        %2201 = vmatprep.mubr.f32.mxu0 %v2055
        %2202 = vmatmul.mubr.f32.gmra.mrb[0].mxu0 %v1977
        %v2203 = vpop.f32.mrb[0].mxu0
        %v2204 = vadd.f32 0.0, %v2203
        %v2205 = vpop.f32.mrb[0].mxu0
        %2206 = vmatprep.mubr.f32.mxu0 %v2058
        %2207 = vmatmul.mubr.f32.gmra.mrb[0].mxu0 %v1983
        %v2208 = vpop.f32.mrb[0].mxu0
        %v2209 = vadd.f32 0.0, %v2208
        %v2210 = vpop.f32.mrb[0].mxu0
        %2211 = vdwg.mxu0
        %v2212 = vadd.f32 %v1895, %v2127
        %v2213 = vadd.f32 %v1896, %v2129
        %v2214 = vadd.f32 %v1897, %v2204
        %v2215 = vadd.f32 %v1898, %v2133
        %v2216 = vadd.f32 %v1899, %v2135
        %v2217 = vadd.f32 %v1900, %v2209
        %s2218 = scalar_lea.vmem %s1, 80
        %v2219 = vld [vmem:[%s2218] sm:$0xff]
        %v2220 = vld [vmem:[%s2218 + $0x8] sm:$0x3]
        %v2222 = vsel %vm640, %v2219, 0
        %v2225 = vsel %vm640, %v2220, 0
        %2227 = vmatprep.subr.mxu0 %v627
        %2228 = vmatpush1.msra.mxu0 %v626
        %2229 = vmatprep.subr.mxu0 %v629
        %2230 = vmatpush1.msra.mxu0 %v628
        %2231 = vmatprep.subr.mxu0 %v631
        %2232 = vmatpush1.msra.mxu0 %v630
        %2233 = vmatprep.subr.mxu0 %v633
        %2234 = vmatpush1.msra.mxu0 %v632
        %2235 = vmatprep.subr.mxu0 %v635
        %2236 = vmatpush1.msra.mxu0 %v634
        %2237 = vmatprep.subr.mxu0 %v652
        %2238 = vmatpush1.msra.mxu0 %v649
        %2239 = vmatprep.subr.mxu0 0.0
        %2240 = vmatpush1.msra.mxu0 0.0
        %2241 = vmatprep.subr.mxu0 0.0
        %2242 = vmatpush1.msra.mxu0 0.0
        %2243 = vmatprep.subr.mxu0 0.0
        %2244 = vmatpush1.msra.mxu0 0.0
        %2245 = vmatprep.subr.mxu0 0.0
        %2246 = vmatpush1.msra.mxu0 0.0
        %2247 = vmatprep.subr.mxu0 0.0
        %2248 = vmatpush1.msra.mxu0 0.0
        %2249 = vmatprep.subr.mxu0 0.0
        %2250 = vmatpush1.msra.mxu0 0.0
        %2251 = vmatprep.subr.mxu0 0.0
        %2252 = vmatpush1.msra.mxu0 0.0
        %2253 = vmatprep.subr.mxu0 0.0
        %2254 = vmatpush1.msra.mxu0 0.0
        %2255 = vmatprep.subr.mxu0 0.0
        %2256 = vmatpush1.msra.mxu0 0.0
        %2257 = vmatprep.subr.mxu0 0.0
        %2258 = vmatpush1.msra.mxu0 0.0
        %2259 = vmatprep.subr.mxu0 0.0
        %2260 = vmatpush1.msra.mxu0 0.0
        %2261 = vmatprep.subr.mxu0 0.0
        %2262 = vmatpush1.msra.mxu0 0.0
        %2263 = vmatprep.subr.mxu0 0.0
        %2264 = vmatpush1.msra.mxu0 0.0
        %2265 = vmatprep.subr.mxu0 0.0
        %2266 = vmatpush1.msra.mxu0 0.0
        %2267 = vmatprep.subr.mxu0 0.0
        %2268 = vmatpush1.msra.mxu0 0.0
        %2269 = vmatprep.subr.mxu0 0.0
        %2270 = vmatpush1.msra.mxu0 0.0
        %2271 = vmatprep.subr.mxu0 0.0
        %2272 = vmatpush1.msra.mxu0 0.0
        %2273 = vmatprep.subr.mxu0 0.0
        %2274 = vmatpush1.msra.mxu0 0.0
        %2275 = vmatprep.subr.mxu0 0.0
        %2276 = vmatpush1.msra.mxu0 0.0
        %2277 = vmatprep.subr.mxu0 0.0
        %2278 = vmatpush1.msra.mxu0 0.0
        %2279 = vmatprep.subr.mxu0 0.0
        %2280 = vmatpush1.msra.mxu0 0.0
        %2281 = vmatprep.subr.mxu0 0.0
        %2282 = vmatpush1.msra.mxu0 0.0
        %2283 = vmatprep.subr.mxu0 0.0
        %2284 = vmatpush1.msra.mxu0 0.0
        %2285 = vmatprep.subr.mxu0 0.0
        %2286 = vmatpush1.msra.mxu0 0.0
        %2287 = vmatprep.subr.mxu0 0.0
        %2288 = vmatpush1.msra.mxu0 0.0
        %2289 = vmatprep.subr.mxu0 0.0
        %2290 = vmatpush1.msra.mxu0 0.0
        %2291 = vmatprep.mubr.f32.mxu0 0.0
        %2292 = vmatmul.mubr.f32.gmra.mrb[0].mxu0 %v2222
        %v2293 = vpop.f32.mrb[0].mxu0
        %v2294 = vadd.f32 0.0, %v2293
        %v2295 = vpop.f32.mrb[0].mxu0
        %v2296 = vadd.f32 0.0, %v2295
        %2297 = vmatprep.mubr.f32.mxu0 0.0
        %2298 = vmatmul.mubr.f32.gmra.mrb[0].mxu0 %v2225
        %v2299 = vpop.f32.mrb[0].mxu0
        %v2300 = vadd.f32 0.0, %v2299
        %v2301 = vpop.f32.mrb[0].mxu0
        %v2302 = vadd.f32 0.0, %v2301
        %2303 = vdwg.mxu0
        %s2304 = scalar_lea.vmem [#allocation2], 2640
        %v2305 = vld [vmem:[%s2304] sm:$0xff]
        %v2306 = vld [vmem:[%s2304 + $0x8] sm:$0xff]
        %v2307 = vld [vmem:[%s2304 + $0x10] sm:$0xff]
        %v2308 = vld [vmem:[%s2304 + $0x18] sm:$0xff]
        %v2309 = vld [vmem:[%s2304 + $0x20] sm:$0xff]
        %v2310 = vld [vmem:[%s2304 + $0x28] sm:$0xff]
        %v2311 = vld [vmem:[%s2304 + $0x30] sm:$0xff]
        %v2312 = vld [vmem:[%s2304 + $0x38] sm:$0xff]
        %v2313 = vld [vmem:[%s2304 + $0x40] sm:$0xff]
        %v2314 = vld [vmem:[%s2304 + $0x48] sm:$0xff]
        %v2315 = vld [vmem:[%s2304 + $0x50] sm:$0xff]
        %v2316 = vld [vmem:[%s2304 + $0x58] sm:$0xff]
        %v2317 = vld [vmem:[%s2304 + $0x60] sm:$0xff]
        %v2318 = vld [vmem:[%s2304 + $0x68] sm:$0xff]
        %v2319 = vld [vmem:[%s2304 + $0x70] sm:$0xff]
        %v2320 = vld [vmem:[%s2304 + $0x78] sm:$0xff]
        %v2321 = vld [vmem:[%s2304 + $0x80] sm:$0xff]
        %v2322 = vld [vmem:[%s2304 + $0x88] sm:$0xff]
        %v2323 = vld [vmem:[%s2304 + $0x90] sm:$0xff]
        %v2324 = vld [vmem:[%s2304 + $0x98] sm:$0xff]
        %v2325 = vld [vmem:[%s2304 + $0xa0] sm:$0xff]
        %v2326 = vld [vmem:[%s2304 + $0xa8] sm:$0xff]
        %v2327 = vld [vmem:[%s2304 + $0xb0] sm:$0xff]
        %v2328 = vld [vmem:[%s2304 + $0xb8] sm:$0xff]
        %v2329 = vld [vmem:[%s2304 + $0xc0] sm:$0xff]
        %v2330 = vld [vmem:[%s2304 + $0xc8] sm:$0xff]
        %v2331 = vld [vmem:[%s2304 + $0xd0] sm:$0xff]
        %v2332 = vld [vmem:[%s2304 + $0xd8] sm:$0xff]
        %v2333 = vld [vmem:[%s2304 + $0xe0] sm:$0xff]
        %v2334 = vld [vmem:[%s2304 + $0xe8] sm:$0xff]
        %v2335 = vld [vmem:[%s2304 + $0xf0] sm:$0xff]
        %v2336 = vld [vmem:[%s2304 + $0xf8] sm:$0xff]
        %v2337 = vld [vmem:[%s2304 + $0x100] sm:$0xff]
        %v2338 = vld [vmem:[%s2304 + $0x108] sm:$0xff]
        %v2339 = vld [vmem:[%s2304 + $0x110] sm:$0xff]
        %v2340 = vld [vmem:[%s2304 + $0x118] sm:$0xff]
        %v2341 = vld [vmem:[%s2304 + $0x120] sm:$0xff]
        %v2342 = vld [vmem:[%s2304 + $0x128] sm:$0xff]
        %v2343 = vld [vmem:[%s2304 + $0x130] sm:$0xff]
        %v2344 = vld [vmem:[%s2304 + $0x138] sm:$0xff]
        %v2345 = vld [vmem:[%s2304 + $0x140] sm:$0xff]
        %v2346 = vld [vmem:[%s2304 + $0x148] sm:$0xff]
        %v2347 = vld [vmem:[%s2304 + $0x150] sm:$0xff]
        %v2348 = vld [vmem:[%s2304 + $0x158] sm:$0xff]
        %v2349 = vld [vmem:[%s2304 + $0x160] sm:$0xff]
        %v2350 = vld [vmem:[%s2304 + $0x168] sm:$0xff]
        %v2351 = vld [vmem:[%s2304 + $0x170] sm:$0xff]
        %v2352 = vld [vmem:[%s2304 + $0x178] sm:$0xff]
        %v2353 = vld [vmem:[%s2304 + $0x180] sm:$0xff]
        %v2354 = vld [vmem:[%s2304 + $0x188] sm:$0xff]
        %v2355 = vld [vmem:[%s2304 + $0x190] sm:$0xff]
        %v2356 = vld [vmem:[%s2304 + $0x198] sm:$0xff]
        %v2357 = vld [vmem:[%s2304 + $0x1a0] sm:$0xff]
        %v2358 = vld [vmem:[%s2304 + $0x1a8] sm:$0xff]
        %v2359 = vld [vmem:[%s2304 + $0x1b0] sm:$0xff]
        %v2360 = vld [vmem:[%s2304 + $0x1b8] sm:$0xff]
        %v2361 = vld [vmem:[%s2304 + $0x1c0] sm:$0xff]
        %v2362 = vld [vmem:[%s2304 + $0x1c8] sm:$0xff]
        %v2363 = vld [vmem:[%s2304 + $0x1d0] sm:$0xff]
        %v2364 = vld [vmem:[%s2304 + $0x1d8] sm:$0xff]
        %v2365 = vld [vmem:[%s2304 + $0x1e0] sm:$0xff]
        %v2366 = vld [vmem:[%s2304 + $0x1e8] sm:$0xff]
        %v2367 = vld [vmem:[%s2304 + $0x1f0] sm:$0xff]
        %v2368 = vld [vmem:[%s2304 + $0x1f8] sm:$0xff]
        %v2369 = vld [vmem:[%s2304 + $0x200] sm:$0xff]
        %v2370 = vld [vmem:[%s2304 + $0x208] sm:$0xff]
        %v2372 = vsel %vm950, %v2296, 0
        %v2375 = vsel %vm950, %v2302, 0
        %2377 = vmatprep.subr.mxu0 %v2306
        %2378 = vmatpush1.msra.mxu0 %v2305
        %2379 = vmatprep.subr.mxu0 %v2309
        %2380 = vmatpush1.msra.mxu0 %v2308
        %2381 = vmatprep.subr.mxu0 %v2312
        %2382 = vmatpush1.msra.mxu0 %v2311
        %2383 = vmatprep.subr.mxu0 %v2315
        %2384 = vmatpush1.msra.mxu0 %v2314
        %2385 = vmatprep.subr.mxu0 %v2318
        %2386 = vmatpush1.msra.mxu0 %v2317
        %2387 = vmatprep.subr.mxu0 %v2321
        %2388 = vmatpush1.msra.mxu0 %v2320
        %2389 = vmatprep.subr.mxu0 %v2324
        %2390 = vmatpush1.msra.mxu0 %v2323
        %2391 = vmatprep.subr.mxu0 %v2327
        %2392 = vmatpush1.msra.mxu0 %v2326
        %2393 = vmatprep.subr.mxu0 %v2330
        %2394 = vmatpush1.msra.mxu0 %v2329
        %2395 = vmatprep.subr.mxu0 %v2333
        %2396 = vmatpush1.msra.mxu0 %v2332
        %2397 = vmatprep.subr.mxu0 %v2336
        %2398 = vmatpush1.msra.mxu0 %v2335
        %2399 = vmatprep.subr.mxu0 %v2339
        %2400 = vmatpush1.msra.mxu0 %v2338
        %2401 = vmatprep.subr.mxu0 %v2342
        %2402 = vmatpush1.msra.mxu0 %v2341
        %2403 = vmatprep.subr.mxu0 %v2345
        %2404 = vmatpush1.msra.mxu0 %v2344
        %2405 = vmatprep.subr.mxu0 %v2348
        %2406 = vmatpush1.msra.mxu0 %v2347
        %2407 = vmatprep.subr.mxu0 %v2351
        %2408 = vmatpush1.msra.mxu0 %v2350
        %2409 = vmatprep.subr.mxu0 %v2354
        %2410 = vmatpush1.msra.mxu0 %v2353
        %2411 = vmatprep.subr.mxu0 %v2357
        %2412 = vmatpush1.msra.mxu0 %v2356
        %2413 = vmatprep.subr.mxu0 %v2360
        %2414 = vmatpush1.msra.mxu0 %v2359
        %2415 = vmatprep.subr.mxu0 %v2363
        %2416 = vmatpush1.msra.mxu0 %v2362
        %2417 = vmatprep.subr.mxu0 %v2366
        %2418 = vmatpush1.msra.mxu0 %v2365
        %2419 = vmatprep.subr.mxu0 %v2369
        %2420 = vmatpush1.msra.mxu0 %v2368
        %2421 = vmatprep.subr.mxu0 0.0
        %2422 = vmatpush1.msra.mxu0 0.0
        %2423 = vmatprep.subr.mxu0 0.0
        %2424 = vmatpush1.msra.mxu0 0.0
        %2425 = vmatprep.subr.mxu0 0.0
        %2426 = vmatpush1.msra.mxu0 0.0
        %2427 = vmatprep.subr.mxu0 0.0
        %2428 = vmatpush1.msra.mxu0 0.0
        %2429 = vmatprep.subr.mxu0 0.0
        %2430 = vmatpush1.msra.mxu0 0.0
        %2431 = vmatprep.subr.mxu0 0.0
        %2432 = vmatpush1.msra.mxu0 0.0
        %2433 = vmatprep.subr.mxu0 0.0
        %2434 = vmatpush1.msra.mxu0 0.0
        %2435 = vmatprep.subr.mxu0 0.0
        %2436 = vmatpush1.msra.mxu0 0.0
        %2437 = vmatprep.subr.mxu0 0.0
        %2438 = vmatpush1.msra.mxu0 0.0
        %2439 = vmatprep.subr.mxu0 0.0
        %2440 = vmatpush1.msra.mxu0 0.0
        %2441 = vmatprep.mubr.f32.mxu0 %v2372
        %2442 = vmatmul.mubr.f32.gmra.mrb[0].mxu0 %v2294
        %v2443 = vpop.f32.mrb[0].mxu0
        %v2444 = vadd.f32 0.0, %v2443
        %v2445 = vpop.f32.mrb[0].mxu0
        %v2446 = vadd.f32 0.0, %v2445
        %2447 = vmatprep.mubr.f32.mxu0 %v2375
        %2448 = vmatmul.mubr.f32.gmra.mrb[0].mxu0 %v2300
        %v2449 = vpop.f32.mrb[0].mxu0
        %v2450 = vadd.f32 0.0, %v2449
        %v2451 = vpop.f32.mrb[0].mxu0
        %v2452 = vadd.f32 0.0, %v2451
        %2453 = vdwg.mxu0
        %2454 = vmatprep.subr.mxu0 0.0
        %2455 = vmatpush1.msra.mxu0 %v2307
        %2456 = vmatprep.subr.mxu0 0.0
        %2457 = vmatpush1.msra.mxu0 %v2310
        %2458 = vmatprep.subr.mxu0 0.0
        %2459 = vmatpush1.msra.mxu0 %v2313
        %2460 = vmatprep.subr.mxu0 0.0
        %2461 = vmatpush1.msra.mxu0 %v2316
        %2462 = vmatprep.subr.mxu0 0.0
        %2463 = vmatpush1.msra.mxu0 %v2319
        %2464 = vmatprep.subr.mxu0 0.0
        %2465 = vmatpush1.msra.mxu0 %v2322
        %2466 = vmatprep.subr.mxu0 0.0
        %2467 = vmatpush1.msra.mxu0 %v2325
        %2468 = vmatprep.subr.mxu0 0.0
        %2469 = vmatpush1.msra.mxu0 %v2328
        %2470 = vmatprep.subr.mxu0 0.0
        %2471 = vmatpush1.msra.mxu0 %v2331
        %2472 = vmatprep.subr.mxu0 0.0
        %2473 = vmatpush1.msra.mxu0 %v2334
        %2474 = vmatprep.subr.mxu0 0.0
        %2475 = vmatpush1.msra.mxu0 %v2337
        %2476 = vmatprep.subr.mxu0 0.0
        %2477 = vmatpush1.msra.mxu0 %v2340
        %2478 = vmatprep.subr.mxu0 0.0
        %2479 = vmatpush1.msra.mxu0 %v2343
        %2480 = vmatprep.subr.mxu0 0.0
        %2481 = vmatpush1.msra.mxu0 %v2346
        %2482 = vmatprep.subr.mxu0 0.0
        %2483 = vmatpush1.msra.mxu0 %v2349
        %2484 = vmatprep.subr.mxu0 0.0
        %2485 = vmatpush1.msra.mxu0 %v2352
        %2486 = vmatprep.subr.mxu0 0.0
        %2487 = vmatpush1.msra.mxu0 %v2355
        %2488 = vmatprep.subr.mxu0 0.0
        %2489 = vmatpush1.msra.mxu0 %v2358
        %2490 = vmatprep.subr.mxu0 0.0
        %2491 = vmatpush1.msra.mxu0 %v2361
        %2492 = vmatprep.subr.mxu0 0.0
        %2493 = vmatpush1.msra.mxu0 %v2364
        %2494 = vmatprep.subr.mxu0 0.0
        %2495 = vmatpush1.msra.mxu0 %v2367
        %2496 = vmatprep.subr.mxu0 0.0
        %2497 = vmatpush1.msra.mxu0 %v2370
        %2498 = vmatprep.subr.mxu0 0.0
        %2499 = vmatpush1.msra.mxu0 0.0
        %2500 = vmatprep.subr.mxu0 0.0
        %2501 = vmatpush1.msra.mxu0 0.0
        %2502 = vmatprep.subr.mxu0 0.0
        %2503 = vmatpush1.msra.mxu0 0.0
        %2504 = vmatprep.subr.mxu0 0.0
        %2505 = vmatpush1.msra.mxu0 0.0
        %2506 = vmatprep.subr.mxu0 0.0
        %2507 = vmatpush1.msra.mxu0 0.0
        %2508 = vmatprep.subr.mxu0 0.0
        %2509 = vmatpush1.msra.mxu0 0.0
        %2510 = vmatprep.subr.mxu0 0.0
        %2511 = vmatpush1.msra.mxu0 0.0
        %2512 = vmatprep.subr.mxu0 0.0
        %2513 = vmatpush1.msra.mxu0 0.0
        %2514 = vmatprep.subr.mxu0 0.0
        %2515 = vmatpush1.msra.mxu0 0.0
        %2516 = vmatprep.subr.mxu0 0.0
        %2517 = vmatpush1.msra.mxu0 0.0
        %2518 = vmatprep.mubr.f32.mxu0 %v2372
        %2519 = vmatmul.mubr.f32.gmra.mrb[0].mxu0 %v2294
        %v2520 = vpop.f32.mrb[0].mxu0
        %v2521 = vadd.f32 0.0, %v2520
        %v2522 = vpop.f32.mrb[0].mxu0
        %2523 = vmatprep.mubr.f32.mxu0 %v2375
        %2524 = vmatmul.mubr.f32.gmra.mrb[0].mxu0 %v2300
        %v2525 = vpop.f32.mrb[0].mxu0
        %v2526 = vadd.f32 0.0, %v2525
        %v2527 = vpop.f32.mrb[0].mxu0
        %2528 = vdwg.mxu0
        %v2529 = vadd.f32 %v2212, %v2444
        %v2530 = vadd.f32 %v2213, %v2446
        %v2531 = vadd.f32 %v2214, %v2521
        %v2532 = vadd.f32 %v2215, %v2450
        %v2533 = vadd.f32 %v2216, %v2452
        %v2534 = vadd.f32 %v2217, %v2526
        %s2535 = scalar_lea.vmem %s1, 96
        %v2536 = vld [vmem:[%s2535] sm:$0xff]
        %v2537 = vld [vmem:[%s2535 + $0x8] sm:$0x3]
        %v2539 = vsel %vm640, %v2536, 0
        %v2542 = vsel %vm640, %v2537, 0
        %2544 = vmatprep.subr.mxu0 %v627
        %2545 = vmatpush1.msra.mxu0 %v626
        %2546 = vmatprep.subr.mxu0 %v629
        %2547 = vmatpush1.msra.mxu0 %v628
        %2548 = vmatprep.subr.mxu0 %v631
        %2549 = vmatpush1.msra.mxu0 %v630
        %2550 = vmatprep.subr.mxu0 %v633
        %2551 = vmatpush1.msra.mxu0 %v632
        %2552 = vmatprep.subr.mxu0 %v635
        %2553 = vmatpush1.msra.mxu0 %v634
        %2554 = vmatprep.subr.mxu0 %v652
        %2555 = vmatpush1.msra.mxu0 %v649
        %2556 = vmatprep.subr.mxu0 0.0
        %2557 = vmatpush1.msra.mxu0 0.0
        %2558 = vmatprep.subr.mxu0 0.0
        %2559 = vmatpush1.msra.mxu0 0.0
        %2560 = vmatprep.subr.mxu0 0.0
        %2561 = vmatpush1.msra.mxu0 0.0
        %2562 = vmatprep.subr.mxu0 0.0
        %2563 = vmatpush1.msra.mxu0 0.0
        %2564 = vmatprep.subr.mxu0 0.0
        %2565 = vmatpush1.msra.mxu0 0.0
        %2566 = vmatprep.subr.mxu0 0.0
        %2567 = vmatpush1.msra.mxu0 0.0
        %2568 = vmatprep.subr.mxu0 0.0
        %2569 = vmatpush1.msra.mxu0 0.0
        %2570 = vmatprep.subr.mxu0 0.0
        %2571 = vmatpush1.msra.mxu0 0.0
        %2572 = vmatprep.subr.mxu0 0.0
        %2573 = vmatpush1.msra.mxu0 0.0
        %2574 = vmatprep.subr.mxu0 0.0
        %2575 = vmatpush1.msra.mxu0 0.0
        %2576 = vmatprep.subr.mxu0 0.0
        %2577 = vmatpush1.msra.mxu0 0.0
        %2578 = vmatprep.subr.mxu0 0.0
        %2579 = vmatpush1.msra.mxu0 0.0
        %2580 = vmatprep.subr.mxu0 0.0
        %2581 = vmatpush1.msra.mxu0 0.0
        %2582 = vmatprep.subr.mxu0 0.0
        %2583 = vmatpush1.msra.mxu0 0.0
        %2584 = vmatprep.subr.mxu0 0.0
        %2585 = vmatpush1.msra.mxu0 0.0
        %2586 = vmatprep.subr.mxu0 0.0
        %2587 = vmatpush1.msra.mxu0 0.0
        %2588 = vmatprep.subr.mxu0 0.0
        %2589 = vmatpush1.msra.mxu0 0.0
        %2590 = vmatprep.subr.mxu0 0.0
        %2591 = vmatpush1.msra.mxu0 0.0
        %2592 = vmatprep.subr.mxu0 0.0
        %2593 = vmatpush1.msra.mxu0 0.0
        %2594 = vmatprep.subr.mxu0 0.0
        %2595 = vmatpush1.msra.mxu0 0.0
        %2596 = vmatprep.subr.mxu0 0.0
        %2597 = vmatpush1.msra.mxu0 0.0
        %2598 = vmatprep.subr.mxu0 0.0
        %2599 = vmatpush1.msra.mxu0 0.0
        %2600 = vmatprep.subr.mxu0 0.0
        %2601 = vmatpush1.msra.mxu0 0.0
        %2602 = vmatprep.subr.mxu0 0.0
        %2603 = vmatpush1.msra.mxu0 0.0
        %2604 = vmatprep.subr.mxu0 0.0
        %2605 = vmatpush1.msra.mxu0 0.0
        %2606 = vmatprep.subr.mxu0 0.0
        %2607 = vmatpush1.msra.mxu0 0.0
        %2608 = vmatprep.mubr.f32.mxu0 0.0
        %2609 = vmatmul.mubr.f32.gmra.mrb[0].mxu0 %v2539
        %v2610 = vpop.f32.mrb[0].mxu0
        %v2611 = vadd.f32 0.0, %v2610
        %v2612 = vpop.f32.mrb[0].mxu0
        %v2613 = vadd.f32 0.0, %v2612
        %2614 = vmatprep.mubr.f32.mxu0 0.0
        %2615 = vmatmul.mubr.f32.gmra.mrb[0].mxu0 %v2542
        %v2616 = vpop.f32.mrb[0].mxu0
        %v2617 = vadd.f32 0.0, %v2616
        %v2618 = vpop.f32.mrb[0].mxu0
        %v2619 = vadd.f32 0.0, %v2618
        %2620 = vdwg.mxu0
        %s2621 = scalar_lea.vmem [#allocation2], 3168
        %v2622 = vld [vmem:[%s2621] sm:$0xff]
        %v2623 = vld [vmem:[%s2621 + $0x8] sm:$0xff]
        %v2624 = vld [vmem:[%s2621 + $0x10] sm:$0xff]
        %v2625 = vld [vmem:[%s2621 + $0x18] sm:$0xff]
        %v2626 = vld [vmem:[%s2621 + $0x20] sm:$0xff]
        %v2627 = vld [vmem:[%s2621 + $0x28] sm:$0xff]
        %v2628 = vld [vmem:[%s2621 + $0x30] sm:$0xff]
        %v2629 = vld [vmem:[%s2621 + $0x38] sm:$0xff]
        %v2630 = vld [vmem:[%s2621 + $0x40] sm:$0xff]
        %v2631 = vld [vmem:[%s2621 + $0x48] sm:$0xff]
        %v2632 = vld [vmem:[%s2621 + $0x50] sm:$0xff]
        %v2633 = vld [vmem:[%s2621 + $0x58] sm:$0xff]
        %v2634 = vld [vmem:[%s2621 + $0x60] sm:$0xff]
        %v2635 = vld [vmem:[%s2621 + $0x68] sm:$0xff]
        %v2636 = vld [vmem:[%s2621 + $0x70] sm:$0xff]
        %v2637 = vld [vmem:[%s2621 + $0x78] sm:$0xff]
        %v2638 = vld [vmem:[%s2621 + $0x80] sm:$0xff]
        %v2639 = vld [vmem:[%s2621 + $0x88] sm:$0xff]
        %v2640 = vld [vmem:[%s2621 + $0x90] sm:$0xff]
        %v2641 = vld [vmem:[%s2621 + $0x98] sm:$0xff]
        %v2642 = vld [vmem:[%s2621 + $0xa0] sm:$0xff]
        %v2643 = vld [vmem:[%s2621 + $0xa8] sm:$0xff]
        %v2644 = vld [vmem:[%s2621 + $0xb0] sm:$0xff]
        %v2645 = vld [vmem:[%s2621 + $0xb8] sm:$0xff]
        %v2646 = vld [vmem:[%s2621 + $0xc0] sm:$0xff]
        %v2647 = vld [vmem:[%s2621 + $0xc8] sm:$0xff]
        %v2648 = vld [vmem:[%s2621 + $0xd0] sm:$0xff]
        %v2649 = vld [vmem:[%s2621 + $0xd8] sm:$0xff]
        %v2650 = vld [vmem:[%s2621 + $0xe0] sm:$0xff]
        %v2651 = vld [vmem:[%s2621 + $0xe8] sm:$0xff]
        %v2652 = vld [vmem:[%s2621 + $0xf0] sm:$0xff]
        %v2653 = vld [vmem:[%s2621 + $0xf8] sm:$0xff]
        %v2654 = vld [vmem:[%s2621 + $0x100] sm:$0xff]
        %v2655 = vld [vmem:[%s2621 + $0x108] sm:$0xff]
        %v2656 = vld [vmem:[%s2621 + $0x110] sm:$0xff]
        %v2657 = vld [vmem:[%s2621 + $0x118] sm:$0xff]
        %v2658 = vld [vmem:[%s2621 + $0x120] sm:$0xff]
        %v2659 = vld [vmem:[%s2621 + $0x128] sm:$0xff]
        %v2660 = vld [vmem:[%s2621 + $0x130] sm:$0xff]
        %v2661 = vld [vmem:[%s2621 + $0x138] sm:$0xff]
        %v2662 = vld [vmem:[%s2621 + $0x140] sm:$0xff]
        %v2663 = vld [vmem:[%s2621 + $0x148] sm:$0xff]
        %v2664 = vld [vmem:[%s2621 + $0x150] sm:$0xff]
        %v2665 = vld [vmem:[%s2621 + $0x158] sm:$0xff]
        %v2666 = vld [vmem:[%s2621 + $0x160] sm:$0xff]
        %v2667 = vld [vmem:[%s2621 + $0x168] sm:$0xff]
        %v2668 = vld [vmem:[%s2621 + $0x170] sm:$0xff]
        %v2669 = vld [vmem:[%s2621 + $0x178] sm:$0xff]
        %v2670 = vld [vmem:[%s2621 + $0x180] sm:$0xff]
        %v2671 = vld [vmem:[%s2621 + $0x188] sm:$0xff]
        %v2672 = vld [vmem:[%s2621 + $0x190] sm:$0xff]
        %v2673 = vld [vmem:[%s2621 + $0x198] sm:$0xff]
        %v2674 = vld [vmem:[%s2621 + $0x1a0] sm:$0xff]
        %v2675 = vld [vmem:[%s2621 + $0x1a8] sm:$0xff]
        %v2676 = vld [vmem:[%s2621 + $0x1b0] sm:$0xff]
        %v2677 = vld [vmem:[%s2621 + $0x1b8] sm:$0xff]
        %v2678 = vld [vmem:[%s2621 + $0x1c0] sm:$0xff]
        %v2679 = vld [vmem:[%s2621 + $0x1c8] sm:$0xff]
        %v2680 = vld [vmem:[%s2621 + $0x1d0] sm:$0xff]
        %v2681 = vld [vmem:[%s2621 + $0x1d8] sm:$0xff]
        %v2682 = vld [vmem:[%s2621 + $0x1e0] sm:$0xff]
        %v2683 = vld [vmem:[%s2621 + $0x1e8] sm:$0xff]
        %v2684 = vld [vmem:[%s2621 + $0x1f0] sm:$0xff]
        %v2685 = vld [vmem:[%s2621 + $0x1f8] sm:$0xff]
        %v2686 = vld [vmem:[%s2621 + $0x200] sm:$0xff]
        %v2687 = vld [vmem:[%s2621 + $0x208] sm:$0xff]
        %v2689 = vsel %vm950, %v2613, 0
        %v2692 = vsel %vm950, %v2619, 0
        %2694 = vmatprep.subr.mxu0 %v2623
        %2695 = vmatpush1.msra.mxu0 %v2622
        %2696 = vmatprep.subr.mxu0 %v2626
        %2697 = vmatpush1.msra.mxu0 %v2625
        %2698 = vmatprep.subr.mxu0 %v2629
        %2699 = vmatpush1.msra.mxu0 %v2628
        %2700 = vmatprep.subr.mxu0 %v2632
        %2701 = vmatpush1.msra.mxu0 %v2631
        %2702 = vmatprep.subr.mxu0 %v2635
        %2703 = vmatpush1.msra.mxu0 %v2634
        %2704 = vmatprep.subr.mxu0 %v2638
        %2705 = vmatpush1.msra.mxu0 %v2637
        %2706 = vmatprep.subr.mxu0 %v2641
        %2707 = vmatpush1.msra.mxu0 %v2640
        %2708 = vmatprep.subr.mxu0 %v2644
        %2709 = vmatpush1.msra.mxu0 %v2643
        %2710 = vmatprep.subr.mxu0 %v2647
        %2711 = vmatpush1.msra.mxu0 %v2646
        %2712 = vmatprep.subr.mxu0 %v2650
        %2713 = vmatpush1.msra.mxu0 %v2649
        %2714 = vmatprep.subr.mxu0 %v2653
        %2715 = vmatpush1.msra.mxu0 %v2652
        %2716 = vmatprep.subr.mxu0 %v2656
        %2717 = vmatpush1.msra.mxu0 %v2655
        %2718 = vmatprep.subr.mxu0 %v2659
        %2719 = vmatpush1.msra.mxu0 %v2658
        %2720 = vmatprep.subr.mxu0 %v2662
        %2721 = vmatpush1.msra.mxu0 %v2661
        %2722 = vmatprep.subr.mxu0 %v2665
        %2723 = vmatpush1.msra.mxu0 %v2664
        %2724 = vmatprep.subr.mxu0 %v2668
        %2725 = vmatpush1.msra.mxu0 %v2667
        %2726 = vmatprep.subr.mxu0 %v2671
        %2727 = vmatpush1.msra.mxu0 %v2670
        %2728 = vmatprep.subr.mxu0 %v2674
        %2729 = vmatpush1.msra.mxu0 %v2673
        %2730 = vmatprep.subr.mxu0 %v2677
        %2731 = vmatpush1.msra.mxu0 %v2676
        %2732 = vmatprep.subr.mxu0 %v2680
        %2733 = vmatpush1.msra.mxu0 %v2679
        %2734 = vmatprep.subr.mxu0 %v2683
        %2735 = vmatpush1.msra.mxu0 %v2682
        %2736 = vmatprep.subr.mxu0 %v2686
        %2737 = vmatpush1.msra.mxu0 %v2685
        %2738 = vmatprep.subr.mxu0 0.0
        %2739 = vmatpush1.msra.mxu0 0.0
        %2740 = vmatprep.subr.mxu0 0.0
        %2741 = vmatpush1.msra.mxu0 0.0
        %2742 = vmatprep.subr.mxu0 0.0
        %2743 = vmatpush1.msra.mxu0 0.0
        %2744 = vmatprep.subr.mxu0 0.0
        %2745 = vmatpush1.msra.mxu0 0.0
        %2746 = vmatprep.subr.mxu0 0.0
        %2747 = vmatpush1.msra.mxu0 0.0
        %2748 = vmatprep.subr.mxu0 0.0
        %2749 = vmatpush1.msra.mxu0 0.0
        %2750 = vmatprep.subr.mxu0 0.0
        %2751 = vmatpush1.msra.mxu0 0.0
        %2752 = vmatprep.subr.mxu0 0.0
        %2753 = vmatpush1.msra.mxu0 0.0
        %2754 = vmatprep.subr.mxu0 0.0
        %2755 = vmatpush1.msra.mxu0 0.0
        %2756 = vmatprep.subr.mxu0 0.0
        %2757 = vmatpush1.msra.mxu0 0.0
        %2758 = vmatprep.mubr.f32.mxu0 %v2689
        %2759 = vmatmul.mubr.f32.gmra.mrb[0].mxu0 %v2611
        %v2760 = vpop.f32.mrb[0].mxu0
        %v2761 = vadd.f32 0.0, %v2760
        %v2762 = vpop.f32.mrb[0].mxu0
        %v2763 = vadd.f32 0.0, %v2762
        %2764 = vmatprep.mubr.f32.mxu0 %v2692
        %2765 = vmatmul.mubr.f32.gmra.mrb[0].mxu0 %v2617
        %v2766 = vpop.f32.mrb[0].mxu0
        %v2767 = vadd.f32 0.0, %v2766
        %v2768 = vpop.f32.mrb[0].mxu0
        %v2769 = vadd.f32 0.0, %v2768
        %2770 = vdwg.mxu0
        %2771 = vmatprep.subr.mxu0 0.0
        %2772 = vmatpush1.msra.mxu0 %v2624
        %2773 = vmatprep.subr.mxu0 0.0
        %2774 = vmatpush1.msra.mxu0 %v2627
        %2775 = vmatprep.subr.mxu0 0.0
        %2776 = vmatpush1.msra.mxu0 %v2630
        %2777 = vmatprep.subr.mxu0 0.0
        %2778 = vmatpush1.msra.mxu0 %v2633
        %2779 = vmatprep.subr.mxu0 0.0
        %2780 = vmatpush1.msra.mxu0 %v2636
        %2781 = vmatprep.subr.mxu0 0.0
        %2782 = vmatpush1.msra.mxu0 %v2639
        %2783 = vmatprep.subr.mxu0 0.0
        %2784 = vmatpush1.msra.mxu0 %v2642
        %2785 = vmatprep.subr.mxu0 0.0
        %2786 = vmatpush1.msra.mxu0 %v2645
        %2787 = vmatprep.subr.mxu0 0.0
        %2788 = vmatpush1.msra.mxu0 %v2648
        %2789 = vmatprep.subr.mxu0 0.0
        %2790 = vmatpush1.msra.mxu0 %v2651
        %2791 = vmatprep.subr.mxu0 0.0
        %2792 = vmatpush1.msra.mxu0 %v2654
        %2793 = vmatprep.subr.mxu0 0.0
        %2794 = vmatpush1.msra.mxu0 %v2657
        %2795 = vmatprep.subr.mxu0 0.0
        %2796 = vmatpush1.msra.mxu0 %v2660
        %2797 = vmatprep.subr.mxu0 0.0
        %2798 = vmatpush1.msra.mxu0 %v2663
        %2799 = vmatprep.subr.mxu0 0.0
        %2800 = vmatpush1.msra.mxu0 %v2666
        %2801 = vmatprep.subr.mxu0 0.0
        %2802 = vmatpush1.msra.mxu0 %v2669
        %2803 = vmatprep.subr.mxu0 0.0
        %2804 = vmatpush1.msra.mxu0 %v2672
        %2805 = vmatprep.subr.mxu0 0.0
        %2806 = vmatpush1.msra.mxu0 %v2675
        %2807 = vmatprep.subr.mxu0 0.0
        %2808 = vmatpush1.msra.mxu0 %v2678
        %2809 = vmatprep.subr.mxu0 0.0
        %2810 = vmatpush1.msra.mxu0 %v2681
        %2811 = vmatprep.subr.mxu0 0.0
        %2812 = vmatpush1.msra.mxu0 %v2684
        %2813 = vmatprep.subr.mxu0 0.0
        %2814 = vmatpush1.msra.mxu0 %v2687
        %2815 = vmatprep.subr.mxu0 0.0
        %2816 = vmatpush1.msra.mxu0 0.0
        %2817 = vmatprep.subr.mxu0 0.0
        %2818 = vmatpush1.msra.mxu0 0.0
        %2819 = vmatprep.subr.mxu0 0.0
        %2820 = vmatpush1.msra.mxu0 0.0
        %2821 = vmatprep.subr.mxu0 0.0
        %2822 = vmatpush1.msra.mxu0 0.0
        %2823 = vmatprep.subr.mxu0 0.0
        %2824 = vmatpush1.msra.mxu0 0.0
        %2825 = vmatprep.subr.mxu0 0.0
        %2826 = vmatpush1.msra.mxu0 0.0
        %2827 = vmatprep.subr.mxu0 0.0
        %2828 = vmatpush1.msra.mxu0 0.0
        %2829 = vmatprep.subr.mxu0 0.0
        %2830 = vmatpush1.msra.mxu0 0.0
        %2831 = vmatprep.subr.mxu0 0.0
        %2832 = vmatpush1.msra.mxu0 0.0
        %2833 = vmatprep.subr.mxu0 0.0
        %2834 = vmatpush1.msra.mxu0 0.0
        %2835 = vmatprep.mubr.f32.mxu0 %v2689
        %2836 = vmatmul.mubr.f32.gmra.mrb[0].mxu0 %v2611
        %v2837 = vpop.f32.mrb[0].mxu0
        %v2838 = vadd.f32 0.0, %v2837
        %v2839 = vpop.f32.mrb[0].mxu0
        %2840 = vmatprep.mubr.f32.mxu0 %v2692
        %2841 = vmatmul.mubr.f32.gmra.mrb[0].mxu0 %v2617
        %v2842 = vpop.f32.mrb[0].mxu0
        %v2843 = vadd.f32 0.0, %v2842
        %v2844 = vpop.f32.mrb[0].mxu0
        %2845 = vdwg.mxu0
        %v2846 = vadd.f32 %v2529, %v2761
        %v2847 = vadd.f32 %v2530, %v2763
        %v2848 = vadd.f32 %v2531, %v2838
        %v2849 = vadd.f32 %v2532, %v2767
        %v2850 = vadd.f32 %v2533, %v2769
        %v2851 = vadd.f32 %v2534, %v2843
        %s2852 = scalar_lea.vmem %s1, 112
        %v2853 = vld [vmem:[%s2852] sm:$0xff]
        %v2854 = vld [vmem:[%s2852 + $0x8] sm:$0x3]
        %v2856 = vsel %vm640, %v2853, 0
        %v2859 = vsel %vm640, %v2854, 0
        %2861 = vmatprep.subr.mxu0 %v627
        %2862 = vmatpush1.msra.mxu0 %v626
        %2863 = vmatprep.subr.mxu0 %v629
        %2864 = vmatpush1.msra.mxu0 %v628
        %2865 = vmatprep.subr.mxu0 %v631
        %2866 = vmatpush1.msra.mxu0 %v630
        %2867 = vmatprep.subr.mxu0 %v633
        %2868 = vmatpush1.msra.mxu0 %v632
        %2869 = vmatprep.subr.mxu0 %v635
        %2870 = vmatpush1.msra.mxu0 %v634
        %2871 = vmatprep.subr.mxu0 %v652
        %2872 = vmatpush1.msra.mxu0 %v649
        %2873 = vmatprep.subr.mxu0 0.0
        %2874 = vmatpush1.msra.mxu0 0.0
        %2875 = vmatprep.subr.mxu0 0.0
        %2876 = vmatpush1.msra.mxu0 0.0
        %2877 = vmatprep.subr.mxu0 0.0
        %2878 = vmatpush1.msra.mxu0 0.0
        %2879 = vmatprep.subr.mxu0 0.0
        %2880 = vmatpush1.msra.mxu0 0.0
        %2881 = vmatprep.subr.mxu0 0.0
        %2882 = vmatpush1.msra.mxu0 0.0
        %2883 = vmatprep.subr.mxu0 0.0
        %2884 = vmatpush1.msra.mxu0 0.0
        %2885 = vmatprep.subr.mxu0 0.0
        %2886 = vmatpush1.msra.mxu0 0.0
        %2887 = vmatprep.subr.mxu0 0.0
        %2888 = vmatpush1.msra.mxu0 0.0
        %2889 = vmatprep.subr.mxu0 0.0
        %2890 = vmatpush1.msra.mxu0 0.0
        %2891 = vmatprep.subr.mxu0 0.0
        %2892 = vmatpush1.msra.mxu0 0.0
        %2893 = vmatprep.subr.mxu0 0.0
        %2894 = vmatpush1.msra.mxu0 0.0
        %2895 = vmatprep.subr.mxu0 0.0
        %2896 = vmatpush1.msra.mxu0 0.0
        %2897 = vmatprep.subr.mxu0 0.0
        %2898 = vmatpush1.msra.mxu0 0.0
        %2899 = vmatprep.subr.mxu0 0.0
        %2900 = vmatpush1.msra.mxu0 0.0
        %2901 = vmatprep.subr.mxu0 0.0
        %2902 = vmatpush1.msra.mxu0 0.0
        %2903 = vmatprep.subr.mxu0 0.0
        %2904 = vmatpush1.msra.mxu0 0.0
        %2905 = vmatprep.subr.mxu0 0.0
        %2906 = vmatpush1.msra.mxu0 0.0
        %2907 = vmatprep.subr.mxu0 0.0
        %2908 = vmatpush1.msra.mxu0 0.0
        %2909 = vmatprep.subr.mxu0 0.0
        %2910 = vmatpush1.msra.mxu0 0.0
        %2911 = vmatprep.subr.mxu0 0.0
        %2912 = vmatpush1.msra.mxu0 0.0
        %2913 = vmatprep.subr.mxu0 0.0
        %2914 = vmatpush1.msra.mxu0 0.0
        %2915 = vmatprep.subr.mxu0 0.0
        %2916 = vmatpush1.msra.mxu0 0.0
        %2917 = vmatprep.subr.mxu0 0.0
        %2918 = vmatpush1.msra.mxu0 0.0
        %2919 = vmatprep.subr.mxu0 0.0
        %2920 = vmatpush1.msra.mxu0 0.0
        %2921 = vmatprep.subr.mxu0 0.0
        %2922 = vmatpush1.msra.mxu0 0.0
        %2923 = vmatprep.subr.mxu0 0.0
        %2924 = vmatpush1.msra.mxu0 0.0
        %2925 = vmatprep.mubr.f32.mxu0 0.0
        %2926 = vmatmul.mubr.f32.gmra.mrb[0].mxu0 %v2856
        %v2927 = vpop.f32.mrb[0].mxu0
        %v2928 = vadd.f32 0.0, %v2927
        %v2929 = vpop.f32.mrb[0].mxu0
        %v2930 = vadd.f32 0.0, %v2929
        %2931 = vmatprep.mubr.f32.mxu0 0.0
        %2932 = vmatmul.mubr.f32.gmra.mrb[0].mxu0 %v2859
        %v2933 = vpop.f32.mrb[0].mxu0
        %v2934 = vadd.f32 0.0, %v2933
        %v2935 = vpop.f32.mrb[0].mxu0
        %v2936 = vadd.f32 0.0, %v2935
        %2937 = vdwg.mxu0
        %s2938 = scalar_lea.vmem [#allocation2], 3696
        %v2939 = vld [vmem:[%s2938] sm:$0xff]
        %v2940 = vld [vmem:[%s2938 + $0x8] sm:$0xff]
        %v2941 = vld [vmem:[%s2938 + $0x10] sm:$0xff]
        %v2942 = vld [vmem:[%s2938 + $0x18] sm:$0xff]
        %v2943 = vld [vmem:[%s2938 + $0x20] sm:$0xff]
        %v2944 = vld [vmem:[%s2938 + $0x28] sm:$0xff]
        %v2945 = vld [vmem:[%s2938 + $0x30] sm:$0xff]
        %v2946 = vld [vmem:[%s2938 + $0x38] sm:$0xff]
        %v2947 = vld [vmem:[%s2938 + $0x40] sm:$0xff]
        %v2948 = vld [vmem:[%s2938 + $0x48] sm:$0xff]
        %v2949 = vld [vmem:[%s2938 + $0x50] sm:$0xff]
        %v2950 = vld [vmem:[%s2938 + $0x58] sm:$0xff]
        %v2951 = vld [vmem:[%s2938 + $0x60] sm:$0xff]
        %v2952 = vld [vmem:[%s2938 + $0x68] sm:$0xff]
        %v2953 = vld [vmem:[%s2938 + $0x70] sm:$0xff]
        %v2954 = vld [vmem:[%s2938 + $0x78] sm:$0xff]
        %v2955 = vld [vmem:[%s2938 + $0x80] sm:$0xff]
        %v2956 = vld [vmem:[%s2938 + $0x88] sm:$0xff]
        %v2957 = vld [vmem:[%s2938 + $0x90] sm:$0xff]
        %v2958 = vld [vmem:[%s2938 + $0x98] sm:$0xff]
        %v2959 = vld [vmem:[%s2938 + $0xa0] sm:$0xff]
        %v2960 = vld [vmem:[%s2938 + $0xa8] sm:$0xff]
        %v2961 = vld [vmem:[%s2938 + $0xb0] sm:$0xff]
        %v2962 = vld [vmem:[%s2938 + $0xb8] sm:$0xff]
        %v2963 = vld [vmem:[%s2938 + $0xc0] sm:$0xff]
        %v2964 = vld [vmem:[%s2938 + $0xc8] sm:$0xff]
        %v2965 = vld [vmem:[%s2938 + $0xd0] sm:$0xff]
        %v2966 = vld [vmem:[%s2938 + $0xd8] sm:$0xff]
        %v2967 = vld [vmem:[%s2938 + $0xe0] sm:$0xff]
        %v2968 = vld [vmem:[%s2938 + $0xe8] sm:$0xff]
        %v2969 = vld [vmem:[%s2938 + $0xf0] sm:$0xff]
        %v2970 = vld [vmem:[%s2938 + $0xf8] sm:$0xff]
        %v2971 = vld [vmem:[%s2938 + $0x100] sm:$0xff]
        %v2972 = vld [vmem:[%s2938 + $0x108] sm:$0xff]
        %v2973 = vld [vmem:[%s2938 + $0x110] sm:$0xff]
        %v2974 = vld [vmem:[%s2938 + $0x118] sm:$0xff]
        %v2975 = vld [vmem:[%s2938 + $0x120] sm:$0xff]
        %v2976 = vld [vmem:[%s2938 + $0x128] sm:$0xff]
        %v2977 = vld [vmem:[%s2938 + $0x130] sm:$0xff]
        %v2978 = vld [vmem:[%s2938 + $0x138] sm:$0xff]
        %v2979 = vld [vmem:[%s2938 + $0x140] sm:$0xff]
        %v2980 = vld [vmem:[%s2938 + $0x148] sm:$0xff]
        %v2981 = vld [vmem:[%s2938 + $0x150] sm:$0xff]
        %v2982 = vld [vmem:[%s2938 + $0x158] sm:$0xff]
        %v2983 = vld [vmem:[%s2938 + $0x160] sm:$0xff]
        %v2984 = vld [vmem:[%s2938 + $0x168] sm:$0xff]
        %v2985 = vld [vmem:[%s2938 + $0x170] sm:$0xff]
        %v2986 = vld [vmem:[%s2938 + $0x178] sm:$0xff]
        %v2987 = vld [vmem:[%s2938 + $0x180] sm:$0xff]
        %v2988 = vld [vmem:[%s2938 + $0x188] sm:$0xff]
        %v2989 = vld [vmem:[%s2938 + $0x190] sm:$0xff]
        %v2990 = vld [vmem:[%s2938 + $0x198] sm:$0xff]
        %v2991 = vld [vmem:[%s2938 + $0x1a0] sm:$0xff]
        %v2992 = vld [vmem:[%s2938 + $0x1a8] sm:$0xff]
        %v2993 = vld [vmem:[%s2938 + $0x1b0] sm:$0xff]
        %v2994 = vld [vmem:[%s2938 + $0x1b8] sm:$0xff]
        %v2995 = vld [vmem:[%s2938 + $0x1c0] sm:$0xff]
        %v2996 = vld [vmem:[%s2938 + $0x1c8] sm:$0xff]
        %v2997 = vld [vmem:[%s2938 + $0x1d0] sm:$0xff]
        %v2998 = vld [vmem:[%s2938 + $0x1d8] sm:$0xff]
        %v2999 = vld [vmem:[%s2938 + $0x1e0] sm:$0xff]
        %v3000 = vld [vmem:[%s2938 + $0x1e8] sm:$0xff]
        %v3001 = vld [vmem:[%s2938 + $0x1f0] sm:$0xff]
        %v3002 = vld [vmem:[%s2938 + $0x1f8] sm:$0xff]
        %v3003 = vld [vmem:[%s2938 + $0x200] sm:$0xff]
        %v3004 = vld [vmem:[%s2938 + $0x208] sm:$0xff]
        %v3006 = vsel %vm950, %v2930, 0
        %v3009 = vsel %vm950, %v2936, 0
        %3011 = vmatprep.subr.mxu0 %v2940
        %3012 = vmatpush1.msra.mxu0 %v2939
        %3013 = vmatprep.subr.mxu0 %v2943
        %3014 = vmatpush1.msra.mxu0 %v2942
        %3015 = vmatprep.subr.mxu0 %v2946
        %3016 = vmatpush1.msra.mxu0 %v2945
        %3017 = vmatprep.subr.mxu0 %v2949
        %3018 = vmatpush1.msra.mxu0 %v2948
        %3019 = vmatprep.subr.mxu0 %v2952
        %3020 = vmatpush1.msra.mxu0 %v2951
        %3021 = vmatprep.subr.mxu0 %v2955
        %3022 = vmatpush1.msra.mxu0 %v2954
        %3023 = vmatprep.subr.mxu0 %v2958
        %3024 = vmatpush1.msra.mxu0 %v2957
        %3025 = vmatprep.subr.mxu0 %v2961
        %3026 = vmatpush1.msra.mxu0 %v2960
        %3027 = vmatprep.subr.mxu0 %v2964
        %3028 = vmatpush1.msra.mxu0 %v2963
        %3029 = vmatprep.subr.mxu0 %v2967
        %3030 = vmatpush1.msra.mxu0 %v2966
        %3031 = vmatprep.subr.mxu0 %v2970
        %3032 = vmatpush1.msra.mxu0 %v2969
        %3033 = vmatprep.subr.mxu0 %v2973
        %3034 = vmatpush1.msra.mxu0 %v2972
        %3035 = vmatprep.subr.mxu0 %v2976
        %3036 = vmatpush1.msra.mxu0 %v2975
        %3037 = vmatprep.subr.mxu0 %v2979
        %3038 = vmatpush1.msra.mxu0 %v2978
        %3039 = vmatprep.subr.mxu0 %v2982
        %3040 = vmatpush1.msra.mxu0 %v2981
        %3041 = vmatprep.subr.mxu0 %v2985
        %3042 = vmatpush1.msra.mxu0 %v2984
        %3043 = vmatprep.subr.mxu0 %v2988
        %3044 = vmatpush1.msra.mxu0 %v2987
        %3045 = vmatprep.subr.mxu0 %v2991
        %3046 = vmatpush1.msra.mxu0 %v2990
        %3047 = vmatprep.subr.mxu0 %v2994
        %3048 = vmatpush1.msra.mxu0 %v2993
        %3049 = vmatprep.subr.mxu0 %v2997
        %3050 = vmatpush1.msra.mxu0 %v2996
        %3051 = vmatprep.subr.mxu0 %v3000
        %3052 = vmatpush1.msra.mxu0 %v2999
        %3053 = vmatprep.subr.mxu0 %v3003
        %3054 = vmatpush1.msra.mxu0 %v3002
        %3055 = vmatprep.subr.mxu0 0.0
        %3056 = vmatpush1.msra.mxu0 0.0
        %3057 = vmatprep.subr.mxu0 0.0
        %3058 = vmatpush1.msra.mxu0 0.0
        %3059 = vmatprep.subr.mxu0 0.0
        %3060 = vmatpush1.msra.mxu0 0.0
        %3061 = vmatprep.subr.mxu0 0.0
        %3062 = vmatpush1.msra.mxu0 0.0
        %3063 = vmatprep.subr.mxu0 0.0
        %3064 = vmatpush1.msra.mxu0 0.0
        %3065 = vmatprep.subr.mxu0 0.0
        %3066 = vmatpush1.msra.mxu0 0.0
        %3067 = vmatprep.subr.mxu0 0.0
        %3068 = vmatpush1.msra.mxu0 0.0
        %3069 = vmatprep.subr.mxu0 0.0
        %3070 = vmatpush1.msra.mxu0 0.0
        %3071 = vmatprep.subr.mxu0 0.0
        %3072 = vmatpush1.msra.mxu0 0.0
        %3073 = vmatprep.subr.mxu0 0.0
        %3074 = vmatpush1.msra.mxu0 0.0
        %3075 = vmatprep.mubr.f32.mxu0 %v3006
        %3076 = vmatmul.mubr.f32.gmra.mrb[0].mxu0 %v2928
        %v3077 = vpop.f32.mrb[0].mxu0
        %v3078 = vadd.f32 0.0, %v3077
        %v3079 = vpop.f32.mrb[0].mxu0
        %v3080 = vadd.f32 0.0, %v3079
        %3081 = vmatprep.mubr.f32.mxu0 %v3009
        %3082 = vmatmul.mubr.f32.gmra.mrb[0].mxu0 %v2934
        %v3083 = vpop.f32.mrb[0].mxu0
        %v3084 = vadd.f32 0.0, %v3083
        %v3085 = vpop.f32.mrb[0].mxu0
        %v3086 = vadd.f32 0.0, %v3085
        %3087 = vdwg.mxu0
        %3088 = vmatprep.subr.mxu0 0.0
        %3089 = vmatpush1.msra.mxu0 %v2941
        %3090 = vmatprep.subr.mxu0 0.0
        %3091 = vmatpush1.msra.mxu0 %v2944
        %3092 = vmatprep.subr.mxu0 0.0
        %3093 = vmatpush1.msra.mxu0 %v2947
        %3094 = vmatprep.subr.mxu0 0.0
        %3095 = vmatpush1.msra.mxu0 %v2950
        %3096 = vmatprep.subr.mxu0 0.0
        %3097 = vmatpush1.msra.mxu0 %v2953
        %3098 = vmatprep.subr.mxu0 0.0
        %3099 = vmatpush1.msra.mxu0 %v2956
        %3100 = vmatprep.subr.mxu0 0.0
        %3101 = vmatpush1.msra.mxu0 %v2959
        %3102 = vmatprep.subr.mxu0 0.0
        %3103 = vmatpush1.msra.mxu0 %v2962
        %3104 = vmatprep.subr.mxu0 0.0
        %3105 = vmatpush1.msra.mxu0 %v2965
        %3106 = vmatprep.subr.mxu0 0.0
        %3107 = vmatpush1.msra.mxu0 %v2968
        %3108 = vmatprep.subr.mxu0 0.0
        %3109 = vmatpush1.msra.mxu0 %v2971
        %3110 = vmatprep.subr.mxu0 0.0
        %3111 = vmatpush1.msra.mxu0 %v2974
        %3112 = vmatprep.subr.mxu0 0.0
        %3113 = vmatpush1.msra.mxu0 %v2977
        %3114 = vmatprep.subr.mxu0 0.0
        %3115 = vmatpush1.msra.mxu0 %v2980
        %3116 = vmatprep.subr.mxu0 0.0
        %3117 = vmatpush1.msra.mxu0 %v2983
        %3118 = vmatprep.subr.mxu0 0.0
        %3119 = vmatpush1.msra.mxu0 %v2986
        %3120 = vmatprep.subr.mxu0 0.0
        %3121 = vmatpush1.msra.mxu0 %v2989
        %3122 = vmatprep.subr.mxu0 0.0
        %3123 = vmatpush1.msra.mxu0 %v2992
        %3124 = vmatprep.subr.mxu0 0.0
        %3125 = vmatpush1.msra.mxu0 %v2995
        %3126 = vmatprep.subr.mxu0 0.0
        %3127 = vmatpush1.msra.mxu0 %v2998
        %3128 = vmatprep.subr.mxu0 0.0
        %3129 = vmatpush1.msra.mxu0 %v3001
        %3130 = vmatprep.subr.mxu0 0.0
        %3131 = vmatpush1.msra.mxu0 %v3004
        %3132 = vmatprep.subr.mxu0 0.0
        %3133 = vmatpush1.msra.mxu0 0.0
        %3134 = vmatprep.subr.mxu0 0.0
        %3135 = vmatpush1.msra.mxu0 0.0
        %3136 = vmatprep.subr.mxu0 0.0
        %3137 = vmatpush1.msra.mxu0 0.0
        %3138 = vmatprep.subr.mxu0 0.0
        %3139 = vmatpush1.msra.mxu0 0.0
        %3140 = vmatprep.subr.mxu0 0.0
        %3141 = vmatpush1.msra.mxu0 0.0
        %3142 = vmatprep.subr.mxu0 0.0
        %3143 = vmatpush1.msra.mxu0 0.0
        %3144 = vmatprep.subr.mxu0 0.0
        %3145 = vmatpush1.msra.mxu0 0.0
        %3146 = vmatprep.subr.mxu0 0.0
        %3147 = vmatpush1.msra.mxu0 0.0
        %3148 = vmatprep.subr.mxu0 0.0
        %3149 = vmatpush1.msra.mxu0 0.0
        %3150 = vmatprep.subr.mxu0 0.0
        %3151 = vmatpush1.msra.mxu0 0.0
        %3152 = vmatprep.mubr.f32.mxu0 %v3006
        %3153 = vmatmul.mubr.f32.gmra.mrb[0].mxu0 %v2928
        %v3154 = vpop.f32.mrb[0].mxu0
        %v3155 = vadd.f32 0.0, %v3154
        %v3156 = vpop.f32.mrb[0].mxu0
        %3157 = vmatprep.mubr.f32.mxu0 %v3009
        %3158 = vmatmul.mubr.f32.gmra.mrb[0].mxu0 %v2934
        %v3159 = vpop.f32.mrb[0].mxu0
        %v3160 = vadd.f32 0.0, %v3159
        %v3161 = vpop.f32.mrb[0].mxu0
        %3162 = vdwg.mxu0
        %v3163 = vadd.f32 %v2846, %v3078
        %v3164 = vadd.f32 %v2847, %v3080
        %v3165 = vadd.f32 %v2848, %v3155
        %v3166 = vadd.f32 %v2849, %v3084
        %v3167 = vadd.f32 %v2850, %v3086
        %v3168 = vadd.f32 %v2851, %v3160
        %v3169 = vld [vmem:[#allocation5] sm:$0x7]
        %v3171 = vlaneseq
        %v3172 = vshrl.u32 %v3171, 7
        %v3173 = vsub.s32 0, %v3172
        %v3174 = vrot.slane %v3169, %v3173
        %v3175 = vlaneseq
        %v3176 = vshrl.u32 %v3175, 7
        %v3177 = vsub.s32 1, %v3176
        %v3178 = vrot.slane %v3169, %v3177
        %v3179 = vlaneseq
        %v3180 = vshrl.u32 %v3179, 7
        %v3181 = vsub.s32 2, %v3180
        %v3182 = vrot.slane %v3169, %v3181
        %v3186 = vadd.f32 %v3163, %v3174
        %v3187 = vadd.f32 %v3164, %v3178
        %v3188 = vadd.f32 %v3165, %v3182
        %v3189 = vadd.f32 %v3166, %v3174
        %v3190 = vadd.f32 %v3167, %v3178
        %v3191 = vadd.f32 %v3168, %v3182
        %v3192 = vmax.f32 %v3186, 0.0
        %v3193 = vmax.f32 %v3187, 0.0
        %v3194 = vmax.f32 %v3188, 0.0
        %v3195 = vmax.f32 %v3189, 0.0
        %v3196 = vmax.f32 %v3190, 0.0
        %v3197 = vmax.f32 %v3191, 0.0
        %v3198 = vld [vmem:[#allocation7] sm:$0xf]
        %vm3199 = vcmask 80896
        %v3201 = vsel %vm3199, %v3198, 0
        %vm3203 = vcmask 1041408
        %v3205 = vsel %vm3203, %v3195, 0
        %v3208 = vsel %vm3203, %v3196, 0
        %v3211 = vsel %vm3203, %v3197, 0
        %3213 = vmatprep.subr.mxu0 %v3193
        %3214 = vmatpush1.msra.mxu0 %v3192
        %3215 = vmatprep.subr.mxu0 %v3208
        %3216 = vmatpush1.msra.mxu0 %v3205
        %3217 = vmatprep.subr.mxu0 0.0
        %3218 = vmatpush1.msra.mxu0 0.0
        %3219 = vmatprep.subr.mxu0 0.0
        %3220 = vmatpush1.msra.mxu0 0.0
        %3221 = vmatprep.subr.mxu0 0.0
        %3222 = vmatpush1.msra.mxu0 0.0
        %3223 = vmatprep.subr.mxu0 0.0
        %3224 = vmatpush1.msra.mxu0 0.0
        %3225 = vmatprep.subr.mxu0 0.0
        %3226 = vmatpush1.msra.mxu0 0.0
        %3227 = vmatprep.subr.mxu0 0.0
        %3228 = vmatpush1.msra.mxu0 0.0
        %3229 = vmatprep.subr.mxu0 0.0
        %3230 = vmatpush1.msra.mxu0 0.0
        %3231 = vmatprep.subr.mxu0 0.0
        %3232 = vmatpush1.msra.mxu0 0.0
        %3233 = vmatprep.subr.mxu0 0.0
        %3234 = vmatpush1.msra.mxu0 0.0
        %3235 = vmatprep.subr.mxu0 0.0
        %3236 = vmatpush1.msra.mxu0 0.0
        %3237 = vmatprep.subr.mxu0 0.0
        %3238 = vmatpush1.msra.mxu0 0.0
        %3239 = vmatprep.subr.mxu0 0.0
        %3240 = vmatpush1.msra.mxu0 0.0
        %3241 = vmatprep.subr.mxu0 0.0
        %3242 = vmatpush1.msra.mxu0 0.0
        %3243 = vmatprep.subr.mxu0 0.0
        %3244 = vmatpush1.msra.mxu0 0.0
        %3245 = vmatprep.subr.mxu0 0.0
        %3246 = vmatpush1.msra.mxu0 0.0
        %3247 = vmatprep.subr.mxu0 0.0
        %3248 = vmatpush1.msra.mxu0 0.0
        %3249 = vmatprep.subr.mxu0 0.0
        %3250 = vmatpush1.msra.mxu0 0.0
        %3251 = vmatprep.subr.mxu0 0.0
        %3252 = vmatpush1.msra.mxu0 0.0
        %3253 = vmatprep.subr.mxu0 0.0
        %3254 = vmatpush1.msra.mxu0 0.0
        %3255 = vmatprep.subr.mxu0 0.0
        %3256 = vmatpush1.msra.mxu0 0.0
        %3257 = vmatprep.subr.mxu0 0.0
        %3258 = vmatpush1.msra.mxu0 0.0
        %3259 = vmatprep.subr.mxu0 0.0
        %3260 = vmatpush1.msra.mxu0 0.0
        %3261 = vmatprep.subr.mxu0 0.0
        %3262 = vmatpush1.msra.mxu0 0.0
        %3263 = vmatprep.subr.mxu0 0.0
        %3264 = vmatpush1.msra.mxu0 0.0
        %3265 = vmatprep.subr.mxu0 0.0
        %3266 = vmatpush1.msra.mxu0 0.0
        %3267 = vmatprep.subr.mxu0 0.0
        %3268 = vmatpush1.msra.mxu0 0.0
        %3269 = vmatprep.subr.mxu0 0.0
        %3270 = vmatpush1.msra.mxu0 0.0
        %3271 = vmatprep.subr.mxu0 0.0
        %3272 = vmatpush1.msra.mxu0 0.0
        %3273 = vmatprep.subr.mxu0 0.0
        %3274 = vmatpush1.msra.mxu0 0.0
        %3275 = vmatprep.subr.mxu0 0.0
        %3276 = vmatpush1.msra.mxu0 0.0
        %3277 = vmatprep.mubr.f32.mxu0 0.0
        %3278 = vmatmul.mubr.f32.gmra.mrb[0].mxu0 %v3201
        %v3279 = vpop.f32.mrb[0].mxu0
        %v3280 = vadd.f32 0.0, %v3279
        %v3281 = vpop.f32.mrb[0].mxu0
        %v3282 = vadd.f32 0.0, %v3281
        %3283 = vdwg.mxu0
        %3284 = vmatprep.subr.mxu0 0.0
        %3285 = vmatpush1.msra.mxu0 %v3194
        %3286 = vmatprep.subr.mxu0 0.0
        %3287 = vmatpush1.msra.mxu0 %v3211
        %3288 = vmatprep.subr.mxu0 0.0
        %3289 = vmatpush1.msra.mxu0 0.0
        %3290 = vmatprep.subr.mxu0 0.0
        %3291 = vmatpush1.msra.mxu0 0.0
        %3292 = vmatprep.subr.mxu0 0.0
        %3293 = vmatpush1.msra.mxu0 0.0
        %3294 = vmatprep.subr.mxu0 0.0
        %3295 = vmatpush1.msra.mxu0 0.0
        %3296 = vmatprep.subr.mxu0 0.0
        %3297 = vmatpush1.msra.mxu0 0.0
        %3298 = vmatprep.subr.mxu0 0.0
        %3299 = vmatpush1.msra.mxu0 0.0
        %3300 = vmatprep.subr.mxu0 0.0
        %3301 = vmatpush1.msra.mxu0 0.0
        %3302 = vmatprep.subr.mxu0 0.0
        %3303 = vmatpush1.msra.mxu0 0.0
        %3304 = vmatprep.subr.mxu0 0.0
        %3305 = vmatpush1.msra.mxu0 0.0
        %3306 = vmatprep.subr.mxu0 0.0
        %3307 = vmatpush1.msra.mxu0 0.0
        %3308 = vmatprep.subr.mxu0 0.0
        %3309 = vmatpush1.msra.mxu0 0.0
        %3310 = vmatprep.subr.mxu0 0.0
        %3311 = vmatpush1.msra.mxu0 0.0
        %3312 = vmatprep.subr.mxu0 0.0
        %3313 = vmatpush1.msra.mxu0 0.0
        %3314 = vmatprep.subr.mxu0 0.0
        %3315 = vmatpush1.msra.mxu0 0.0
        %3316 = vmatprep.subr.mxu0 0.0
        %3317 = vmatpush1.msra.mxu0 0.0
        %3318 = vmatprep.subr.mxu0 0.0
        %3319 = vmatpush1.msra.mxu0 0.0
        %3320 = vmatprep.subr.mxu0 0.0
        %3321 = vmatpush1.msra.mxu0 0.0
        %3322 = vmatprep.subr.mxu0 0.0
        %3323 = vmatpush1.msra.mxu0 0.0
        %3324 = vmatprep.subr.mxu0 0.0
        %3325 = vmatpush1.msra.mxu0 0.0
        %3326 = vmatprep.subr.mxu0 0.0
        %3327 = vmatpush1.msra.mxu0 0.0
        %3328 = vmatprep.subr.mxu0 0.0
        %3329 = vmatpush1.msra.mxu0 0.0
        %3330 = vmatprep.subr.mxu0 0.0
        %3331 = vmatpush1.msra.mxu0 0.0
        %3332 = vmatprep.subr.mxu0 0.0
        %3333 = vmatpush1.msra.mxu0 0.0
        %3334 = vmatprep.subr.mxu0 0.0
        %3335 = vmatpush1.msra.mxu0 0.0
        %3336 = vmatprep.subr.mxu0 0.0
        %3337 = vmatpush1.msra.mxu0 0.0
        %3338 = vmatprep.subr.mxu0 0.0
        %3339 = vmatpush1.msra.mxu0 0.0
        %3340 = vmatprep.subr.mxu0 0.0
        %3341 = vmatpush1.msra.mxu0 0.0
        %3342 = vmatprep.subr.mxu0 0.0
        %3343 = vmatpush1.msra.mxu0 0.0
        %3344 = vmatprep.subr.mxu0 0.0
        %3345 = vmatpush1.msra.mxu0 0.0
        %3346 = vmatprep.subr.mxu0 0.0
        %3347 = vmatpush1.msra.mxu0 0.0
        %3348 = vmatprep.mubr.f32.mxu0 0.0
        %3349 = vmatmul.mubr.f32.gmra.mrb[0].mxu0 %v3201
        %v3350 = vpop.f32.mrb[0].mxu0
        %v3351 = vadd.f32 0.0, %v3350
        %v3352 = vpop.f32.mrb[0].mxu0
        %3353 = vdwg.mxu0
        %v3354 = vld [vmem:[%s5] sm:$0xff]
        %v3355 = vld [vmem:[%s5 + $0x8] sm:$0xff]
        %v3356 = vld [vmem:[%s5 + $0x10] sm:$0xff]
        %v3357 = vld [vmem:[%s5 + $0x18] sm:$0xff]
        %v3358 = vld [vmem:[%s5 + $0x20] sm:$0xff]
        %v3359 = vld [vmem:[%s5 + $0x28] sm:$0xff]
        %v3360 = vld [vmem:[%s5 + $0x30] sm:$0xff]
        %v3361 = vld [vmem:[%s5 + $0x38] sm:$0xff]
        %v3362 = vld [vmem:[%s5 + $0x40] sm:$0xff]
        %v3363 = vld [vmem:[%s5 + $0x48] sm:$0xff]
        %v3364 = vld [vmem:[%s5 + $0x50] sm:$0xff]
        %v3365 = vld [vmem:[%s5 + $0x58] sm:$0xff]
        %v3366 = vld [vmem:[%s5 + $0x60] sm:$0xff]
        %v3367 = vld [vmem:[%s5 + $0x68] sm:$0xff]
        %v3368 = vld [vmem:[%s5 + $0x70] sm:$0xff]
        %v3369 = vld [vmem:[%s5 + $0x78] sm:$0xff]
        %v3370 = vld [vmem:[%s5 + $0x80] sm:$0xff]
        %v3371 = vld [vmem:[%s5 + $0x88] sm:$0xff]
        %v3372 = vld [vmem:[%s5 + $0x90] sm:$0xff]
        %v3373 = vld [vmem:[%s5 + $0x98] sm:$0xff]
        %v3374 = vld [vmem:[%s5 + $0xa0] sm:$0xff]
        %v3375 = vld [vmem:[%s5 + $0xa8] sm:$0xff]
        %v3376 = vld [vmem:[%s5 + $0xb0] sm:$0xff]
        %v3377 = vld [vmem:[%s5 + $0xb8] sm:$0xff]
        %v3378 = vld [vmem:[%s5 + $0xc0] sm:$0xff]
        %v3379 = vld [vmem:[%s5 + $0xc8] sm:$0xff]
        %v3380 = vld [vmem:[%s5 + $0xd0] sm:$0xff]
        %v3381 = vld [vmem:[%s5 + $0xd8] sm:$0xff]
        %v3382 = vld [vmem:[%s5 + $0xe0] sm:$0xff]
        %v3383 = vld [vmem:[%s5 + $0xe8] sm:$0xff]
        %v3384 = vld [vmem:[%s5 + $0xf0] sm:$0xff]
        %v3385 = vld [vmem:[%s5 + $0xf8] sm:$0xff]
        %v3386 = vld [vmem:[%s5 + $0x100] sm:$0xff]
        %v3387 = vld [vmem:[%s5 + $0x108] sm:$0xff]
        %v3388 = vld [vmem:[%s5 + $0x110] sm:$0xff]
        %v3389 = vld [vmem:[%s5 + $0x118] sm:$0xff]
        %v3390 = vld [vmem:[%s5 + $0x120] sm:$0xff]
        %v3391 = vld [vmem:[%s5 + $0x128] sm:$0xff]
        %v3392 = vld [vmem:[%s5 + $0x130] sm:$0xff]
        %v3393 = vld [vmem:[%s5 + $0x138] sm:$0xff]
        %v3394 = vld [vmem:[%s5 + $0x140] sm:$0xff]
        %v3395 = vld [vmem:[%s5 + $0x148] sm:$0xff]
        %v3396 = vld [vmem:[%s5 + $0x150] sm:$0xff]
        %v3397 = vld [vmem:[%s5 + $0x158] sm:$0xff]
        %v3398 = vld [vmem:[%s5 + $0x160] sm:$0xff]
        %v3399 = vld [vmem:[%s5 + $0x168] sm:$0xff]
        %v3400 = vld [vmem:[%s5 + $0x170] sm:$0xff]
        %v3401 = vld [vmem:[%s5 + $0x178] sm:$0xff]
        %v3402 = vld [vmem:[%s5 + $0x180] sm:$0xff]
        %v3403 = vld [vmem:[%s5 + $0x188] sm:$0xff]
        %v3404 = vld [vmem:[%s5 + $0x190] sm:$0xff]
        %v3405 = vld [vmem:[%s5 + $0x198] sm:$0xff]
        %v3406 = vld [vmem:[%s5 + $0x1a0] sm:$0xff]
        %v3407 = vld [vmem:[%s5 + $0x1a8] sm:$0xff]
        %v3408 = vld [vmem:[%s5 + $0x1b0] sm:$0xff]
        %v3409 = vld [vmem:[%s5 + $0x1b8] sm:$0xff]
        %v3410 = vld [vmem:[%s5 + $0x1c0] sm:$0xff]
        %v3411 = vld [vmem:[%s5 + $0x1c8] sm:$0xff]
        %v3412 = vld [vmem:[%s5 + $0x1d0] sm:$0xff]
        %v3413 = vld [vmem:[%s5 + $0x1d8] sm:$0xff]
        %v3414 = vld [vmem:[%s5 + $0x1e0] sm:$0xff]
        %v3415 = vld [vmem:[%s5 + $0x1e8] sm:$0xff]
        %v3416 = vld [vmem:[%s5 + $0x1f0] sm:$0xff]
        %v3417 = vld [vmem:[%s5 + $0x1f8] sm:$0xff]
        %v3418 = vld [vmem:[%s5 + $0x200] sm:$0xff]
        %v3419 = vld [vmem:[%s5 + $0x208] sm:$0xff]
        %v3420 = vld [vmem:[%s5 + $0x210] sm:$0xff]
        %v3421 = vld [vmem:[%s5 + $0x218] sm:$0xff]
        %v3422 = vld [vmem:[%s5 + $0x220] sm:$0xff]
        %v3423 = vld [vmem:[%s5 + $0x228] sm:$0xff]
        %v3424 = vld [vmem:[%s5 + $0x230] sm:$0xff]
        %v3425 = vld [vmem:[%s5 + $0x238] sm:$0xff]
        %v3426 = vld [vmem:[%s5 + $0x240] sm:$0xff]
        %v3427 = vld [vmem:[%s5 + $0x248] sm:$0xff]
        %v3428 = vld [vmem:[%s5 + $0x250] sm:$0xff]
        %v3429 = vld [vmem:[%s5 + $0x258] sm:$0xff]
        %v3430 = vld [vmem:[%s5 + $0x260] sm:$0xff]
        %v3431 = vld [vmem:[%s5 + $0x268] sm:$0xff]
        %v3432 = vld [vmem:[%s5 + $0x270] sm:$0xff]
        %v3433 = vld [vmem:[%s5 + $0x278] sm:$0xff]
        %s3434 = scalar_lea.vmem [#allocation7], 4
        %v3435 = vld [vmem:[%s3434] sm:$0xf]
        %v3437 = vsel %vm3199, %v3435, 0
        %3439 = vmatprep.subr.mxu0 %v3193
        %3440 = vmatpush1.msra.mxu0 %v3192
        %3441 = vmatprep.subr.mxu0 %v3208
        %3442 = vmatpush1.msra.mxu0 %v3205
        %3443 = vmatprep.subr.mxu0 0.0
        %3444 = vmatpush1.msra.mxu0 0.0
        %3445 = vmatprep.subr.mxu0 0.0
        %3446 = vmatpush1.msra.mxu0 0.0
        %3447 = vmatprep.subr.mxu0 0.0
        %3448 = vmatpush1.msra.mxu0 0.0
        %3449 = vmatprep.subr.mxu0 0.0
        %3450 = vmatpush1.msra.mxu0 0.0
        %3451 = vmatprep.subr.mxu0 0.0
        %3452 = vmatpush1.msra.mxu0 0.0
        %3453 = vmatprep.subr.mxu0 0.0
        %3454 = vmatpush1.msra.mxu0 0.0
        %3455 = vmatprep.subr.mxu0 0.0
        %3456 = vmatpush1.msra.mxu0 0.0
        %3457 = vmatprep.subr.mxu0 0.0
        %3458 = vmatpush1.msra.mxu0 0.0
        %3459 = vmatprep.subr.mxu0 0.0
        %3460 = vmatpush1.msra.mxu0 0.0
        %3461 = vmatprep.subr.mxu0 0.0
        %3462 = vmatpush1.msra.mxu0 0.0
        %3463 = vmatprep.subr.mxu0 0.0
        %3464 = vmatpush1.msra.mxu0 0.0
        %3465 = vmatprep.subr.mxu0 0.0
        %3466 = vmatpush1.msra.mxu0 0.0
        %3467 = vmatprep.subr.mxu0 0.0
        %3468 = vmatpush1.msra.mxu0 0.0
        %3469 = vmatprep.subr.mxu0 0.0
        %3470 = vmatpush1.msra.mxu0 0.0
        %3471 = vmatprep.subr.mxu0 0.0
        %3472 = vmatpush1.msra.mxu0 0.0
        %3473 = vmatprep.subr.mxu0 0.0
        %3474 = vmatpush1.msra.mxu0 0.0
        %3475 = vmatprep.subr.mxu0 0.0
        %3476 = vmatpush1.msra.mxu0 0.0
        %3477 = vmatprep.subr.mxu0 0.0
        %3478 = vmatpush1.msra.mxu0 0.0
        %3479 = vmatprep.subr.mxu0 0.0
        %3480 = vmatpush1.msra.mxu0 0.0
        %3481 = vmatprep.subr.mxu0 0.0
        %3482 = vmatpush1.msra.mxu0 0.0
        %3483 = vmatprep.subr.mxu0 0.0
        %3484 = vmatpush1.msra.mxu0 0.0
        %3485 = vmatprep.subr.mxu0 0.0
        %3486 = vmatpush1.msra.mxu0 0.0
        %3487 = vmatprep.subr.mxu0 0.0
        %3488 = vmatpush1.msra.mxu0 0.0
        %3489 = vmatprep.subr.mxu0 0.0
        %3490 = vmatpush1.msra.mxu0 0.0
        %3491 = vmatprep.subr.mxu0 0.0
        %3492 = vmatpush1.msra.mxu0 0.0
        %3493 = vmatprep.subr.mxu0 0.0
        %3494 = vmatpush1.msra.mxu0 0.0
        %3495 = vmatprep.subr.mxu0 0.0
        %3496 = vmatpush1.msra.mxu0 0.0
        %3497 = vmatprep.subr.mxu0 0.0
        %3498 = vmatpush1.msra.mxu0 0.0
        %3499 = vmatprep.subr.mxu0 0.0
        %3500 = vmatpush1.msra.mxu0 0.0
        %3501 = vmatprep.subr.mxu0 0.0
        %3502 = vmatpush1.msra.mxu0 0.0
        %3503 = vmatprep.mubr.f32.mxu0 0.0
        %3504 = vmatmul.mubr.f32.gmra.mrb[0].mxu0 %v3437
        %v3505 = vpop.f32.mrb[0].mxu0
        %v3506 = vadd.f32 0.0, %v3505
        %v3507 = vpop.f32.mrb[0].mxu0
        %v3508 = vadd.f32 0.0, %v3507
        %3509 = vdwg.mxu0
        %3510 = vmatprep.subr.mxu0 0.0
        %3511 = vmatpush1.msra.mxu0 %v3194
        %3512 = vmatprep.subr.mxu0 0.0
        %3513 = vmatpush1.msra.mxu0 %v3211
        %3514 = vmatprep.subr.mxu0 0.0
        %3515 = vmatpush1.msra.mxu0 0.0
        %3516 = vmatprep.subr.mxu0 0.0
        %3517 = vmatpush1.msra.mxu0 0.0
        %3518 = vmatprep.subr.mxu0 0.0
        %3519 = vmatpush1.msra.mxu0 0.0
        %3520 = vmatprep.subr.mxu0 0.0
        %3521 = vmatpush1.msra.mxu0 0.0
        %3522 = vmatprep.subr.mxu0 0.0
        %3523 = vmatpush1.msra.mxu0 0.0
        %3524 = vmatprep.subr.mxu0 0.0
        %3525 = vmatpush1.msra.mxu0 0.0
        %3526 = vmatprep.subr.mxu0 0.0
        %3527 = vmatpush1.msra.mxu0 0.0
        %3528 = vmatprep.subr.mxu0 0.0
        %3529 = vmatpush1.msra.mxu0 0.0
        %3530 = vmatprep.subr.mxu0 0.0
        %3531 = vmatpush1.msra.mxu0 0.0
        %3532 = vmatprep.subr.mxu0 0.0
        %3533 = vmatpush1.msra.mxu0 0.0
        %3534 = vmatprep.subr.mxu0 0.0
        %3535 = vmatpush1.msra.mxu0 0.0
        %3536 = vmatprep.subr.mxu0 0.0
        %3537 = vmatpush1.msra.mxu0 0.0
        %3538 = vmatprep.subr.mxu0 0.0
        %3539 = vmatpush1.msra.mxu0 0.0
        %3540 = vmatprep.subr.mxu0 0.0
        %3541 = vmatpush1.msra.mxu0 0.0
        %3542 = vmatprep.subr.mxu0 0.0
        %3543 = vmatpush1.msra.mxu0 0.0
        %3544 = vmatprep.subr.mxu0 0.0
        %3545 = vmatpush1.msra.mxu0 0.0
        %3546 = vmatprep.subr.mxu0 0.0
        %3547 = vmatpush1.msra.mxu0 0.0
        %3548 = vmatprep.subr.mxu0 0.0
        %3549 = vmatpush1.msra.mxu0 0.0
        %3550 = vmatprep.subr.mxu0 0.0
        %3551 = vmatpush1.msra.mxu0 0.0
        %3552 = vmatprep.subr.mxu0 0.0
        %3553 = vmatpush1.msra.mxu0 0.0
        %3554 = vmatprep.subr.mxu0 0.0
        %3555 = vmatpush1.msra.mxu0 0.0
        %3556 = vmatprep.subr.mxu0 0.0
        %3557 = vmatpush1.msra.mxu0 0.0
        %3558 = vmatprep.subr.mxu0 0.0
        %3559 = vmatpush1.msra.mxu0 0.0
        %3560 = vmatprep.subr.mxu0 0.0
        %3561 = vmatpush1.msra.mxu0 0.0
        %3562 = vmatprep.subr.mxu0 0.0
        %3563 = vmatpush1.msra.mxu0 0.0
        %3564 = vmatprep.subr.mxu0 0.0
        %3565 = vmatpush1.msra.mxu0 0.0
        %3566 = vmatprep.subr.mxu0 0.0
        %3567 = vmatpush1.msra.mxu0 0.0
        %3568 = vmatprep.subr.mxu0 0.0
        %3569 = vmatpush1.msra.mxu0 0.0
        %3570 = vmatprep.subr.mxu0 0.0
        %3571 = vmatpush1.msra.mxu0 0.0
        %3572 = vmatprep.subr.mxu0 0.0
        %3573 = vmatpush1.msra.mxu0 0.0
        %3574 = vmatprep.mubr.f32.mxu0 0.0
        %3575 = vmatmul.mubr.f32.gmra.mrb[0].mxu0 %v3437
        %v3576 = vpop.f32.mrb[0].mxu0
        %v3577 = vadd.f32 0.0, %v3576
        %v3578 = vpop.f32.mrb[0].mxu0
        %3579 = vdwg.mxu0
        %s3580 = scalar_lea.vmem %s5, 640
        %v3581 = vld [vmem:[%s3580] sm:$0xff]
        %v3582 = vld [vmem:[%s3580 + $0x8] sm:$0xff]
        %v3583 = vld [vmem:[%s3580 + $0x10] sm:$0xff]
        %v3584 = vld [vmem:[%s3580 + $0x18] sm:$0xff]
        %v3585 = vld [vmem:[%s3580 + $0x20] sm:$0xff]
        %v3586 = vld [vmem:[%s3580 + $0x28] sm:$0xff]
        %v3587 = vld [vmem:[%s3580 + $0x30] sm:$0xff]
        %v3588 = vld [vmem:[%s3580 + $0x38] sm:$0xff]
        %v3589 = vld [vmem:[%s3580 + $0x40] sm:$0xff]
        %v3590 = vld [vmem:[%s3580 + $0x48] sm:$0xff]
        %v3591 = vld [vmem:[%s3580 + $0x50] sm:$0xff]
        %v3592 = vld [vmem:[%s3580 + $0x58] sm:$0xff]
        %v3593 = vld [vmem:[%s3580 + $0x60] sm:$0xff]
        %v3594 = vld [vmem:[%s3580 + $0x68] sm:$0xff]
        %v3595 = vld [vmem:[%s3580 + $0x70] sm:$0xff]
        %v3596 = vld [vmem:[%s3580 + $0x78] sm:$0xff]
        %v3597 = vld [vmem:[%s3580 + $0x80] sm:$0xff]
        %v3598 = vld [vmem:[%s3580 + $0x88] sm:$0xff]
        %v3599 = vld [vmem:[%s3580 + $0x90] sm:$0xff]
        %v3600 = vld [vmem:[%s3580 + $0x98] sm:$0xff]
        %v3601 = vld [vmem:[%s3580 + $0xa0] sm:$0xff]
        %v3602 = vld [vmem:[%s3580 + $0xa8] sm:$0xff]
        %v3603 = vld [vmem:[%s3580 + $0xb0] sm:$0xff]
        %v3604 = vld [vmem:[%s3580 + $0xb8] sm:$0xff]
        %v3605 = vld [vmem:[%s3580 + $0xc0] sm:$0xff]
        %v3606 = vld [vmem:[%s3580 + $0xc8] sm:$0xff]
        %v3607 = vld [vmem:[%s3580 + $0xd0] sm:$0xff]
        %v3608 = vld [vmem:[%s3580 + $0xd8] sm:$0xff]
        %v3609 = vld [vmem:[%s3580 + $0xe0] sm:$0xff]
        %v3610 = vld [vmem:[%s3580 + $0xe8] sm:$0xff]
        %v3611 = vld [vmem:[%s3580 + $0xf0] sm:$0xff]
        %v3612 = vld [vmem:[%s3580 + $0xf8] sm:$0xff]
        %v3613 = vld [vmem:[%s3580 + $0x100] sm:$0xff]
        %v3614 = vld [vmem:[%s3580 + $0x108] sm:$0xff]
        %v3615 = vld [vmem:[%s3580 + $0x110] sm:$0xff]
        %v3616 = vld [vmem:[%s3580 + $0x118] sm:$0xff]
        %v3617 = vld [vmem:[%s3580 + $0x120] sm:$0xff]
        %v3618 = vld [vmem:[%s3580 + $0x128] sm:$0xff]
        %v3619 = vld [vmem:[%s3580 + $0x130] sm:$0xff]
        %v3620 = vld [vmem:[%s3580 + $0x138] sm:$0xff]
        %v3621 = vld [vmem:[%s3580 + $0x140] sm:$0xff]
        %v3622 = vld [vmem:[%s3580 + $0x148] sm:$0xff]
        %v3623 = vld [vmem:[%s3580 + $0x150] sm:$0xff]
        %v3624 = vld [vmem:[%s3580 + $0x158] sm:$0xff]
        %v3625 = vld [vmem:[%s3580 + $0x160] sm:$0xff]
        %v3626 = vld [vmem:[%s3580 + $0x168] sm:$0xff]
        %v3627 = vld [vmem:[%s3580 + $0x170] sm:$0xff]
        %v3628 = vld [vmem:[%s3580 + $0x178] sm:$0xff]
        %v3629 = vld [vmem:[%s3580 + $0x180] sm:$0xff]
        %v3630 = vld [vmem:[%s3580 + $0x188] sm:$0xff]
        %v3631 = vld [vmem:[%s3580 + $0x190] sm:$0xff]
        %v3632 = vld [vmem:[%s3580 + $0x198] sm:$0xff]
        %v3633 = vld [vmem:[%s3580 + $0x1a0] sm:$0xff]
        %v3634 = vld [vmem:[%s3580 + $0x1a8] sm:$0xff]
        %v3635 = vld [vmem:[%s3580 + $0x1b0] sm:$0xff]
        %v3636 = vld [vmem:[%s3580 + $0x1b8] sm:$0xff]
        %v3637 = vld [vmem:[%s3580 + $0x1c0] sm:$0xff]
        %v3638 = vld [vmem:[%s3580 + $0x1c8] sm:$0xff]
        %v3639 = vld [vmem:[%s3580 + $0x1d0] sm:$0xff]
        %v3640 = vld [vmem:[%s3580 + $0x1d8] sm:$0xff]
        %v3641 = vld [vmem:[%s3580 + $0x1e0] sm:$0xff]
        %v3642 = vld [vmem:[%s3580 + $0x1e8] sm:$0xff]
        %v3643 = vld [vmem:[%s3580 + $0x1f0] sm:$0xff]
        %v3644 = vld [vmem:[%s3580 + $0x1f8] sm:$0xff]
        %v3645 = vld [vmem:[%s3580 + $0x200] sm:$0xff]
        %v3646 = vld [vmem:[%s3580 + $0x208] sm:$0xff]
        %v3647 = vld [vmem:[%s3580 + $0x210] sm:$0xff]
        %v3648 = vld [vmem:[%s3580 + $0x218] sm:$0xff]
        %v3649 = vld [vmem:[%s3580 + $0x220] sm:$0xff]
        %v3650 = vld [vmem:[%s3580 + $0x228] sm:$0xff]
        %v3651 = vld [vmem:[%s3580 + $0x230] sm:$0xff]
        %v3652 = vld [vmem:[%s3580 + $0x238] sm:$0xff]
        %v3653 = vld [vmem:[%s3580 + $0x240] sm:$0xff]
        %v3654 = vld [vmem:[%s3580 + $0x248] sm:$0xff]
        %v3655 = vld [vmem:[%s3580 + $0x250] sm:$0xff]
        %v3656 = vld [vmem:[%s3580 + $0x258] sm:$0xff]
        %v3657 = vld [vmem:[%s3580 + $0x260] sm:$0xff]
        %v3658 = vld [vmem:[%s3580 + $0x268] sm:$0xff]
        %v3659 = vld [vmem:[%s3580 + $0x270] sm:$0xff]
        %v3660 = vld [vmem:[%s3580 + $0x278] sm:$0xff]
        %vm3661 = vcmask 523264
        %v3663 = vsel %vm3661, %v3577, 0
        %3665 = vmatprep.subr.mxu0 %v3582
        %3666 = vmatpush1.msra.mxu0 %v3581
        %3667 = vmatprep.subr.mxu0 %v3584
        %3668 = vmatpush1.msra.mxu0 %v3583
        %3669 = vmatprep.subr.mxu0 %v3586
        %3670 = vmatpush1.msra.mxu0 %v3585
        %3671 = vmatprep.subr.mxu0 %v3588
        %3672 = vmatpush1.msra.mxu0 %v3587
        %3673 = vmatprep.subr.mxu0 %v3590
        %3674 = vmatpush1.msra.mxu0 %v3589
        %3675 = vmatprep.subr.mxu0 %v3592
        %3676 = vmatpush1.msra.mxu0 %v3591
        %3677 = vmatprep.subr.mxu0 %v3594
        %3678 = vmatpush1.msra.mxu0 %v3593
        %3679 = vmatprep.subr.mxu0 %v3596
        %3680 = vmatpush1.msra.mxu0 %v3595
        %3681 = vmatprep.subr.mxu0 %v3598
        %3682 = vmatpush1.msra.mxu0 %v3597
        %3683 = vmatprep.subr.mxu0 %v3600
        %3684 = vmatpush1.msra.mxu0 %v3599
        %3685 = vmatprep.subr.mxu0 %v3602
        %3686 = vmatpush1.msra.mxu0 %v3601
        %3687 = vmatprep.subr.mxu0 %v3604
        %3688 = vmatpush1.msra.mxu0 %v3603
        %3689 = vmatprep.subr.mxu0 %v3606
        %3690 = vmatpush1.msra.mxu0 %v3605
        %3691 = vmatprep.subr.mxu0 %v3608
        %3692 = vmatpush1.msra.mxu0 %v3607
        %3693 = vmatprep.subr.mxu0 %v3610
        %3694 = vmatpush1.msra.mxu0 %v3609
        %3695 = vmatprep.subr.mxu0 %v3612
        %3696 = vmatpush1.msra.mxu0 %v3611
        %3697 = vmatprep.subr.mxu0 %v3614
        %3698 = vmatpush1.msra.mxu0 %v3613
        %3699 = vmatprep.subr.mxu0 %v3616
        %3700 = vmatpush1.msra.mxu0 %v3615
        %3701 = vmatprep.subr.mxu0 %v3618
        %3702 = vmatpush1.msra.mxu0 %v3617
        %3703 = vmatprep.subr.mxu0 %v3620
        %3704 = vmatpush1.msra.mxu0 %v3619
        %3705 = vmatprep.subr.mxu0 %v3622
        %3706 = vmatpush1.msra.mxu0 %v3621
        %3707 = vmatprep.subr.mxu0 %v3624
        %3708 = vmatpush1.msra.mxu0 %v3623
        %3709 = vmatprep.subr.mxu0 %v3626
        %3710 = vmatpush1.msra.mxu0 %v3625
        %3711 = vmatprep.subr.mxu0 %v3628
        %3712 = vmatpush1.msra.mxu0 %v3627
        %3713 = vmatprep.subr.mxu0 %v3630
        %3714 = vmatpush1.msra.mxu0 %v3629
        %3715 = vmatprep.subr.mxu0 %v3632
        %3716 = vmatpush1.msra.mxu0 %v3631
        %3717 = vmatprep.subr.mxu0 %v3634
        %3718 = vmatpush1.msra.mxu0 %v3633
        %3719 = vmatprep.subr.mxu0 %v3636
        %3720 = vmatpush1.msra.mxu0 %v3635
        %3721 = vmatprep.subr.mxu0 %v3638
        %3722 = vmatpush1.msra.mxu0 %v3637
        %3723 = vmatprep.subr.mxu0 %v3640
        %3724 = vmatpush1.msra.mxu0 %v3639
        %3725 = vmatprep.subr.mxu0 %v3642
        %3726 = vmatpush1.msra.mxu0 %v3641
        %3727 = vmatprep.subr.mxu0 %v3644
        %3728 = vmatpush1.msra.mxu0 %v3643
        %3729 = vmatprep.mubr.f32.mxu0 %v3508
        %3730 = vmatmul.mubr.f32.gmra.mrb[0].mxu0 %v3506
        %v3731 = vpop.f32.mrb[0].mxu0
        %v3732 = vadd.f32 0.0, %v3731
        %v3733 = vpop.f32.mrb[0].mxu0
        %v3734 = vadd.f32 0.0, %v3733
        %3735 = vdwg.mxu0
        %3736 = vmatprep.subr.mxu0 %v3646
        %3737 = vmatpush1.msra.mxu0 %v3645
        %3738 = vmatprep.subr.mxu0 %v3648
        %3739 = vmatpush1.msra.mxu0 %v3647
        %3740 = vmatprep.subr.mxu0 %v3650
        %3741 = vmatpush1.msra.mxu0 %v3649
        %3742 = vmatprep.subr.mxu0 %v3652
        %3743 = vmatpush1.msra.mxu0 %v3651
        %3744 = vmatprep.subr.mxu0 %v3654
        %3745 = vmatpush1.msra.mxu0 %v3653
        %3746 = vmatprep.subr.mxu0 %v3656
        %3747 = vmatpush1.msra.mxu0 %v3655
        %3748 = vmatprep.subr.mxu0 %v3658
        %3749 = vmatpush1.msra.mxu0 %v3657
        %3750 = vmatprep.subr.mxu0 %v3660
        %3751 = vmatpush1.msra.mxu0 %v3659
        %3752 = vmatprep.subr.mxu0 0.0
        %3753 = vmatpush1.msra.mxu0 0.0
        %3754 = vmatprep.subr.mxu0 0.0
        %3755 = vmatpush1.msra.mxu0 0.0
        %3756 = vmatprep.subr.mxu0 0.0
        %3757 = vmatpush1.msra.mxu0 0.0
        %3758 = vmatprep.subr.mxu0 0.0
        %3759 = vmatpush1.msra.mxu0 0.0
        %3760 = vmatprep.subr.mxu0 0.0
        %3761 = vmatpush1.msra.mxu0 0.0
        %3762 = vmatprep.subr.mxu0 0.0
        %3763 = vmatpush1.msra.mxu0 0.0
        %3764 = vmatprep.subr.mxu0 0.0
        %3765 = vmatpush1.msra.mxu0 0.0
        %3766 = vmatprep.subr.mxu0 0.0
        %3767 = vmatpush1.msra.mxu0 0.0
        %3768 = vmatprep.subr.mxu0 0.0
        %3769 = vmatpush1.msra.mxu0 0.0
        %3770 = vmatprep.subr.mxu0 0.0
        %3771 = vmatpush1.msra.mxu0 0.0
        %3772 = vmatprep.subr.mxu0 0.0
        %3773 = vmatpush1.msra.mxu0 0.0
        %3774 = vmatprep.subr.mxu0 0.0
        %3775 = vmatpush1.msra.mxu0 0.0
        %3776 = vmatprep.subr.mxu0 0.0
        %3777 = vmatpush1.msra.mxu0 0.0
        %3778 = vmatprep.subr.mxu0 0.0
        %3779 = vmatpush1.msra.mxu0 0.0
        %3780 = vmatprep.subr.mxu0 0.0
        %3781 = vmatpush1.msra.mxu0 0.0
        %3782 = vmatprep.subr.mxu0 0.0
        %3783 = vmatpush1.msra.mxu0 0.0
        %3784 = vmatprep.subr.mxu0 0.0
        %3785 = vmatpush1.msra.mxu0 0.0
        %3786 = vmatprep.subr.mxu0 0.0
        %3787 = vmatpush1.msra.mxu0 0.0
        %3788 = vmatprep.subr.mxu0 0.0
        %3789 = vmatpush1.msra.mxu0 0.0
        %3790 = vmatprep.subr.mxu0 0.0
        %3791 = vmatpush1.msra.mxu0 0.0
        %3792 = vmatprep.subr.mxu0 0.0
        %3793 = vmatpush1.msra.mxu0 0.0
        %3794 = vmatprep.subr.mxu0 0.0
        %3795 = vmatpush1.msra.mxu0 0.0
        %3796 = vmatprep.subr.mxu0 0.0
        %3797 = vmatpush1.msra.mxu0 0.0
        %3798 = vmatprep.subr.mxu0 0.0
        %3799 = vmatpush1.msra.mxu0 0.0
        %3800 = vmatprep.mubr.f32.mxu0 0.0
        %3801 = vmatmul.mubr.f32.gmra.mrb[0].mxu0 %v3663
        %v3802 = vpop.f32.mrb[0].mxu0
        %v3803 = vadd.f32 %v3732, %v3802
        %v3804 = vpop.f32.mrb[0].mxu0
        %v3805 = vadd.f32 %v3734, %v3804
        %3806 = vdwg.mxu0
        %v3808 = vsel %vm3661, %v3351, 0
        %3810 = vmatprep.subr.mxu0 %v3355
        %3811 = vmatpush1.msra.mxu0 %v3354
        %3812 = vmatprep.subr.mxu0 %v3357
        %3813 = vmatpush1.msra.mxu0 %v3356
        %3814 = vmatprep.subr.mxu0 %v3359
        %3815 = vmatpush1.msra.mxu0 %v3358
        %3816 = vmatprep.subr.mxu0 %v3361
        %3817 = vmatpush1.msra.mxu0 %v3360
        %3818 = vmatprep.subr.mxu0 %v3363
        %3819 = vmatpush1.msra.mxu0 %v3362
        %3820 = vmatprep.subr.mxu0 %v3365
        %3821 = vmatpush1.msra.mxu0 %v3364
        %3822 = vmatprep.subr.mxu0 %v3367
        %3823 = vmatpush1.msra.mxu0 %v3366
        %3824 = vmatprep.subr.mxu0 %v3369
        %3825 = vmatpush1.msra.mxu0 %v3368
        %3826 = vmatprep.subr.mxu0 %v3371
        %3827 = vmatpush1.msra.mxu0 %v3370
        %3828 = vmatprep.subr.mxu0 %v3373
        %3829 = vmatpush1.msra.mxu0 %v3372
        %3830 = vmatprep.subr.mxu0 %v3375
        %3831 = vmatpush1.msra.mxu0 %v3374
        %3832 = vmatprep.subr.mxu0 %v3377
        %3833 = vmatpush1.msra.mxu0 %v3376
        %3834 = vmatprep.subr.mxu0 %v3379
        %3835 = vmatpush1.msra.mxu0 %v3378
        %3836 = vmatprep.subr.mxu0 %v3381
        %3837 = vmatpush1.msra.mxu0 %v3380
        %3838 = vmatprep.subr.mxu0 %v3383
        %3839 = vmatpush1.msra.mxu0 %v3382
        %3840 = vmatprep.subr.mxu0 %v3385
        %3841 = vmatpush1.msra.mxu0 %v3384
        %3842 = vmatprep.subr.mxu0 %v3387
        %3843 = vmatpush1.msra.mxu0 %v3386
        %3844 = vmatprep.subr.mxu0 %v3389
        %3845 = vmatpush1.msra.mxu0 %v3388
        %3846 = vmatprep.subr.mxu0 %v3391
        %3847 = vmatpush1.msra.mxu0 %v3390
        %3848 = vmatprep.subr.mxu0 %v3393
        %3849 = vmatpush1.msra.mxu0 %v3392
        %3850 = vmatprep.subr.mxu0 %v3395
        %3851 = vmatpush1.msra.mxu0 %v3394
        %3852 = vmatprep.subr.mxu0 %v3397
        %3853 = vmatpush1.msra.mxu0 %v3396
        %3854 = vmatprep.subr.mxu0 %v3399
        %3855 = vmatpush1.msra.mxu0 %v3398
        %3856 = vmatprep.subr.mxu0 %v3401
        %3857 = vmatpush1.msra.mxu0 %v3400
        %3858 = vmatprep.subr.mxu0 %v3403
        %3859 = vmatpush1.msra.mxu0 %v3402
        %3860 = vmatprep.subr.mxu0 %v3405
        %3861 = vmatpush1.msra.mxu0 %v3404
        %3862 = vmatprep.subr.mxu0 %v3407
        %3863 = vmatpush1.msra.mxu0 %v3406
        %3864 = vmatprep.subr.mxu0 %v3409
        %3865 = vmatpush1.msra.mxu0 %v3408
        %3866 = vmatprep.subr.mxu0 %v3411
        %3867 = vmatpush1.msra.mxu0 %v3410
        %3868 = vmatprep.subr.mxu0 %v3413
        %3869 = vmatpush1.msra.mxu0 %v3412
        %3870 = vmatprep.subr.mxu0 %v3415
        %3871 = vmatpush1.msra.mxu0 %v3414
        %3872 = vmatprep.subr.mxu0 %v3417
        %3873 = vmatpush1.msra.mxu0 %v3416
        %3874 = vmatprep.mubr.f32.mxu0 %v3282
        %3875 = vmatmul.mubr.f32.gmra.mrb[0].mxu0 %v3280
        %v3876 = vpop.f32.mrb[0].mxu0
        %v3877 = vadd.f32 %v3803, %v3876
        %v3878 = vpop.f32.mrb[0].mxu0
        %v3879 = vadd.f32 %v3805, %v3878
        %3880 = vdwg.mxu0
        %3881 = vmatprep.subr.mxu0 %v3419
        %3882 = vmatpush1.msra.mxu0 %v3418
        %3883 = vmatprep.subr.mxu0 %v3421
        %3884 = vmatpush1.msra.mxu0 %v3420
        %3885 = vmatprep.subr.mxu0 %v3423
        %3886 = vmatpush1.msra.mxu0 %v3422
        %3887 = vmatprep.subr.mxu0 %v3425
        %3888 = vmatpush1.msra.mxu0 %v3424
        %3889 = vmatprep.subr.mxu0 %v3427
        %3890 = vmatpush1.msra.mxu0 %v3426
        %3891 = vmatprep.subr.mxu0 %v3429
        %3892 = vmatpush1.msra.mxu0 %v3428
        %3893 = vmatprep.subr.mxu0 %v3431
        %3894 = vmatpush1.msra.mxu0 %v3430
        %3895 = vmatprep.subr.mxu0 %v3433
        %3896 = vmatpush1.msra.mxu0 %v3432
        %3897 = vmatprep.subr.mxu0 0.0
        %3898 = vmatpush1.msra.mxu0 0.0
        %3899 = vmatprep.subr.mxu0 0.0
        %3900 = vmatpush1.msra.mxu0 0.0
        %3901 = vmatprep.subr.mxu0 0.0
        %3902 = vmatpush1.msra.mxu0 0.0
        %3903 = vmatprep.subr.mxu0 0.0
        %3904 = vmatpush1.msra.mxu0 0.0
        %3905 = vmatprep.subr.mxu0 0.0
        %3906 = vmatpush1.msra.mxu0 0.0
        %3907 = vmatprep.subr.mxu0 0.0
        %3908 = vmatpush1.msra.mxu0 0.0
        %3909 = vmatprep.subr.mxu0 0.0
        %3910 = vmatpush1.msra.mxu0 0.0
        %3911 = vmatprep.subr.mxu0 0.0
        %3912 = vmatpush1.msra.mxu0 0.0
        %3913 = vmatprep.subr.mxu0 0.0
        %3914 = vmatpush1.msra.mxu0 0.0
        %3915 = vmatprep.subr.mxu0 0.0
        %3916 = vmatpush1.msra.mxu0 0.0
        %3917 = vmatprep.subr.mxu0 0.0
        %3918 = vmatpush1.msra.mxu0 0.0
        %3919 = vmatprep.subr.mxu0 0.0
        %3920 = vmatpush1.msra.mxu0 0.0
        %3921 = vmatprep.subr.mxu0 0.0
        %3922 = vmatpush1.msra.mxu0 0.0
        %3923 = vmatprep.subr.mxu0 0.0
        %3924 = vmatpush1.msra.mxu0 0.0
        %3925 = vmatprep.subr.mxu0 0.0
        %3926 = vmatpush1.msra.mxu0 0.0
        %3927 = vmatprep.subr.mxu0 0.0
        %3928 = vmatpush1.msra.mxu0 0.0
        %3929 = vmatprep.subr.mxu0 0.0
        %3930 = vmatpush1.msra.mxu0 0.0
        %3931 = vmatprep.subr.mxu0 0.0
        %3932 = vmatpush1.msra.mxu0 0.0
        %3933 = vmatprep.subr.mxu0 0.0
        %3934 = vmatpush1.msra.mxu0 0.0
        %3935 = vmatprep.subr.mxu0 0.0
        %3936 = vmatpush1.msra.mxu0 0.0
        %3937 = vmatprep.subr.mxu0 0.0
        %3938 = vmatpush1.msra.mxu0 0.0
        %3939 = vmatprep.subr.mxu0 0.0
        %3940 = vmatpush1.msra.mxu0 0.0
        %3941 = vmatprep.subr.mxu0 0.0
        %3942 = vmatpush1.msra.mxu0 0.0
        %3943 = vmatprep.subr.mxu0 0.0
        %3944 = vmatpush1.msra.mxu0 0.0
        %3945 = vmatprep.mubr.f32.mxu0 0.0
        %3946 = vmatmul.mubr.f32.gmra.mrb[0].mxu0 %v3808
        %v3947 = vpop.f32.mrb[0].mxu0
        %v3948 = vadd.f32 %v3877, %v3947
        %v3949 = vpop.f32.mrb[0].mxu0
        %v3950 = vadd.f32 %v3879, %v3949
        %3951 = vdwg.mxu0
        %s3952 = scalar_lea.vmem [#allocation7], 8
        %v3953 = vld [vmem:[%s3952] sm:$0xf]
        %v3955 = vsel %vm3199, %v3953, 0
        %3957 = vmatprep.subr.mxu0 %v3193
        %3958 = vmatpush1.msra.mxu0 %v3192
        %3959 = vmatprep.subr.mxu0 %v3208
        %3960 = vmatpush1.msra.mxu0 %v3205
        %3961 = vmatprep.subr.mxu0 0.0
        %3962 = vmatpush1.msra.mxu0 0.0
        %3963 = vmatprep.subr.mxu0 0.0
        %3964 = vmatpush1.msra.mxu0 0.0
        %3965 = vmatprep.subr.mxu0 0.0
        %3966 = vmatpush1.msra.mxu0 0.0
        %3967 = vmatprep.subr.mxu0 0.0
        %3968 = vmatpush1.msra.mxu0 0.0
        %3969 = vmatprep.subr.mxu0 0.0
        %3970 = vmatpush1.msra.mxu0 0.0
        %3971 = vmatprep.subr.mxu0 0.0
        %3972 = vmatpush1.msra.mxu0 0.0
        %3973 = vmatprep.subr.mxu0 0.0
        %3974 = vmatpush1.msra.mxu0 0.0
        %3975 = vmatprep.subr.mxu0 0.0
        %3976 = vmatpush1.msra.mxu0 0.0
        %3977 = vmatprep.subr.mxu0 0.0
        %3978 = vmatpush1.msra.mxu0 0.0
        %3979 = vmatprep.subr.mxu0 0.0
        %3980 = vmatpush1.msra.mxu0 0.0
        %3981 = vmatprep.subr.mxu0 0.0
        %3982 = vmatpush1.msra.mxu0 0.0
        %3983 = vmatprep.subr.mxu0 0.0
        %3984 = vmatpush1.msra.mxu0 0.0
        %3985 = vmatprep.subr.mxu0 0.0
        %3986 = vmatpush1.msra.mxu0 0.0
        %3987 = vmatprep.subr.mxu0 0.0
        %3988 = vmatpush1.msra.mxu0 0.0
        %3989 = vmatprep.subr.mxu0 0.0
        %3990 = vmatpush1.msra.mxu0 0.0
        %3991 = vmatprep.subr.mxu0 0.0
        %3992 = vmatpush1.msra.mxu0 0.0
        %3993 = vmatprep.subr.mxu0 0.0
        %3994 = vmatpush1.msra.mxu0 0.0
        %3995 = vmatprep.subr.mxu0 0.0
        %3996 = vmatpush1.msra.mxu0 0.0
        %3997 = vmatprep.subr.mxu0 0.0
        %3998 = vmatpush1.msra.mxu0 0.0
        %3999 = vmatprep.subr.mxu0 0.0
        %4000 = vmatpush1.msra.mxu0 0.0
        %4001 = vmatprep.subr.mxu0 0.0
        %4002 = vmatpush1.msra.mxu0 0.0
        %4003 = vmatprep.subr.mxu0 0.0
        %4004 = vmatpush1.msra.mxu0 0.0
        %4005 = vmatprep.subr.mxu0 0.0
        %4006 = vmatpush1.msra.mxu0 0.0
        %4007 = vmatprep.subr.mxu0 0.0
        %4008 = vmatpush1.msra.mxu0 0.0
        %4009 = vmatprep.subr.mxu0 0.0
        %4010 = vmatpush1.msra.mxu0 0.0
        %4011 = vmatprep.subr.mxu0 0.0
        %4012 = vmatpush1.msra.mxu0 0.0
        %4013 = vmatprep.subr.mxu0 0.0
        %4014 = vmatpush1.msra.mxu0 0.0
        %4015 = vmatprep.subr.mxu0 0.0
        %4016 = vmatpush1.msra.mxu0 0.0
        %4017 = vmatprep.subr.mxu0 0.0
        %4018 = vmatpush1.msra.mxu0 0.0
        %4019 = vmatprep.subr.mxu0 0.0
        %4020 = vmatpush1.msra.mxu0 0.0
        %4021 = vmatprep.mubr.f32.mxu0 0.0
        %4022 = vmatmul.mubr.f32.gmra.mrb[0].mxu0 %v3955
        %v4023 = vpop.f32.mrb[0].mxu0
        %v4024 = vadd.f32 0.0, %v4023
        %v4025 = vpop.f32.mrb[0].mxu0
        %v4026 = vadd.f32 0.0, %v4025
        %4027 = vdwg.mxu0
        %4028 = vmatprep.subr.mxu0 0.0
        %4029 = vmatpush1.msra.mxu0 %v3194
        %4030 = vmatprep.subr.mxu0 0.0
        %4031 = vmatpush1.msra.mxu0 %v3211
        %4032 = vmatprep.subr.mxu0 0.0
        %4033 = vmatpush1.msra.mxu0 0.0
        %4034 = vmatprep.subr.mxu0 0.0
        %4035 = vmatpush1.msra.mxu0 0.0
        %4036 = vmatprep.subr.mxu0 0.0
        %4037 = vmatpush1.msra.mxu0 0.0
        %4038 = vmatprep.subr.mxu0 0.0
        %4039 = vmatpush1.msra.mxu0 0.0
        %4040 = vmatprep.subr.mxu0 0.0
        %4041 = vmatpush1.msra.mxu0 0.0
        %4042 = vmatprep.subr.mxu0 0.0
        %4043 = vmatpush1.msra.mxu0 0.0
        %4044 = vmatprep.subr.mxu0 0.0
        %4045 = vmatpush1.msra.mxu0 0.0
        %4046 = vmatprep.subr.mxu0 0.0
        %4047 = vmatpush1.msra.mxu0 0.0
        %4048 = vmatprep.subr.mxu0 0.0
        %4049 = vmatpush1.msra.mxu0 0.0
        %4050 = vmatprep.subr.mxu0 0.0
        %4051 = vmatpush1.msra.mxu0 0.0
        %4052 = vmatprep.subr.mxu0 0.0
        %4053 = vmatpush1.msra.mxu0 0.0
        %4054 = vmatprep.subr.mxu0 0.0
        %4055 = vmatpush1.msra.mxu0 0.0
        %4056 = vmatprep.subr.mxu0 0.0
        %4057 = vmatpush1.msra.mxu0 0.0
        %4058 = vmatprep.subr.mxu0 0.0
        %4059 = vmatpush1.msra.mxu0 0.0
        %4060 = vmatprep.subr.mxu0 0.0
        %4061 = vmatpush1.msra.mxu0 0.0
        %4062 = vmatprep.subr.mxu0 0.0
        %4063 = vmatpush1.msra.mxu0 0.0
        %4064 = vmatprep.subr.mxu0 0.0
        %4065 = vmatpush1.msra.mxu0 0.0
        %4066 = vmatprep.subr.mxu0 0.0
        %4067 = vmatpush1.msra.mxu0 0.0
        %4068 = vmatprep.subr.mxu0 0.0
        %4069 = vmatpush1.msra.mxu0 0.0
        %4070 = vmatprep.subr.mxu0 0.0
        %4071 = vmatpush1.msra.mxu0 0.0
        %4072 = vmatprep.subr.mxu0 0.0
        %4073 = vmatpush1.msra.mxu0 0.0
        %4074 = vmatprep.subr.mxu0 0.0
        %4075 = vmatpush1.msra.mxu0 0.0
        %4076 = vmatprep.subr.mxu0 0.0
        %4077 = vmatpush1.msra.mxu0 0.0
        %4078 = vmatprep.subr.mxu0 0.0
        %4079 = vmatpush1.msra.mxu0 0.0
        %4080 = vmatprep.subr.mxu0 0.0
        %4081 = vmatpush1.msra.mxu0 0.0
        %4082 = vmatprep.subr.mxu0 0.0
        %4083 = vmatpush1.msra.mxu0 0.0
        %4084 = vmatprep.subr.mxu0 0.0
        %4085 = vmatpush1.msra.mxu0 0.0
        %4086 = vmatprep.subr.mxu0 0.0
        %4087 = vmatpush1.msra.mxu0 0.0
        %4088 = vmatprep.subr.mxu0 0.0
        %4089 = vmatpush1.msra.mxu0 0.0
        %4090 = vmatprep.subr.mxu0 0.0
        %4091 = vmatpush1.msra.mxu0 0.0
        %4092 = vmatprep.mubr.f32.mxu0 0.0
        %4093 = vmatmul.mubr.f32.gmra.mrb[0].mxu0 %v3955
        %v4094 = vpop.f32.mrb[0].mxu0
        %v4095 = vadd.f32 0.0, %v4094
        %v4096 = vpop.f32.mrb[0].mxu0
        %4097 = vdwg.mxu0
        %s4098 = scalar_lea.vmem %s5, 1280
        %v4099 = vld [vmem:[%s4098] sm:$0xff]
        %v4100 = vld [vmem:[%s4098 + $0x8] sm:$0xff]
        %v4101 = vld [vmem:[%s4098 + $0x10] sm:$0xff]
        %v4102 = vld [vmem:[%s4098 + $0x18] sm:$0xff]
        %v4103 = vld [vmem:[%s4098 + $0x20] sm:$0xff]
        %v4104 = vld [vmem:[%s4098 + $0x28] sm:$0xff]
        %v4105 = vld [vmem:[%s4098 + $0x30] sm:$0xff]
        %v4106 = vld [vmem:[%s4098 + $0x38] sm:$0xff]
        %v4107 = vld [vmem:[%s4098 + $0x40] sm:$0xff]
        %v4108 = vld [vmem:[%s4098 + $0x48] sm:$0xff]
        %v4109 = vld [vmem:[%s4098 + $0x50] sm:$0xff]
        %v4110 = vld [vmem:[%s4098 + $0x58] sm:$0xff]
        %v4111 = vld [vmem:[%s4098 + $0x60] sm:$0xff]
        %v4112 = vld [vmem:[%s4098 + $0x68] sm:$0xff]
        %v4113 = vld [vmem:[%s4098 + $0x70] sm:$0xff]
        %v4114 = vld [vmem:[%s4098 + $0x78] sm:$0xff]
        %v4115 = vld [vmem:[%s4098 + $0x80] sm:$0xff]
        %v4116 = vld [vmem:[%s4098 + $0x88] sm:$0xff]
        %v4117 = vld [vmem:[%s4098 + $0x90] sm:$0xff]
        %v4118 = vld [vmem:[%s4098 + $0x98] sm:$0xff]
        %v4119 = vld [vmem:[%s4098 + $0xa0] sm:$0xff]
        %v4120 = vld [vmem:[%s4098 + $0xa8] sm:$0xff]
        %v4121 = vld [vmem:[%s4098 + $0xb0] sm:$0xff]
        %v4122 = vld [vmem:[%s4098 + $0xb8] sm:$0xff]
        %v4123 = vld [vmem:[%s4098 + $0xc0] sm:$0xff]
        %v4124 = vld [vmem:[%s4098 + $0xc8] sm:$0xff]
        %v4125 = vld [vmem:[%s4098 + $0xd0] sm:$0xff]
        %v4126 = vld [vmem:[%s4098 + $0xd8] sm:$0xff]
        %v4127 = vld [vmem:[%s4098 + $0xe0] sm:$0xff]
        %v4128 = vld [vmem:[%s4098 + $0xe8] sm:$0xff]
        %v4129 = vld [vmem:[%s4098 + $0xf0] sm:$0xff]
        %v4130 = vld [vmem:[%s4098 + $0xf8] sm:$0xff]
        %v4131 = vld [vmem:[%s4098 + $0x100] sm:$0xff]
        %v4132 = vld [vmem:[%s4098 + $0x108] sm:$0xff]
        %v4133 = vld [vmem:[%s4098 + $0x110] sm:$0xff]
        %v4134 = vld [vmem:[%s4098 + $0x118] sm:$0xff]
        %v4135 = vld [vmem:[%s4098 + $0x120] sm:$0xff]
        %v4136 = vld [vmem:[%s4098 + $0x128] sm:$0xff]
        %v4137 = vld [vmem:[%s4098 + $0x130] sm:$0xff]
        %v4138 = vld [vmem:[%s4098 + $0x138] sm:$0xff]
        %v4139 = vld [vmem:[%s4098 + $0x140] sm:$0xff]
        %v4140 = vld [vmem:[%s4098 + $0x148] sm:$0xff]
        %v4141 = vld [vmem:[%s4098 + $0x150] sm:$0xff]
        %v4142 = vld [vmem:[%s4098 + $0x158] sm:$0xff]
        %v4143 = vld [vmem:[%s4098 + $0x160] sm:$0xff]
        %v4144 = vld [vmem:[%s4098 + $0x168] sm:$0xff]
        %v4145 = vld [vmem:[%s4098 + $0x170] sm:$0xff]
        %v4146 = vld [vmem:[%s4098 + $0x178] sm:$0xff]
        %v4147 = vld [vmem:[%s4098 + $0x180] sm:$0xff]
        %v4148 = vld [vmem:[%s4098 + $0x188] sm:$0xff]
        %v4149 = vld [vmem:[%s4098 + $0x190] sm:$0xff]
        %v4150 = vld [vmem:[%s4098 + $0x198] sm:$0xff]
        %v4151 = vld [vmem:[%s4098 + $0x1a0] sm:$0xff]
        %v4152 = vld [vmem:[%s4098 + $0x1a8] sm:$0xff]
        %v4153 = vld [vmem:[%s4098 + $0x1b0] sm:$0xff]
        %v4154 = vld [vmem:[%s4098 + $0x1b8] sm:$0xff]
        %v4155 = vld [vmem:[%s4098 + $0x1c0] sm:$0xff]
        %v4156 = vld [vmem:[%s4098 + $0x1c8] sm:$0xff]
        %v4157 = vld [vmem:[%s4098 + $0x1d0] sm:$0xff]
        %v4158 = vld [vmem:[%s4098 + $0x1d8] sm:$0xff]
        %v4159 = vld [vmem:[%s4098 + $0x1e0] sm:$0xff]
        %v4160 = vld [vmem:[%s4098 + $0x1e8] sm:$0xff]
        %v4161 = vld [vmem:[%s4098 + $0x1f0] sm:$0xff]
        %v4162 = vld [vmem:[%s4098 + $0x1f8] sm:$0xff]
        %v4163 = vld [vmem:[%s4098 + $0x200] sm:$0xff]
        %v4164 = vld [vmem:[%s4098 + $0x208] sm:$0xff]
        %v4165 = vld [vmem:[%s4098 + $0x210] sm:$0xff]
        %v4166 = vld [vmem:[%s4098 + $0x218] sm:$0xff]
        %v4167 = vld [vmem:[%s4098 + $0x220] sm:$0xff]
        %v4168 = vld [vmem:[%s4098 + $0x228] sm:$0xff]
        %v4169 = vld [vmem:[%s4098 + $0x230] sm:$0xff]
        %v4170 = vld [vmem:[%s4098 + $0x238] sm:$0xff]
        %v4171 = vld [vmem:[%s4098 + $0x240] sm:$0xff]
        %v4172 = vld [vmem:[%s4098 + $0x248] sm:$0xff]
        %v4173 = vld [vmem:[%s4098 + $0x250] sm:$0xff]
        %v4174 = vld [vmem:[%s4098 + $0x258] sm:$0xff]
        %v4175 = vld [vmem:[%s4098 + $0x260] sm:$0xff]
        %v4176 = vld [vmem:[%s4098 + $0x268] sm:$0xff]
        %v4177 = vld [vmem:[%s4098 + $0x270] sm:$0xff]
        %v4178 = vld [vmem:[%s4098 + $0x278] sm:$0xff]
        %v4180 = vsel %vm3661, %v4095, 0
        %4182 = vmatprep.subr.mxu0 %v4100
        %4183 = vmatpush1.msra.mxu0 %v4099
        %4184 = vmatprep.subr.mxu0 %v4102
        %4185 = vmatpush1.msra.mxu0 %v4101
        %4186 = vmatprep.subr.mxu0 %v4104
        %4187 = vmatpush1.msra.mxu0 %v4103
        %4188 = vmatprep.subr.mxu0 %v4106
        %4189 = vmatpush1.msra.mxu0 %v4105
        %4190 = vmatprep.subr.mxu0 %v4108
        %4191 = vmatpush1.msra.mxu0 %v4107
        %4192 = vmatprep.subr.mxu0 %v4110
        %4193 = vmatpush1.msra.mxu0 %v4109
        %4194 = vmatprep.subr.mxu0 %v4112
        %4195 = vmatpush1.msra.mxu0 %v4111
        %4196 = vmatprep.subr.mxu0 %v4114
        %4197 = vmatpush1.msra.mxu0 %v4113
        %4198 = vmatprep.subr.mxu0 %v4116
        %4199 = vmatpush1.msra.mxu0 %v4115
        %4200 = vmatprep.subr.mxu0 %v4118
        %4201 = vmatpush1.msra.mxu0 %v4117
        %4202 = vmatprep.subr.mxu0 %v4120
        %4203 = vmatpush1.msra.mxu0 %v4119
        %4204 = vmatprep.subr.mxu0 %v4122
        %4205 = vmatpush1.msra.mxu0 %v4121
        %4206 = vmatprep.subr.mxu0 %v4124
        %4207 = vmatpush1.msra.mxu0 %v4123
        %4208 = vmatprep.subr.mxu0 %v4126
        %4209 = vmatpush1.msra.mxu0 %v4125
        %4210 = vmatprep.subr.mxu0 %v4128
        %4211 = vmatpush1.msra.mxu0 %v4127
        %4212 = vmatprep.subr.mxu0 %v4130
        %4213 = vmatpush1.msra.mxu0 %v4129
        %4214 = vmatprep.subr.mxu0 %v4132
        %4215 = vmatpush1.msra.mxu0 %v4131
        %4216 = vmatprep.subr.mxu0 %v4134
        %4217 = vmatpush1.msra.mxu0 %v4133
        %4218 = vmatprep.subr.mxu0 %v4136
        %4219 = vmatpush1.msra.mxu0 %v4135
        %4220 = vmatprep.subr.mxu0 %v4138
        %4221 = vmatpush1.msra.mxu0 %v4137
        %4222 = vmatprep.subr.mxu0 %v4140
        %4223 = vmatpush1.msra.mxu0 %v4139
        %4224 = vmatprep.subr.mxu0 %v4142
        %4225 = vmatpush1.msra.mxu0 %v4141
        %4226 = vmatprep.subr.mxu0 %v4144
        %4227 = vmatpush1.msra.mxu0 %v4143
        %4228 = vmatprep.subr.mxu0 %v4146
        %4229 = vmatpush1.msra.mxu0 %v4145
        %4230 = vmatprep.subr.mxu0 %v4148
        %4231 = vmatpush1.msra.mxu0 %v4147
        %4232 = vmatprep.subr.mxu0 %v4150
        %4233 = vmatpush1.msra.mxu0 %v4149
        %4234 = vmatprep.subr.mxu0 %v4152
        %4235 = vmatpush1.msra.mxu0 %v4151
        %4236 = vmatprep.subr.mxu0 %v4154
        %4237 = vmatpush1.msra.mxu0 %v4153
        %4238 = vmatprep.subr.mxu0 %v4156
        %4239 = vmatpush1.msra.mxu0 %v4155
        %4240 = vmatprep.subr.mxu0 %v4158
        %4241 = vmatpush1.msra.mxu0 %v4157
        %4242 = vmatprep.subr.mxu0 %v4160
        %4243 = vmatpush1.msra.mxu0 %v4159
        %4244 = vmatprep.subr.mxu0 %v4162
        %4245 = vmatpush1.msra.mxu0 %v4161
        %4246 = vmatprep.mubr.f32.mxu0 %v4026
        %4247 = vmatmul.mubr.f32.gmra.mrb[0].mxu0 %v4024
        %v4248 = vpop.f32.mrb[0].mxu0
        %v4249 = vadd.f32 0.0, %v4248
        %v4250 = vpop.f32.mrb[0].mxu0
        %v4251 = vadd.f32 0.0, %v4250
        %4252 = vdwg.mxu0
        %4253 = vmatprep.subr.mxu0 %v4164
        %4254 = vmatpush1.msra.mxu0 %v4163
        %4255 = vmatprep.subr.mxu0 %v4166
        %4256 = vmatpush1.msra.mxu0 %v4165
        %4257 = vmatprep.subr.mxu0 %v4168
        %4258 = vmatpush1.msra.mxu0 %v4167
        %4259 = vmatprep.subr.mxu0 %v4170
        %4260 = vmatpush1.msra.mxu0 %v4169
        %4261 = vmatprep.subr.mxu0 %v4172
        %4262 = vmatpush1.msra.mxu0 %v4171
        %4263 = vmatprep.subr.mxu0 %v4174
        %4264 = vmatpush1.msra.mxu0 %v4173
        %4265 = vmatprep.subr.mxu0 %v4176
        %4266 = vmatpush1.msra.mxu0 %v4175
        %4267 = vmatprep.subr.mxu0 %v4178
        %4268 = vmatpush1.msra.mxu0 %v4177
        %4269 = vmatprep.subr.mxu0 0.0
        %4270 = vmatpush1.msra.mxu0 0.0
        %4271 = vmatprep.subr.mxu0 0.0
        %4272 = vmatpush1.msra.mxu0 0.0
        %4273 = vmatprep.subr.mxu0 0.0
        %4274 = vmatpush1.msra.mxu0 0.0
        %4275 = vmatprep.subr.mxu0 0.0
        %4276 = vmatpush1.msra.mxu0 0.0
        %4277 = vmatprep.subr.mxu0 0.0
        %4278 = vmatpush1.msra.mxu0 0.0
        %4279 = vmatprep.subr.mxu0 0.0
        %4280 = vmatpush1.msra.mxu0 0.0
        %4281 = vmatprep.subr.mxu0 0.0
        %4282 = vmatpush1.msra.mxu0 0.0
        %4283 = vmatprep.subr.mxu0 0.0
        %4284 = vmatpush1.msra.mxu0 0.0
        %4285 = vmatprep.subr.mxu0 0.0
        %4286 = vmatpush1.msra.mxu0 0.0
        %4287 = vmatprep.subr.mxu0 0.0
        %4288 = vmatpush1.msra.mxu0 0.0
        %4289 = vmatprep.subr.mxu0 0.0
        %4290 = vmatpush1.msra.mxu0 0.0
        %4291 = vmatprep.subr.mxu0 0.0
        %4292 = vmatpush1.msra.mxu0 0.0
        %4293 = vmatprep.subr.mxu0 0.0
        %4294 = vmatpush1.msra.mxu0 0.0
        %4295 = vmatprep.subr.mxu0 0.0
        %4296 = vmatpush1.msra.mxu0 0.0
        %4297 = vmatprep.subr.mxu0 0.0
        %4298 = vmatpush1.msra.mxu0 0.0
        %4299 = vmatprep.subr.mxu0 0.0
        %4300 = vmatpush1.msra.mxu0 0.0
        %4301 = vmatprep.subr.mxu0 0.0
        %4302 = vmatpush1.msra.mxu0 0.0
        %4303 = vmatprep.subr.mxu0 0.0
        %4304 = vmatpush1.msra.mxu0 0.0
        %4305 = vmatprep.subr.mxu0 0.0
        %4306 = vmatpush1.msra.mxu0 0.0
        %4307 = vmatprep.subr.mxu0 0.0
        %4308 = vmatpush1.msra.mxu0 0.0
        %4309 = vmatprep.subr.mxu0 0.0
        %4310 = vmatpush1.msra.mxu0 0.0
        %4311 = vmatprep.subr.mxu0 0.0
        %4312 = vmatpush1.msra.mxu0 0.0
        %4313 = vmatprep.subr.mxu0 0.0
        %4314 = vmatpush1.msra.mxu0 0.0
        %4315 = vmatprep.subr.mxu0 0.0
        %4316 = vmatpush1.msra.mxu0 0.0
        %4317 = vmatprep.mubr.f32.mxu0 0.0
        %4318 = vmatmul.mubr.f32.gmra.mrb[0].mxu0 %v4180
        %v4319 = vpop.f32.mrb[0].mxu0
        %v4320 = vadd.f32 %v4249, %v4319
        %v4321 = vpop.f32.mrb[0].mxu0
        %v4322 = vadd.f32 %v4251, %v4321
        %4323 = vdwg.mxu0
        %v4324 = vadd.f32 %v3948, %v4320
        %v4325 = vadd.f32 %v3950, %v4322
        %s4326 = scalar_lea.vmem [#allocation7], 12
        %v4327 = vld [vmem:[%s4326] sm:$0xf]
        %v4329 = vsel %vm3199, %v4327, 0
        %4331 = vmatprep.subr.mxu0 %v3193
        %4332 = vmatpush1.msra.mxu0 %v3192
        %4333 = vmatprep.subr.mxu0 %v3208
        %4334 = vmatpush1.msra.mxu0 %v3205
        %4335 = vmatprep.subr.mxu0 0.0
        %4336 = vmatpush1.msra.mxu0 0.0
        %4337 = vmatprep.subr.mxu0 0.0
        %4338 = vmatpush1.msra.mxu0 0.0
        %4339 = vmatprep.subr.mxu0 0.0
        %4340 = vmatpush1.msra.mxu0 0.0
        %4341 = vmatprep.subr.mxu0 0.0
        %4342 = vmatpush1.msra.mxu0 0.0
        %4343 = vmatprep.subr.mxu0 0.0
        %4344 = vmatpush1.msra.mxu0 0.0
        %4345 = vmatprep.subr.mxu0 0.0
        %4346 = vmatpush1.msra.mxu0 0.0
        %4347 = vmatprep.subr.mxu0 0.0
        %4348 = vmatpush1.msra.mxu0 0.0
        %4349 = vmatprep.subr.mxu0 0.0
        %4350 = vmatpush1.msra.mxu0 0.0
        %4351 = vmatprep.subr.mxu0 0.0
        %4352 = vmatpush1.msra.mxu0 0.0
        %4353 = vmatprep.subr.mxu0 0.0
        %4354 = vmatpush1.msra.mxu0 0.0
        %4355 = vmatprep.subr.mxu0 0.0
        %4356 = vmatpush1.msra.mxu0 0.0
        %4357 = vmatprep.subr.mxu0 0.0
        %4358 = vmatpush1.msra.mxu0 0.0
        %4359 = vmatprep.subr.mxu0 0.0
        %4360 = vmatpush1.msra.mxu0 0.0
        %4361 = vmatprep.subr.mxu0 0.0
        %4362 = vmatpush1.msra.mxu0 0.0
        %4363 = vmatprep.subr.mxu0 0.0
        %4364 = vmatpush1.msra.mxu0 0.0
        %4365 = vmatprep.subr.mxu0 0.0
        %4366 = vmatpush1.msra.mxu0 0.0
        %4367 = vmatprep.subr.mxu0 0.0
        %4368 = vmatpush1.msra.mxu0 0.0
        %4369 = vmatprep.subr.mxu0 0.0
        %4370 = vmatpush1.msra.mxu0 0.0
        %4371 = vmatprep.subr.mxu0 0.0
        %4372 = vmatpush1.msra.mxu0 0.0
        %4373 = vmatprep.subr.mxu0 0.0
        %4374 = vmatpush1.msra.mxu0 0.0
        %4375 = vmatprep.subr.mxu0 0.0
        %4376 = vmatpush1.msra.mxu0 0.0
        %4377 = vmatprep.subr.mxu0 0.0
        %4378 = vmatpush1.msra.mxu0 0.0
        %4379 = vmatprep.subr.mxu0 0.0
        %4380 = vmatpush1.msra.mxu0 0.0
        %4381 = vmatprep.subr.mxu0 0.0
        %4382 = vmatpush1.msra.mxu0 0.0
        %4383 = vmatprep.subr.mxu0 0.0
        %4384 = vmatpush1.msra.mxu0 0.0
        %4385 = vmatprep.subr.mxu0 0.0
        %4386 = vmatpush1.msra.mxu0 0.0
        %4387 = vmatprep.subr.mxu0 0.0
        %4388 = vmatpush1.msra.mxu0 0.0
        %4389 = vmatprep.subr.mxu0 0.0
        %4390 = vmatpush1.msra.mxu0 0.0
        %4391 = vmatprep.subr.mxu0 0.0
        %4392 = vmatpush1.msra.mxu0 0.0
        %4393 = vmatprep.subr.mxu0 0.0
        %4394 = vmatpush1.msra.mxu0 0.0
        %4395 = vmatprep.mubr.f32.mxu0 0.0
        %4396 = vmatmul.mubr.f32.gmra.mrb[0].mxu0 %v4329
        %v4397 = vpop.f32.mrb[0].mxu0
        %v4398 = vadd.f32 0.0, %v4397
        %v4399 = vpop.f32.mrb[0].mxu0
        %v4400 = vadd.f32 0.0, %v4399
        %4401 = vdwg.mxu0
        %4402 = vmatprep.subr.mxu0 0.0
        %4403 = vmatpush1.msra.mxu0 %v3194
        %4404 = vmatprep.subr.mxu0 0.0
        %4405 = vmatpush1.msra.mxu0 %v3211
        %4406 = vmatprep.subr.mxu0 0.0
        %4407 = vmatpush1.msra.mxu0 0.0
        %4408 = vmatprep.subr.mxu0 0.0
        %4409 = vmatpush1.msra.mxu0 0.0
        %4410 = vmatprep.subr.mxu0 0.0
        %4411 = vmatpush1.msra.mxu0 0.0
        %4412 = vmatprep.subr.mxu0 0.0
        %4413 = vmatpush1.msra.mxu0 0.0
        %4414 = vmatprep.subr.mxu0 0.0
        %4415 = vmatpush1.msra.mxu0 0.0
        %4416 = vmatprep.subr.mxu0 0.0
        %4417 = vmatpush1.msra.mxu0 0.0
        %4418 = vmatprep.subr.mxu0 0.0
        %4419 = vmatpush1.msra.mxu0 0.0
        %4420 = vmatprep.subr.mxu0 0.0
        %4421 = vmatpush1.msra.mxu0 0.0
        %4422 = vmatprep.subr.mxu0 0.0
        %4423 = vmatpush1.msra.mxu0 0.0
        %4424 = vmatprep.subr.mxu0 0.0
        %4425 = vmatpush1.msra.mxu0 0.0
        %4426 = vmatprep.subr.mxu0 0.0
        %4427 = vmatpush1.msra.mxu0 0.0
        %4428 = vmatprep.subr.mxu0 0.0
        %4429 = vmatpush1.msra.mxu0 0.0
        %4430 = vmatprep.subr.mxu0 0.0
        %4431 = vmatpush1.msra.mxu0 0.0
        %4432 = vmatprep.subr.mxu0 0.0
        %4433 = vmatpush1.msra.mxu0 0.0
        %4434 = vmatprep.subr.mxu0 0.0
        %4435 = vmatpush1.msra.mxu0 0.0
        %4436 = vmatprep.subr.mxu0 0.0
        %4437 = vmatpush1.msra.mxu0 0.0
        %4438 = vmatprep.subr.mxu0 0.0
        %4439 = vmatpush1.msra.mxu0 0.0
        %4440 = vmatprep.subr.mxu0 0.0
        %4441 = vmatpush1.msra.mxu0 0.0
        %4442 = vmatprep.subr.mxu0 0.0
        %4443 = vmatpush1.msra.mxu0 0.0
        %4444 = vmatprep.subr.mxu0 0.0
        %4445 = vmatpush1.msra.mxu0 0.0
        %4446 = vmatprep.subr.mxu0 0.0
        %4447 = vmatpush1.msra.mxu0 0.0
        %4448 = vmatprep.subr.mxu0 0.0
        %4449 = vmatpush1.msra.mxu0 0.0
        %4450 = vmatprep.subr.mxu0 0.0
        %4451 = vmatpush1.msra.mxu0 0.0
        %4452 = vmatprep.subr.mxu0 0.0
        %4453 = vmatpush1.msra.mxu0 0.0
        %4454 = vmatprep.subr.mxu0 0.0
        %4455 = vmatpush1.msra.mxu0 0.0
        %4456 = vmatprep.subr.mxu0 0.0
        %4457 = vmatpush1.msra.mxu0 0.0
        %4458 = vmatprep.subr.mxu0 0.0
        %4459 = vmatpush1.msra.mxu0 0.0
        %4460 = vmatprep.subr.mxu0 0.0
        %4461 = vmatpush1.msra.mxu0 0.0
        %4462 = vmatprep.subr.mxu0 0.0
        %4463 = vmatpush1.msra.mxu0 0.0
        %4464 = vmatprep.subr.mxu0 0.0
        %4465 = vmatpush1.msra.mxu0 0.0
        %4466 = vmatprep.mubr.f32.mxu0 0.0
        %4467 = vmatmul.mubr.f32.gmra.mrb[0].mxu0 %v4329
        %v4468 = vpop.f32.mrb[0].mxu0
        %v4469 = vadd.f32 0.0, %v4468
        %v4470 = vpop.f32.mrb[0].mxu0
        %4471 = vdwg.mxu0
        %s4472 = scalar_lea.vmem %s5, 1920
        %v4473 = vld [vmem:[%s4472] sm:$0xff]
        %v4474 = vld [vmem:[%s4472 + $0x8] sm:$0xff]
        %v4475 = vld [vmem:[%s4472 + $0x10] sm:$0xff]
        %v4476 = vld [vmem:[%s4472 + $0x18] sm:$0xff]
        %v4477 = vld [vmem:[%s4472 + $0x20] sm:$0xff]
        %v4478 = vld [vmem:[%s4472 + $0x28] sm:$0xff]
        %v4479 = vld [vmem:[%s4472 + $0x30] sm:$0xff]
        %v4480 = vld [vmem:[%s4472 + $0x38] sm:$0xff]
        %v4481 = vld [vmem:[%s4472 + $0x40] sm:$0xff]
        %v4482 = vld [vmem:[%s4472 + $0x48] sm:$0xff]
        %v4483 = vld [vmem:[%s4472 + $0x50] sm:$0xff]
        %v4484 = vld [vmem:[%s4472 + $0x58] sm:$0xff]
        %v4485 = vld [vmem:[%s4472 + $0x60] sm:$0xff]
        %v4486 = vld [vmem:[%s4472 + $0x68] sm:$0xff]
        %v4487 = vld [vmem:[%s4472 + $0x70] sm:$0xff]
        %v4488 = vld [vmem:[%s4472 + $0x78] sm:$0xff]
        %v4489 = vld [vmem:[%s4472 + $0x80] sm:$0xff]
        %v4490 = vld [vmem:[%s4472 + $0x88] sm:$0xff]
        %v4491 = vld [vmem:[%s4472 + $0x90] sm:$0xff]
        %v4492 = vld [vmem:[%s4472 + $0x98] sm:$0xff]
        %v4493 = vld [vmem:[%s4472 + $0xa0] sm:$0xff]
        %v4494 = vld [vmem:[%s4472 + $0xa8] sm:$0xff]
        %v4495 = vld [vmem:[%s4472 + $0xb0] sm:$0xff]
        %v4496 = vld [vmem:[%s4472 + $0xb8] sm:$0xff]
        %v4497 = vld [vmem:[%s4472 + $0xc0] sm:$0xff]
        %v4498 = vld [vmem:[%s4472 + $0xc8] sm:$0xff]
        %v4499 = vld [vmem:[%s4472 + $0xd0] sm:$0xff]
        %v4500 = vld [vmem:[%s4472 + $0xd8] sm:$0xff]
        %v4501 = vld [vmem:[%s4472 + $0xe0] sm:$0xff]
        %v4502 = vld [vmem:[%s4472 + $0xe8] sm:$0xff]
        %v4503 = vld [vmem:[%s4472 + $0xf0] sm:$0xff]
        %v4504 = vld [vmem:[%s4472 + $0xf8] sm:$0xff]
        %v4505 = vld [vmem:[%s4472 + $0x100] sm:$0xff]
        %v4506 = vld [vmem:[%s4472 + $0x108] sm:$0xff]
        %v4507 = vld [vmem:[%s4472 + $0x110] sm:$0xff]
        %v4508 = vld [vmem:[%s4472 + $0x118] sm:$0xff]
        %v4509 = vld [vmem:[%s4472 + $0x120] sm:$0xff]
        %v4510 = vld [vmem:[%s4472 + $0x128] sm:$0xff]
        %v4511 = vld [vmem:[%s4472 + $0x130] sm:$0xff]
        %v4512 = vld [vmem:[%s4472 + $0x138] sm:$0xff]
        %v4513 = vld [vmem:[%s4472 + $0x140] sm:$0xff]
        %v4514 = vld [vmem:[%s4472 + $0x148] sm:$0xff]
        %v4515 = vld [vmem:[%s4472 + $0x150] sm:$0xff]
        %v4516 = vld [vmem:[%s4472 + $0x158] sm:$0xff]
        %v4517 = vld [vmem:[%s4472 + $0x160] sm:$0xff]
        %v4518 = vld [vmem:[%s4472 + $0x168] sm:$0xff]
        %v4519 = vld [vmem:[%s4472 + $0x170] sm:$0xff]
        %v4520 = vld [vmem:[%s4472 + $0x178] sm:$0xff]
        %v4521 = vld [vmem:[%s4472 + $0x180] sm:$0xff]
        %v4522 = vld [vmem:[%s4472 + $0x188] sm:$0xff]
        %v4523 = vld [vmem:[%s4472 + $0x190] sm:$0xff]
        %v4524 = vld [vmem:[%s4472 + $0x198] sm:$0xff]
        %v4525 = vld [vmem:[%s4472 + $0x1a0] sm:$0xff]
        %v4526 = vld [vmem:[%s4472 + $0x1a8] sm:$0xff]
        %v4527 = vld [vmem:[%s4472 + $0x1b0] sm:$0xff]
        %v4528 = vld [vmem:[%s4472 + $0x1b8] sm:$0xff]
        %v4529 = vld [vmem:[%s4472 + $0x1c0] sm:$0xff]
        %v4530 = vld [vmem:[%s4472 + $0x1c8] sm:$0xff]
        %v4531 = vld [vmem:[%s4472 + $0x1d0] sm:$0xff]
        %v4532 = vld [vmem:[%s4472 + $0x1d8] sm:$0xff]
        %v4533 = vld [vmem:[%s4472 + $0x1e0] sm:$0xff]
        %v4534 = vld [vmem:[%s4472 + $0x1e8] sm:$0xff]
        %v4535 = vld [vmem:[%s4472 + $0x1f0] sm:$0xff]
        %v4536 = vld [vmem:[%s4472 + $0x1f8] sm:$0xff]
        %v4537 = vld [vmem:[%s4472 + $0x200] sm:$0xff]
        %v4538 = vld [vmem:[%s4472 + $0x208] sm:$0xff]
        %v4539 = vld [vmem:[%s4472 + $0x210] sm:$0xff]
        %v4540 = vld [vmem:[%s4472 + $0x218] sm:$0xff]
        %v4541 = vld [vmem:[%s4472 + $0x220] sm:$0xff]
        %v4542 = vld [vmem:[%s4472 + $0x228] sm:$0xff]
        %v4543 = vld [vmem:[%s4472 + $0x230] sm:$0xff]
        %v4544 = vld [vmem:[%s4472 + $0x238] sm:$0xff]
        %v4545 = vld [vmem:[%s4472 + $0x240] sm:$0xff]
        %v4546 = vld [vmem:[%s4472 + $0x248] sm:$0xff]
        %v4547 = vld [vmem:[%s4472 + $0x250] sm:$0xff]
        %v4548 = vld [vmem:[%s4472 + $0x258] sm:$0xff]
        %v4549 = vld [vmem:[%s4472 + $0x260] sm:$0xff]
        %v4550 = vld [vmem:[%s4472 + $0x268] sm:$0xff]
        %v4551 = vld [vmem:[%s4472 + $0x270] sm:$0xff]
        %v4552 = vld [vmem:[%s4472 + $0x278] sm:$0xff]
        %v4554 = vsel %vm3661, %v4469, 0
        %4556 = vmatprep.subr.mxu0 %v4474
        %4557 = vmatpush1.msra.mxu0 %v4473
        %4558 = vmatprep.subr.mxu0 %v4476
        %4559 = vmatpush1.msra.mxu0 %v4475
        %4560 = vmatprep.subr.mxu0 %v4478
        %4561 = vmatpush1.msra.mxu0 %v4477
        %4562 = vmatprep.subr.mxu0 %v4480
        %4563 = vmatpush1.msra.mxu0 %v4479
        %4564 = vmatprep.subr.mxu0 %v4482
        %4565 = vmatpush1.msra.mxu0 %v4481
        %4566 = vmatprep.subr.mxu0 %v4484
        %4567 = vmatpush1.msra.mxu0 %v4483
        %4568 = vmatprep.subr.mxu0 %v4486
        %4569 = vmatpush1.msra.mxu0 %v4485
        %4570 = vmatprep.subr.mxu0 %v4488
        %4571 = vmatpush1.msra.mxu0 %v4487
        %4572 = vmatprep.subr.mxu0 %v4490
        %4573 = vmatpush1.msra.mxu0 %v4489
        %4574 = vmatprep.subr.mxu0 %v4492
        %4575 = vmatpush1.msra.mxu0 %v4491
        %4576 = vmatprep.subr.mxu0 %v4494
        %4577 = vmatpush1.msra.mxu0 %v4493
        %4578 = vmatprep.subr.mxu0 %v4496
        %4579 = vmatpush1.msra.mxu0 %v4495
        %4580 = vmatprep.subr.mxu0 %v4498
        %4581 = vmatpush1.msra.mxu0 %v4497
        %4582 = vmatprep.subr.mxu0 %v4500
        %4583 = vmatpush1.msra.mxu0 %v4499
        %4584 = vmatprep.subr.mxu0 %v4502
        %4585 = vmatpush1.msra.mxu0 %v4501
        %4586 = vmatprep.subr.mxu0 %v4504
        %4587 = vmatpush1.msra.mxu0 %v4503
        %4588 = vmatprep.subr.mxu0 %v4506
        %4589 = vmatpush1.msra.mxu0 %v4505
        %4590 = vmatprep.subr.mxu0 %v4508
        %4591 = vmatpush1.msra.mxu0 %v4507
        %4592 = vmatprep.subr.mxu0 %v4510
        %4593 = vmatpush1.msra.mxu0 %v4509
        %4594 = vmatprep.subr.mxu0 %v4512
        %4595 = vmatpush1.msra.mxu0 %v4511
        %4596 = vmatprep.subr.mxu0 %v4514
        %4597 = vmatpush1.msra.mxu0 %v4513
        %4598 = vmatprep.subr.mxu0 %v4516
        %4599 = vmatpush1.msra.mxu0 %v4515
        %4600 = vmatprep.subr.mxu0 %v4518
        %4601 = vmatpush1.msra.mxu0 %v4517
        %4602 = vmatprep.subr.mxu0 %v4520
        %4603 = vmatpush1.msra.mxu0 %v4519
        %4604 = vmatprep.subr.mxu0 %v4522
        %4605 = vmatpush1.msra.mxu0 %v4521
        %4606 = vmatprep.subr.mxu0 %v4524
        %4607 = vmatpush1.msra.mxu0 %v4523
        %4608 = vmatprep.subr.mxu0 %v4526
        %4609 = vmatpush1.msra.mxu0 %v4525
        %4610 = vmatprep.subr.mxu0 %v4528
        %4611 = vmatpush1.msra.mxu0 %v4527
        %4612 = vmatprep.subr.mxu0 %v4530
        %4613 = vmatpush1.msra.mxu0 %v4529
        %4614 = vmatprep.subr.mxu0 %v4532
        %4615 = vmatpush1.msra.mxu0 %v4531
        %4616 = vmatprep.subr.mxu0 %v4534
        %4617 = vmatpush1.msra.mxu0 %v4533
        %4618 = vmatprep.subr.mxu0 %v4536
        %4619 = vmatpush1.msra.mxu0 %v4535
        %4620 = vmatprep.mubr.f32.mxu0 %v4400
        %4621 = vmatmul.mubr.f32.gmra.mrb[0].mxu0 %v4398
        %v4622 = vpop.f32.mrb[0].mxu0
        %v4623 = vadd.f32 0.0, %v4622
        %v4624 = vpop.f32.mrb[0].mxu0
        %v4625 = vadd.f32 0.0, %v4624
        %4626 = vdwg.mxu0
        %4627 = vmatprep.subr.mxu0 %v4538
        %4628 = vmatpush1.msra.mxu0 %v4537
        %4629 = vmatprep.subr.mxu0 %v4540
        %4630 = vmatpush1.msra.mxu0 %v4539
        %4631 = vmatprep.subr.mxu0 %v4542
        %4632 = vmatpush1.msra.mxu0 %v4541
        %4633 = vmatprep.subr.mxu0 %v4544
        %4634 = vmatpush1.msra.mxu0 %v4543
        %4635 = vmatprep.subr.mxu0 %v4546
        %4636 = vmatpush1.msra.mxu0 %v4545
        %4637 = vmatprep.subr.mxu0 %v4548
        %4638 = vmatpush1.msra.mxu0 %v4547
        %4639 = vmatprep.subr.mxu0 %v4550
        %4640 = vmatpush1.msra.mxu0 %v4549
        %4641 = vmatprep.subr.mxu0 %v4552
        %4642 = vmatpush1.msra.mxu0 %v4551
        %4643 = vmatprep.subr.mxu0 0.0
        %4644 = vmatpush1.msra.mxu0 0.0
        %4645 = vmatprep.subr.mxu0 0.0
        %4646 = vmatpush1.msra.mxu0 0.0
        %4647 = vmatprep.subr.mxu0 0.0
        %4648 = vmatpush1.msra.mxu0 0.0
        %4649 = vmatprep.subr.mxu0 0.0
        %4650 = vmatpush1.msra.mxu0 0.0
        %4651 = vmatprep.subr.mxu0 0.0
        %4652 = vmatpush1.msra.mxu0 0.0
        %4653 = vmatprep.subr.mxu0 0.0
        %4654 = vmatpush1.msra.mxu0 0.0
        %4655 = vmatprep.subr.mxu0 0.0
        %4656 = vmatpush1.msra.mxu0 0.0
        %4657 = vmatprep.subr.mxu0 0.0
        %4658 = vmatpush1.msra.mxu0 0.0
        %4659 = vmatprep.subr.mxu0 0.0
        %4660 = vmatpush1.msra.mxu0 0.0
        %4661 = vmatprep.subr.mxu0 0.0
        %4662 = vmatpush1.msra.mxu0 0.0
        %4663 = vmatprep.subr.mxu0 0.0
        %4664 = vmatpush1.msra.mxu0 0.0
        %4665 = vmatprep.subr.mxu0 0.0
        %4666 = vmatpush1.msra.mxu0 0.0
        %4667 = vmatprep.subr.mxu0 0.0
        %4668 = vmatpush1.msra.mxu0 0.0
        %4669 = vmatprep.subr.mxu0 0.0
        %4670 = vmatpush1.msra.mxu0 0.0
        %4671 = vmatprep.subr.mxu0 0.0
        %4672 = vmatpush1.msra.mxu0 0.0
        %4673 = vmatprep.subr.mxu0 0.0
        %4674 = vmatpush1.msra.mxu0 0.0
        %4675 = vmatprep.subr.mxu0 0.0
        %4676 = vmatpush1.msra.mxu0 0.0
        %4677 = vmatprep.subr.mxu0 0.0
        %4678 = vmatpush1.msra.mxu0 0.0
        %4679 = vmatprep.subr.mxu0 0.0
        %4680 = vmatpush1.msra.mxu0 0.0
        %4681 = vmatprep.subr.mxu0 0.0
        %4682 = vmatpush1.msra.mxu0 0.0
        %4683 = vmatprep.subr.mxu0 0.0
        %4684 = vmatpush1.msra.mxu0 0.0
        %4685 = vmatprep.subr.mxu0 0.0
        %4686 = vmatpush1.msra.mxu0 0.0
        %4687 = vmatprep.subr.mxu0 0.0
        %4688 = vmatpush1.msra.mxu0 0.0
        %4689 = vmatprep.subr.mxu0 0.0
        %4690 = vmatpush1.msra.mxu0 0.0
        %4691 = vmatprep.mubr.f32.mxu0 0.0
        %4692 = vmatmul.mubr.f32.gmra.mrb[0].mxu0 %v4554
        %v4693 = vpop.f32.mrb[0].mxu0
        %v4694 = vadd.f32 %v4623, %v4693
        %v4695 = vpop.f32.mrb[0].mxu0
        %v4696 = vadd.f32 %v4625, %v4695
        %4697 = vdwg.mxu0
        %v4698 = vadd.f32 %v4324, %v4694
        %v4699 = vadd.f32 %v4325, %v4696
        %v4700 = vld [vmem:[#allocation8] sm:$0x3]
        %v4702 = vlaneseq
        %v4703 = vshrl.u32 %v4702, 7
        %v4704 = vsub.s32 0, %v4703
        %v4705 = vrot.slane %v4700, %v4704
        %v4706 = vlaneseq
        %v4707 = vshrl.u32 %v4706, 7
        %v4708 = vsub.s32 1, %v4707
        %v4709 = vrot.slane %v4700, %v4708
        %v4712 = vadd.f32 %v4698, %v4705
        %v4713 = vadd.f32 %v4699, %v4709
        %v4714 = vmax.f32 %v4712, 0.0
        %v4715 = vmax.f32 %v4713, 0.0
        %v4716 = vld [vmem:[#allocation10] sm:$0x3]
        %vm4717 = vcmask 31744
        %v4719 = vsel %vm4717, %v4716, 0
        %v4722 = vsel %vm647, %v4714, 0
        %v4725 = vsel %vm647, %v4715, 0
        %4727 = vmatprep.subr.mxu0 %v4725
        %4728 = vmatpush1.msra.mxu0 %v4722
        %4729 = vmatprep.subr.mxu0 0.0
        %4730 = vmatpush1.msra.mxu0 0.0
        %4731 = vmatprep.subr.mxu0 0.0
        %4732 = vmatpush1.msra.mxu0 0.0
        %4733 = vmatprep.subr.mxu0 0.0
        %4734 = vmatpush1.msra.mxu0 0.0
        %4735 = vmatprep.subr.mxu0 0.0
        %4736 = vmatpush1.msra.mxu0 0.0
        %4737 = vmatprep.subr.mxu0 0.0
        %4738 = vmatpush1.msra.mxu0 0.0
        %4739 = vmatprep.subr.mxu0 0.0
        %4740 = vmatpush1.msra.mxu0 0.0
        %4741 = vmatprep.subr.mxu0 0.0
        %4742 = vmatpush1.msra.mxu0 0.0
        %4743 = vmatprep.subr.mxu0 0.0
        %4744 = vmatpush1.msra.mxu0 0.0
        %4745 = vmatprep.subr.mxu0 0.0
        %4746 = vmatpush1.msra.mxu0 0.0
        %4747 = vmatprep.subr.mxu0 0.0
        %4748 = vmatpush1.msra.mxu0 0.0
        %4749 = vmatprep.subr.mxu0 0.0
        %4750 = vmatpush1.msra.mxu0 0.0
        %4751 = vmatprep.subr.mxu0 0.0
        %4752 = vmatpush1.msra.mxu0 0.0
        %4753 = vmatprep.subr.mxu0 0.0
        %4754 = vmatpush1.msra.mxu0 0.0
        %4755 = vmatprep.subr.mxu0 0.0
        %4756 = vmatpush1.msra.mxu0 0.0
        %4757 = vmatprep.subr.mxu0 0.0
        %4758 = vmatpush1.msra.mxu0 0.0
        %4759 = vmatprep.subr.mxu0 0.0
        %4760 = vmatpush1.msra.mxu0 0.0
        %4761 = vmatprep.subr.mxu0 0.0
        %4762 = vmatpush1.msra.mxu0 0.0
        %4763 = vmatprep.subr.mxu0 0.0
        %4764 = vmatpush1.msra.mxu0 0.0
        %4765 = vmatprep.subr.mxu0 0.0
        %4766 = vmatpush1.msra.mxu0 0.0
        %4767 = vmatprep.subr.mxu0 0.0
        %4768 = vmatpush1.msra.mxu0 0.0
        %4769 = vmatprep.subr.mxu0 0.0
        %4770 = vmatpush1.msra.mxu0 0.0
        %4771 = vmatprep.subr.mxu0 0.0
        %4772 = vmatpush1.msra.mxu0 0.0
        %4773 = vmatprep.subr.mxu0 0.0
        %4774 = vmatpush1.msra.mxu0 0.0
        %4775 = vmatprep.subr.mxu0 0.0
        %4776 = vmatpush1.msra.mxu0 0.0
        %4777 = vmatprep.subr.mxu0 0.0
        %4778 = vmatpush1.msra.mxu0 0.0
        %4779 = vmatprep.subr.mxu0 0.0
        %4780 = vmatpush1.msra.mxu0 0.0
        %4781 = vmatprep.subr.mxu0 0.0
        %4782 = vmatpush1.msra.mxu0 0.0
        %4783 = vmatprep.subr.mxu0 0.0
        %4784 = vmatpush1.msra.mxu0 0.0
        %4785 = vmatprep.subr.mxu0 0.0
        %4786 = vmatpush1.msra.mxu0 0.0
        %4787 = vmatprep.subr.mxu0 0.0
        %4788 = vmatpush1.msra.mxu0 0.0
        %4789 = vmatprep.subr.mxu0 0.0
        %4790 = vmatpush1.msra.mxu0 0.0
        %4791 = vmatprep.mubr.f32.mxu0 0.0
        %4792 = vmatmul.mubr.f32.gmra.mrb[0].mxu0 %v4719
        %v4793 = vpop.f32.mrb[0].mxu0
        %v4794 = vadd.f32 0.0, %v4793
        %v4795 = vpop.f32.mrb[0].mxu0
        %v4796 = vadd.f32 0.0, %v4795
        %4797 = vdwg.mxu0
        %v4798 = vld [vmem:[%s8] sm:$0xff]
        %v4799 = vld [vmem:[%s8 + $0x8] sm:$0xff]
        %v4800 = vld [vmem:[%s8 + $0x10] sm:$0xff]
        %v4801 = vld [vmem:[%s8 + $0x18] sm:$0xff]
        %v4802 = vld [vmem:[%s8 + $0x20] sm:$0xff]
        %v4803 = vld [vmem:[%s8 + $0x28] sm:$0xff]
        %v4804 = vld [vmem:[%s8 + $0x30] sm:$0xff]
        %v4805 = vld [vmem:[%s8 + $0x38] sm:$0xff]
        %v4806 = vld [vmem:[%s8 + $0x40] sm:$0xff]
        %v4807 = vld [vmem:[%s8 + $0x48] sm:$0xff]
        %v4808 = vld [vmem:[%s8 + $0x50] sm:$0xff]
        %v4809 = vld [vmem:[%s8 + $0x58] sm:$0xff]
        %v4810 = vld [vmem:[%s8 + $0x60] sm:$0xff]
        %v4811 = vld [vmem:[%s8 + $0x68] sm:$0xff]
        %v4812 = vld [vmem:[%s8 + $0x70] sm:$0xff]
        %v4813 = vld [vmem:[%s8 + $0x78] sm:$0xff]
        %v4814 = vld [vmem:[%s8 + $0x80] sm:$0xff]
        %v4815 = vld [vmem:[%s8 + $0x88] sm:$0xff]
        %v4816 = vld [vmem:[%s8 + $0x90] sm:$0xff]
        %v4817 = vld [vmem:[%s8 + $0x98] sm:$0xff]
        %v4818 = vld [vmem:[%s8 + $0xa0] sm:$0xff]
        %v4819 = vld [vmem:[%s8 + $0xa8] sm:$0xff]
        %v4820 = vld [vmem:[%s8 + $0xb0] sm:$0xff]
        %v4821 = vld [vmem:[%s8 + $0xb8] sm:$0xff]
        %v4822 = vld [vmem:[%s8 + $0xc0] sm:$0xff]
        %v4823 = vld [vmem:[%s8 + $0xc8] sm:$0xff]
        %v4824 = vld [vmem:[%s8 + $0xd0] sm:$0xff]
        %v4825 = vld [vmem:[%s8 + $0xd8] sm:$0xff]
        %v4826 = vld [vmem:[%s8 + $0xe0] sm:$0xff]
        %v4827 = vld [vmem:[%s8 + $0xe8] sm:$0xff]
        %v4828 = vld [vmem:[%s8 + $0xf0] sm:$0xff]
        %v4829 = vld [vmem:[%s8 + $0xf8] sm:$0xff]
        %s4830 = scalar_lea.vmem [#allocation10], 2
        %v4831 = vld [vmem:[%s4830] sm:$0x3]
        %v4833 = vsel %vm4717, %v4831, 0
        %4835 = vmatprep.subr.mxu0 %v4725
        %4836 = vmatpush1.msra.mxu0 %v4722
        %4837 = vmatprep.subr.mxu0 0.0
        %4838 = vmatpush1.msra.mxu0 0.0
        %4839 = vmatprep.subr.mxu0 0.0
        %4840 = vmatpush1.msra.mxu0 0.0
        %4841 = vmatprep.subr.mxu0 0.0
        %4842 = vmatpush1.msra.mxu0 0.0
        %4843 = vmatprep.subr.mxu0 0.0
        %4844 = vmatpush1.msra.mxu0 0.0
        %4845 = vmatprep.subr.mxu0 0.0
        %4846 = vmatpush1.msra.mxu0 0.0
        %4847 = vmatprep.subr.mxu0 0.0
        %4848 = vmatpush1.msra.mxu0 0.0
        %4849 = vmatprep.subr.mxu0 0.0
        %4850 = vmatpush1.msra.mxu0 0.0
        %4851 = vmatprep.subr.mxu0 0.0
        %4852 = vmatpush1.msra.mxu0 0.0
        %4853 = vmatprep.subr.mxu0 0.0
        %4854 = vmatpush1.msra.mxu0 0.0
        %4855 = vmatprep.subr.mxu0 0.0
        %4856 = vmatpush1.msra.mxu0 0.0
        %4857 = vmatprep.subr.mxu0 0.0
        %4858 = vmatpush1.msra.mxu0 0.0
        %4859 = vmatprep.subr.mxu0 0.0
        %4860 = vmatpush1.msra.mxu0 0.0
        %4861 = vmatprep.subr.mxu0 0.0
        %4862 = vmatpush1.msra.mxu0 0.0
        %4863 = vmatprep.subr.mxu0 0.0
        %4864 = vmatpush1.msra.mxu0 0.0
        %4865 = vmatprep.subr.mxu0 0.0
        %4866 = vmatpush1.msra.mxu0 0.0
        %4867 = vmatprep.subr.mxu0 0.0
        %4868 = vmatpush1.msra.mxu0 0.0
        %4869 = vmatprep.subr.mxu0 0.0
        %4870 = vmatpush1.msra.mxu0 0.0
        %4871 = vmatprep.subr.mxu0 0.0
        %4872 = vmatpush1.msra.mxu0 0.0
        %4873 = vmatprep.subr.mxu0 0.0
        %4874 = vmatpush1.msra.mxu0 0.0
        %4875 = vmatprep.subr.mxu0 0.0
        %4876 = vmatpush1.msra.mxu0 0.0
        %4877 = vmatprep.subr.mxu0 0.0
        %4878 = vmatpush1.msra.mxu0 0.0
        %4879 = vmatprep.subr.mxu0 0.0
        %4880 = vmatpush1.msra.mxu0 0.0
        %4881 = vmatprep.subr.mxu0 0.0
        %4882 = vmatpush1.msra.mxu0 0.0
        %4883 = vmatprep.subr.mxu0 0.0
        %4884 = vmatpush1.msra.mxu0 0.0
        %4885 = vmatprep.subr.mxu0 0.0
        %4886 = vmatpush1.msra.mxu0 0.0
        %4887 = vmatprep.subr.mxu0 0.0
        %4888 = vmatpush1.msra.mxu0 0.0
        %4889 = vmatprep.subr.mxu0 0.0
        %4890 = vmatpush1.msra.mxu0 0.0
        %4891 = vmatprep.subr.mxu0 0.0
        %4892 = vmatpush1.msra.mxu0 0.0
        %4893 = vmatprep.subr.mxu0 0.0
        %4894 = vmatpush1.msra.mxu0 0.0
        %4895 = vmatprep.subr.mxu0 0.0
        %4896 = vmatpush1.msra.mxu0 0.0
        %4897 = vmatprep.subr.mxu0 0.0
        %4898 = vmatpush1.msra.mxu0 0.0
        %4899 = vmatprep.mubr.f32.mxu0 0.0
        %4900 = vmatmul.mubr.f32.gmra.mrb[0].mxu0 %v4833
        %v4901 = vpop.f32.mrb[0].mxu0
        %v4902 = vadd.f32 0.0, %v4901
        %v4903 = vpop.f32.mrb[0].mxu0
        %v4904 = vadd.f32 0.0, %v4903
        %4905 = vdwg.mxu0
        %s4906 = scalar_lea.vmem %s8, 256
        %v4907 = vld [vmem:[%s4906] sm:$0xff]
        %v4908 = vld [vmem:[%s4906 + $0x8] sm:$0xff]
        %v4909 = vld [vmem:[%s4906 + $0x10] sm:$0xff]
        %v4910 = vld [vmem:[%s4906 + $0x18] sm:$0xff]
        %v4911 = vld [vmem:[%s4906 + $0x20] sm:$0xff]
        %v4912 = vld [vmem:[%s4906 + $0x28] sm:$0xff]
        %v4913 = vld [vmem:[%s4906 + $0x30] sm:$0xff]
        %v4914 = vld [vmem:[%s4906 + $0x38] sm:$0xff]
        %v4915 = vld [vmem:[%s4906 + $0x40] sm:$0xff]
        %v4916 = vld [vmem:[%s4906 + $0x48] sm:$0xff]
        %v4917 = vld [vmem:[%s4906 + $0x50] sm:$0xff]
        %v4918 = vld [vmem:[%s4906 + $0x58] sm:$0xff]
        %v4919 = vld [vmem:[%s4906 + $0x60] sm:$0xff]
        %v4920 = vld [vmem:[%s4906 + $0x68] sm:$0xff]
        %v4921 = vld [vmem:[%s4906 + $0x70] sm:$0xff]
        %v4922 = vld [vmem:[%s4906 + $0x78] sm:$0xff]
        %v4923 = vld [vmem:[%s4906 + $0x80] sm:$0xff]
        %v4924 = vld [vmem:[%s4906 + $0x88] sm:$0xff]
        %v4925 = vld [vmem:[%s4906 + $0x90] sm:$0xff]
        %v4926 = vld [vmem:[%s4906 + $0x98] sm:$0xff]
        %v4927 = vld [vmem:[%s4906 + $0xa0] sm:$0xff]
        %v4928 = vld [vmem:[%s4906 + $0xa8] sm:$0xff]
        %v4929 = vld [vmem:[%s4906 + $0xb0] sm:$0xff]
        %v4930 = vld [vmem:[%s4906 + $0xb8] sm:$0xff]
        %v4931 = vld [vmem:[%s4906 + $0xc0] sm:$0xff]
        %v4932 = vld [vmem:[%s4906 + $0xc8] sm:$0xff]
        %v4933 = vld [vmem:[%s4906 + $0xd0] sm:$0xff]
        %v4934 = vld [vmem:[%s4906 + $0xd8] sm:$0xff]
        %v4935 = vld [vmem:[%s4906 + $0xe0] sm:$0xff]
        %v4936 = vld [vmem:[%s4906 + $0xe8] sm:$0xff]
        %v4937 = vld [vmem:[%s4906 + $0xf0] sm:$0xff]
        %v4938 = vld [vmem:[%s4906 + $0xf8] sm:$0xff]
        %4939 = vmatprep.subr.mxu0 0.0
        %4940 = vmatpush1.msra.mxu0 %v4907
        %4941 = vmatprep.subr.mxu0 0.0
        %4942 = vmatpush1.msra.mxu0 %v4908
        %4943 = vmatprep.subr.mxu0 0.0
        %4944 = vmatpush1.msra.mxu0 %v4909
        %4945 = vmatprep.subr.mxu0 0.0
        %4946 = vmatpush1.msra.mxu0 %v4910
        %4947 = vmatprep.subr.mxu0 0.0
        %4948 = vmatpush1.msra.mxu0 %v4911
        %4949 = vmatprep.subr.mxu0 0.0
        %4950 = vmatpush1.msra.mxu0 %v4912
        %4951 = vmatprep.subr.mxu0 0.0
        %4952 = vmatpush1.msra.mxu0 %v4913
        %4953 = vmatprep.subr.mxu0 0.0
        %4954 = vmatpush1.msra.mxu0 %v4914
        %4955 = vmatprep.subr.mxu0 0.0
        %4956 = vmatpush1.msra.mxu0 %v4915
        %4957 = vmatprep.subr.mxu0 0.0
        %4958 = vmatpush1.msra.mxu0 %v4916
        %4959 = vmatprep.subr.mxu0 0.0
        %4960 = vmatpush1.msra.mxu0 %v4917
        %4961 = vmatprep.subr.mxu0 0.0
        %4962 = vmatpush1.msra.mxu0 %v4918
        %4963 = vmatprep.subr.mxu0 0.0
        %4964 = vmatpush1.msra.mxu0 %v4919
        %4965 = vmatprep.subr.mxu0 0.0
        %4966 = vmatpush1.msra.mxu0 %v4920
        %4967 = vmatprep.subr.mxu0 0.0
        %4968 = vmatpush1.msra.mxu0 %v4921
        %4969 = vmatprep.subr.mxu0 0.0
        %4970 = vmatpush1.msra.mxu0 %v4922
        %4971 = vmatprep.subr.mxu0 0.0
        %4972 = vmatpush1.msra.mxu0 %v4923
        %4973 = vmatprep.subr.mxu0 0.0
        %4974 = vmatpush1.msra.mxu0 %v4924
        %4975 = vmatprep.subr.mxu0 0.0
        %4976 = vmatpush1.msra.mxu0 %v4925
        %4977 = vmatprep.subr.mxu0 0.0
        %4978 = vmatpush1.msra.mxu0 %v4926
        %4979 = vmatprep.subr.mxu0 0.0
        %4980 = vmatpush1.msra.mxu0 %v4927
        %4981 = vmatprep.subr.mxu0 0.0
        %4982 = vmatpush1.msra.mxu0 %v4928
        %4983 = vmatprep.subr.mxu0 0.0
        %4984 = vmatpush1.msra.mxu0 %v4929
        %4985 = vmatprep.subr.mxu0 0.0
        %4986 = vmatpush1.msra.mxu0 %v4930
        %4987 = vmatprep.subr.mxu0 0.0
        %4988 = vmatpush1.msra.mxu0 %v4931
        %4989 = vmatprep.subr.mxu0 0.0
        %4990 = vmatpush1.msra.mxu0 %v4932
        %4991 = vmatprep.subr.mxu0 0.0
        %4992 = vmatpush1.msra.mxu0 %v4933
        %4993 = vmatprep.subr.mxu0 0.0
        %4994 = vmatpush1.msra.mxu0 %v4934
        %4995 = vmatprep.subr.mxu0 0.0
        %4996 = vmatpush1.msra.mxu0 %v4935
        %4997 = vmatprep.subr.mxu0 0.0
        %4998 = vmatpush1.msra.mxu0 %v4936
        %4999 = vmatprep.subr.mxu0 0.0
        %5000 = vmatpush1.msra.mxu0 %v4937
        %5001 = vmatprep.subr.mxu0 0.0
        %5002 = vmatpush1.msra.mxu0 %v4938
        %5003 = vmatprep.mubr.f32.mxu0 %v4904
        %5004 = vmatmul.mubr.f32.gmra.mrb[0].mxu0 %v4902
        %v5005 = vpop.f32.mrb[0].mxu0
        %v5006 = vadd.f32 0.0, %v5005
        %v5007 = vpop.f32.mrb[0].mxu0
        %5008 = vdwg.mxu0
        %5009 = vmatprep.subr.mxu0 0.0
        %5010 = vmatpush1.msra.mxu0 %v4798
        %5011 = vmatprep.subr.mxu0 0.0
        %5012 = vmatpush1.msra.mxu0 %v4799
        %5013 = vmatprep.subr.mxu0 0.0
        %5014 = vmatpush1.msra.mxu0 %v4800
        %5015 = vmatprep.subr.mxu0 0.0
        %5016 = vmatpush1.msra.mxu0 %v4801
        %5017 = vmatprep.subr.mxu0 0.0
        %5018 = vmatpush1.msra.mxu0 %v4802
        %5019 = vmatprep.subr.mxu0 0.0
        %5020 = vmatpush1.msra.mxu0 %v4803
        %5021 = vmatprep.subr.mxu0 0.0
        %5022 = vmatpush1.msra.mxu0 %v4804
        %5023 = vmatprep.subr.mxu0 0.0
        %5024 = vmatpush1.msra.mxu0 %v4805
        %5025 = vmatprep.subr.mxu0 0.0
        %5026 = vmatpush1.msra.mxu0 %v4806
        %5027 = vmatprep.subr.mxu0 0.0
        %5028 = vmatpush1.msra.mxu0 %v4807
        %5029 = vmatprep.subr.mxu0 0.0
        %5030 = vmatpush1.msra.mxu0 %v4808
        %5031 = vmatprep.subr.mxu0 0.0
        %5032 = vmatpush1.msra.mxu0 %v4809
        %5033 = vmatprep.subr.mxu0 0.0
        %5034 = vmatpush1.msra.mxu0 %v4810
        %5035 = vmatprep.subr.mxu0 0.0
        %5036 = vmatpush1.msra.mxu0 %v4811
        %5037 = vmatprep.subr.mxu0 0.0
        %5038 = vmatpush1.msra.mxu0 %v4812
        %5039 = vmatprep.subr.mxu0 0.0
        %5040 = vmatpush1.msra.mxu0 %v4813
        %5041 = vmatprep.subr.mxu0 0.0
        %5042 = vmatpush1.msra.mxu0 %v4814
        %5043 = vmatprep.subr.mxu0 0.0
        %5044 = vmatpush1.msra.mxu0 %v4815
        %5045 = vmatprep.subr.mxu0 0.0
        %5046 = vmatpush1.msra.mxu0 %v4816
        %5047 = vmatprep.subr.mxu0 0.0
        %5048 = vmatpush1.msra.mxu0 %v4817
        %5049 = vmatprep.subr.mxu0 0.0
        %5050 = vmatpush1.msra.mxu0 %v4818
        %5051 = vmatprep.subr.mxu0 0.0
        %5052 = vmatpush1.msra.mxu0 %v4819
        %5053 = vmatprep.subr.mxu0 0.0
        %5054 = vmatpush1.msra.mxu0 %v4820
        %5055 = vmatprep.subr.mxu0 0.0
        %5056 = vmatpush1.msra.mxu0 %v4821
        %5057 = vmatprep.subr.mxu0 0.0
        %5058 = vmatpush1.msra.mxu0 %v4822
        %5059 = vmatprep.subr.mxu0 0.0
        %5060 = vmatpush1.msra.mxu0 %v4823
        %5061 = vmatprep.subr.mxu0 0.0
        %5062 = vmatpush1.msra.mxu0 %v4824
        %5063 = vmatprep.subr.mxu0 0.0
        %5064 = vmatpush1.msra.mxu0 %v4825
        %5065 = vmatprep.subr.mxu0 0.0
        %5066 = vmatpush1.msra.mxu0 %v4826
        %5067 = vmatprep.subr.mxu0 0.0
        %5068 = vmatpush1.msra.mxu0 %v4827
        %5069 = vmatprep.subr.mxu0 0.0
        %5070 = vmatpush1.msra.mxu0 %v4828
        %5071 = vmatprep.subr.mxu0 0.0
        %5072 = vmatpush1.msra.mxu0 %v4829
        %5073 = vmatprep.mubr.f32.mxu0 %v4796
        %5074 = vmatmul.mubr.f32.gmra.mrb[0].mxu0 %v4794
        %v5075 = vpop.f32.mrb[0].mxu0
        %v5076 = vadd.f32 %v5006, %v5075
        %v5077 = vpop.f32.mrb[0].mxu0
        %5078 = vdwg.mxu0
        %s5079 = scalar_lea.vmem [#allocation10], 4
        %v5080 = vld [vmem:[%s5079] sm:$0x3]
        %v5082 = vsel %vm4717, %v5080, 0
        %5084 = vmatprep.subr.mxu0 %v4725
        %5085 = vmatpush1.msra.mxu0 %v4722
        %5086 = vmatprep.subr.mxu0 0.0
        %5087 = vmatpush1.msra.mxu0 0.0
        %5088 = vmatprep.subr.mxu0 0.0
        %5089 = vmatpush1.msra.mxu0 0.0
        %5090 = vmatprep.subr.mxu0 0.0
        %5091 = vmatpush1.msra.mxu0 0.0
        %5092 = vmatprep.subr.mxu0 0.0
        %5093 = vmatpush1.msra.mxu0 0.0
        %5094 = vmatprep.subr.mxu0 0.0
        %5095 = vmatpush1.msra.mxu0 0.0
        %5096 = vmatprep.subr.mxu0 0.0
        %5097 = vmatpush1.msra.mxu0 0.0
        %5098 = vmatprep.subr.mxu0 0.0
        %5099 = vmatpush1.msra.mxu0 0.0
        %5100 = vmatprep.subr.mxu0 0.0
        %5101 = vmatpush1.msra.mxu0 0.0
        %5102 = vmatprep.subr.mxu0 0.0
        %5103 = vmatpush1.msra.mxu0 0.0
        %5104 = vmatprep.subr.mxu0 0.0
        %5105 = vmatpush1.msra.mxu0 0.0
        %5106 = vmatprep.subr.mxu0 0.0
        %5107 = vmatpush1.msra.mxu0 0.0
        %5108 = vmatprep.subr.mxu0 0.0
        %5109 = vmatpush1.msra.mxu0 0.0
        %5110 = vmatprep.subr.mxu0 0.0
        %5111 = vmatpush1.msra.mxu0 0.0
        %5112 = vmatprep.subr.mxu0 0.0
        %5113 = vmatpush1.msra.mxu0 0.0
        %5114 = vmatprep.subr.mxu0 0.0
        %5115 = vmatpush1.msra.mxu0 0.0
        %5116 = vmatprep.subr.mxu0 0.0
        %5117 = vmatpush1.msra.mxu0 0.0
        %5118 = vmatprep.subr.mxu0 0.0
        %5119 = vmatpush1.msra.mxu0 0.0
        %5120 = vmatprep.subr.mxu0 0.0
        %5121 = vmatpush1.msra.mxu0 0.0
        %5122 = vmatprep.subr.mxu0 0.0
        %5123 = vmatpush1.msra.mxu0 0.0
        %5124 = vmatprep.subr.mxu0 0.0
        %5125 = vmatpush1.msra.mxu0 0.0
        %5126 = vmatprep.subr.mxu0 0.0
        %5127 = vmatpush1.msra.mxu0 0.0
        %5128 = vmatprep.subr.mxu0 0.0
        %5129 = vmatpush1.msra.mxu0 0.0
        %5130 = vmatprep.subr.mxu0 0.0
        %5131 = vmatpush1.msra.mxu0 0.0
        %5132 = vmatprep.subr.mxu0 0.0
        %5133 = vmatpush1.msra.mxu0 0.0
        %5134 = vmatprep.subr.mxu0 0.0
        %5135 = vmatpush1.msra.mxu0 0.0
        %5136 = vmatprep.subr.mxu0 0.0
        %5137 = vmatpush1.msra.mxu0 0.0
        %5138 = vmatprep.subr.mxu0 0.0
        %5139 = vmatpush1.msra.mxu0 0.0
        %5140 = vmatprep.subr.mxu0 0.0
        %5141 = vmatpush1.msra.mxu0 0.0
        %5142 = vmatprep.subr.mxu0 0.0
        %5143 = vmatpush1.msra.mxu0 0.0
        %5144 = vmatprep.subr.mxu0 0.0
        %5145 = vmatpush1.msra.mxu0 0.0
        %5146 = vmatprep.subr.mxu0 0.0
        %5147 = vmatpush1.msra.mxu0 0.0
        %5148 = vmatprep.mubr.f32.mxu0 0.0
        %5149 = vmatmul.mubr.f32.gmra.mrb[0].mxu0 %v5082
        %v5150 = vpop.f32.mrb[0].mxu0
        %v5151 = vadd.f32 0.0, %v5150
        %v5152 = vpop.f32.mrb[0].mxu0
        %v5153 = vadd.f32 0.0, %v5152
        %5154 = vdwg.mxu0
        %s5155 = scalar_lea.vmem %s8, 512
        %v5156 = vld [vmem:[%s5155] sm:$0xff]
        %v5157 = vld [vmem:[%s5155 + $0x8] sm:$0xff]
        %v5158 = vld [vmem:[%s5155 + $0x10] sm:$0xff]
        %v5159 = vld [vmem:[%s5155 + $0x18] sm:$0xff]
        %v5160 = vld [vmem:[%s5155 + $0x20] sm:$0xff]
        %v5161 = vld [vmem:[%s5155 + $0x28] sm:$0xff]
        %v5162 = vld [vmem:[%s5155 + $0x30] sm:$0xff]
        %v5163 = vld [vmem:[%s5155 + $0x38] sm:$0xff]
        %v5164 = vld [vmem:[%s5155 + $0x40] sm:$0xff]
        %v5165 = vld [vmem:[%s5155 + $0x48] sm:$0xff]
        %v5166 = vld [vmem:[%s5155 + $0x50] sm:$0xff]
        %v5167 = vld [vmem:[%s5155 + $0x58] sm:$0xff]
        %v5168 = vld [vmem:[%s5155 + $0x60] sm:$0xff]
        %v5169 = vld [vmem:[%s5155 + $0x68] sm:$0xff]
        %v5170 = vld [vmem:[%s5155 + $0x70] sm:$0xff]
        %v5171 = vld [vmem:[%s5155 + $0x78] sm:$0xff]
        %v5172 = vld [vmem:[%s5155 + $0x80] sm:$0xff]
        %v5173 = vld [vmem:[%s5155 + $0x88] sm:$0xff]
        %v5174 = vld [vmem:[%s5155 + $0x90] sm:$0xff]
        %v5175 = vld [vmem:[%s5155 + $0x98] sm:$0xff]
        %v5176 = vld [vmem:[%s5155 + $0xa0] sm:$0xff]
        %v5177 = vld [vmem:[%s5155 + $0xa8] sm:$0xff]
        %v5178 = vld [vmem:[%s5155 + $0xb0] sm:$0xff]
        %v5179 = vld [vmem:[%s5155 + $0xb8] sm:$0xff]
        %v5180 = vld [vmem:[%s5155 + $0xc0] sm:$0xff]
        %v5181 = vld [vmem:[%s5155 + $0xc8] sm:$0xff]
        %v5182 = vld [vmem:[%s5155 + $0xd0] sm:$0xff]
        %v5183 = vld [vmem:[%s5155 + $0xd8] sm:$0xff]
        %v5184 = vld [vmem:[%s5155 + $0xe0] sm:$0xff]
        %v5185 = vld [vmem:[%s5155 + $0xe8] sm:$0xff]
        %v5186 = vld [vmem:[%s5155 + $0xf0] sm:$0xff]
        %v5187 = vld [vmem:[%s5155 + $0xf8] sm:$0xff]
        %5188 = vmatprep.subr.mxu0 0.0
        %5189 = vmatpush1.msra.mxu0 %v5156
        %5190 = vmatprep.subr.mxu0 0.0
        %5191 = vmatpush1.msra.mxu0 %v5157
        %5192 = vmatprep.subr.mxu0 0.0
        %5193 = vmatpush1.msra.mxu0 %v5158
        %5194 = vmatprep.subr.mxu0 0.0
        %5195 = vmatpush1.msra.mxu0 %v5159
        %5196 = vmatprep.subr.mxu0 0.0
        %5197 = vmatpush1.msra.mxu0 %v5160
        %5198 = vmatprep.subr.mxu0 0.0
        %5199 = vmatpush1.msra.mxu0 %v5161
        %5200 = vmatprep.subr.mxu0 0.0
        %5201 = vmatpush1.msra.mxu0 %v5162
        %5202 = vmatprep.subr.mxu0 0.0
        %5203 = vmatpush1.msra.mxu0 %v5163
        %5204 = vmatprep.subr.mxu0 0.0
        %5205 = vmatpush1.msra.mxu0 %v5164
        %5206 = vmatprep.subr.mxu0 0.0
        %5207 = vmatpush1.msra.mxu0 %v5165
        %5208 = vmatprep.subr.mxu0 0.0
        %5209 = vmatpush1.msra.mxu0 %v5166
        %5210 = vmatprep.subr.mxu0 0.0
        %5211 = vmatpush1.msra.mxu0 %v5167
        %5212 = vmatprep.subr.mxu0 0.0
        %5213 = vmatpush1.msra.mxu0 %v5168
        %5214 = vmatprep.subr.mxu0 0.0
        %5215 = vmatpush1.msra.mxu0 %v5169
        %5216 = vmatprep.subr.mxu0 0.0
        %5217 = vmatpush1.msra.mxu0 %v5170
        %5218 = vmatprep.subr.mxu0 0.0
        %5219 = vmatpush1.msra.mxu0 %v5171
        %5220 = vmatprep.subr.mxu0 0.0
        %5221 = vmatpush1.msra.mxu0 %v5172
        %5222 = vmatprep.subr.mxu0 0.0
        %5223 = vmatpush1.msra.mxu0 %v5173
        %5224 = vmatprep.subr.mxu0 0.0
        %5225 = vmatpush1.msra.mxu0 %v5174
        %5226 = vmatprep.subr.mxu0 0.0
        %5227 = vmatpush1.msra.mxu0 %v5175
        %5228 = vmatprep.subr.mxu0 0.0
        %5229 = vmatpush1.msra.mxu0 %v5176
        %5230 = vmatprep.subr.mxu0 0.0
        %5231 = vmatpush1.msra.mxu0 %v5177
        %5232 = vmatprep.subr.mxu0 0.0
        %5233 = vmatpush1.msra.mxu0 %v5178
        %5234 = vmatprep.subr.mxu0 0.0
        %5235 = vmatpush1.msra.mxu0 %v5179
        %5236 = vmatprep.subr.mxu0 0.0
        %5237 = vmatpush1.msra.mxu0 %v5180
        %5238 = vmatprep.subr.mxu0 0.0
        %5239 = vmatpush1.msra.mxu0 %v5181
        %5240 = vmatprep.subr.mxu0 0.0
        %5241 = vmatpush1.msra.mxu0 %v5182
        %5242 = vmatprep.subr.mxu0 0.0
        %5243 = vmatpush1.msra.mxu0 %v5183
        %5244 = vmatprep.subr.mxu0 0.0
        %5245 = vmatpush1.msra.mxu0 %v5184
        %5246 = vmatprep.subr.mxu0 0.0
        %5247 = vmatpush1.msra.mxu0 %v5185
        %5248 = vmatprep.subr.mxu0 0.0
        %5249 = vmatpush1.msra.mxu0 %v5186
        %5250 = vmatprep.subr.mxu0 0.0
        %5251 = vmatpush1.msra.mxu0 %v5187
        %5252 = vmatprep.mubr.f32.mxu0 %v5153
        %5253 = vmatmul.mubr.f32.gmra.mrb[0].mxu0 %v5151
        %v5254 = vpop.f32.mrb[0].mxu0
        %v5255 = vadd.f32 0.0, %v5254
        %v5256 = vpop.f32.mrb[0].mxu0
        %5257 = vdwg.mxu0
        %v5258 = vadd.f32 %v5076, %v5255
        %v5259 = vld [vmem:[#allocation11] sm:$0x1]
        %v5261 = vlaneseq
        %v5262 = vshrl.u32 %v5261, 7
        %v5263 = vsub.s32 0, %v5262
        %v5264 = vrot.slane %v5259, %v5263
        %v5266 = vadd.f32 %v5258, %v5264
        %v5267 = vmax.f32 %v5266, 0.0
        %v5268 = vld [vmem:[#allocation13] sm:$0x1]
        %vm5269 = vcmask 15360
        %v5271 = vsel %vm5269, %v5268, 0
        %v5274 = vsel %vm3203, %v5267, 0
        %5276 = vmatprep.subr.mxu0 0.0
        %5277 = vmatpush1.msra.mxu0 %v5274
        %5278 = vmatprep.subr.mxu0 0.0
        %5279 = vmatpush1.msra.mxu0 0.0
        %5280 = vmatprep.subr.mxu0 0.0
        %5281 = vmatpush1.msra.mxu0 0.0
        %5282 = vmatprep.subr.mxu0 0.0
        %5283 = vmatpush1.msra.mxu0 0.0
        %5284 = vmatprep.subr.mxu0 0.0
        %5285 = vmatpush1.msra.mxu0 0.0
        %5286 = vmatprep.subr.mxu0 0.0
        %5287 = vmatpush1.msra.mxu0 0.0
        %5288 = vmatprep.subr.mxu0 0.0
        %5289 = vmatpush1.msra.mxu0 0.0
        %5290 = vmatprep.subr.mxu0 0.0
        %5291 = vmatpush1.msra.mxu0 0.0
        %5292 = vmatprep.subr.mxu0 0.0
        %5293 = vmatpush1.msra.mxu0 0.0
        %5294 = vmatprep.subr.mxu0 0.0
        %5295 = vmatpush1.msra.mxu0 0.0
        %5296 = vmatprep.subr.mxu0 0.0
        %5297 = vmatpush1.msra.mxu0 0.0
        %5298 = vmatprep.subr.mxu0 0.0
        %5299 = vmatpush1.msra.mxu0 0.0
        %5300 = vmatprep.subr.mxu0 0.0
        %5301 = vmatpush1.msra.mxu0 0.0
        %5302 = vmatprep.subr.mxu0 0.0
        %5303 = vmatpush1.msra.mxu0 0.0
        %5304 = vmatprep.subr.mxu0 0.0
        %5305 = vmatpush1.msra.mxu0 0.0
        %5306 = vmatprep.subr.mxu0 0.0
        %5307 = vmatpush1.msra.mxu0 0.0
        %5308 = vmatprep.subr.mxu0 0.0
        %5309 = vmatpush1.msra.mxu0 0.0
        %5310 = vmatprep.subr.mxu0 0.0
        %5311 = vmatpush1.msra.mxu0 0.0
        %5312 = vmatprep.subr.mxu0 0.0
        %5313 = vmatpush1.msra.mxu0 0.0
        %5314 = vmatprep.subr.mxu0 0.0
        %5315 = vmatpush1.msra.mxu0 0.0
        %5316 = vmatprep.subr.mxu0 0.0
        %5317 = vmatpush1.msra.mxu0 0.0
        %5318 = vmatprep.subr.mxu0 0.0
        %5319 = vmatpush1.msra.mxu0 0.0
        %5320 = vmatprep.subr.mxu0 0.0
        %5321 = vmatpush1.msra.mxu0 0.0
        %5322 = vmatprep.subr.mxu0 0.0
        %5323 = vmatpush1.msra.mxu0 0.0
        %5324 = vmatprep.subr.mxu0 0.0
        %5325 = vmatpush1.msra.mxu0 0.0
        %5326 = vmatprep.subr.mxu0 0.0
        %5327 = vmatpush1.msra.mxu0 0.0
        %5328 = vmatprep.subr.mxu0 0.0
        %5329 = vmatpush1.msra.mxu0 0.0
        %5330 = vmatprep.subr.mxu0 0.0
        %5331 = vmatpush1.msra.mxu0 0.0
        %5332 = vmatprep.subr.mxu0 0.0
        %5333 = vmatpush1.msra.mxu0 0.0
        %5334 = vmatprep.subr.mxu0 0.0
        %5335 = vmatpush1.msra.mxu0 0.0
        %5336 = vmatprep.subr.mxu0 0.0
        %5337 = vmatpush1.msra.mxu0 0.0
        %5338 = vmatprep.subr.mxu0 0.0
        %5339 = vmatpush1.msra.mxu0 0.0
        %5340 = vmatprep.mubr.f32.mxu0 0.0
        %5341 = vmatmul.mubr.f32.gmra.mrb[0].mxu0 %v5271
        %v5342 = vpop.f32.mrb[0].mxu0
        %v5343 = vadd.f32 0.0, %v5342
        %v5344 = vpop.f32.mrb[0].mxu0
        %5345 = vdwg.mxu0
        %v5346 = vld [vmem:[%s11] sm:$0xff]
        %v5347 = vld [vmem:[%s11 + $0x8] sm:$0xff]
        %v5348 = vld [vmem:[%s11 + $0x10] sm:$0xff]
        %v5349 = vld [vmem:[%s11 + $0x18] sm:$0xff]
        %v5350 = vld [vmem:[%s11 + $0x20] sm:$0xff]
        %v5351 = vld [vmem:[%s11 + $0x28] sm:$0xff]
        %v5352 = vld [vmem:[%s11 + $0x30] sm:$0xff]
        %v5353 = vld [vmem:[%s11 + $0x38] sm:$0xff]
        %s5354 = scalar_lea.vmem [#allocation13], 1
        %v5355 = vld [vmem:[%s5354] sm:$0x1]
        %v5357 = vsel %vm5269, %v5355, 0
        %5359 = vmatprep.subr.mxu0 0.0
        %5360 = vmatpush1.msra.mxu0 %v5274
        %5361 = vmatprep.subr.mxu0 0.0
        %5362 = vmatpush1.msra.mxu0 0.0
        %5363 = vmatprep.subr.mxu0 0.0
        %5364 = vmatpush1.msra.mxu0 0.0
        %5365 = vmatprep.subr.mxu0 0.0
        %5366 = vmatpush1.msra.mxu0 0.0
        %5367 = vmatprep.subr.mxu0 0.0
        %5368 = vmatpush1.msra.mxu0 0.0
        %5369 = vmatprep.subr.mxu0 0.0
        %5370 = vmatpush1.msra.mxu0 0.0
        %5371 = vmatprep.subr.mxu0 0.0
        %5372 = vmatpush1.msra.mxu0 0.0
        %5373 = vmatprep.subr.mxu0 0.0
        %5374 = vmatpush1.msra.mxu0 0.0
        %5375 = vmatprep.subr.mxu0 0.0
        %5376 = vmatpush1.msra.mxu0 0.0
        %5377 = vmatprep.subr.mxu0 0.0
        %5378 = vmatpush1.msra.mxu0 0.0
        %5379 = vmatprep.subr.mxu0 0.0
        %5380 = vmatpush1.msra.mxu0 0.0
        %5381 = vmatprep.subr.mxu0 0.0
        %5382 = vmatpush1.msra.mxu0 0.0
        %5383 = vmatprep.subr.mxu0 0.0
        %5384 = vmatpush1.msra.mxu0 0.0
        %5385 = vmatprep.subr.mxu0 0.0
        %5386 = vmatpush1.msra.mxu0 0.0
        %5387 = vmatprep.subr.mxu0 0.0
        %5388 = vmatpush1.msra.mxu0 0.0
        %5389 = vmatprep.subr.mxu0 0.0
        %5390 = vmatpush1.msra.mxu0 0.0
        %5391 = vmatprep.subr.mxu0 0.0
        %5392 = vmatpush1.msra.mxu0 0.0
        %5393 = vmatprep.subr.mxu0 0.0
        %5394 = vmatpush1.msra.mxu0 0.0
        %5395 = vmatprep.subr.mxu0 0.0
        %5396 = vmatpush1.msra.mxu0 0.0
        %5397 = vmatprep.subr.mxu0 0.0
        %5398 = vmatpush1.msra.mxu0 0.0
        %5399 = vmatprep.subr.mxu0 0.0
        %5400 = vmatpush1.msra.mxu0 0.0
        %5401 = vmatprep.subr.mxu0 0.0
        %5402 = vmatpush1.msra.mxu0 0.0
        %5403 = vmatprep.subr.mxu0 0.0
        %5404 = vmatpush1.msra.mxu0 0.0
        %5405 = vmatprep.subr.mxu0 0.0
        %5406 = vmatpush1.msra.mxu0 0.0
        %5407 = vmatprep.subr.mxu0 0.0
        %5408 = vmatpush1.msra.mxu0 0.0
        %5409 = vmatprep.subr.mxu0 0.0
        %5410 = vmatpush1.msra.mxu0 0.0
        %5411 = vmatprep.subr.mxu0 0.0
        %5412 = vmatpush1.msra.mxu0 0.0
        %5413 = vmatprep.subr.mxu0 0.0
        %5414 = vmatpush1.msra.mxu0 0.0
        %5415 = vmatprep.subr.mxu0 0.0
        %5416 = vmatpush1.msra.mxu0 0.0
        %5417 = vmatprep.subr.mxu0 0.0
        %5418 = vmatpush1.msra.mxu0 0.0
        %5419 = vmatprep.subr.mxu0 0.0
        %5420 = vmatpush1.msra.mxu0 0.0
        %5421 = vmatprep.subr.mxu0 0.0
        %5422 = vmatpush1.msra.mxu0 0.0
        %5423 = vmatprep.mubr.f32.mxu0 0.0
        %5424 = vmatmul.mubr.f32.gmra.mrb[0].mxu0 %v5357
        %v5425 = vpop.f32.mrb[0].mxu0
        %v5426 = vadd.f32 0.0, %v5425
        %v5427 = vpop.f32.mrb[0].mxu0
        %5428 = vdwg.mxu0
        %s5429 = scalar_lea.vmem %s11, 64
        %v5430 = vld [vmem:[%s5429] sm:$0xff]
        %v5431 = vld [vmem:[%s5429 + $0x8] sm:$0xff]
        %v5432 = vld [vmem:[%s5429 + $0x10] sm:$0xff]
        %v5433 = vld [vmem:[%s5429 + $0x18] sm:$0xff]
        %v5434 = vld [vmem:[%s5429 + $0x20] sm:$0xff]
        %v5435 = vld [vmem:[%s5429 + $0x28] sm:$0xff]
        %v5436 = vld [vmem:[%s5429 + $0x30] sm:$0xff]
        %v5437 = vld [vmem:[%s5429 + $0x38] sm:$0xff]
        %v5439 = vsel %vm3661, %v5426, 0
        %5441 = vmatprep.subr.mxu0 0.0
        %5442 = vmatpush1.msra.mxu0 %v5430
        %5443 = vmatprep.subr.mxu0 0.0
        %5444 = vmatpush1.msra.mxu0 %v5431
        %5445 = vmatprep.subr.mxu0 0.0
        %5446 = vmatpush1.msra.mxu0 %v5432
        %5447 = vmatprep.subr.mxu0 0.0
        %5448 = vmatpush1.msra.mxu0 %v5433
        %5449 = vmatprep.subr.mxu0 0.0
        %5450 = vmatpush1.msra.mxu0 %v5434
        %5451 = vmatprep.subr.mxu0 0.0
        %5452 = vmatpush1.msra.mxu0 %v5435
        %5453 = vmatprep.subr.mxu0 0.0
        %5454 = vmatpush1.msra.mxu0 %v5436
        %5455 = vmatprep.subr.mxu0 0.0
        %5456 = vmatpush1.msra.mxu0 %v5437
        %5457 = vmatprep.subr.mxu0 0.0
        %5458 = vmatpush1.msra.mxu0 0.0
        %5459 = vmatprep.subr.mxu0 0.0
        %5460 = vmatpush1.msra.mxu0 0.0
        %5461 = vmatprep.subr.mxu0 0.0
        %5462 = vmatpush1.msra.mxu0 0.0
        %5463 = vmatprep.subr.mxu0 0.0
        %5464 = vmatpush1.msra.mxu0 0.0
        %5465 = vmatprep.subr.mxu0 0.0
        %5466 = vmatpush1.msra.mxu0 0.0
        %5467 = vmatprep.subr.mxu0 0.0
        %5468 = vmatpush1.msra.mxu0 0.0
        %5469 = vmatprep.subr.mxu0 0.0
        %5470 = vmatpush1.msra.mxu0 0.0
        %5471 = vmatprep.subr.mxu0 0.0
        %5472 = vmatpush1.msra.mxu0 0.0
        %5473 = vmatprep.subr.mxu0 0.0
        %5474 = vmatpush1.msra.mxu0 0.0
        %5475 = vmatprep.subr.mxu0 0.0
        %5476 = vmatpush1.msra.mxu0 0.0
        %5477 = vmatprep.subr.mxu0 0.0
        %5478 = vmatpush1.msra.mxu0 0.0
        %5479 = vmatprep.subr.mxu0 0.0
        %5480 = vmatpush1.msra.mxu0 0.0
        %5481 = vmatprep.subr.mxu0 0.0
        %5482 = vmatpush1.msra.mxu0 0.0
        %5483 = vmatprep.subr.mxu0 0.0
        %5484 = vmatpush1.msra.mxu0 0.0
        %5485 = vmatprep.subr.mxu0 0.0
        %5486 = vmatpush1.msra.mxu0 0.0
        %5487 = vmatprep.subr.mxu0 0.0
        %5488 = vmatpush1.msra.mxu0 0.0
        %5489 = vmatprep.subr.mxu0 0.0
        %5490 = vmatpush1.msra.mxu0 0.0
        %5491 = vmatprep.subr.mxu0 0.0
        %5492 = vmatpush1.msra.mxu0 0.0
        %5493 = vmatprep.subr.mxu0 0.0
        %5494 = vmatpush1.msra.mxu0 0.0
        %5495 = vmatprep.subr.mxu0 0.0
        %5496 = vmatpush1.msra.mxu0 0.0
        %5497 = vmatprep.subr.mxu0 0.0
        %5498 = vmatpush1.msra.mxu0 0.0
        %5499 = vmatprep.subr.mxu0 0.0
        %5500 = vmatpush1.msra.mxu0 0.0
        %5501 = vmatprep.subr.mxu0 0.0
        %5502 = vmatpush1.msra.mxu0 0.0
        %5503 = vmatprep.subr.mxu0 0.0
        %5504 = vmatpush1.msra.mxu0 0.0
        %5505 = vmatprep.mubr.f32.mxu0 0.0
        %5506 = vmatmul.mubr.f32.gmra.mrb[0].mxu0 %v5439
        %v5507 = vpop.f32.mrb[0].mxu0
        %v5508 = vadd.f32 0.0, %v5507
        %v5509 = vpop.f32.mrb[0].mxu0
        %5510 = vdwg.mxu0
        %v5512 = vsel %vm3661, %v5343, 0
        %5514 = vmatprep.subr.mxu0 0.0
        %5515 = vmatpush1.msra.mxu0 %v5346
        %5516 = vmatprep.subr.mxu0 0.0
        %5517 = vmatpush1.msra.mxu0 %v5347
        %5518 = vmatprep.subr.mxu0 0.0
        %5519 = vmatpush1.msra.mxu0 %v5348
        %5520 = vmatprep.subr.mxu0 0.0
        %5521 = vmatpush1.msra.mxu0 %v5349
        %5522 = vmatprep.subr.mxu0 0.0
        %5523 = vmatpush1.msra.mxu0 %v5350
        %5524 = vmatprep.subr.mxu0 0.0
        %5525 = vmatpush1.msra.mxu0 %v5351
        %5526 = vmatprep.subr.mxu0 0.0
        %5527 = vmatpush1.msra.mxu0 %v5352
        %5528 = vmatprep.subr.mxu0 0.0
        %5529 = vmatpush1.msra.mxu0 %v5353
        %5530 = vmatprep.subr.mxu0 0.0
        %5531 = vmatpush1.msra.mxu0 0.0
        %5532 = vmatprep.subr.mxu0 0.0
        %5533 = vmatpush1.msra.mxu0 0.0
        %5534 = vmatprep.subr.mxu0 0.0
        %5535 = vmatpush1.msra.mxu0 0.0
        %5536 = vmatprep.subr.mxu0 0.0
        %5537 = vmatpush1.msra.mxu0 0.0
        %5538 = vmatprep.subr.mxu0 0.0
        %5539 = vmatpush1.msra.mxu0 0.0
        %5540 = vmatprep.subr.mxu0 0.0
        %5541 = vmatpush1.msra.mxu0 0.0
        %5542 = vmatprep.subr.mxu0 0.0
        %5543 = vmatpush1.msra.mxu0 0.0
        %5544 = vmatprep.subr.mxu0 0.0
        %5545 = vmatpush1.msra.mxu0 0.0
        %5546 = vmatprep.subr.mxu0 0.0
        %5547 = vmatpush1.msra.mxu0 0.0
        %5548 = vmatprep.subr.mxu0 0.0
        %5549 = vmatpush1.msra.mxu0 0.0
        %5550 = vmatprep.subr.mxu0 0.0
        %5551 = vmatpush1.msra.mxu0 0.0
        %5552 = vmatprep.subr.mxu0 0.0
        %5553 = vmatpush1.msra.mxu0 0.0
        %5554 = vmatprep.subr.mxu0 0.0
        %5555 = vmatpush1.msra.mxu0 0.0
        %5556 = vmatprep.subr.mxu0 0.0
        %5557 = vmatpush1.msra.mxu0 0.0
        %5558 = vmatprep.subr.mxu0 0.0
        %5559 = vmatpush1.msra.mxu0 0.0
        %5560 = vmatprep.subr.mxu0 0.0
        %5561 = vmatpush1.msra.mxu0 0.0
        %5562 = vmatprep.subr.mxu0 0.0
        %5563 = vmatpush1.msra.mxu0 0.0
        %5564 = vmatprep.subr.mxu0 0.0
        %5565 = vmatpush1.msra.mxu0 0.0
        %5566 = vmatprep.subr.mxu0 0.0
        %5567 = vmatpush1.msra.mxu0 0.0
        %5568 = vmatprep.subr.mxu0 0.0
        %5569 = vmatpush1.msra.mxu0 0.0
        %5570 = vmatprep.subr.mxu0 0.0
        %5571 = vmatpush1.msra.mxu0 0.0
        %5572 = vmatprep.subr.mxu0 0.0
        %5573 = vmatpush1.msra.mxu0 0.0
        %5574 = vmatprep.subr.mxu0 0.0
        %5575 = vmatpush1.msra.mxu0 0.0
        %5576 = vmatprep.subr.mxu0 0.0
        %5577 = vmatpush1.msra.mxu0 0.0
        %5578 = vmatprep.mubr.f32.mxu0 0.0
        %5579 = vmatmul.mubr.f32.gmra.mrb[0].mxu0 %v5512
        %v5580 = vpop.f32.mrb[0].mxu0
        %v5581 = vadd.f32 %v5508, %v5580
        %v5582 = vpop.f32.mrb[0].mxu0
        %5583 = vdwg.mxu0
        %v5584 = vld [vmem:[#allocation14] sm:$0x1]
        %v5585 = vadd.f32 %v5581, %v5584
        %vm5586 = vcmask 253952
        %v5587 = vsel %vm5586, %v5585, 0.0
        %5588 = vadd.xlane.f32.xlu0 %v5587
        %v5589 = vpop.xlane.xlu0 %5588
        %v5590 = vrcp.pop 32.0
        %v5591 = vmul.f32 %v5589, %v5590
        %v5592 = vsub.f32 %v5585, %v5591
        %v5593 = vmul.f32 %v5592, %v5592
        %v5594 = vsel %vm5586, %v5593, 0.0
        %5595 = vadd.xlane.f32.xlu0 %v5594
        %v5596 = vpop.xlane.xlu0 %5595
        %v5597 = vmul.f32 %v5596, %v5590
        %v5598 = vadd.f32 %v5597, 1e-05
        %v5599 = vrsqrt.pop %v5598
        %v5600 = vmul.f32 %v5592, %v5599
        %v5601 = vld [vmem:[#allocation16] sm:$0x1]
        %v5602 = vmul.f32 %v5600, %v5601
        %v5603 = vld [vmem:[#allocation17] sm:$0x1]
        %v5604 = vadd.f32 %v5602, %v5603
        %5605 = vst.msk [vmem:[%s620] sm:$0x1] %vm5586, %v5604
        %s5606 = sand.u32 %s363, 1
        %s5607 = scalar_lea.sflag [#allocation4], %s5606
        %s5608 = sand.u32 %s363, 1
        %s5609 = scalar_lea.vmem [#allocation19], %s5608
        // Predicated region
        $region121: #{cnn_encoder_forward.1} parent=79 // pred_check
          %p5610 = pneg %p373
        $region122: #{cnn_encoder_forward.1} parent=79 // pred_check_branch
          %5612 = sbr.rel (%p5610) target = $region124
        $region123: #{cnn_encoder_forward.1} parent=79 // pred_region
          %s5614 = ssub.s32 16, 16
          %5615 = vsyncadd %s5607, %s5614
          %s5616 = smul.addr %s35, 16
          %s5617 = scalar_lea.hbm %s15, %s5616
          %s5619 = sshll.u32 %s5609, 4
          %s5620 = int_to_ptr.vmem [resolvable:$true] %s5619
          %5622 = dma.vmem_to_hbm [thread:$0]  %s5620, 16, %s5617, %s5607
        $region124: #{cnn_encoder_forward.1} parent=79 // pred_fallthru
          _
      $region80: #{cnn_encoder_forward.1} parent=5 // pred_fallthru
        _
      %p5623 = scmp.le.s32.totalorder 2, %s30
      // Predicated region
      $region125: #{cnn_encoder_forward.1} parent=5 // pred_check
        %p5624 = pneg %p5623
      $region126: #{cnn_encoder_forward.1} parent=5 // pred_check_branch
        %5626 = sbr.rel (%p5624) target = $region128
      $region127: #{cnn_encoder_forward.1} parent=5 // pred_region
        %s5627 = ssub.s32 %s30, 2
        // Predicated region
        $region129: #{cnn_encoder_forward.1} parent=127 // pred_check
          %p5628 = pneg %p379
        $region130: #{cnn_encoder_forward.1} parent=127 // pred_check_branch
          %5630 = sbr.rel (%p5628) target = $region132
        $region131: #{cnn_encoder_forward.1} parent=127 // pred_region
          %s5631 = sand.u32 %s364, 1
          %s5632 = scalar_lea.sflag [#allocation4], %s5631
          %s5633 = sand.u32 %s364, 1
          %s5634 = scalar_lea.vmem [#allocation19], %s5633
          %5635 = dma.done %s5632, 16
        $region132: #{cnn_encoder_forward.1} parent=127 // pred_fallthru
          _
      $region128: #{cnn_encoder_forward.1} parent=5 // pred_fallthru
        _
    $region6: #{cnn_encoder_forward.1} parent=1 // loop_footer
      %s34 = sadd.s32 1, %s30
    $region7: #{cnn_encoder_forward.1} parent=1 // loop_footer_branch
      %29 = sbr.rel target = $region3
    $region8: #{cnn_encoder_forward.1} parent=1 // loop_exit
      _
    %5636 = vsyncpa [#allocation3], 1
    %s5637 = scalar_lea.sflag [#allocation3], 1
    %5638 = vsyncpa %s5637, 1
    %5639 = vsyncpa [#allocation6], 1
    %5640 = vsyncpa [#allocation9], 1
    %5641 = vsyncpa [#allocation12], 1
    %5642 = vsyncpa [#allocation15], 1
    %5643 = vsyncpa [#allocation18], 1
    %5644 = vsyncpa [#allocation4], 1
    %s5645 = scalar_lea.sflag [#allocation4], 1
    %5646 = vsyncpa %s5645, 1

</llo_original>
